<compile_context>
chip_gen: v7x
topology: tpu7x:2x2x1
jax: 0.10.0
libtpu: 0.0.40
codegen_flags: <defaults>
</compile_context>

<pallas_src>
import functools

import jax
import jax.numpy as jnp
from jax.experimental import pallas as pl
from jax.experimental.pallas import tpu as pltpu

EPS = 1e-5


@functools.lru_cache(maxsize=1)
def _vmem_limit():
    """Chip-aware scoped-VMEM limit: ~3/4 of physical capacity, capped at 96 MiB."""
    cap = 64 * 1024 * 1024          # conservative fallback (safe on v7x's 64 MiB per-TC VMEM)
    try:
        cap = int(pltpu.get_tpu_info().vmem_capacity_bytes)
    except Exception:
        pass
    return int(min(96 * 1024 * 1024, max(32 * 1024 * 1024, (cap * 3) // 4)))


# ---------------------------------------------------------------------------
# Kernel 1: per-channel sum / sum-of-squares over a flattened (M, C) slab,
#   tiled over M with resident (1, C) accumulators (single-pass statistics).
# ---------------------------------------------------------------------------
def _channel_sums_kernel(x_ref, sum_ref, sq_ref, *, m_total):
    i = pl.program_id(0)

    @pl.when(i == 0)
    def _init():
        sum_ref[...] = jnp.zeros_like(sum_ref)
        sq_ref[...] = jnp.zeros_like(sq_ref)

    tm = x_ref.shape[0]
    x = x_ref[...].astype(jnp.float32)                            # (TM, C)
    row = jax.lax.broadcasted_iota(jnp.int32, (tm, 1), 0) + i * tm
    x = jnp.where(row < m_total, x, 0.0)                          # mask the ragged tail tile
    sum_ref[...] += jnp.sum(x, axis=0, keepdims=True)
    sq_ref[...] += jnp.sum(x * x, axis=0, keepdims=True)


def channel_stats(x_nhwc):
    """Per-channel (mean, biased var) over N*H*W via a tiled single-pass Pallas reduction."""
    n, h, w, c = x_nhwc.shape
    m = n * h * w
    x2 = x_nhwc.reshape(m, c)
    # ~4 MiB per input buffer (multiple of 8 sublanes) -> near HBM roofline, incl. on v7x.
    row_bytes = x2.dtype.itemsize * c
    tm_cap = max(8, ((4 << 20) // row_bytes) // 8 * 8)
    tm = m if m <= tm_cap else tm_cap
    s, ss = pl.pallas_call(
        functools.partial(_channel_sums_kernel, m_total=m),
        out_shape=(jax.ShapeDtypeStruct((1, c), jnp.float32),
                   jax.ShapeDtypeStruct((1, c), jnp.float32)),
        grid=(pl.cdiv(m, tm),),
        in_specs=[pl.BlockSpec((tm, c), lambda i: (i, 0))],
        out_specs=(pl.BlockSpec((1, c), lambda i: (0, 0)),
                   pl.BlockSpec((1, c), lambda i: (0, 0))),
        compiler_params=pltpu.CompilerParams(
            dimension_semantics=("arbitrary",),
            vmem_limit_bytes=_vmem_limit()),
    )(x2)
    mean = s / m
    var = ss / m - mean * mean                     # single-pass biased variance
    return mean, var


def _bn_scale_shift(mean, var, gamma, beta):
    """Fold training-mode BN into per-channel scale/shift: y = x * scale + shift."""
    var = jnp.maximum(var, 0.0)                    # guard single-pass cancellation
    inv = jax.lax.rsqrt(var + EPS)
    scale = gamma.reshape(1, -1).astype(jnp.float32) * inv
    shift = beta.reshape(1, -1).astype(jnp.float32) - mean * scale
    return scale, shift


# ---------------------------------------------------------------------------
# Shared in-kernel helpers
# ---------------------------------------------------------------------------
def _build_padded_bnrelu(x_ref, scale_ref, shift_ref, xpad_ref):
    """BN(scale/shift) + ReLU on the input tile, written in the compute dtype into the interior
    of the zero-halo VMEM scratch.  Only the 1-px border is zeroed; the interior is always
    fully overwritten, so no full-buffer zeroing is needed."""
    _, h, w, cin = x_ref.shape
    cdtype = xpad_ref.dtype
    xn = jnp.maximum(
        x_ref[0].astype(jnp.float32) * scale_ref[...] + shift_ref[...], 0.0
    ).astype(cdtype)
    zrow = jnp.zeros((1, w + 2, cin), cdtype)
    zcol = jnp.zeros((h, 1, cin), cdtype)
    xpad_ref[0:1, :, :] = zrow
    xpad_ref[h + 1:h + 2, :, :] = zrow
    xpad_ref[1:h + 1, 0:1, :] = zcol
    xpad_ref[1:h + 1, w + 1:w + 2, :] = zcol
    xpad_ref[1:h + 1, 1:w + 1, :] = xn


def _conv3x3_from_pad(xpad_ref, w_ref, *, ho, wo, stride, cin):
    """3x3 conv of the padded activation against w_ref ((9*Cin, TCo)) -> (Ho*Wo, TCo) f32."""
    cdtype = w_ref.dtype
    xp = xpad_ref[...]

    def tap(ky, kx):
        p = jax.lax.slice(
            xp, (ky, kx, 0),
            (ky + (ho - 1) * stride + 1, kx + (wo - 1) * stride + 1, cin),
            (stride, stride, 1))
        return p.reshape(ho * wo, cin).astype(cdtype)

    if cin % 128 == 0:
        # Lane-aligned chunks: one large-K MXU matmul over the im2col tile.
        cols = jnp.concatenate(
            [tap(ky, kx) for ky in range(3) for kx in range(3)], axis=1)
        return jnp.dot(cols, w_ref[...], preferred_element_type=jnp.float32)

    # Cin not 128-aligned: 9 accumulated K=Cin matmuls (no cross-lane concatenation and no
    # (Ho*Wo, 9*Cin) cols buffer in VMEM).
    acc = None
    for t in range(9):
        ky, kx = t // 3, t % 3
        d = jnp.dot(tap(ky, kx), w_ref[t * cin:(t + 1) * cin, :],
                    preferred_element_type=jnp.float32)
        acc = d if acc is None else acc + d
    return acc


# ---------------------------------------------------------------------------
# Kernel 2: conv1 = fused [BN1 + ReLU + zero-halo + 3x3 conv (stride)] with fused
#   per-channel sum / sumsq of its own f32 output (for bn2's batch statistics).
# ---------------------------------------------------------------------------
def _conv1_bnrelu_stats_kernel(x_ref, scale_ref, shift_ref, w_ref,
                               o_ref, sum_ref, sq_ref, xpad_ref, *, stride):
    i = pl.program_id(0)
    _, h, w, cin = x_ref.shape
    cout = w_ref.shape[-1]
    ho = (h - 1) // stride + 1
    wo = (w - 1) // stride + 1

    @pl.when(i == 0)
    def _init():
        sum_ref[...] = jnp.zeros_like(sum_ref)
        sq_ref[...] = jnp.zeros_like(sq_ref)

    _build_padded_bnrelu(x_ref, scale_ref, shift_ref, xpad_ref)
    acc = _conv3x3_from_pad(xpad_ref, w_ref, ho=ho, wo=wo, stride=stride, cin=cin)

    # Fused per-channel statistics of the (f32, pre-cast) conv1 output.
    sum_ref[...] += jnp.sum(acc, axis=0, keepdims=True)
    sq_ref[...] += jnp.sum(acc * acc, axis=0, keepdims=True)

    o_ref[0] = acc.reshape(ho, wo, cout).astype(o_ref.dtype)


def conv3x3_bn_relu_stats(x_nhwc, scale, shift, w_hwio, *, stride=1,
                          out_dtype=None, cdtype=jnp.bfloat16):
    """out = conv3x3(relu(x*scale+shift), stride); also returns per-channel (sum, sumsq) of out."""
    n, h, w, cin = x_nhwc.shape
    cout = w_hwio.shape[-1]
    ho = (h - 1) // stride + 1
    wo = (w - 1) // stride + 1
    out_dtype = x_nhwc.dtype if out_dtype is None else out_dtype
    wflat = w_hwio.reshape(9 * cin, cout).astype(cdtype)

    return pl.pallas_call(
        functools.partial(_conv1_bnrelu_stats_kernel, stride=stride),
        out_shape=(jax.ShapeDtypeStruct((n, ho, wo, cout), out_dtype),
                   jax.ShapeDtypeStruct((1, cout), jnp.float32),
                   jax.ShapeDtypeStruct((1, cout), jnp.float32)),
        grid=(n,),
        in_specs=[
            pl.BlockSpec((1, h, w, cin), lambda i: (i, 0, 0, 0)),
            pl.BlockSpec((1, cin), lambda i: (0, 0)),
            pl.BlockSpec((1, cin), lambda i: (0, 0)),
            pl.BlockSpec((9 * cin, cout), lambda i: (0, 0)),
        ],
        out_specs=(pl.BlockSpec((1, ho, wo, cout), lambda i: (i, 0, 0, 0)),
                   pl.BlockSpec((1, cout), lambda i: (0, 0)),
                   pl.BlockSpec((1, cout), lambda i: (0, 0))),
        scratch_shapes=[pltpu.VMEM((h + 2, w + 2, cin), cdtype)],
        compiler_params=pltpu.CompilerParams(
            # sum/sumsq accumulate across the image axis -> it must be sequential.
            dimension_semantics=("arbitrary",),
            vmem_limit_bytes=_vmem_limit()),
    )(x_nhwc, scale, shift, wflat)


# ---------------------------------------------------------------------------
# Kernel 3: conv2 = fused [BN2 + ReLU + zero-halo + 3x3 conv] + residual
#   (identity add, or projection shortcut BN3 + ReLU + strided 1x1 conv).
#   The padded activation is cached across Cout tiles (rebuilt only at j == 0).
# ---------------------------------------------------------------------------
def _conv2_bnrelu_add_kernel(x_ref, scale_ref, shift_ref, w_ref, res_ref,
                             o_ref, xpad_ref):
    j = pl.program_id(1)
    _, h, w, cin = x_ref.shape
    tco = w_ref.shape[-1]

    @pl.when(j == 0)
    def _build():
        _build_padded_bnrelu(x_ref, scale_ref, shift_ref, xpad_ref)

    acc = _conv3x3_from_pad(xpad_ref, w_ref, ho=h, wo=w, stride=1, cin=cin)
    acc = acc + res_ref[0].astype(jnp.float32).reshape(h * w, tco)
    o_ref[0] = acc.reshape(h, w, tco).astype(o_ref.dtype)


def _conv2_bnrelu_proj_add_kernel(x_ref, scale_ref, shift_ref, w_ref,
                                  sc_ref, sc_scale_ref, sc_shift_ref, scw_ref,
                                  o_ref, xpad_ref, *, sc_stride):
    j = pl.program_id(1)
    _, h, w, cin = x_ref.shape
    tco = w_ref.shape[-1]
    cs = sc_ref.shape[-1]
    cdtype = scw_ref.dtype

    @pl.when(j == 0)
    def _build():
        _build_padded_bnrelu(x_ref, scale_ref, shift_ref, xpad_ref)

    acc = _conv3x3_from_pad(xpad_ref, w_ref, ho=h, wo=w, stride=1, cin=cin)

    # Projection shortcut: BN3 + ReLU + (strided) 1x1 conv fused as one more accumulated matmul.
    # TODO(synk): a one-shot W-deinterleave for sc_stride==2 would be cheaper on XLU-limited chips.
    sc = jnp.maximum(
        sc_ref[0].astype(jnp.float32) * sc_scale_ref[...] + sc_shift_ref[...], 0.0)
    if sc_stride > 1:
        sc = jax.lax.slice(
            sc, (0, 0, 0),
            ((h - 1) * sc_stride + 1, (w - 1) * sc_stride + 1, cs),
            (sc_stride, sc_stride, 1))
    acc = acc + jnp.dot(sc.reshape(h * w, cs).astype(cdtype), scw_ref[...],
                        preferred_element_type=jnp.float32)
    o_ref[0] = acc.reshape(h, w, tco).astype(o_ref.dtype)


def _pick_tco(cout):
    # Tile Cout only when it is large and 128-aligned (keeps the (8,128) layout rule);
    # otherwise use the full extent, which is always a legal block dim.
    if cout > 256 and cout % 128 == 0:
        return 256 if cout % 256 == 0 else 128
    return cout


def _conv2_compiler_params():
    return pltpu.CompilerParams(
        # Cout axis must be sequential so the padded-activation cache built at j == 0 is reused
        # by the remaining Cout tiles of the same image; image axis stays parallel (megacore).
        dimension_semantics=("parallel", "arbitrary"),
        vmem_limit_bytes=_vmem_limit())


def conv3x3_bn_relu_add(x_nhwc, scale, shift, w_hwio, residual, *,
                        out_dtype=None, cdtype=jnp.bfloat16):
    """out = conv3x3(relu(x*scale+shift)) + residual   (stride 1, identity shortcut)."""
    n, h, w, cin = x_nhwc.shape
    cout = w_hwio.shape[-1]
    assert residual.shape == (n, h, w, cout)
    tco = _pick_tco(cout)
    out_dtype = residual.dtype if out_dtype is None else out_dtype
    wflat = w_hwio.reshape(9 * cin, cout).astype(cdtype)

    return pl.pallas_call(
        _conv2_bnrelu_add_kernel,
        out_shape=jax.ShapeDtypeStruct((n, h, w, cout), out_dtype),
        grid=(n, cout // tco),
        in_specs=[
            pl.BlockSpec((1, h, w, cin), lambda i, j: (i, 0, 0, 0)),
            pl.BlockSpec((1, cin), lambda i, j: (0, 0)),
            pl.BlockSpec((1, cin), lambda i, j: (0, 0)),
            pl.BlockSpec((9 * cin, tco), lambda i, j: (0, j)),
            pl.BlockSpec((1, h, w, tco), lambda i, j: (i, 0, 0, j)),
        ],
        out_specs=pl.BlockSpec((1, h, w, tco), lambda i, j: (i, 0, 0, j)),
        scratch_shapes=[pltpu.VMEM((h + 2, w + 2, cin), cdtype)],
        compiler_params=_conv2_compiler_params(),
    )(x_nhwc, scale, shift, wflat, residual)


def conv3x3_bn_relu_proj_add(x_nhwc, scale, shift, w_hwio,
                             sc, sc_scale, sc_shift, sc_w, *,
                             sc_stride=1, out_dtype=None, cdtype=jnp.bfloat16):
    """out = conv3x3(relu(x*scale+shift)) + conv1x1_stride(relu(sc*sc_scale+sc_shift))."""
    n, h, w, cin = x_nhwc.shape
    cout = w_hwio.shape[-1]
    ns, hs, ws, cs = sc.shape
    assert ns == n
    assert (hs - 1) // sc_stride + 1 == h and (ws - 1) // sc_stride + 1 == w
    assert sc_w.shape == (cs, cout)
    tco = _pick_tco(cout)
    out_dtype = sc.dtype if out_dtype is None else out_dtype
    wflat = w_hwio.reshape(9 * cin, cout).astype(cdtype)
    scw = sc_w.astype(cdtype)

    return pl.pallas_call(
        functools.partial(_conv2_bnrelu_proj_add_kernel, sc_stride=sc_stride),
        out_shape=jax.ShapeDtypeStruct((n, h, w, cout), out_dtype),
        grid=(n, cout // tco),
        in_specs=[
            pl.BlockSpec((1, h, w, cin), lambda i, j: (i, 0, 0, 0)),
            pl.BlockSpec((1, cin), lambda i, j: (0, 0)),
            pl.BlockSpec((1, cin), lambda i, j: (0, 0)),
            pl.BlockSpec((9 * cin, tco), lambda i, j: (0, j)),
            pl.BlockSpec((1, hs, ws, cs), lambda i, j: (i, 0, 0, 0)),
            pl.BlockSpec((1, cs), lambda i, j: (0, 0)),
            pl.BlockSpec((1, cs), lambda i, j: (0, 0)),
            pl.BlockSpec((cs, tco), lambda i, j: (0, j)),
        ],
        out_specs=pl.BlockSpec((1, h, w, tco), lambda i, j: (i, 0, 0, j)),
        scratch_shapes=[pltpu.VMEM((h + 2, w + 2, cin), cdtype)],
        compiler_params=_conv2_compiler_params(),
    )(x_nhwc, scale, shift, wflat, sc, sc_scale, sc_shift, scw)


# ---------------------------------------------------------------------------
# Full BasicBlock forward (NCHW in / NCHW out, like the PyTorch module)
# ---------------------------------------------------------------------------
def basic_block_forward(x_nchw, params, stride=1, cdtype=jnp.bfloat16):
    x = jnp.transpose(x_nchw, (0, 2, 3, 1))                 # NCHW -> NHWC (channels -> lanes)
    inplanes = x.shape[-1]
    planes = params["conv1_w"].shape[-1]
    has_proj = (stride != 1) or (inplanes != planes)

    # Per-channel batch statistics of x: shared by bn1 and (when present) the shortcut BN.
    mean_x, var_x = channel_stats(x)
    scale1, shift1 = _bn_scale_shift(mean_x, var_x, params["bn1_gamma"], params["bn1_beta"])

    # conv1(relu(bn1(x))) with BN + ReLU + zero-padding fused into the conv kernel, plus fused
    # per-channel sum/sumsq of its own f32 output (no separate stats pass over out1).
    out1, s1, ss1 = conv3x3_bn_relu_stats(
        x, scale1, shift1, params["conv1_w"], stride=stride, out_dtype=cdtype, cdtype=cdtype)
    n1, ho, wo, _ = out1.shape
    m1 = n1 * ho * wo
    mean1 = s1 / m1
    var1 = ss1 / m1 - mean1 * mean1
    # Note: bn2 stats come from the f32 conv1 accumulator; conv2 normalizes the cdtype-stored
    # out1 with them (tiny mismatch when cdtype=bf16, exact when cdtype=f32).
    scale2, shift2 = _bn_scale_shift(mean1, var1, params["bn2_gamma"], params["bn2_beta"])

    if has_proj:
        scale3, shift3 = _bn_scale_shift(mean_x, var_x,
                                         params["bn3_gamma"], params["bn3_beta"])
        out = conv3x3_bn_relu_proj_add(
            out1, scale2, shift2, params["conv2_w"],
            x, scale3, shift3, params["convs_w"],
            sc_stride=stride, out_dtype=x_nchw.dtype, cdtype=cdtype)
    else:
        out = conv3x3_bn_relu_add(out1, scale2, shift2, params["conv2_w"], x,
                                  out_dtype=x_nchw.dtype, cdtype=cdtype)

    return jnp.transpose(out, (0, 3, 1, 2))                 # NHWC -> NCHW


# ---------------------------------------------------------------------------
# Pure-JAX reference (NCHW, HIGHEST precision convs) for verification
# ---------------------------------------------------------------------------
def ref_forward(x, params, stride=1):
    def bnrelu(x, g, b):
        mean = x.mean(axis=(0, 2, 3), keepdims=True)
        var = ((x - mean) ** 2).mean(axis=(0, 2, 3), keepdims=True)
        y = (x - mean) * jax.lax.rsqrt(var + EPS) * g[None, :, None, None] \
            + b[None, :, None, None]
        return jnp.maximum(y, 0.0)

    def conv(x, w_hwio, s, p):
        return jax.lax.conv_general_dilated(
            x, w_hwio, (s, s), ((p, p), (p, p)),
            dimension_numbers=("NCHW", "HWIO", "NCHW"),
            precision=jax.lax.Precision.HIGHEST)

    inplanes = x.shape[1]
    planes = params["conv1_w"].shape[-1]
    out = bnrelu(x, params["bn1_gamma"], params["bn1_beta"])
    out = conv(out, params["conv1_w"], stride, 1)
    out = bnrelu(out, params["bn2_gamma"], params["bn2_beta"])
    out = conv(out, params["conv2_w"], 1, 1)
    if stride != 1 or inplanes != planes:
        sc = bnrelu(x, params["bn3_gamma"], params["bn3_beta"])
        sc = conv(sc, params["convs_w"].reshape(1, 1, inplanes, planes), stride, 0)
    else:
        sc = x
    return out + sc


if __name__ == "__main__":
    root = jax.random.PRNGKey(0)

    def make_params(key, inplanes, planes):
        ks = jax.random.split(key, 9)
        f32 = jnp.float32
        return {
            "bn1_gamma": 1.0 + 0.1 * jax.random.normal(ks[0], (inplanes,), f32),
            "bn1_beta": 0.1 * jax.random.normal(ks[1], (inplanes,), f32),
            "conv1_w": 0.1 * jax.random.normal(ks[2], (3, 3, inplanes, planes), f32),  # HWIO
            "bn2_gamma": 1.0 + 0.1 * jax.random.normal(ks[3], (planes,), f32),
            "bn2_beta": 0.1 * jax.random.normal(ks[4], (planes,), f32),
            "conv2_w": 0.1 * jax.random.normal(ks[5], (3, 3, planes, planes), f32),    # HWIO
            "bn3_gamma": 1.0 + 0.1 * jax.random.normal(ks[6], (inplanes,), f32),
            "bn3_beta": 0.1 * jax.random.normal(ks[7], (inplanes,), f32),
            "convs_w": 0.1 * jax.random.normal(ks[8], (inplanes, planes), f32),        # 1x1 (I, O)
        }

    fwd = jax.jit(basic_block_forward, static_argnames=("stride", "cdtype"))

    configs = [
        # (N, inplanes, planes, H, W, stride)
        (2, 4, 8, 16, 16, 1),   # projection shortcut (BN -> ReLU -> 1x1 conv) exercised
        (2, 8, 8, 16, 16, 1),   # identity shortcut exercised
    ]
    for cfg_idx, (n, cin, planes, h, w, s) in enumerate(configs):
        kp, kx = jax.random.split(jax.random.fold_in(root, cfg_idx))
        x = jax.random.normal(kx, (n, cin, h, w), jnp.float32)
        params = make_params(kp, cin, planes)

        ref = jax.block_until_ready(ref_forward(x, params, stride=s))

        # f32 compute path: structural correctness check.
        out32 = jax.block_until_ready(fwd(x, params, stride=s, cdtype=jnp.float32))
        assert out32.shape == ref.shape == (n, planes, h // s, w // s), (out32.shape, ref.shape)
        assert bool(jnp.allclose(out32, ref, atol=2e-2, rtol=2e-2)), (
            f"f32 path mismatch (cfg {cfg_idx}), max abs err "
            f"{float(jnp.max(jnp.abs(out32 - ref)))}")

        # bf16 compute path (MXU-native, halved intermediate HBM bytes): looser check.
        out16 = jax.block_until_ready(fwd(x, params, stride=s, cdtype=jnp.bfloat16))
        rel = float(jnp.linalg.norm(out16 - ref) / (jnp.linalg.norm(ref) + 1e-12))
        assert rel < 2.5e-2, f"bf16 path mismatch (cfg {cfg_idx}), rel l2 err {rel}"

    print("KERNEL_OK")
</pallas_src>

<mosaic_0001>
module attributes {stable_mosaic.version = 11 : i64} {
  func.func @_channel_sums_kernel(%arg0: i32, %arg1: memref<512x4xf32, #tpu.memory_space<vmem>>, %arg2: memref<1x4xf32, #tpu.memory_space<vmem>>, %arg3: memref<1x4xf32, #tpu.memory_space<vmem>>) attributes {dimension_semantics = [#tpu.dimension_semantics<arbitrary>], iteration_bounds = array<i64: 1>, scalar_prefetch = 0 : i64, scratch_operands = 0 : i64, tpu.core_type = #tpu.core_type<tc>, window_params = [{transform_indices = @transform_0, window_bounds = array<i64: 512, 4>}, {pipeline_mode = #tpu.pipeline_mode<synchronous>, transform_indices = @transform_1, window_bounds = array<i64: 1, 4>}, {pipeline_mode = #tpu.pipeline_mode<synchronous>, transform_indices = @transform_2, window_bounds = array<i64: 1, 4>}]} {
    %c0_i32 = arith.constant 0 : i32
    %0 = arith.cmpi eq, %arg0, %c0_i32 : i32
    %1 = arith.extui %0 : i1 to i32
    %c0_i32_0 = arith.constant 0 : i32
    %2 = arith.cmpi ne, %1, %c0_i32_0 : i32
    scf.if %2 {
      %cst_13 = arith.constant 0.000000e+00 : f32
      %25 = vector.broadcast %cst_13 : f32 to vector<1x4xf32>
      %c0_14 = arith.constant 0 : index
      %c0_15 = arith.constant 0 : index
      %26 = vector.load %arg2[%c0_14, %c0_15] : memref<1x4xf32, #tpu.memory_space<vmem>>, vector<1x4xf32>
      tpu.vector_store %arg2[%c0_14, %c0_15], %25 {strides = array<i32>} : memref<1x4xf32, #tpu.memory_space<vmem>>, vector<1x4xf32>,
      %cst_16 = arith.constant 0.000000e+00 : f32
      %27 = vector.broadcast %cst_16 : f32 to vector<1x4xf32>
      %c0_17 = arith.constant 0 : index
      %c0_18 = arith.constant 0 : index
      %28 = vector.load %arg3[%c0_17, %c0_18] : memref<1x4xf32, #tpu.memory_space<vmem>>, vector<1x4xf32>
      tpu.vector_store %arg3[%c0_17, %c0_18], %27 {strides = array<i32>} : memref<1x4xf32, #tpu.memory_space<vmem>>, vector<1x4xf32>,
    } else {
    }
    %c0 = arith.constant 0 : index
    %c0_1 = arith.constant 0 : index
    %3 = vector.load %arg1[%c0, %c0_1] : memref<512x4xf32, #tpu.memory_space<vmem>>, vector<512x4xf32>
    %4 = tpu.iota {dimensions = array<i32: 0>} : vector<512x1xi32>
    %c512_i32 = arith.constant 512 : i32
    %5 = arith.muli %arg0, %c512_i32 : i32
    %6 = vector.broadcast %5 : i32 to vector<512x1xi32>
    %7 = arith.addi %4, %6 : vector<512x1xi32>
    %c512_i32_2 = arith.constant 512 : i32
    %8 = vector.broadcast %c512_i32_2 : i32 to vector<512x1xi32>
    %9 = arith.cmpi slt, %7, %8 : vector<512x1xi32>
    %cst = arith.constant 0.000000e+00 : f32
    %10 = vector.shape_cast %9 : vector<512x1xi1> to vector<512x1xi1>
    %11 = vector.broadcast %10 : vector<512x1xi1> to vector<512x4xi1>
    %12 = vector.broadcast %cst : f32 to vector<512x4xf32>
    %13 = arith.select %11, %3, %12 : vector<512x4xi1>, vector<512x4xf32>
    %c0_3 = arith.constant 0 : index
    %c0_4 = arith.constant 0 : index
    %14 = vector.load %arg2[%c0_3, %c0_4] : memref<1x4xf32, #tpu.memory_space<vmem>>, vector<1x4xf32>
    %cst_5 = arith.constant dense<0.000000e+00> : vector<4xf32>
    %15 = vector.multi_reduction <add>, %13, %cst_5 [0] : vector<512x4xf32> to vector<4xf32>
    %16 = vector.shape_cast %15 : vector<4xf32> to vector<1x4xf32>
    %17 = arith.addf %14, %16 : vector<1x4xf32>
    %c0_6 = arith.constant 0 : index
    %c0_7 = arith.constant 0 : index
    %18 = vector.load %arg2[%c0_6, %c0_7] : memref<1x4xf32, #tpu.memory_space<vmem>>, vector<1x4xf32>
    tpu.vector_store %arg2[%c0_6, %c0_7], %17 {strides = array<i32>} : memref<1x4xf32, #tpu.memory_space<vmem>>, vector<1x4xf32>,
    %c0_8 = arith.constant 0 : index
    %c0_9 = arith.constant 0 : index
    %19 = vector.load %arg3[%c0_8, %c0_9] : memref<1x4xf32, #tpu.memory_space<vmem>>, vector<1x4xf32>
    %20 = arith.mulf %13, %13 : vector<512x4xf32>
    %cst_10 = arith.constant dense<0.000000e+00> : vector<4xf32>
    %21 = vector.multi_reduction <add>, %20, %cst_10 [0] : vector<512x4xf32> to vector<4xf32>
    %22 = vector.shape_cast %21 : vector<4xf32> to vector<1x4xf32>
    %23 = arith.addf %19, %22 : vector<1x4xf32>
    %c0_11 = arith.constant 0 : index
    %c0_12 = arith.constant 0 : index
    %24 = vector.load %arg3[%c0_11, %c0_12] : memref<1x4xf32, #tpu.memory_space<vmem>>, vector<1x4xf32>
    tpu.vector_store %arg3[%c0_11, %c0_12], %23 {strides = array<i32>} : memref<1x4xf32, #tpu.memory_space<vmem>>, vector<1x4xf32>,
    return
  }
  func.func @transform_0(%arg0: i32) -> (i32, i32) {
    %c0_i32 = arith.constant 0 : i32
    %c0_i32_0 = arith.constant 0 : i32
    return %arg0, %c0_i32 : i32, i32
  }
  func.func @transform_1(%arg0: i32) -> (i32, i32) {
    %c0_i32 = arith.constant 0 : i32
    %c0_i32_0 = arith.constant 0 : i32
    %c0_i32_1 = arith.constant 0 : i32
    return %c0_i32, %c0_i32_0 : i32, i32
  }
  func.func @transform_2(%arg0: i32) -> (i32, i32) {
    %c0_i32 = arith.constant 0 : i32
    %c0_i32_0 = arith.constant 0 : i32
    %c0_i32_1 = arith.constant 0 : i32
    return %c0_i32, %c0_i32_0 : i32, i32
  }
}

module attributes {stable_mosaic.version = 11 : i64} {
  func.func @_conv2_bnrelu_proj_add_kernel(%arg0: i32, %arg1: i32, %arg2: memref<1x16x16x8xf32, #tpu.memory_space<vmem>>, %arg3: memref<1x8xf32, #tpu.memory_space<vmem>>, %arg4: memref<1x8xf32, #tpu.memory_space<vmem>>, %arg5: memref<72x8xf32, #tpu.memory_space<vmem>>, %arg6: memref<1x16x16x4xf32, #tpu.memory_space<vmem>>, %arg7: memref<1x4xf32, #tpu.memory_space<vmem>>, %arg8: memref<1x4xf32, #tpu.memory_space<vmem>>, %arg9: memref<4x8xf32, #tpu.memory_space<vmem>>, %arg10: memref<1x16x16x8xf32, #tpu.memory_space<vmem>>, %arg11: memref<18x18x8xf32, #tpu.memory_space<vmem>>) attributes {dimension_semantics = [#tpu.dimension_semantics<parallel>, #tpu.dimension_semantics<arbitrary>], iteration_bounds = array<i64: 2, 1>, scalar_prefetch = 0 : i64, scratch_operands = 1 : i64, tpu.core_type = #tpu.core_type<tc>, window_params = [{transform_indices = @transform_0, window_bounds = array<i64: 1, 16, 16, 8>}, {pipeline_mode = #tpu.pipeline_mode<synchronous>, transform_indices = @transform_1, window_bounds = array<i64: 1, 8>}, {pipeline_mode = #tpu.pipeline_mode<synchronous>, transform_indices = @transform_2, window_bounds = array<i64: 1, 8>}, {transform_indices = @transform_3, window_bounds = array<i64: 72, 8>}, {transform_indices = @transform_4, window_bounds = array<i64: 1, 16, 16, 4>}, {pipeline_mode = #tpu.pipeline_mode<synchronous>, transform_indices = @transform_5, window_bounds = array<i64: 1, 4>}, {pipeline_mode = #tpu.pipeline_mode<synchronous>, transform_indices = @transform_6, window_bounds = array<i64: 1, 4>}, {transform_indices = @transform_7, window_bounds = array<i64: 4, 8>}, {transform_indices = @transform_8, window_bounds = array<i64: 1, 16, 16, 8>}]} {
    %c0_i32 = arith.constant 0 : i32
    %0 = arith.cmpi eq, %arg1, %c0_i32 : i32
    %1 = arith.extui %0 : i1 to i32
    %c0_i32_0 = arith.constant 0 : i32
    %2 = arith.cmpi ne, %1, %c0_i32_0 : i32
    scf.if %2 {
      %c0_37 = arith.constant 0 : index
      %c0_38 = arith.constant 0 : index
      %c0_39 = arith.constant 0 : index
      %c0_40 = arith.constant 0 : index
      %68 = vector.load %arg2[%c0_37, %c0_38, %c0_39, %c0_40] : memref<1x16x16x8xf32, #tpu.memory_space<vmem>>, vector<1x16x16x8xf32>
      %69 = vector.shape_cast %68 : vector<1x16x16x8xf32> to vector<16x16x8xf32>
      %c0_41 = arith.constant 0 : index
      %c0_42 = arith.constant 0 : index
      %70 = vector.load %arg3[%c0_41, %c0_42] : memref<1x8xf32, #tpu.memory_space<vmem>>, vector<1x8xf32>
      %71 = vector.shape_cast %70 : vector<1x8xf32> to vector<1x1x8xf32>
      %72 = vector.broadcast %71 : vector<1x1x8xf32> to vector<16x16x8xf32>
      %73 = arith.mulf %69, %72 : vector<16x16x8xf32>
      %c0_43 = arith.constant 0 : index
      %c0_44 = arith.constant 0 : index
      %74 = vector.load %arg4[%c0_43, %c0_44] : memref<1x8xf32, #tpu.memory_space<vmem>>, vector<1x8xf32>
      %75 = vector.shape_cast %74 : vector<1x8xf32> to vector<1x1x8xf32>
      %76 = vector.broadcast %75 : vector<1x1x8xf32> to vector<16x16x8xf32>
      %77 = arith.addf %73, %76 : vector<16x16x8xf32>
      %cst_45 = arith.constant 0.000000e+00 : f32
      %78 = vector.broadcast %cst_45 : f32 to vector<16x16x8xf32>
      %79 = arith.maximumf %77, %78 : vector<16x16x8xf32>
      %cst_46 = arith.constant 0.000000e+00 : f32
      %80 = vector.broadcast %cst_46 : f32 to vector<1x18x8xf32>
      %cst_47 = arith.constant 0.000000e+00 : f32
      %81 = vector.broadcast %cst_47 : f32 to vector<16x1x8xf32>
      %c0_48 = arith.constant 0 : index
      %c0_49 = arith.constant 0 : index
      %c0_50 = arith.constant 0 : index
      %82 = vector.load %arg11[%c0_48, %c0_49, %c0_50] : memref<18x18x8xf32, #tpu.memory_space<vmem>>, vector<1x18x8xf32>
      tpu.vector_store %arg11[%c0_48, %c0_49, %c0_50], %80 {strides = array<i32>} : memref<18x18x8xf32, #tpu.memory_space<vmem>>, vector<1x18x8xf32>,
      %c17 = arith.constant 17 : index
      %c0_51 = arith.constant 0 : index
      %c0_52 = arith.constant 0 : index
      %83 = vector.load %arg11[%c17, %c0_51, %c0_52] : memref<18x18x8xf32, #tpu.memory_space<vmem>>, vector<1x18x8xf32>
      tpu.vector_store %arg11[%c17, %c0_51, %c0_52], %80 {strides = array<i32>} : memref<18x18x8xf32, #tpu.memory_space<vmem>>, vector<1x18x8xf32>,
      %c1 = arith.constant 1 : index
      %c0_53 = arith.constant 0 : index
      %c0_54 = arith.constant 0 : index
      %84 = vector.load %arg11[%c1, %c0_53, %c0_54] : memref<18x18x8xf32, #tpu.memory_space<vmem>>, vector<16x1x8xf32>
      tpu.vector_store %arg11[%c1, %c0_53, %c0_54], %81 {strides = array<i32>} : memref<18x18x8xf32, #tpu.memory_space<vmem>>, vector<16x1x8xf32>,
      %c1_55 = arith.constant 1 : index
      %c17_56 = arith.constant 17 : index
      %c0_57 = arith.constant 0 : index
      %85 = vector.load %arg11[%c1_55, %c17_56, %c0_57] : memref<18x18x8xf32, #tpu.memory_space<vmem>>, vector<16x1x8xf32>
      tpu.vector_store %arg11[%c1_55, %c17_56, %c0_57], %81 {strides = array<i32>} : memref<18x18x8xf32, #tpu.memory_space<vmem>>, vector<16x1x8xf32>,
      %c1_58 = arith.constant 1 : index
      %c1_59 = arith.constant 1 : index
      %c0_60 = arith.constant 0 : index
      %86 = vector.load %arg11[%c1_58, %c1_59, %c0_60] : memref<18x18x8xf32, #tpu.memory_space<vmem>>, vector<16x16x8xf32>
      tpu.vector_store %arg11[%c1_58, %c1_59, %c0_60], %79 {strides = array<i32>} : memref<18x18x8xf32, #tpu.memory_space<vmem>>, vector<16x16x8xf32>,
    } else {
    }
    %c0 = arith.constant 0 : index
    %c0_1 = arith.constant 0 : index
    %c0_2 = arith.constant 0 : index
    %3 = vector.load %arg11[%c0, %c0_1, %c0_2] : memref<18x18x8xf32, #tpu.memory_space<vmem>>, vector<18x18x8xf32>
    %4 = vector.extract_strided_slice %3 {offsets = [0, 0, 0], sizes = [16, 16, 8], strides = [1, 1, 1]} : vector<18x18x8xf32> to vector<16x16x8xf32>
    %5 = vector.shape_cast %4 : vector<16x16x8xf32> to vector<256x8xf32>
    %c0_3 = arith.constant 0 : index
    %c0_4 = arith.constant 0 : index
    %6 = vector.load %arg5[%c0_3, %c0_4] : memref<72x8xf32, #tpu.memory_space<vmem>>, vector<8x8xf32>
    %cst = arith.constant dense<0.000000e+00> : vector<256x8xf32>
    %7 = tpu.matmul %5, %6, %cst {dimension_numbers = #tpu.dot_dimension_numbers<[1], [0], [0], [1], [0, 0, 1, 1], [], []>} : vector<256x8xf32>, vector<8x8xf32>, vector<256x8xf32> -> vector<256x8xf32>
    %8 = vector.extract_strided_slice %3 {offsets = [0, 1, 0], sizes = [16, 16, 8], strides = [1, 1, 1]} : vector<18x18x8xf32> to vector<16x16x8xf32>
    %9 = vector.shape_cast %8 : vector<16x16x8xf32> to vector<256x8xf32>
    %c8 = arith.constant 8 : index
    %c0_5 = arith.constant 0 : index
    %10 = vector.load %arg5[%c8, %c0_5] : memref<72x8xf32, #tpu.memory_space<vmem>>, vector<8x8xf32>
    %cst_6 = arith.constant dense<0.000000e+00> : vector<256x8xf32>
    %11 = tpu.matmul %9, %10, %cst_6 {dimension_numbers = #tpu.dot_dimension_numbers<[1], [0], [0], [1], [0, 0, 1, 1], [], []>} : vector<256x8xf32>, vector<8x8xf32>, vector<256x8xf32> -> vector<256x8xf32>
    %12 = arith.addf %7, %11 : vector<256x8xf32>
    %13 = vector.extract_strided_slice %3 {offsets = [0, 2, 0], sizes = [16, 16, 8], strides = [1, 1, 1]} : vector<18x18x8xf32> to vector<16x16x8xf32>
    %14 = vector.shape_cast %13 : vector<16x16x8xf32> to vector<256x8xf32>
    %c16 = arith.constant 16 : index
    %c0_7 = arith.constant 0 : index
    %15 = vector.load %arg5[%c16, %c0_7] : memref<72x8xf32, #tpu.memory_space<vmem>>, vector<8x8xf32>
    %cst_8 = arith.constant dense<0.000000e+00> : vector<256x8xf32>
    %16 = tpu.matmul %14, %15, %cst_8 {dimension_numbers = #tpu.dot_dimension_numbers<[1], [0], [0], [1], [0, 0, 1, 1], [], []>} : vector<256x8xf32>, vector<8x8xf32>, vector<256x8xf32> -> vector<256x8xf32>
    %17 = arith.addf %12, %16 : vector<256x8xf32>
    %18 = vector.extract_strided_slice %3 {offsets = [1, 0, 0], sizes = [16, 16, 8], strides = [1, 1, 1]} : vector<18x18x8xf32> to vector<16x16x8xf32>
    %19 = vector.shape_cast %18 : vector<16x16x8xf32> to vector<256x8xf32>
    %c24 = arith.constant 24 : index
    %c0_9 = arith.constant 0 : index
    %20 = vector.load %arg5[%c24, %c0_9] : memref<72x8xf32, #tpu.memory_space<vmem>>, vector<8x8xf32>
    %cst_10 = arith.constant dense<0.000000e+00> : vector<256x8xf32>
    %21 = tpu.matmul %19, %20, %cst_10 {dimension_numbers = #tpu.dot_dimension_numbers<[1], [0], [0], [1], [0, 0, 1, 1], [], []>} : vector<256x8xf32>, vector<8x8xf32>, vector<256x8xf32> -> vector<256x8xf32>
    %22 = arith.addf %17, %21 : vector<256x8xf32>
    %23 = vector.extract_strided_slice %3 {offsets = [1, 1, 0], sizes = [16, 16, 8], strides = [1, 1, 1]} : vector<18x18x8xf32> to vector<16x16x8xf32>
    %24 = vector.shape_cast %23 : vector<16x16x8xf32> to vector<256x8xf32>
    %c32 = arith.constant 32 : index
    %c0_11 = arith.constant 0 : index
    %25 = vector.load %arg5[%c32, %c0_11] : memref<72x8xf32, #tpu.memory_space<vmem>>, vector<8x8xf32>
    %cst_12 = arith.constant dense<0.000000e+00> : vector<256x8xf32>
    %26 = tpu.matmul %24, %25, %cst_12 {dimension_numbers = #tpu.dot_dimension_numbers<[1], [0], [0], [1], [0, 0, 1, 1], [], []>} : vector<256x8xf32>, vector<8x8xf32>, vector<256x8xf32> -> vector<256x8xf32>
    %27 = arith.addf %22, %26 : vector<256x8xf32>
    %28 = vector.extract_strided_slice %3 {offsets = [1, 2, 0], sizes = [16, 16, 8], strides = [1, 1, 1]} : vector<18x18x8xf32> to vector<16x16x8xf32>
    %29 = vector.shape_cast %28 : vector<16x16x8xf32> to vector<256x8xf32>
    %c40 = arith.constant 40 : index
    %c0_13 = arith.constant 0 : index
    %30 = vector.load %arg5[%c40, %c0_13] : memref<72x8xf32, #tpu.memory_space<vmem>>, vector<8x8xf32>
    %cst_14 = arith.constant dense<0.000000e+00> : vector<256x8xf32>
    %31 = tpu.matmul %29, %30, %cst_14 {dimension_numbers = #tpu.dot_dimension_numbers<[1], [0], [0], [1], [0, 0, 1, 1], [], []>} : vector<256x8xf32>, vector<8x8xf32>, vector<256x8xf32> -> vector<256x8xf32>
    %32 = arith.addf %27, %31 : vector<256x8xf32>
    %33 = vector.extract_strided_slice %3 {offsets = [2, 0, 0], sizes = [16, 16, 8], strides = [1, 1, 1]} : vector<18x18x8xf32> to vector<16x16x8xf32>
    %34 = vector.shape_cast %33 : vector<16x16x8xf32> to vector<256x8xf32>
    %c48 = arith.constant 48 : index
    %c0_15 = arith.constant 0 : index
    %35 = vector.load %arg5[%c48, %c0_15] : memref<72x8xf32, #tpu.memory_space<vmem>>, vector<8x8xf32>
    %cst_16 = arith.constant dense<0.000000e+00> : vector<256x8xf32>
    %36 = tpu.matmul %34, %35, %cst_16 {dimension_numbers = #tpu.dot_dimension_numbers<[1], [0], [0], [1], [0, 0, 1, 1], [], []>} : vector<256x8xf32>, vector<8x8xf32>, vector<256x8xf32> -> vector<256x8xf32>
    %37 = arith.addf %32, %36 : vector<256x8xf32>
    %38 = vector.extract_strided_slice %3 {offsets = [2, 1, 0], sizes = [16, 16, 8], strides = [1, 1, 1]} : vector<18x18x8xf32> to vector<16x16x8xf32>
    %39 = vector.shape_cast %38 : vector<16x16x8xf32> to vector<256x8xf32>
    %c56 = arith.constant 56 : index
    %c0_17 = arith.constant 0 : index
    %40 = vector.load %arg5[%c56, %c0_17] : memref<72x8xf32, #tpu.memory_space<vmem>>, vector<8x8xf32>
    %cst_18 = arith.constant dense<0.000000e+00> : vector<256x8xf32>
    %41 = tpu.matmul %39, %40, %cst_18 {dimension_numbers = #tpu.dot_dimension_numbers<[1], [0], [0], [1], [0, 0, 1, 1], [], []>} : vector<256x8xf32>, vector<8x8xf32>, vector<256x8xf32> -> vector<256x8xf32>
    %42 = arith.addf %37, %41 : vector<256x8xf32>
    %43 = vector.extract_strided_slice %3 {offsets = [2, 2, 0], sizes = [16, 16, 8], strides = [1, 1, 1]} : vector<18x18x8xf32> to vector<16x16x8xf32>
    %44 = vector.shape_cast %43 : vector<16x16x8xf32> to vector<256x8xf32>
    %c64 = arith.constant 64 : index
    %c0_19 = arith.constant 0 : index
    %45 = vector.load %arg5[%c64, %c0_19] : memref<72x8xf32, #tpu.memory_space<vmem>>, vector<8x8xf32>
    %cst_20 = arith.constant dense<0.000000e+00> : vector<256x8xf32>
    %46 = tpu.matmul %44, %45, %cst_20 {dimension_numbers = #tpu.dot_dimension_numbers<[1], [0], [0], [1], [0, 0, 1, 1], [], []>} : vector<256x8xf32>, vector<8x8xf32>, vector<256x8xf32> -> vector<256x8xf32>
    %47 = arith.addf %42, %46 : vector<256x8xf32>
    %c0_21 = arith.constant 0 : index
    %c0_22 = arith.constant 0 : index
    %c0_23 = arith.constant 0 : index
    %c0_24 = arith.constant 0 : index
    %48 = vector.load %arg6[%c0_21, %c0_22, %c0_23, %c0_24] : memref<1x16x16x4xf32, #tpu.memory_space<vmem>>, vector<1x16x16x4xf32>
    %49 = vector.shape_cast %48 : vector<1x16x16x4xf32> to vector<16x16x4xf32>
    %c0_25 = arith.constant 0 : index
    %c0_26 = arith.constant 0 : index
    %50 = vector.load %arg7[%c0_25, %c0_26] : memref<1x4xf32, #tpu.memory_space<vmem>>, vector<1x4xf32>
    %51 = vector.shape_cast %50 : vector<1x4xf32> to vector<1x1x4xf32>
    %52 = vector.broadcast %51 : vector<1x1x4xf32> to vector<16x16x4xf32>
    %53 = arith.mulf %49, %52 : vector<16x16x4xf32>
    %c0_27 = arith.constant 0 : index
    %c0_28 = arith.constant 0 : index
    %54 = vector.load %arg8[%c0_27, %c0_28] : memref<1x4xf32, #tpu.memory_space<vmem>>, vector<1x4xf32>
    %55 = vector.shape_cast %54 : vector<1x4xf32> to vector<1x1x4xf32>
    %56 = vector.broadcast %55 : vector<1x1x4xf32> to vector<16x16x4xf32>
    %57 = arith.addf %53, %56 : vector<16x16x4xf32>
    %cst_29 = arith.constant 0.000000e+00 : f32
    %58 = vector.broadcast %cst_29 : f32 to vector<16x16x4xf32>
    %59 = arith.maximumf %57, %58 : vector<16x16x4xf32>
    %60 = vector.shape_cast %59 : vector<16x16x4xf32> to vector<256x4xf32>
    %c0_30 = arith.constant 0 : index
    %c0_31 = arith.constant 0 : index
    %61 = vector.load %arg9[%c0_30, %c0_31] : memref<4x8xf32, #tpu.memory_space<vmem>>, vector<4x8xf32>
    %cst_32 = arith.constant dense<0.000000e+00> : vector<256x8xf32>
    %62 = tpu.matmul %60, %61, %cst_32 {dimension_numbers = #tpu.dot_dimension_numbers<[1], [0], [0], [1], [0, 0, 1, 1], [], []>} : vector<256x4xf32>, vector<4x8xf32>, vector<256x8xf32> -> vector<256x8xf32>
    %63 = arith.addf %47, %62 : vector<256x8xf32>
    %64 = vector.shape_cast %63 : vector<256x8xf32> to vector<16x16x8xf32>
    %c0_33 = arith.constant 0 : index
    %c0_34 = arith.constant 0 : index
    %c0_35 = arith.constant 0 : index
    %c0_36 = arith.constant 0 : index
    %65 = vector.load %arg10[%c0_33, %c0_34, %c0_35, %c0_36] : memref<1x16x16x8xf32, #tpu.memory_space<vmem>>, vector<1x16x16x8xf32>
    %66 = vector.shape_cast %65 : vector<1x16x16x8xf32> to vector<16x16x8xf32>
    %67 = vector.shape_cast %64 : vector<16x16x8xf32> to vector<1x16x16x8xf32>
    tpu.vector_store %arg10[%c0_33, %c0_34, %c0_35, %c0_36], %67 {strides = array<i32>} : memref<1x16x16x8xf32, #tpu.memory_space<vmem>>, vector<1x16x16x8xf32>,
    return
  }
  func.func @transform_0(%arg0: i32, %arg1: i32) -> (i32, i32, i32, i32) {
    %c0_i32 = arith.constant 0 : i32
    %c0_i32_0 = arith.constant 0 : i32
    %c0_i32_1 = arith.constant 0 : i32
    %c0_i32_2 = arith.constant 0 : i32
    return %arg0, %c0_i32, %c0_i32_0, %c0_i32_1 : i32, i32, i32, i32
  }
  func.func @transform_1(%arg0: i32, %arg1: i32) -> (i32, i32) {
    %c0_i32 = arith.constant 0 : i32
    %c0_i32_0 = arith.constant 0 : i32
    %c0_i32_1 = arith.constant 0 : i32
    return %c0_i32, %c0_i32_0 : i32, i32
  }
  func.func @transform_2(%arg0: i32, %arg1: i32) -> (i32, i32) {
    %c0_i32 = arith.constant 0 : i32
    %c0_i32_0 = arith.constant 0 : i32
    %c0_i32_1 = arith.constant 0 : i32
    return %c0_i32, %c0_i32_0 : i32, i32
  }
  func.func @transform_3(%arg0: i32, %arg1: i32) -> (i32, i32) {
    %c0_i32 = arith.constant 0 : i32
    %c0_i32_0 = arith.constant 0 : i32
    return %c0_i32, %arg1 : i32, i32
  }
  func.func @transform_4(%arg0: i32, %arg1: i32) -> (i32, i32, i32, i32) {
    %c0_i32 = arith.constant 0 : i32
    %c0_i32_0 = arith.constant 0 : i32
    %c0_i32_1 = arith.constant 0 : i32
    %c0_i32_2 = arith.constant 0 : i32
    return %arg0, %c0_i32, %c0_i32_0, %c0_i32_1 : i32, i32, i32, i32
  }
  func.func @transform_5(%arg0: i32, %arg1: i32) -> (i32, i32) {
    %c0_i32 = arith.constant 0 : i32
    %c0_i32_0 = arith.constant 0 : i32
    %c0_i32_1 = arith.constant 0 : i32
    return %c0_i32, %c0_i32_0 : i32, i32
  }
  func.func @transform_6(%arg0: i32, %arg1: i32) -> (i32, i32) {
    %c0_i32 = arith.constant 0 : i32
    %c0_i32_0 = arith.constant 0 : i32
    %c0_i32_1 = arith.constant 0 : i32
    return %c0_i32, %c0_i32_0 : i32, i32
  }
  func.func @transform_7(%arg0: i32, %arg1: i32) -> (i32, i32) {
    %c0_i32 = arith.constant 0 : i32
    %c0_i32_0 = arith.constant 0 : i32
    return %c0_i32, %arg1 : i32, i32
  }
  func.func @transform_8(%arg0: i32, %arg1: i32) -> (i32, i32, i32, i32) {
    %c0_i32 = arith.constant 0 : i32
    %c0_i32_0 = arith.constant 0 : i32
    %c0_i32_1 = arith.constant 0 : i32
    return %arg0, %c0_i32, %c0_i32_0, %arg1 : i32, i32, i32, i32
  }
}

module attributes {stable_mosaic.version = 11 : i64} {
  func.func @_conv1_bnrelu_stats_kernel(%arg0: i32, %arg1: memref<1x16x16x4xf32, #tpu.memory_space<vmem>>, %arg2: memref<1x4xf32, #tpu.memory_space<vmem>>, %arg3: memref<1x4xf32, #tpu.memory_space<vmem>>, %arg4: memref<36x8xf32, #tpu.memory_space<vmem>>, %arg5: memref<1x16x16x8xf32, #tpu.memory_space<vmem>>, %arg6: memref<1x8xf32, #tpu.memory_space<vmem>>, %arg7: memref<1x8xf32, #tpu.memory_space<vmem>>, %arg8: memref<18x18x4xf32, #tpu.memory_space<vmem>>) attributes {dimension_semantics = [#tpu.dimension_semantics<arbitrary>], iteration_bounds = array<i64: 2>, scalar_prefetch = 0 : i64, scratch_operands = 1 : i64, tpu.core_type = #tpu.core_type<tc>, window_params = [{transform_indices = @transform_0, window_bounds = array<i64: 1, 16, 16, 4>}, {pipeline_mode = #tpu.pipeline_mode<synchronous>, transform_indices = @transform_1, window_bounds = array<i64: 1, 4>}, {pipeline_mode = #tpu.pipeline_mode<synchronous>, transform_indices = @transform_2, window_bounds = array<i64: 1, 4>}, {pipeline_mode = #tpu.pipeline_mode<synchronous>, transform_indices = @transform_3, window_bounds = array<i64: 36, 8>}, {transform_indices = @transform_4, window_bounds = array<i64: 1, 16, 16, 8>}, {pipeline_mode = #tpu.pipeline_mode<synchronous>, transform_indices = @transform_5, window_bounds = array<i64: 1, 8>}, {pipeline_mode = #tpu.pipeline_mode<synchronous>, transform_indices = @transform_6, window_bounds = array<i64: 1, 8>}]} {
    %c0_i32 = arith.constant 0 : i32
    %0 = arith.cmpi eq, %arg0, %c0_i32 : i32
    %1 = arith.extui %0 : i1 to i32
    %c0_i32_0 = arith.constant 0 : i32
    %2 = arith.cmpi ne, %1, %c0_i32_0 : i32
    scf.if %2 {
      %cst_59 = arith.constant 0.000000e+00 : f32
      %82 = vector.broadcast %cst_59 : f32 to vector<1x8xf32>
      %c0_60 = arith.constant 0 : index
      %c0_61 = arith.constant 0 : index
      %83 = vector.load %arg6[%c0_60, %c0_61] : memref<1x8xf32, #tpu.memory_space<vmem>>, vector<1x8xf32>
      tpu.vector_store %arg6[%c0_60, %c0_61], %82 {strides = array<i32>} : memref<1x8xf32, #tpu.memory_space<vmem>>, vector<1x8xf32>,
      %cst_62 = arith.constant 0.000000e+00 : f32
      %84 = vector.broadcast %cst_62 : f32 to vector<1x8xf32>
      %c0_63 = arith.constant 0 : index
      %c0_64 = arith.constant 0 : index
      %85 = vector.load %arg7[%c0_63, %c0_64] : memref<1x8xf32, #tpu.memory_space<vmem>>, vector<1x8xf32>
      tpu.vector_store %arg7[%c0_63, %c0_64], %84 {strides = array<i32>} : memref<1x8xf32, #tpu.memory_space<vmem>>, vector<1x8xf32>,
    } else {
    }
    %c0 = arith.constant 0 : index
    %c0_1 = arith.constant 0 : index
    %c0_2 = arith.constant 0 : index
    %c0_3 = arith.constant 0 : index
    %3 = vector.load %arg1[%c0, %c0_1, %c0_2, %c0_3] : memref<1x16x16x4xf32, #tpu.memory_space<vmem>>, vector<1x16x16x4xf32>
    %4 = vector.shape_cast %3 : vector<1x16x16x4xf32> to vector<16x16x4xf32>
    %c0_4 = arith.constant 0 : index
    %c0_5 = arith.constant 0 : index
    %5 = vector.load %arg2[%c0_4, %c0_5] : memref<1x4xf32, #tpu.memory_space<vmem>>, vector<1x4xf32>
    %6 = vector.shape_cast %5 : vector<1x4xf32> to vector<1x1x4xf32>
    %7 = vector.broadcast %6 : vector<1x1x4xf32> to vector<16x16x4xf32>
    %8 = arith.mulf %4, %7 : vector<16x16x4xf32>
    %c0_6 = arith.constant 0 : index
    %c0_7 = arith.constant 0 : index
    %9 = vector.load %arg3[%c0_6, %c0_7] : memref<1x4xf32, #tpu.memory_space<vmem>>, vector<1x4xf32>
    %10 = vector.shape_cast %9 : vector<1x4xf32> to vector<1x1x4xf32>
    %11 = vector.broadcast %10 : vector<1x1x4xf32> to vector<16x16x4xf32>
    %12 = arith.addf %8, %11 : vector<16x16x4xf32>
    %cst = arith.constant 0.000000e+00 : f32
    %13 = vector.broadcast %cst : f32 to vector<16x16x4xf32>
    %14 = arith.maximumf %12, %13 : vector<16x16x4xf32>
    %cst_8 = arith.constant 0.000000e+00 : f32
    %15 = vector.broadcast %cst_8 : f32 to vector<1x18x4xf32>
    %cst_9 = arith.constant 0.000000e+00 : f32
    %16 = vector.broadcast %cst_9 : f32 to vector<16x1x4xf32>
    %c0_10 = arith.constant 0 : index
    %c0_11 = arith.constant 0 : index
    %c0_12 = arith.constant 0 : index
    %17 = vector.load %arg8[%c0_10, %c0_11, %c0_12] : memref<18x18x4xf32, #tpu.memory_space<vmem>>, vector<1x18x4xf32>
    tpu.vector_store %arg8[%c0_10, %c0_11, %c0_12], %15 {strides = array<i32>} : memref<18x18x4xf32, #tpu.memory_space<vmem>>, vector<1x18x4xf32>,
    %c17 = arith.constant 17 : index
    %c0_13 = arith.constant 0 : index
    %c0_14 = arith.constant 0 : index
    %18 = vector.load %arg8[%c17, %c0_13, %c0_14] : memref<18x18x4xf32, #tpu.memory_space<vmem>>, vector<1x18x4xf32>
    tpu.vector_store %arg8[%c17, %c0_13, %c0_14], %15 {strides = array<i32>} : memref<18x18x4xf32, #tpu.memory_space<vmem>>, vector<1x18x4xf32>,
    %c1 = arith.constant 1 : index
    %c0_15 = arith.constant 0 : index
    %c0_16 = arith.constant 0 : index
    %19 = vector.load %arg8[%c1, %c0_15, %c0_16] : memref<18x18x4xf32, #tpu.memory_space<vmem>>, vector<16x1x4xf32>
    tpu.vector_store %arg8[%c1, %c0_15, %c0_16], %16 {strides = array<i32>} : memref<18x18x4xf32, #tpu.memory_space<vmem>>, vector<16x1x4xf32>,
    %c1_17 = arith.constant 1 : index
    %c17_18 = arith.constant 17 : index
    %c0_19 = arith.constant 0 : index
    %20 = vector.load %arg8[%c1_17, %c17_18, %c0_19] : memref<18x18x4xf32, #tpu.memory_space<vmem>>, vector<16x1x4xf32>
    tpu.vector_store %arg8[%c1_17, %c17_18, %c0_19], %16 {strides = array<i32>} : memref<18x18x4xf32, #tpu.memory_space<vmem>>, vector<16x1x4xf32>,
    %c1_20 = arith.constant 1 : index
    %c1_21 = arith.constant 1 : index
    %c0_22 = arith.constant 0 : index
    %21 = vector.load %arg8[%c1_20, %c1_21, %c0_22] : memref<18x18x4xf32, #tpu.memory_space<vmem>>, vector<16x16x4xf32>
    tpu.vector_store %arg8[%c1_20, %c1_21, %c0_22], %14 {strides = array<i32>} : memref<18x18x4xf32, #tpu.memory_space<vmem>>, vector<16x16x4xf32>,
    %c0_23 = arith.constant 0 : index
    %c0_24 = arith.constant 0 : index
    %c0_25 = arith.constant 0 : index
    %22 = vector.load %arg8[%c0_23, %c0_24, %c0_25] : memref<18x18x4xf32, #tpu.memory_space<vmem>>, vector<18x18x4xf32>
    %23 = vector.extract_strided_slice %22 {offsets = [0, 0, 0], sizes = [16, 16, 4], strides = [1, 1, 1]} : vector<18x18x4xf32> to vector<16x16x4xf32>
    %24 = vector.shape_cast %23 : vector<16x16x4xf32> to vector<256x4xf32>
    %c0_26 = arith.constant 0 : index
    %c0_27 = arith.constant 0 : index
    %25 = vector.load %arg4[%c0_26, %c0_27] : memref<36x8xf32, #tpu.memory_space<vmem>>, vector<4x8xf32>
    %cst_28 = arith.constant dense<0.000000e+00> : vector<256x8xf32>
    %26 = tpu.matmul %24, %25, %cst_28 {dimension_numbers = #tpu.dot_dimension_numbers<[1], [0], [0], [1], [0, 0, 1, 1], [], []>} : vector<256x4xf32>, vector<4x8xf32>, vector<256x8xf32> -> vector<256x8xf32>
    %27 = vector.extract_strided_slice %22 {offsets = [0, 1, 0], sizes = [16, 16, 4], strides = [1, 1, 1]} : vector<18x18x4xf32> to vector<16x16x4xf32>
    %28 = vector.shape_cast %27 : vector<16x16x4xf32> to vector<256x4xf32>
    %c4 = arith.constant 4 : index
    %c0_29 = arith.constant 0 : index
    %29 = vector.load %arg4[%c4, %c0_29] : memref<36x8xf32, #tpu.memory_space<vmem>>, vector<4x8xf32>
    %cst_30 = arith.constant dense<0.000000e+00> : vector<256x8xf32>
    %30 = tpu.matmul %28, %29, %cst_30 {dimension_numbers = #tpu.dot_dimension_numbers<[1], [0], [0], [1], [0, 0, 1, 1], [], []>} : vector<256x4xf32>, vector<4x8xf32>, vector<256x8xf32> -> vector<256x8xf32>
    %31 = arith.addf %26, %30 : vector<256x8xf32>
    %32 = vector.extract_strided_slice %22 {offsets = [0, 2, 0], sizes = [16, 16, 4], strides = [1, 1, 1]} : vector<18x18x4xf32> to vector<16x16x4xf32>
    %33 = vector.shape_cast %32 : vector<16x16x4xf32> to vector<256x4xf32>
    %c8 = arith.constant 8 : index
    %c0_31 = arith.constant 0 : index
    %34 = vector.load %arg4[%c8, %c0_31] : memref<36x8xf32, #tpu.memory_space<vmem>>, vector<4x8xf32>
    %cst_32 = arith.constant dense<0.000000e+00> : vector<256x8xf32>
    %35 = tpu.matmul %33, %34, %cst_32 {dimension_numbers = #tpu.dot_dimension_numbers<[1], [0], [0], [1], [0, 0, 1, 1], [], []>} : vector<256x4xf32>, vector<4x8xf32>, vector<256x8xf32> -> vector<256x8xf32>
    %36 = arith.addf %31, %35 : vector<256x8xf32>
    %37 = vector.extract_strided_slice %22 {offsets = [1, 0, 0], sizes = [16, 16, 4], strides = [1, 1, 1]} : vector<18x18x4xf32> to vector<16x16x4xf32>
    %38 = vector.shape_cast %37 : vector<16x16x4xf32> to vector<256x4xf32>
    %c12 = arith.constant 12 : index
    %c0_33 = arith.constant 0 : index
    %39 = vector.load %arg4[%c12, %c0_33] : memref<36x8xf32, #tpu.memory_space<vmem>>, vector<4x8xf32>
    %cst_34 = arith.constant dense<0.000000e+00> : vector<256x8xf32>
    %40 = tpu.matmul %38, %39, %cst_34 {dimension_numbers = #tpu.dot_dimension_numbers<[1], [0], [0], [1], [0, 0, 1, 1], [], []>} : vector<256x4xf32>, vector<4x8xf32>, vector<256x8xf32> -> vector<256x8xf32>
    %41 = arith.addf %36, %40 : vector<256x8xf32>
    %42 = vector.extract_strided_slice %22 {offsets = [1, 1, 0], sizes = [16, 16, 4], strides = [1, 1, 1]} : vector<18x18x4xf32> to vector<16x16x4xf32>
    %43 = vector.shape_cast %42 : vector<16x16x4xf32> to vector<256x4xf32>
    %c16 = arith.constant 16 : index
    %c0_35 = arith.constant 0 : index
    %44 = vector.load %arg4[%c16, %c0_35] : memref<36x8xf32, #tpu.memory_space<vmem>>, vector<4x8xf32>
    %cst_36 = arith.constant dense<0.000000e+00> : vector<256x8xf32>
    %45 = tpu.matmul %43, %44, %cst_36 {dimension_numbers = #tpu.dot_dimension_numbers<[1], [0], [0], [1], [0, 0, 1, 1], [], []>} : vector<256x4xf32>, vector<4x8xf32>, vector<256x8xf32> -> vector<256x8xf32>
    %46 = arith.addf %41, %45 : vector<256x8xf32>
    %47 = vector.extract_strided_slice %22 {offsets = [1, 2, 0], sizes = [16, 16, 4], strides = [1, 1, 1]} : vector<18x18x4xf32> to vector<16x16x4xf32>
    %48 = vector.shape_cast %47 : vector<16x16x4xf32> to vector<256x4xf32>
    %c20 = arith.constant 20 : index
    %c0_37 = arith.constant 0 : index
    %49 = vector.load %arg4[%c20, %c0_37] : memref<36x8xf32, #tpu.memory_space<vmem>>, vector<4x8xf32>
    %cst_38 = arith.constant dense<0.000000e+00> : vector<256x8xf32>
    %50 = tpu.matmul %48, %49, %cst_38 {dimension_numbers = #tpu.dot_dimension_numbers<[1], [0], [0], [1], [0, 0, 1, 1], [], []>} : vector<256x4xf32>, vector<4x8xf32>, vector<256x8xf32> -> vector<256x8xf32>
    %51 = arith.addf %46, %50 : vector<256x8xf32>
    %52 = vector.extract_strided_slice %22 {offsets = [2, 0, 0], sizes = [16, 16, 4], strides = [1, 1, 1]} : vector<18x18x4xf32> to vector<16x16x4xf32>
    %53 = vector.shape_cast %52 : vector<16x16x4xf32> to vector<256x4xf32>
    %c24 = arith.constant 24 : index
    %c0_39 = arith.constant 0 : index
    %54 = vector.load %arg4[%c24, %c0_39] : memref<36x8xf32, #tpu.memory_space<vmem>>, vector<4x8xf32>
    %cst_40 = arith.constant dense<0.000000e+00> : vector<256x8xf32>
    %55 = tpu.matmul %53, %54, %cst_40 {dimension_numbers = #tpu.dot_dimension_numbers<[1], [0], [0], [1], [0, 0, 1, 1], [], []>} : vector<256x4xf32>, vector<4x8xf32>, vector<256x8xf32> -> vector<256x8xf32>
    %56 = arith.addf %51, %55 : vector<256x8xf32>
    %57 = vector.extract_strided_slice %22 {offsets = [2, 1, 0], sizes = [16, 16, 4], strides = [1, 1, 1]} : vector<18x18x4xf32> to vector<16x16x4xf32>
    %58 = vector.shape_cast %57 : vector<16x16x4xf32> to vector<256x4xf32>
    %c28 = arith.constant 28 : index
    %c0_41 = arith.constant 0 : index
    %59 = vector.load %arg4[%c28, %c0_41] : memref<36x8xf32, #tpu.memory_space<vmem>>, vector<4x8xf32>
    %cst_42 = arith.constant dense<0.000000e+00> : vector<256x8xf32>
    %60 = tpu.matmul %58, %59, %cst_42 {dimension_numbers = #tpu.dot_dimension_numbers<[1], [0], [0], [1], [0, 0, 1, 1], [], []>} : vector<256x4xf32>, vector<4x8xf32>, vector<256x8xf32> -> vector<256x8xf32>
    %61 = arith.addf %56, %60 : vector<256x8xf32>
    %62 = vector.extract_strided_slice %22 {offsets = [2, 2, 0], sizes = [16, 16, 4], strides = [1, 1, 1]} : vector<18x18x4xf32> to vector<16x16x4xf32>
    %63 = vector.shape_cast %62 : vector<16x16x4xf32> to vector<256x4xf32>
    %c32 = arith.constant 32 : index
    %c0_43 = arith.constant 0 : index
    %64 = vector.load %arg4[%c32, %c0_43] : memref<36x8xf32, #tpu.memory_space<vmem>>, vector<4x8xf32>
    %cst_44 = arith.constant dense<0.000000e+00> : vector<256x8xf32>
    %65 = tpu.matmul %63, %64, %cst_44 {dimension_numbers = #tpu.dot_dimension_numbers<[1], [0], [0], [1], [0, 0, 1, 1], [], []>} : vector<256x4xf32>, vector<4x8xf32>, vector<256x8xf32> -> vector<256x8xf32>
    %66 = arith.addf %61, %65 : vector<256x8xf32>
    %c0_45 = arith.constant 0 : index
    %c0_46 = arith.constant 0 : index
    %67 = vector.load %arg6[%c0_45, %c0_46] : memref<1x8xf32, #tpu.memory_space<vmem>>, vector<1x8xf32>
    %cst_47 = arith.constant dense<0.000000e+00> : vector<8xf32>
    %68 = vector.multi_reduction <add>, %66, %cst_47 [0] : vector<256x8xf32> to vector<8xf32>
    %69 = vector.shape_cast %68 : vector<8xf32> to vector<1x8xf32>
    %70 = arith.addf %67, %69 : vector<1x8xf32>
    %c0_48 = arith.constant 0 : index
    %c0_49 = arith.constant 0 : index
    %71 = vector.load %arg6[%c0_48, %c0_49] : memref<1x8xf32, #tpu.memory_space<vmem>>, vector<1x8xf32>
    tpu.vector_store %arg6[%c0_48, %c0_49], %70 {strides = array<i32>} : memref<1x8xf32, #tpu.memory_space<vmem>>, vector<1x8xf32>,
    %c0_50 = arith.constant 0 : index
    %c0_51 = arith.constant 0 : index
    %72 = vector.load %arg7[%c0_50, %c0_51] : memref<1x8xf32, #tpu.memory_space<vmem>>, vector<1x8xf32>
    %73 = arith.mulf %66, %66 : vector<256x8xf32>
    %cst_52 = arith.constant dense<0.000000e+00> : vector<8xf32>
    %74 = vector.multi_reduction <add>, %73, %cst_52 [0] : vector<256x8xf32> to vector<8xf32>
    %75 = vector.shape_cast %74 : vector<8xf32> to vector<1x8xf32>
    %76 = arith.addf %72, %75 : vector<1x8xf32>
    %c0_53 = arith.constant 0 : index
    %c0_54 = arith.constant 0 : index
    %77 = vector.load %arg7[%c0_53, %c0_54] : memref<1x8xf32, #tpu.memory_space<vmem>>, vector<1x8xf32>
    tpu.vector_store %arg7[%c0_53, %c0_54], %76 {strides = array<i32>} : memref<1x8xf32, #tpu.memory_space<vmem>>, vector<1x8xf32>,
    %78 = vector.shape_cast %66 : vector<256x8xf32> to vector<16x16x8xf32>
    %c0_55 = arith.constant 0 : index
    %c0_56 = arith.constant 0 : index
    %c0_57 = arith.constant 0 : index
    %c0_58 = arith.constant 0 : index
    %79 = vector.load %arg5[%c0_55, %c0_56, %c0_57, %c0_58] : memref<1x16x16x8xf32, #tpu.memory_space<vmem>>, vector<1x16x16x8xf32>
    %80 = vector.shape_cast %79 : vector<1x16x16x8xf32> to vector<16x16x8xf32>
    %81 = vector.shape_cast %78 : vector<16x16x8xf32> to vector<1x16x16x8xf32>
    tpu.vector_store %arg5[%c0_55, %c0_56, %c0_57, %c0_58], %81 {strides = array<i32>} : memref<1x16x16x8xf32, #tpu.memory_space<vmem>>, vector<1x16x16x8xf32>,
    return
  }
  func.func @transform_0(%arg0: i32) -> (i32, i32, i32, i32) {
    %c0_i32 = arith.constant 0 : i32
    %c0_i32_0 = arith.constant 0 : i32
    %c0_i32_1 = arith.constant 0 : i32
    %c0_i32_2 = arith.constant 0 : i32
    return %arg0, %c0_i32, %c0_i32_0, %c0_i32_1 : i32, i32, i32, i32
  }
  func.func @transform_1(%arg0: i32) -> (i32, i32) {
    %c0_i32 = arith.constant 0 : i32
    %c0_i32_0 = arith.constant 0 : i32
    %c0_i32_1 = arith.constant 0 : i32
    return %c0_i32, %c0_i32_0 : i32, i32
  }
  func.func @transform_2(%arg0: i32) -> (i32, i32) {
    %c0_i32 = arith.constant 0 : i32
    %c0_i32_0 = arith.constant 0 : i32
    %c0_i32_1 = arith.constant 0 : i32
    return %c0_i32, %c0_i32_0 : i32, i32
  }
  func.func @transform_3(%arg0: i32) -> (i32, i32) {
    %c0_i32 = arith.constant 0 : i32
    %c0_i32_0 = arith.constant 0 : i32
    %c0_i32_1 = arith.constant 0 : i32
    return %c0_i32, %c0_i32_0 : i32, i32
  }
  func.func @transform_4(%arg0: i32) -> (i32, i32, i32, i32) {
    %c0_i32 = arith.constant 0 : i32
    %c0_i32_0 = arith.constant 0 : i32
    %c0_i32_1 = arith.constant 0 : i32
    %c0_i32_2 = arith.constant 0 : i32
    return %arg0, %c0_i32, %c0_i32_0, %c0_i32_1 : i32, i32, i32, i32
  }
  func.func @transform_5(%arg0: i32) -> (i32, i32) {
    %c0_i32 = arith.constant 0 : i32
    %c0_i32_0 = arith.constant 0 : i32
    %c0_i32_1 = arith.constant 0 : i32
    return %c0_i32, %c0_i32_0 : i32, i32
  }
  func.func @transform_6(%arg0: i32) -> (i32, i32) {
    %c0_i32 = arith.constant 0 : i32
    %c0_i32_0 = arith.constant 0 : i32
    %c0_i32_1 = arith.constant 0 : i32
    return %c0_i32, %c0_i32_0 : i32, i32
  }
}

</mosaic_0001>

<llo_original>
// kernel: basic_block_forward.3
$region0: #{basic_block_forward.3}
  #allocation0 [shape = 'u32[]', space=smem, size = 0x4, offset = 0x4, fixed_abs, tag = 'smem constant byte address 0x4 - core index']
  #allocation1 [shape = 'u32[144,128]{1,0:T(1,128)}', space=vmem, size = 0x12000, scoped, tag = 'internal scratch']
  %s0 = inlined_call_operand.vmem [shape: f32[512,4], index: 0, kind: input, shape index: {}]
  %s1 = inlined_call_operand.vmem [shape: f32[1,4], index: 1, kind: output, shape index: {0}]
  %s2 = inlined_call_operand.vmem [shape: f32[1,4], index: 2, kind: output, shape index: {1}]
  %3 = xla_tuple %s1, %s2
  %s4 = sld [smem:[#allocation0]]
  $region26: #{basic_block_forward.3} parent=0
    _
  %s6 = ssub.s32 1, %s4
  %s7 = scalar_select 0, %s6, %s4
  // Predicated region
  $region2: #{basic_block_forward.3} parent=0 // pred_check
    _
  $region3: #{basic_block_forward.3} parent=0 // pred_check_branch
    %9 = sbr.rel (0) target = $region5
  $region4: #{basic_block_forward.3} parent=0 // pred_region
    _
  $region5: #{basic_block_forward.3} parent=0 // pred_fallthru
    _
  %p10 = scmp.eq.s32.totalorder 0, 0
  // Predicated region
  $region6: #{basic_block_forward.3} parent=0 // pred_check
    %p11 = pneg %p10
  $region7: #{basic_block_forward.3} parent=0 // pred_check_branch
    %13 = sbr.rel (%p11) target = $region9
  $region8: #{basic_block_forward.3} parent=0 // pred_region
    %vm14 = vcmask 24576
    %15 = vst.msk [vmem:[%s1] sm:$0x1] %vm14, 0.0
    %16 = vst.msk [vmem:[%s2] sm:$0x1] %vm14, 0.0
  $region9: #{basic_block_forward.3} parent=0 // pred_fallthru
    _
  %v17 = vld [vmem:[%s0] sm:$0xff]
  %v18 = vld [vmem:[%s0 + $0x8] sm:$0xff]
  %v19 = vld [vmem:[%s0 + $0x10] sm:$0xff]
  %v20 = vld [vmem:[%s0 + $0x18] sm:$0xff]
  %v21 = vld [vmem:[%s0 + $0x20] sm:$0xff]
  %v22 = vld [vmem:[%s0 + $0x28] sm:$0xff]
  %v23 = vld [vmem:[%s0 + $0x30] sm:$0xff]
  %v24 = vld [vmem:[%s0 + $0x38] sm:$0xff]
  %v25 = vld [vmem:[%s0 + $0x40] sm:$0xff]
  %v26 = vld [vmem:[%s0 + $0x48] sm:$0xff]
  %v27 = vld [vmem:[%s0 + $0x50] sm:$0xff]
  %v28 = vld [vmem:[%s0 + $0x58] sm:$0xff]
  %v29 = vld [vmem:[%s0 + $0x60] sm:$0xff]
  %v30 = vld [vmem:[%s0 + $0x68] sm:$0xff]
  %v31 = vld [vmem:[%s0 + $0x70] sm:$0xff]
  %v32 = vld [vmem:[%s0 + $0x78] sm:$0xff]
  %v33 = vld [vmem:[%s0 + $0x80] sm:$0xff]
  %v34 = vld [vmem:[%s0 + $0x88] sm:$0xff]
  %v35 = vld [vmem:[%s0 + $0x90] sm:$0xff]
  %v36 = vld [vmem:[%s0 + $0x98] sm:$0xff]
  %v37 = vld [vmem:[%s0 + $0xa0] sm:$0xff]
  %v38 = vld [vmem:[%s0 + $0xa8] sm:$0xff]
  %v39 = vld [vmem:[%s0 + $0xb0] sm:$0xff]
  %v40 = vld [vmem:[%s0 + $0xb8] sm:$0xff]
  %v41 = vld [vmem:[%s0 + $0xc0] sm:$0xff]
  %v42 = vld [vmem:[%s0 + $0xc8] sm:$0xff]
  %v43 = vld [vmem:[%s0 + $0xd0] sm:$0xff]
  %v44 = vld [vmem:[%s0 + $0xd8] sm:$0xff]
  %v45 = vld [vmem:[%s0 + $0xe0] sm:$0xff]
  %v46 = vld [vmem:[%s0 + $0xe8] sm:$0xff]
  %v47 = vld [vmem:[%s0 + $0xf0] sm:$0xff]
  %v48 = vld [vmem:[%s0 + $0xf8] sm:$0xff]
  %v49 = vld [vmem:[%s0 + $0x100] sm:$0xff]
  %v50 = vld [vmem:[%s0 + $0x108] sm:$0xff]
  %v51 = vld [vmem:[%s0 + $0x110] sm:$0xff]
  %v52 = vld [vmem:[%s0 + $0x118] sm:$0xff]
  %v53 = vld [vmem:[%s0 + $0x120] sm:$0xff]
  %v54 = vld [vmem:[%s0 + $0x128] sm:$0xff]
  %v55 = vld [vmem:[%s0 + $0x130] sm:$0xff]
  %v56 = vld [vmem:[%s0 + $0x138] sm:$0xff]
  %v57 = vld [vmem:[%s0 + $0x140] sm:$0xff]
  %v58 = vld [vmem:[%s0 + $0x148] sm:$0xff]
  %v59 = vld [vmem:[%s0 + $0x150] sm:$0xff]
  %v60 = vld [vmem:[%s0 + $0x158] sm:$0xff]
  %v61 = vld [vmem:[%s0 + $0x160] sm:$0xff]
  %v62 = vld [vmem:[%s0 + $0x168] sm:$0xff]
  %v63 = vld [vmem:[%s0 + $0x170] sm:$0xff]
  %v64 = vld [vmem:[%s0 + $0x178] sm:$0xff]
  %v65 = vld [vmem:[%s0 + $0x180] sm:$0xff]
  %v66 = vld [vmem:[%s0 + $0x188] sm:$0xff]
  %v67 = vld [vmem:[%s0 + $0x190] sm:$0xff]
  %v68 = vld [vmem:[%s0 + $0x198] sm:$0xff]
  %v69 = vld [vmem:[%s0 + $0x1a0] sm:$0xff]
  %v70 = vld [vmem:[%s0 + $0x1a8] sm:$0xff]
  %v71 = vld [vmem:[%s0 + $0x1b0] sm:$0xff]
  %v72 = vld [vmem:[%s0 + $0x1b8] sm:$0xff]
  %v73 = vld [vmem:[%s0 + $0x1c0] sm:$0xff]
  %v74 = vld [vmem:[%s0 + $0x1c8] sm:$0xff]
  %v75 = vld [vmem:[%s0 + $0x1d0] sm:$0xff]
  %v76 = vld [vmem:[%s0 + $0x1d8] sm:$0xff]
  %v77 = vld [vmem:[%s0 + $0x1e0] sm:$0xff]
  %v78 = vld [vmem:[%s0 + $0x1e8] sm:$0xff]
  %v79 = vld [vmem:[%s0 + $0x1f0] sm:$0xff]
  %v80 = vld [vmem:[%s0 + $0x1f8] sm:$0xff]
  %v81 = vlaneseq
  %v82 = vshrl.u32 %v81, 7
  %v83 = vadd.s32 %v82, 8
  %v84 = vadd.s32 %v82, 16
  %v85 = vadd.s32 %v82, 24
  %v86 = vadd.s32 %v82, 32
  %v87 = vadd.s32 %v82, 40
  %v88 = vadd.s32 %v82, 48
  %v89 = vadd.s32 %v82, 56
  %v90 = vadd.s32 %v82, 64
  %v91 = vadd.s32 %v82, 72
  %v92 = vadd.s32 %v82, 80
  %v93 = vadd.s32 %v82, 88
  %v94 = vadd.s32 %v82, 96
  %v95 = vadd.s32 %v82, 104
  %v96 = vadd.s32 %v82, 112
  %v97 = vadd.s32 %v82, 120
  %v98 = vadd.s32 %v82, 128
  %v99 = vadd.s32 %v82, 136
  %v100 = vadd.s32 %v82, 144
  %v101 = vadd.s32 %v82, 152
  %v102 = vadd.s32 %v82, 160
  %v103 = vadd.s32 %v82, 168
  %v104 = vadd.s32 %v82, 176
  %v105 = vadd.s32 %v82, 184
  %v106 = vadd.s32 %v82, 192
  %v107 = vadd.s32 %v82, 200
  %v108 = vadd.s32 %v82, 208
  %v109 = vadd.s32 %v82, 216
  %v110 = vadd.s32 %v82, 224
  %v111 = vadd.s32 %v82, 232
  %v112 = vadd.s32 %v82, 240
  %v113 = vadd.s32 %v82, 248
  %v114 = vadd.s32 %v82, 256
  %v115 = vadd.s32 %v82, 264
  %v116 = vadd.s32 %v82, 272
  %v117 = vadd.s32 %v82, 280
  %v118 = vadd.s32 %v82, 288
  %v119 = vadd.s32 %v82, 296
  %v120 = vadd.s32 %v82, 304
  %v121 = vadd.s32 %v82, 312
  %v122 = vadd.s32 %v82, 320
  %v123 = vadd.s32 %v82, 328
  %v124 = vadd.s32 %v82, 336
  %v125 = vadd.s32 %v82, 344
  %v126 = vadd.s32 %v82, 352
  %v127 = vadd.s32 %v82, 360
  %v128 = vadd.s32 %v82, 368
  %v129 = vadd.s32 %v82, 376
  %v130 = vadd.s32 %v82, 384
  %v131 = vadd.s32 %v82, 392
  %v132 = vadd.s32 %v82, 400
  %v133 = vadd.s32 %v82, 408
  %v134 = vadd.s32 %v82, 416
  %v135 = vadd.s32 %v82, 424
  %v136 = vadd.s32 %v82, 432
  %v137 = vadd.s32 %v82, 440
  %v138 = vadd.s32 %v82, 448
  %v139 = vadd.s32 %v82, 456
  %v140 = vadd.s32 %v82, 464
  %v141 = vadd.s32 %v82, 472
  %v142 = vadd.s32 %v82, 480
  %v143 = vadd.s32 %v82, 488
  %v144 = vadd.s32 %v82, 496
  %v145 = vadd.s32 %v82, 504
  %s146 = smul.u32 0, 512
  %v147 = vstv %s146
  %v148 = vadd.s32 %v82, %v147
  %v149 = vadd.s32 %v83, %v147
  %v150 = vadd.s32 %v84, %v147
  %v151 = vadd.s32 %v85, %v147
  %v152 = vadd.s32 %v86, %v147
  %v153 = vadd.s32 %v87, %v147
  %v154 = vadd.s32 %v88, %v147
  %v155 = vadd.s32 %v89, %v147
  %v156 = vadd.s32 %v90, %v147
  %v157 = vadd.s32 %v91, %v147
  %v158 = vadd.s32 %v92, %v147
  %v159 = vadd.s32 %v93, %v147
  %v160 = vadd.s32 %v94, %v147
  %v161 = vadd.s32 %v95, %v147
  %v162 = vadd.s32 %v96, %v147
  %v163 = vadd.s32 %v97, %v147
  %v164 = vadd.s32 %v98, %v147
  %v165 = vadd.s32 %v99, %v147
  %v166 = vadd.s32 %v100, %v147
  %v167 = vadd.s32 %v101, %v147
  %v168 = vadd.s32 %v102, %v147
  %v169 = vadd.s32 %v103, %v147
  %v170 = vadd.s32 %v104, %v147
  %v171 = vadd.s32 %v105, %v147
  %v172 = vadd.s32 %v106, %v147
  %v173 = vadd.s32 %v107, %v147
  %v174 = vadd.s32 %v108, %v147
  %v175 = vadd.s32 %v109, %v147
  %v176 = vadd.s32 %v110, %v147
  %v177 = vadd.s32 %v111, %v147
  %v178 = vadd.s32 %v112, %v147
  %v179 = vadd.s32 %v113, %v147
  %v180 = vadd.s32 %v114, %v147
  %v181 = vadd.s32 %v115, %v147
  %v182 = vadd.s32 %v116, %v147
  %v183 = vadd.s32 %v117, %v147
  %v184 = vadd.s32 %v118, %v147
  %v185 = vadd.s32 %v119, %v147
  %v186 = vadd.s32 %v120, %v147
  %v187 = vadd.s32 %v121, %v147
  %v188 = vadd.s32 %v122, %v147
  %v189 = vadd.s32 %v123, %v147
  %v190 = vadd.s32 %v124, %v147
  %v191 = vadd.s32 %v125, %v147
  %v192 = vadd.s32 %v126, %v147
  %v193 = vadd.s32 %v127, %v147
  %v194 = vadd.s32 %v128, %v147
  %v195 = vadd.s32 %v129, %v147
  %v196 = vadd.s32 %v130, %v147
  %v197 = vadd.s32 %v131, %v147
  %v198 = vadd.s32 %v132, %v147
  %v199 = vadd.s32 %v133, %v147
  %v200 = vadd.s32 %v134, %v147
  %v201 = vadd.s32 %v135, %v147
  %v202 = vadd.s32 %v136, %v147
  %v203 = vadd.s32 %v137, %v147
  %v204 = vadd.s32 %v138, %v147
  %v205 = vadd.s32 %v139, %v147
  %v206 = vadd.s32 %v140, %v147
  %v207 = vadd.s32 %v141, %v147
  %v208 = vadd.s32 %v142, %v147
  %v209 = vadd.s32 %v143, %v147
  %v210 = vadd.s32 %v144, %v147
  %v211 = vadd.s32 %v145, %v147
  %vm212 = vcmp.lt.s32.totalorder %v148, 512
  %vm213 = vcmp.lt.s32.totalorder %v149, 512
  %vm214 = vcmp.lt.s32.totalorder %v150, 512
  %vm215 = vcmp.lt.s32.totalorder %v151, 512
  %vm216 = vcmp.lt.s32.totalorder %v152, 512
  %vm217 = vcmp.lt.s32.totalorder %v153, 512
  %vm218 = vcmp.lt.s32.totalorder %v154, 512
  %vm219 = vcmp.lt.s32.totalorder %v155, 512
  %vm220 = vcmp.lt.s32.totalorder %v156, 512
  %vm221 = vcmp.lt.s32.totalorder %v157, 512
  %vm222 = vcmp.lt.s32.totalorder %v158, 512
  %vm223 = vcmp.lt.s32.totalorder %v159, 512
  %vm224 = vcmp.lt.s32.totalorder %v160, 512
  %vm225 = vcmp.lt.s32.totalorder %v161, 512
  %vm226 = vcmp.lt.s32.totalorder %v162, 512
  %vm227 = vcmp.lt.s32.totalorder %v163, 512
  %vm228 = vcmp.lt.s32.totalorder %v164, 512
  %vm229 = vcmp.lt.s32.totalorder %v165, 512
  %vm230 = vcmp.lt.s32.totalorder %v166, 512
  %vm231 = vcmp.lt.s32.totalorder %v167, 512
  %vm232 = vcmp.lt.s32.totalorder %v168, 512
  %vm233 = vcmp.lt.s32.totalorder %v169, 512
  %vm234 = vcmp.lt.s32.totalorder %v170, 512
  %vm235 = vcmp.lt.s32.totalorder %v171, 512
  %vm236 = vcmp.lt.s32.totalorder %v172, 512
  %vm237 = vcmp.lt.s32.totalorder %v173, 512
  %vm238 = vcmp.lt.s32.totalorder %v174, 512
  %vm239 = vcmp.lt.s32.totalorder %v175, 512
  %vm240 = vcmp.lt.s32.totalorder %v176, 512
  %vm241 = vcmp.lt.s32.totalorder %v177, 512
  %vm242 = vcmp.lt.s32.totalorder %v178, 512
  %vm243 = vcmp.lt.s32.totalorder %v179, 512
  %vm244 = vcmp.lt.s32.totalorder %v180, 512
  %vm245 = vcmp.lt.s32.totalorder %v181, 512
  %vm246 = vcmp.lt.s32.totalorder %v182, 512
  %vm247 = vcmp.lt.s32.totalorder %v183, 512
  %vm248 = vcmp.lt.s32.totalorder %v184, 512
  %vm249 = vcmp.lt.s32.totalorder %v185, 512
  %vm250 = vcmp.lt.s32.totalorder %v186, 512
  %vm251 = vcmp.lt.s32.totalorder %v187, 512
  %vm252 = vcmp.lt.s32.totalorder %v188, 512
  %vm253 = vcmp.lt.s32.totalorder %v189, 512
  %vm254 = vcmp.lt.s32.totalorder %v190, 512
  %vm255 = vcmp.lt.s32.totalorder %v191, 512
  %vm256 = vcmp.lt.s32.totalorder %v192, 512
  %vm257 = vcmp.lt.s32.totalorder %v193, 512
  %vm258 = vcmp.lt.s32.totalorder %v194, 512
  %vm259 = vcmp.lt.s32.totalorder %v195, 512
  %vm260 = vcmp.lt.s32.totalorder %v196, 512
  %vm261 = vcmp.lt.s32.totalorder %v197, 512
  %vm262 = vcmp.lt.s32.totalorder %v198, 512
  %vm263 = vcmp.lt.s32.totalorder %v199, 512
  %vm264 = vcmp.lt.s32.totalorder %v200, 512
  %vm265 = vcmp.lt.s32.totalorder %v201, 512
  %vm266 = vcmp.lt.s32.totalorder %v202, 512
  %vm267 = vcmp.lt.s32.totalorder %v203, 512
  %vm268 = vcmp.lt.s32.totalorder %v204, 512
  %vm269 = vcmp.lt.s32.totalorder %v205, 512
  %vm270 = vcmp.lt.s32.totalorder %v206, 512
  %vm271 = vcmp.lt.s32.totalorder %v207, 512
  %vm272 = vcmp.lt.s32.totalorder %v208, 512
  %vm273 = vcmp.lt.s32.totalorder %v209, 512
  %vm274 = vcmp.lt.s32.totalorder %v210, 512
  %vm275 = vcmp.lt.s32.totalorder %v211, 512
  %v276 = vsel %vm212, 1, 0
  %v277 = vsel %vm213, 1, 0
  %v278 = vsel %vm214, 1, 0
  %v279 = vsel %vm215, 1, 0
  %v280 = vsel %vm216, 1, 0
  %v281 = vsel %vm217, 1, 0
  %v282 = vsel %vm218, 1, 0
  %v283 = vsel %vm219, 1, 0
  %v284 = vsel %vm220, 1, 0
  %v285 = vsel %vm221, 1, 0
  %v286 = vsel %vm222, 1, 0
  %v287 = vsel %vm223, 1, 0
  %v288 = vsel %vm224, 1, 0
  %v289 = vsel %vm225, 1, 0
  %v290 = vsel %vm226, 1, 0
  %v291 = vsel %vm227, 1, 0
  %v292 = vsel %vm228, 1, 0
  %v293 = vsel %vm229, 1, 0
  %v294 = vsel %vm230, 1, 0
  %v295 = vsel %vm231, 1, 0
  %v296 = vsel %vm232, 1, 0
  %v297 = vsel %vm233, 1, 0
  %v298 = vsel %vm234, 1, 0
  %v299 = vsel %vm235, 1, 0
  %v300 = vsel %vm236, 1, 0
  %v301 = vsel %vm237, 1, 0
  %v302 = vsel %vm238, 1, 0
  %v303 = vsel %vm239, 1, 0
  %v304 = vsel %vm240, 1, 0
  %v305 = vsel %vm241, 1, 0
  %v306 = vsel %vm242, 1, 0
  %v307 = vsel %vm243, 1, 0
  %v308 = vsel %vm244, 1, 0
  %v309 = vsel %vm245, 1, 0
  %v310 = vsel %vm246, 1, 0
  %v311 = vsel %vm247, 1, 0
  %v312 = vsel %vm248, 1, 0
  %v313 = vsel %vm249, 1, 0
  %v314 = vsel %vm250, 1, 0
  %v315 = vsel %vm251, 1, 0
  %v316 = vsel %vm252, 1, 0
  %v317 = vsel %vm253, 1, 0
  %v318 = vsel %vm254, 1, 0
  %v319 = vsel %vm255, 1, 0
  %v320 = vsel %vm256, 1, 0
  %v321 = vsel %vm257, 1, 0
  %v322 = vsel %vm258, 1, 0
  %v323 = vsel %vm259, 1, 0
  %v324 = vsel %vm260, 1, 0
  %v325 = vsel %vm261, 1, 0
  %v326 = vsel %vm262, 1, 0
  %v327 = vsel %vm263, 1, 0
  %v328 = vsel %vm264, 1, 0
  %v329 = vsel %vm265, 1, 0
  %v330 = vsel %vm266, 1, 0
  %v331 = vsel %vm267, 1, 0
  %v332 = vsel %vm268, 1, 0
  %v333 = vsel %vm269, 1, 0
  %v334 = vsel %vm270, 1, 0
  %v335 = vsel %vm271, 1, 0
  %v336 = vsel %vm272, 1, 0
  %v337 = vsel %vm273, 1, 0
  %v338 = vsel %vm274, 1, 0
  %v339 = vsel %vm275, 1, 0
  %vm340 = vcmp.eq.s32.totalorder %v276, 1
  %vm341 = vcmp.eq.s32.totalorder %v277, 1
  %vm342 = vcmp.eq.s32.totalorder %v278, 1
  %vm343 = vcmp.eq.s32.totalorder %v279, 1
  %vm344 = vcmp.eq.s32.totalorder %v280, 1
  %vm345 = vcmp.eq.s32.totalorder %v281, 1
  %vm346 = vcmp.eq.s32.totalorder %v282, 1
  %vm347 = vcmp.eq.s32.totalorder %v283, 1
  %vm348 = vcmp.eq.s32.totalorder %v284, 1
  %vm349 = vcmp.eq.s32.totalorder %v285, 1
  %vm350 = vcmp.eq.s32.totalorder %v286, 1
  %vm351 = vcmp.eq.s32.totalorder %v287, 1
  %vm352 = vcmp.eq.s32.totalorder %v288, 1
  %vm353 = vcmp.eq.s32.totalorder %v289, 1
  %vm354 = vcmp.eq.s32.totalorder %v290, 1
  %vm355 = vcmp.eq.s32.totalorder %v291, 1
  %vm356 = vcmp.eq.s32.totalorder %v292, 1
  %vm357 = vcmp.eq.s32.totalorder %v293, 1
  %vm358 = vcmp.eq.s32.totalorder %v294, 1
  %vm359 = vcmp.eq.s32.totalorder %v295, 1
  %vm360 = vcmp.eq.s32.totalorder %v296, 1
  %vm361 = vcmp.eq.s32.totalorder %v297, 1
  %vm362 = vcmp.eq.s32.totalorder %v298, 1
  %vm363 = vcmp.eq.s32.totalorder %v299, 1
  %vm364 = vcmp.eq.s32.totalorder %v300, 1
  %vm365 = vcmp.eq.s32.totalorder %v301, 1
  %vm366 = vcmp.eq.s32.totalorder %v302, 1
  %vm367 = vcmp.eq.s32.totalorder %v303, 1
  %vm368 = vcmp.eq.s32.totalorder %v304, 1
  %vm369 = vcmp.eq.s32.totalorder %v305, 1
  %vm370 = vcmp.eq.s32.totalorder %v306, 1
  %vm371 = vcmp.eq.s32.totalorder %v307, 1
  %vm372 = vcmp.eq.s32.totalorder %v308, 1
  %vm373 = vcmp.eq.s32.totalorder %v309, 1
  %vm374 = vcmp.eq.s32.totalorder %v310, 1
  %vm375 = vcmp.eq.s32.totalorder %v311, 1
  %vm376 = vcmp.eq.s32.totalorder %v312, 1
  %vm377 = vcmp.eq.s32.totalorder %v313, 1
  %vm378 = vcmp.eq.s32.totalorder %v314, 1
  %vm379 = vcmp.eq.s32.totalorder %v315, 1
  %vm380 = vcmp.eq.s32.totalorder %v316, 1
  %vm381 = vcmp.eq.s32.totalorder %v317, 1
  %vm382 = vcmp.eq.s32.totalorder %v318, 1
  %vm383 = vcmp.eq.s32.totalorder %v319, 1
  %vm384 = vcmp.eq.s32.totalorder %v320, 1
  %vm385 = vcmp.eq.s32.totalorder %v321, 1
  %vm386 = vcmp.eq.s32.totalorder %v322, 1
  %vm387 = vcmp.eq.s32.totalorder %v323, 1
  %vm388 = vcmp.eq.s32.totalorder %v324, 1
  %vm389 = vcmp.eq.s32.totalorder %v325, 1
  %vm390 = vcmp.eq.s32.totalorder %v326, 1
  %vm391 = vcmp.eq.s32.totalorder %v327, 1
  %vm392 = vcmp.eq.s32.totalorder %v328, 1
  %vm393 = vcmp.eq.s32.totalorder %v329, 1
  %vm394 = vcmp.eq.s32.totalorder %v330, 1
  %vm395 = vcmp.eq.s32.totalorder %v331, 1
  %vm396 = vcmp.eq.s32.totalorder %v332, 1
  %vm397 = vcmp.eq.s32.totalorder %v333, 1
  %vm398 = vcmp.eq.s32.totalorder %v334, 1
  %vm399 = vcmp.eq.s32.totalorder %v335, 1
  %vm400 = vcmp.eq.s32.totalorder %v336, 1
  %vm401 = vcmp.eq.s32.totalorder %v337, 1
  %vm402 = vcmp.eq.s32.totalorder %v338, 1
  %vm403 = vcmp.eq.s32.totalorder %v339, 1
  %v404 = vsel %vm340, %v17, 0.0
  %v405 = vsel %vm341, %v18, 0.0
  %v406 = vsel %vm342, %v19, 0.0
  %v407 = vsel %vm343, %v20, 0.0
  %v408 = vsel %vm344, %v21, 0.0
  %v409 = vsel %vm345, %v22, 0.0
  %v410 = vsel %vm346, %v23, 0.0
  %v411 = vsel %vm347, %v24, 0.0
  %v412 = vsel %vm348, %v25, 0.0
  %v413 = vsel %vm349, %v26, 0.0
  %v414 = vsel %vm350, %v27, 0.0
  %v415 = vsel %vm351, %v28, 0.0
  %v416 = vsel %vm352, %v29, 0.0
  %v417 = vsel %vm353, %v30, 0.0
  %v418 = vsel %vm354, %v31, 0.0
  %v419 = vsel %vm355, %v32, 0.0
  %v420 = vsel %vm356, %v33, 0.0
  %v421 = vsel %vm357, %v34, 0.0
  %v422 = vsel %vm358, %v35, 0.0
  %v423 = vsel %vm359, %v36, 0.0
  %v424 = vsel %vm360, %v37, 0.0
  %v425 = vsel %vm361, %v38, 0.0
  %v426 = vsel %vm362, %v39, 0.0
  %v427 = vsel %vm363, %v40, 0.0
  %v428 = vsel %vm364, %v41, 0.0
  %v429 = vsel %vm365, %v42, 0.0
  %v430 = vsel %vm366, %v43, 0.0
  %v431 = vsel %vm367, %v44, 0.0
  %v432 = vsel %vm368, %v45, 0.0
  %v433 = vsel %vm369, %v46, 0.0
  %v434 = vsel %vm370, %v47, 0.0
  %v435 = vsel %vm371, %v48, 0.0
  %v436 = vsel %vm372, %v49, 0.0
  %v437 = vsel %vm373, %v50, 0.0
  %v438 = vsel %vm374, %v51, 0.0
  %v439 = vsel %vm375, %v52, 0.0
  %v440 = vsel %vm376, %v53, 0.0
  %v441 = vsel %vm377, %v54, 0.0
  %v442 = vsel %vm378, %v55, 0.0
  %v443 = vsel %vm379, %v56, 0.0
  %v444 = vsel %vm380, %v57, 0.0
  %v445 = vsel %vm381, %v58, 0.0
  %v446 = vsel %vm382, %v59, 0.0
  %v447 = vsel %vm383, %v60, 0.0
  %v448 = vsel %vm384, %v61, 0.0
  %v449 = vsel %vm385, %v62, 0.0
  %v450 = vsel %vm386, %v63, 0.0
  %v451 = vsel %vm387, %v64, 0.0
  %v452 = vsel %vm388, %v65, 0.0
  %v453 = vsel %vm389, %v66, 0.0
  %v454 = vsel %vm390, %v67, 0.0
  %v455 = vsel %vm391, %v68, 0.0
  %v456 = vsel %vm392, %v69, 0.0
  %v457 = vsel %vm393, %v70, 0.0
  %v458 = vsel %vm394, %v71, 0.0
  %v459 = vsel %vm395, %v72, 0.0
  %v460 = vsel %vm396, %v73, 0.0
  %v461 = vsel %vm397, %v74, 0.0
  %v462 = vsel %vm398, %v75, 0.0
  %v463 = vsel %vm399, %v76, 0.0
  %v464 = vsel %vm400, %v77, 0.0
  %v465 = vsel %vm401, %v78, 0.0
  %v466 = vsel %vm402, %v79, 0.0
  %v467 = vsel %vm403, %v80, 0.0
  %v468 = vld [vmem:[%s1] sm:$0x1]
  %vm469 = vcmask 31744
  %v470 = vsel %vm469, %v404, 0.0
  %v471 = vsel %vm469, %v405, 0.0
  %v472 = vadd.f32 %v470, %v471
  %v473 = vsel %vm469, %v406, 0.0
  %v474 = vadd.f32 %v472, %v473
  %v475 = vsel %vm469, %v407, 0.0
  %v476 = vadd.f32 %v474, %v475
  %v477 = vsel %vm469, %v408, 0.0
  %v478 = vadd.f32 %v476, %v477
  %v479 = vsel %vm469, %v409, 0.0
  %v480 = vadd.f32 %v478, %v479
  %v481 = vsel %vm469, %v410, 0.0
  %v482 = vadd.f32 %v480, %v481
  %v483 = vsel %vm469, %v411, 0.0
  %v484 = vadd.f32 %v482, %v483
  %v485 = vsel %vm469, %v412, 0.0
  %v486 = vadd.f32 %v484, %v485
  %v487 = vsel %vm469, %v413, 0.0
  %v488 = vadd.f32 %v486, %v487
  %v489 = vsel %vm469, %v414, 0.0
  %v490 = vadd.f32 %v488, %v489
  %v491 = vsel %vm469, %v415, 0.0
  %v492 = vadd.f32 %v490, %v491
  %v493 = vsel %vm469, %v416, 0.0
  %v494 = vadd.f32 %v492, %v493
  %v495 = vsel %vm469, %v417, 0.0
  %v496 = vadd.f32 %v494, %v495
  %v497 = vsel %vm469, %v418, 0.0
  %v498 = vadd.f32 %v496, %v497
  %v499 = vsel %vm469, %v419, 0.0
  %v500 = vadd.f32 %v498, %v499
  %v501 = vsel %vm469, %v420, 0.0
  %v502 = vadd.f32 %v500, %v501
  %v503 = vsel %vm469, %v421, 0.0
  %v504 = vadd.f32 %v502, %v503
  %v505 = vsel %vm469, %v422, 0.0
  %v506 = vadd.f32 %v504, %v505
  %v507 = vsel %vm469, %v423, 0.0
  %v508 = vadd.f32 %v506, %v507
  %v509 = vsel %vm469, %v424, 0.0
  %v510 = vadd.f32 %v508, %v509
  %v511 = vsel %vm469, %v425, 0.0
  %v512 = vadd.f32 %v510, %v511
  %v513 = vsel %vm469, %v426, 0.0
  %v514 = vadd.f32 %v512, %v513
  %v515 = vsel %vm469, %v427, 0.0
  %v516 = vadd.f32 %v514, %v515
  %v517 = vsel %vm469, %v428, 0.0
  %v518 = vadd.f32 %v516, %v517
  %v519 = vsel %vm469, %v429, 0.0
  %v520 = vadd.f32 %v518, %v519
  %v521 = vsel %vm469, %v430, 0.0
  %v522 = vadd.f32 %v520, %v521
  %v523 = vsel %vm469, %v431, 0.0
  %v524 = vadd.f32 %v522, %v523
  %v525 = vsel %vm469, %v432, 0.0
  %v526 = vadd.f32 %v524, %v525
  %v527 = vsel %vm469, %v433, 0.0
  %v528 = vadd.f32 %v526, %v527
  %v529 = vsel %vm469, %v434, 0.0
  %v530 = vadd.f32 %v528, %v529
  %v531 = vsel %vm469, %v435, 0.0
  %v532 = vadd.f32 %v530, %v531
  %v533 = vsel %vm469, %v436, 0.0
  %v534 = vadd.f32 %v532, %v533
  %v535 = vsel %vm469, %v437, 0.0
  %v536 = vadd.f32 %v534, %v535
  %v537 = vsel %vm469, %v438, 0.0
  %v538 = vadd.f32 %v536, %v537
  %v539 = vsel %vm469, %v439, 0.0
  %v540 = vadd.f32 %v538, %v539
  %v541 = vsel %vm469, %v440, 0.0
  %v542 = vadd.f32 %v540, %v541
  %v543 = vsel %vm469, %v441, 0.0
  %v544 = vadd.f32 %v542, %v543
  %v545 = vsel %vm469, %v442, 0.0
  %v546 = vadd.f32 %v544, %v545
  %v547 = vsel %vm469, %v443, 0.0
  %v548 = vadd.f32 %v546, %v547
  %v549 = vsel %vm469, %v444, 0.0
  %v550 = vadd.f32 %v548, %v549
  %v551 = vsel %vm469, %v445, 0.0
  %v552 = vadd.f32 %v550, %v551
  %v553 = vsel %vm469, %v446, 0.0
  %v554 = vadd.f32 %v552, %v553
  %v555 = vsel %vm469, %v447, 0.0
  %v556 = vadd.f32 %v554, %v555
  %v557 = vsel %vm469, %v448, 0.0
  %v558 = vadd.f32 %v556, %v557
  %v559 = vsel %vm469, %v449, 0.0
  %v560 = vadd.f32 %v558, %v559
  %v561 = vsel %vm469, %v450, 0.0
  %v562 = vadd.f32 %v560, %v561
  %v563 = vsel %vm469, %v451, 0.0
  %v564 = vadd.f32 %v562, %v563
  %v565 = vsel %vm469, %v452, 0.0
  %v566 = vadd.f32 %v564, %v565
  %v567 = vsel %vm469, %v453, 0.0
  %v568 = vadd.f32 %v566, %v567
  %v569 = vsel %vm469, %v454, 0.0
  %v570 = vadd.f32 %v568, %v569
  %v571 = vsel %vm469, %v455, 0.0
  %v572 = vadd.f32 %v570, %v571
  %v573 = vsel %vm469, %v456, 0.0
  %v574 = vadd.f32 %v572, %v573
  %v575 = vsel %vm469, %v457, 0.0
  %v576 = vadd.f32 %v574, %v575
  %v577 = vsel %vm469, %v458, 0.0
  %v578 = vadd.f32 %v576, %v577
  %v579 = vsel %vm469, %v459, 0.0
  %v580 = vadd.f32 %v578, %v579
  %v581 = vsel %vm469, %v460, 0.0
  %v582 = vadd.f32 %v580, %v581
  %v583 = vsel %vm469, %v461, 0.0
  %v584 = vadd.f32 %v582, %v583
  %v585 = vsel %vm469, %v462, 0.0
  %v586 = vadd.f32 %v584, %v585
  %v587 = vsel %vm469, %v463, 0.0
  %v588 = vadd.f32 %v586, %v587
  %v589 = vsel %vm469, %v464, 0.0
  %v590 = vadd.f32 %v588, %v589
  %v591 = vsel %vm469, %v465, 0.0
  %v592 = vadd.f32 %v590, %v591
  %v593 = vsel %vm469, %v466, 0.0
  %v594 = vadd.f32 %v592, %v593
  %v595 = vsel %vm469, %v467, 0.0
  %v596 = vadd.f32 %v594, %v595
  %v597 = vrot.slane %v596, 4
  %v598 = vadd.f32 %v596, %v597
  %v599 = vrot.slane %v598, 2
  %v600 = vadd.f32 %v598, %v599
  %v601 = vrot.slane %v600, 1
  %v602 = vadd.f32 %v600, %v601
  %v603 = vadd.f32 %v468, %v602
  %vm604 = vcmask 24576
  %605 = vst.msk [vmem:[%s1] sm:$0x1] %vm604, %v603
  %v606 = vld [vmem:[%s2] sm:$0x1]
  %v607 = vmul.f32 %v404, %v404
  %v608 = vmul.f32 %v405, %v405
  %v609 = vmul.f32 %v406, %v406
  %v610 = vmul.f32 %v407, %v407
  %v611 = vmul.f32 %v408, %v408
  %v612 = vmul.f32 %v409, %v409
  %v613 = vmul.f32 %v410, %v410
  %v614 = vmul.f32 %v411, %v411
  %v615 = vmul.f32 %v412, %v412
  %v616 = vmul.f32 %v413, %v413
  %v617 = vmul.f32 %v414, %v414
  %v618 = vmul.f32 %v415, %v415
  %v619 = vmul.f32 %v416, %v416
  %v620 = vmul.f32 %v417, %v417
  %v621 = vmul.f32 %v418, %v418
  %v622 = vmul.f32 %v419, %v419
  %v623 = vmul.f32 %v420, %v420
  %v624 = vmul.f32 %v421, %v421
  %v625 = vmul.f32 %v422, %v422
  %v626 = vmul.f32 %v423, %v423
  %v627 = vmul.f32 %v424, %v424
  %v628 = vmul.f32 %v425, %v425
  %v629 = vmul.f32 %v426, %v426
  %v630 = vmul.f32 %v427, %v427
  %v631 = vmul.f32 %v428, %v428
  %v632 = vmul.f32 %v429, %v429
  %v633 = vmul.f32 %v430, %v430
  %v634 = vmul.f32 %v431, %v431
  %v635 = vmul.f32 %v432, %v432
  %v636 = vmul.f32 %v433, %v433
  %v637 = vmul.f32 %v434, %v434
  %v638 = vmul.f32 %v435, %v435
  %v639 = vmul.f32 %v436, %v436
  %v640 = vmul.f32 %v437, %v437
  %v641 = vmul.f32 %v438, %v438
  %v642 = vmul.f32 %v439, %v439
  %v643 = vmul.f32 %v440, %v440
  %v644 = vmul.f32 %v441, %v441
  %v645 = vmul.f32 %v442, %v442
  %v646 = vmul.f32 %v443, %v443
  %v647 = vmul.f32 %v444, %v444
  %v648 = vmul.f32 %v445, %v445
  %v649 = vmul.f32 %v446, %v446
  %v650 = vmul.f32 %v447, %v447
  %v651 = vmul.f32 %v448, %v448
  %v652 = vmul.f32 %v449, %v449
  %v653 = vmul.f32 %v450, %v450
  %v654 = vmul.f32 %v451, %v451
  %v655 = vmul.f32 %v452, %v452
  %v656 = vmul.f32 %v453, %v453
  %v657 = vmul.f32 %v454, %v454
  %v658 = vmul.f32 %v455, %v455
  %v659 = vmul.f32 %v456, %v456
  %v660 = vmul.f32 %v457, %v457
  %v661 = vmul.f32 %v458, %v458
  %v662 = vmul.f32 %v459, %v459
  %v663 = vmul.f32 %v460, %v460
  %v664 = vmul.f32 %v461, %v461
  %v665 = vmul.f32 %v462, %v462
  %v666 = vmul.f32 %v463, %v463
  %v667 = vmul.f32 %v464, %v464
  %v668 = vmul.f32 %v465, %v465
  %v669 = vmul.f32 %v466, %v466
  %v670 = vmul.f32 %v467, %v467
  %v671 = vsel %vm469, %v607, 0.0
  %v672 = vsel %vm469, %v608, 0.0
  %v673 = vadd.f32 %v671, %v672
  %v674 = vsel %vm469, %v609, 0.0
  %v675 = vadd.f32 %v673, %v674
  %v676 = vsel %vm469, %v610, 0.0
  %v677 = vadd.f32 %v675, %v676
  %v678 = vsel %vm469, %v611, 0.0
  %v679 = vadd.f32 %v677, %v678
  %v680 = vsel %vm469, %v612, 0.0
  %v681 = vadd.f32 %v679, %v680
  %v682 = vsel %vm469, %v613, 0.0
  %v683 = vadd.f32 %v681, %v682
  %v684 = vsel %vm469, %v614, 0.0
  %v685 = vadd.f32 %v683, %v684
  %v686 = vsel %vm469, %v615, 0.0
  %v687 = vadd.f32 %v685, %v686
  %v688 = vsel %vm469, %v616, 0.0
  %v689 = vadd.f32 %v687, %v688
  %v690 = vsel %vm469, %v617, 0.0
  %v691 = vadd.f32 %v689, %v690
  %v692 = vsel %vm469, %v618, 0.0
  %v693 = vadd.f32 %v691, %v692
  %v694 = vsel %vm469, %v619, 0.0
  %v695 = vadd.f32 %v693, %v694
  %v696 = vsel %vm469, %v620, 0.0
  %v697 = vadd.f32 %v695, %v696
  %v698 = vsel %vm469, %v621, 0.0
  %v699 = vadd.f32 %v697, %v698
  %v700 = vsel %vm469, %v622, 0.0
  %v701 = vadd.f32 %v699, %v700
  %v702 = vsel %vm469, %v623, 0.0
  %v703 = vadd.f32 %v701, %v702
  %v704 = vsel %vm469, %v624, 0.0
  %v705 = vadd.f32 %v703, %v704
  %v706 = vsel %vm469, %v625, 0.0
  %v707 = vadd.f32 %v705, %v706
  %v708 = vsel %vm469, %v626, 0.0
  %v709 = vadd.f32 %v707, %v708
  %v710 = vsel %vm469, %v627, 0.0
  %v711 = vadd.f32 %v709, %v710
  %v712 = vsel %vm469, %v628, 0.0
  %v713 = vadd.f32 %v711, %v712
  %v714 = vsel %vm469, %v629, 0.0
  %v715 = vadd.f32 %v713, %v714
  %v716 = vsel %vm469, %v630, 0.0
  %v717 = vadd.f32 %v715, %v716
  %v718 = vsel %vm469, %v631, 0.0
  %v719 = vadd.f32 %v717, %v718
  %v720 = vsel %vm469, %v632, 0.0
  %v721 = vadd.f32 %v719, %v720
  %v722 = vsel %vm469, %v633, 0.0
  %v723 = vadd.f32 %v721, %v722
  %v724 = vsel %vm469, %v634, 0.0
  %v725 = vadd.f32 %v723, %v724
  %v726 = vsel %vm469, %v635, 0.0
  %v727 = vadd.f32 %v725, %v726
  %v728 = vsel %vm469, %v636, 0.0
  %v729 = vadd.f32 %v727, %v728
  %v730 = vsel %vm469, %v637, 0.0
  %v731 = vadd.f32 %v729, %v730
  %v732 = vsel %vm469, %v638, 0.0
  %v733 = vadd.f32 %v731, %v732
  %v734 = vsel %vm469, %v639, 0.0
  %v735 = vadd.f32 %v733, %v734
  %v736 = vsel %vm469, %v640, 0.0
  %v737 = vadd.f32 %v735, %v736
  %v738 = vsel %vm469, %v641, 0.0
  %v739 = vadd.f32 %v737, %v738
  %v740 = vsel %vm469, %v642, 0.0
  %v741 = vadd.f32 %v739, %v740
  %v742 = vsel %vm469, %v643, 0.0
  %v743 = vadd.f32 %v741, %v742
  %v744 = vsel %vm469, %v644, 0.0
  %v745 = vadd.f32 %v743, %v744
  %v746 = vsel %vm469, %v645, 0.0
  %v747 = vadd.f32 %v745, %v746
  %v748 = vsel %vm469, %v646, 0.0
  %v749 = vadd.f32 %v747, %v748
  %v750 = vsel %vm469, %v647, 0.0
  %v751 = vadd.f32 %v749, %v750
  %v752 = vsel %vm469, %v648, 0.0
  %v753 = vadd.f32 %v751, %v752
  %v754 = vsel %vm469, %v649, 0.0
  %v755 = vadd.f32 %v753, %v754
  %v756 = vsel %vm469, %v650, 0.0
  %v757 = vadd.f32 %v755, %v756
  %v758 = vsel %vm469, %v651, 0.0
  %v759 = vadd.f32 %v757, %v758
  %v760 = vsel %vm469, %v652, 0.0
  %v761 = vadd.f32 %v759, %v760
  %v762 = vsel %vm469, %v653, 0.0
  %v763 = vadd.f32 %v761, %v762
  %v764 = vsel %vm469, %v654, 0.0
  %v765 = vadd.f32 %v763, %v764
  %v766 = vsel %vm469, %v655, 0.0
  %v767 = vadd.f32 %v765, %v766
  %v768 = vsel %vm469, %v656, 0.0
  %v769 = vadd.f32 %v767, %v768
  %v770 = vsel %vm469, %v657, 0.0
  %v771 = vadd.f32 %v769, %v770
  %v772 = vsel %vm469, %v658, 0.0
  %v773 = vadd.f32 %v771, %v772
  %v774 = vsel %vm469, %v659, 0.0
  %v775 = vadd.f32 %v773, %v774
  %v776 = vsel %vm469, %v660, 0.0
  %v777 = vadd.f32 %v775, %v776
  %v778 = vsel %vm469, %v661, 0.0
  %v779 = vadd.f32 %v777, %v778
  %v780 = vsel %vm469, %v662, 0.0
  %v781 = vadd.f32 %v779, %v780
  %v782 = vsel %vm469, %v663, 0.0
  %v783 = vadd.f32 %v781, %v782
  %v784 = vsel %vm469, %v664, 0.0
  %v785 = vadd.f32 %v783, %v784
  %v786 = vsel %vm469, %v665, 0.0
  %v787 = vadd.f32 %v785, %v786
  %v788 = vsel %vm469, %v666, 0.0
  %v789 = vadd.f32 %v787, %v788
  %v790 = vsel %vm469, %v667, 0.0
  %v791 = vadd.f32 %v789, %v790
  %v792 = vsel %vm469, %v668, 0.0
  %v793 = vadd.f32 %v791, %v792
  %v794 = vsel %vm469, %v669, 0.0
  %v795 = vadd.f32 %v793, %v794
  %v796 = vsel %vm469, %v670, 0.0
  %v797 = vadd.f32 %v795, %v796
  %v798 = vrot.slane %v797, 4
  %v799 = vadd.f32 %v797, %v798
  %v800 = vrot.slane %v799, 2
  %v801 = vadd.f32 %v799, %v800
  %v802 = vrot.slane %v801, 1
  %v803 = vadd.f32 %v801, %v802
  %v804 = vadd.f32 %v606, %v803
  %805 = vst.msk [vmem:[%s2] sm:$0x1] %vm604, %v804
  // Predicated region
  $region10: #{basic_block_forward.3} parent=0 // pred_check
    _
  $region11: #{basic_block_forward.3} parent=0 // pred_check_branch
    %807 = sbr.rel (0) target = $region13
  $region12: #{basic_block_forward.3} parent=0 // pred_region
    _
  $region13: #{basic_block_forward.3} parent=0 // pred_fallthru
    _
  // Predicated region
  $region14: #{basic_block_forward.3} parent=0 // pred_check
    _
  $region15: #{basic_block_forward.3} parent=0 // pred_check_branch
    %809 = sbr.rel (0) target = $region17
  $region16: #{basic_block_forward.3} parent=0 // pred_region
    _
  $region17: #{basic_block_forward.3} parent=0 // pred_fallthru
    _
  // Predicated region
  $region18: #{basic_block_forward.3} parent=0 // pred_check
    _
  $region19: #{basic_block_forward.3} parent=0 // pred_check_branch
    %811 = sbr.rel (0) target = $region21
  $region20: #{basic_block_forward.3} parent=0 // pred_region
    _
  $region21: #{basic_block_forward.3} parent=0 // pred_fallthru
    _
  // Predicated region
  $region22: #{basic_block_forward.3} parent=0 // pred_check
    _
  $region23: #{basic_block_forward.3} parent=0 // pred_check_branch
    %813 = sbr.rel (0) target = $region25
  $region24: #{basic_block_forward.3} parent=0 // pred_region
    _
  $region25: #{basic_block_forward.3} parent=0 // pred_fallthru
    _

// kernel: basic_block_forward.5
$region0: #{basic_block_forward.5}
  #allocation0 [shape = 'u32[]', space=smem, size = 0x4, offset = 0x4, fixed_abs, tag = 'smem constant byte address 0x4 - core index']
  #allocation1 [shape = 'u32[144,128]{1,0:T(1,128)}', space=vmem, size = 0x12000, scoped, tag = 'internal scratch']
  #allocation2 [shape = 'f32[18,18,8]{2,1,0:T(8,128)}', space=vmem, size = 0x36000, scoped, tag = 'scratch operand']
  %s0 = inlined_call_operand.vmem [shape: f32[2,16,16,8], index: 0, kind: input, shape index: {}]
  %s1 = inlined_call_operand.vmem [shape: f32[1,8], index: 1, kind: input, shape index: {}]
  %s2 = inlined_call_operand.vmem [shape: f32[1,8], index: 2, kind: input, shape index: {}]
  %s3 = inlined_call_operand.vmem [shape: f32[72,8], index: 3, kind: input, shape index: {}]
  %s4 = inlined_call_operand.vmem [shape: f32[2,16,16,4], index: 4, kind: input, shape index: {}]
  %s5 = inlined_call_operand.vmem [shape: f32[1,4], index: 5, kind: input, shape index: {}]
  %s6 = inlined_call_operand.vmem [shape: f32[1,4], index: 6, kind: input, shape index: {}]
  %s7 = inlined_call_operand.vmem [shape: f32[4,8], index: 7, kind: input, shape index: {}]
  %s8 = inlined_call_operand.vmem [shape: f32[2,16,16,8], index: 8, kind: output, shape index: {}]
  %s9 = sld [smem:[#allocation0]]
  $region69: #{basic_block_forward.5} parent=0
    _
  %s11 = ssub.s32 1, %s9
  %s12 = scalar_select 0, %s11, %s9
  loop: start=0, step=1, limit=4
  $region2: #{basic_block_forward.5} parent=0 // loop_pre_header
    _
  $region3: #{basic_block_forward.5} parent=0 // loop_header
    %s14 = sphi 0, %s18
    %p15 = scmp.ge.s32.totalorder %s14, 4
    %s21 = sphi 0, %s33
    %s22 = sphi 0, %s29
    %s23 = sphi 0, %s21
    %s24 = sphi 0, %s22
    %s25 = sphi 0, %s23
    %s26 = sphi 0, %s24
    %s36 = sphi 0, %s38
    %s39 = sphi 0, %s36
    %s40 = sphi 0, %s39
    %s56 = sphi 0, %s40
    %s60 = sphi 0, %s60
    %s62 = sphi 0, %s60
    %s63 = sphi 0, %s62
    %s77 = sphi 0, %s63
    %s81 = sphi 0, %s81
    %s83 = sphi 0, %s81
    %s84 = sphi 0, %s83
    %s98 = sphi 0, %s84
    %s104 = sphi 0, %s106
    %s107 = sphi 0, %s104
    %s108 = sphi 0, %s107
    %s124 = sphi 0, %s108
    %s130 = sphi 0, %s132
    %s133 = sphi 0, %s130
    %s134 = sphi 0, %s133
    %s150 = sphi 0, %s134
    %s154 = sphi 0, %s154
    %s156 = sphi 0, %s154
    %s157 = sphi 0, %s156
    %s171 = sphi 0, %s157
    %s175 = sphi 0, %s175
    %s177 = sphi 0, %s175
    %s178 = sphi 0, %s177
    %s192 = sphi 0, %s178
    %s198 = sphi 0, %s200
    %s201 = sphi 0, %s198
    %s202 = sphi 0, %s201
    %s218 = sphi 0, %s202
    %s226 = sphi 0, %s228
    %s229 = sphi 0, %s226
    %s230 = sphi 0, %s229
    %s246 = sphi 0, %s230
  $region4: #{basic_block_forward.5} parent=0 // loop_header_branch
    %17 = sbr.rel (%p15) target = $region8
  $region5: #{basic_block_forward.5} parent=0 // loop_body
    %s19 = ssub.s32 %s14, 1
    %s20 = ssub.s32 %s14, 2
    %s27 = sadd.s32 1, %s22
    %p28 = scmp.ge.s32.totalorder %s27, 1
    %s29 = scalar_select %p28, 0, %s27
    %s30 = sadd.s32 1, %s21
    %s31 = scalar_select %p28, %s30, %s21
    %p32 = scmp.ge.s32.totalorder %s31, 2
    %s33 = scalar_select %p32, 0, %s31
    %s34 = ssub.s32 %s21, %s33
    %p35 = scmp.eq.s32.totalorder %s34, 0
    %s37 = sadd.s32 %s36, 1
    %s38 = scalar_select %p35, %s36, %s37
    %p41 = pneg %p35
    %p42 = scmp.eq.s32.totalorder %s14, 1
    %p43 = por %p41, %p42
    %p44 = scmp.ne.s32.totalorder %s36, %s39
    %p45 = scmp.eq.s32.totalorder %s14, 0
    %p46 = por %p44, %p45
    %p47 = scmp.ne.s32.totalorder %s36, %s39
    %p48 = scmp.eq.s32.totalorder %s19, 1
    %p49 = por %p47, %p48
    %p50 = scmp.ne.s32.totalorder %s39, %s40
    %p51 = scmp.eq.s32.totalorder %s19, 0
    %p52 = por %p50, %p51
    %p53 = scmp.ne.s32.totalorder %s39, %s40
    %p54 = scmp.eq.s32.totalorder %s20, 1
    %p55 = por %p53, %p54
    %p57 = scmp.ne.s32.totalorder %s40, %s56
    %p58 = scmp.eq.s32.totalorder %s20, 0
    %p59 = por %p57, %p58
    %s61 = sadd.s32 %s60, 1
    %p64 = scmp.eq.s32.totalorder %s14, 1
    %p65 = scmp.ne.s32.totalorder %s60, %s62
    %p66 = scmp.eq.s32.totalorder %s14, 0
    %p67 = por %p65, %p66
    %p68 = scmp.ne.s32.totalorder %s60, %s62
    %p69 = scmp.eq.s32.totalorder %s19, 1
    %p70 = por %p68, %p69
    %p71 = scmp.ne.s32.totalorder %s62, %s63
    %p72 = scmp.eq.s32.totalorder %s19, 0
    %p73 = por %p71, %p72
    %p74 = scmp.ne.s32.totalorder %s62, %s63
    %p75 = scmp.eq.s32.totalorder %s20, 1
    %p76 = por %p74, %p75
    %p78 = scmp.ne.s32.totalorder %s63, %s77
    %p79 = scmp.eq.s32.totalorder %s20, 0
    %p80 = por %p78, %p79
    %s82 = sadd.s32 %s81, 1
    %p85 = scmp.eq.s32.totalorder %s14, 1
    %p86 = scmp.ne.s32.totalorder %s81, %s83
    %p87 = scmp.eq.s32.totalorder %s14, 0
    %p88 = por %p86, %p87
    %p89 = scmp.ne.s32.totalorder %s81, %s83
    %p90 = scmp.eq.s32.totalorder %s19, 1
    %p91 = por %p89, %p90
    %p92 = scmp.ne.s32.totalorder %s83, %s84
    %p93 = scmp.eq.s32.totalorder %s19, 0
    %p94 = por %p92, %p93
    %p95 = scmp.ne.s32.totalorder %s83, %s84
    %p96 = scmp.eq.s32.totalorder %s20, 1
    %p97 = por %p95, %p96
    %p99 = scmp.ne.s32.totalorder %s84, %s98
    %p100 = scmp.eq.s32.totalorder %s20, 0
    %p101 = por %p99, %p100
    %s102 = ssub.s32 %s22, %s29
    %p103 = scmp.eq.s32.totalorder %s102, 0
    %s105 = sadd.s32 %s104, 1
    %s106 = scalar_select %p103, %s104, %s105
    %p109 = pneg %p103
    %p110 = scmp.eq.s32.totalorder %s14, 1
    %p111 = por %p109, %p110
    %p112 = scmp.ne.s32.totalorder %s104, %s107
    %p113 = scmp.eq.s32.totalorder %s14, 0
    %p114 = por %p112, %p113
    %p115 = scmp.ne.s32.totalorder %s104, %s107
    %p116 = scmp.eq.s32.totalorder %s19, 1
    %p117 = por %p115, %p116
    %p118 = scmp.ne.s32.totalorder %s107, %s108
    %p119 = scmp.eq.s32.totalorder %s19, 0
    %p120 = por %p118, %p119
    %p121 = scmp.ne.s32.totalorder %s107, %s108
    %p122 = scmp.eq.s32.totalorder %s20, 1
    %p123 = por %p121, %p122
    %p125 = scmp.ne.s32.totalorder %s108, %s124
    %p126 = scmp.eq.s32.totalorder %s20, 0
    %p127 = por %p125, %p126
    %s128 = ssub.s32 %s21, %s33
    %p129 = scmp.eq.s32.totalorder %s128, 0
    %s131 = sadd.s32 %s130, 1
    %s132 = scalar_select %p129, %s130, %s131
    %p135 = pneg %p129
    %p136 = scmp.eq.s32.totalorder %s14, 1
    %p137 = por %p135, %p136
    %p138 = scmp.ne.s32.totalorder %s130, %s133
    %p139 = scmp.eq.s32.totalorder %s14, 0
    %p140 = por %p138, %p139
    %p141 = scmp.ne.s32.totalorder %s130, %s133
    %p142 = scmp.eq.s32.totalorder %s19, 1
    %p143 = por %p141, %p142
    %p144 = scmp.ne.s32.totalorder %s133, %s134
    %p145 = scmp.eq.s32.totalorder %s19, 0
    %p146 = por %p144, %p145
    %p147 = scmp.ne.s32.totalorder %s133, %s134
    %p148 = scmp.eq.s32.totalorder %s20, 1
    %p149 = por %p147, %p148
    %p151 = scmp.ne.s32.totalorder %s134, %s150
    %p152 = scmp.eq.s32.totalorder %s20, 0
    %p153 = por %p151, %p152
    %s155 = sadd.s32 %s154, 1
    %p158 = scmp.eq.s32.totalorder %s14, 1
    %p159 = scmp.ne.s32.totalorder %s154, %s156
    %p160 = scmp.eq.s32.totalorder %s14, 0
    %p161 = por %p159, %p160
    %p162 = scmp.ne.s32.totalorder %s154, %s156
    %p163 = scmp.eq.s32.totalorder %s19, 1
    %p164 = por %p162, %p163
    %p165 = scmp.ne.s32.totalorder %s156, %s157
    %p166 = scmp.eq.s32.totalorder %s19, 0
    %p167 = por %p165, %p166
    %p168 = scmp.ne.s32.totalorder %s156, %s157
    %p169 = scmp.eq.s32.totalorder %s20, 1
    %p170 = por %p168, %p169
    %p172 = scmp.ne.s32.totalorder %s157, %s171
    %p173 = scmp.eq.s32.totalorder %s20, 0
    %p174 = por %p172, %p173
    %s176 = sadd.s32 %s175, 1
    %p179 = scmp.eq.s32.totalorder %s14, 1
    %p180 = scmp.ne.s32.totalorder %s175, %s177
    %p181 = scmp.eq.s32.totalorder %s14, 0
    %p182 = por %p180, %p181
    %p183 = scmp.ne.s32.totalorder %s175, %s177
    %p184 = scmp.eq.s32.totalorder %s19, 1
    %p185 = por %p183, %p184
    %p186 = scmp.ne.s32.totalorder %s177, %s178
    %p187 = scmp.eq.s32.totalorder %s19, 0
    %p188 = por %p186, %p187
    %p189 = scmp.ne.s32.totalorder %s177, %s178
    %p190 = scmp.eq.s32.totalorder %s20, 1
    %p191 = por %p189, %p190
    %p193 = scmp.ne.s32.totalorder %s178, %s192
    %p194 = scmp.eq.s32.totalorder %s20, 0
    %p195 = por %p193, %p194
    %s196 = ssub.s32 %s22, %s29
    %p197 = scmp.eq.s32.totalorder %s196, 0
    %s199 = sadd.s32 %s198, 1
    %s200 = scalar_select %p197, %s198, %s199
    %p203 = pneg %p197
    %p204 = scmp.eq.s32.totalorder %s14, 1
    %p205 = por %p203, %p204
    %p206 = scmp.ne.s32.totalorder %s198, %s201
    %p207 = scmp.eq.s32.totalorder %s14, 0
    %p208 = por %p206, %p207
    %p209 = scmp.ne.s32.totalorder %s198, %s201
    %p210 = scmp.eq.s32.totalorder %s19, 1
    %p211 = por %p209, %p210
    %p212 = scmp.ne.s32.totalorder %s201, %s202
    %p213 = scmp.eq.s32.totalorder %s19, 0
    %p214 = por %p212, %p213
    %p215 = scmp.ne.s32.totalorder %s201, %s202
    %p216 = scmp.eq.s32.totalorder %s20, 1
    %p217 = por %p215, %p216
    %p219 = scmp.ne.s32.totalorder %s202, %s218
    %p220 = scmp.eq.s32.totalorder %s20, 0
    %p221 = por %p219, %p220
    %s222 = ssub.s32 %s21, %s33
    %s223 = ssub.s32 %s22, %s29
    %s224 = sor.u32 %s222, %s223
    %p225 = scmp.eq.s32.totalorder %s224, 0
    %s227 = sadd.s32 %s226, 1
    %s228 = scalar_select %p225, %s226, %s227
    %p231 = pneg %p225
    %p232 = scmp.eq.s32.totalorder %s14, 1
    %p233 = por %p231, %p232
    %p234 = scmp.ne.s32.totalorder %s226, %s229
    %p235 = scmp.eq.s32.totalorder %s14, 0
    %p236 = por %p234, %p235
    %p237 = scmp.ne.s32.totalorder %s226, %s229
    %p238 = scmp.eq.s32.totalorder %s19, 1
    %p239 = por %p237, %p238
    %p240 = scmp.ne.s32.totalorder %s229, %s230
    %p241 = scmp.eq.s32.totalorder %s19, 0
    %p242 = por %p240, %p241
    %p243 = scmp.ne.s32.totalorder %s229, %s230
    %p244 = scmp.eq.s32.totalorder %s20, 1
    %p245 = por %p243, %p244
    %p247 = scmp.ne.s32.totalorder %s230, %s246
    %p248 = scmp.eq.s32.totalorder %s20, 0
    %p249 = por %p247, %p248
    %p250 = scmp.le.s32.totalorder 1, %s14
    %p251 = scmp.lt.s32.totalorder %s14, 3
    %p252 = pnand %p250, %p251
    %p253 = pneg %p252
    // Predicated region
    $region9: #{basic_block_forward.5} parent=5 // pred_check
      _
    $region10: #{basic_block_forward.5} parent=5 // pred_check_branch
      %255 = sbr.rel (%p252) target = $region12
    $region11: #{basic_block_forward.5} parent=5 // pred_region
      %s256 = ssub.s32 %s14, 1
      // Predicated region
      $region13: #{basic_block_forward.5} parent=11 // pred_check
        %p257 = pneg %p73
      $region14: #{basic_block_forward.5} parent=11 // pred_check_branch
        %259 = sbr.rel (%p257) target = $region16
      $region15: #{basic_block_forward.5} parent=11 // pred_region
        _
      $region16: #{basic_block_forward.5} parent=11 // pred_fallthru
        _
      // Predicated region
      $region17: #{basic_block_forward.5} parent=11 // pred_check
        %p260 = pneg %p94
      $region18: #{basic_block_forward.5} parent=11 // pred_check_branch
        %262 = sbr.rel (%p260) target = $region20
      $region19: #{basic_block_forward.5} parent=11 // pred_region
        _
      $region20: #{basic_block_forward.5} parent=11 // pred_fallthru
        _
      // Predicated region
      $region21: #{basic_block_forward.5} parent=11 // pred_check
        %p263 = pneg %p120
      $region22: #{basic_block_forward.5} parent=11 // pred_check_branch
        %265 = sbr.rel (%p263) target = $region24
      $region23: #{basic_block_forward.5} parent=11 // pred_region
        %p266 = scmp.lt.s32.totalorder %s24, 0
        %s267 = scalar_select %p266, %s24, 0
        %s268 = smul.addr %s267, 8
        %s269 = scalar_lea.vmem %s3, %s268
      $region24: #{basic_block_forward.5} parent=11 // pred_fallthru
        _
      // Predicated region
      $region25: #{basic_block_forward.5} parent=11 // pred_check
        %p270 = pneg %p167
      $region26: #{basic_block_forward.5} parent=11 // pred_check_branch
        %272 = sbr.rel (%p270) target = $region28
      $region27: #{basic_block_forward.5} parent=11 // pred_region
        _
      $region28: #{basic_block_forward.5} parent=11 // pred_fallthru
        _
      // Predicated region
      $region29: #{basic_block_forward.5} parent=11 // pred_check
        %p273 = pneg %p188
      $region30: #{basic_block_forward.5} parent=11 // pred_check_branch
        %275 = sbr.rel (%p273) target = $region32
      $region31: #{basic_block_forward.5} parent=11 // pred_region
        _
      $region32: #{basic_block_forward.5} parent=11 // pred_fallthru
        _
      // Predicated region
      $region33: #{basic_block_forward.5} parent=11 // pred_check
        %p276 = pneg %p214
      $region34: #{basic_block_forward.5} parent=11 // pred_check_branch
        %278 = sbr.rel (%p276) target = $region36
      $region35: #{basic_block_forward.5} parent=11 // pred_region
        %p279 = scmp.lt.s32.totalorder %s24, 0
        %s280 = scalar_select %p279, %s24, 0
        %s281 = smul.addr %s280, 4
        %s282 = scalar_lea.vmem %s7, %s281
      $region36: #{basic_block_forward.5} parent=11 // pred_fallthru
        _
    $region12: #{basic_block_forward.5} parent=5 // pred_fallthru
      _
    %p283 = scmp.lt.s32.totalorder %s14, 2
    // Predicated region
    $region37: #{basic_block_forward.5} parent=5 // pred_check
      %p284 = pneg %p283
    $region38: #{basic_block_forward.5} parent=5 // pred_check_branch
      %286 = sbr.rel (%p284) target = $region40
    $region39: #{basic_block_forward.5} parent=5 // pred_region
      // Predicated region
      $region41: #{basic_block_forward.5} parent=39 // pred_check
        %p287 = pneg %p46
      $region42: #{basic_block_forward.5} parent=39 // pred_check_branch
        %289 = sbr.rel (%p287) target = $region44
      $region43: #{basic_block_forward.5} parent=39 // pred_region
        %p290 = scmp.lt.s32.totalorder %s21, 1
        %s291 = scalar_select %p290, %s21, 1
        %s292 = smul.addr %s291, 32
        %s293 = smul.addr %s292, 8
        %s294 = scalar_lea.vmem %s0, %s293
      $region44: #{basic_block_forward.5} parent=39 // pred_fallthru
        _
      // Predicated region
      $region45: #{basic_block_forward.5} parent=39 // pred_check
        %p295 = pneg %p140
      $region46: #{basic_block_forward.5} parent=39 // pred_check_branch
        %297 = sbr.rel (%p295) target = $region48
      $region47: #{basic_block_forward.5} parent=39 // pred_region
        %p298 = scmp.lt.s32.totalorder %s21, 1
        %s299 = scalar_select %p298, %s21, 1
        %s300 = smul.addr %s299, 32
        %s301 = smul.addr %s300, 8
        %s302 = scalar_lea.vmem %s4, %s301
      $region48: #{basic_block_forward.5} parent=39 // pred_fallthru
        _
    $region40: #{basic_block_forward.5} parent=5 // pred_fallthru
      _
    %p303 = scmp.le.s32.totalorder 1, %s14
    %p304 = scmp.lt.s32.totalorder %s14, 3
    %p305 = pnand %p303, %p304
    %p306 = pneg %p305
    // Predicated region
    $region49: #{basic_block_forward.5} parent=5 // pred_check
      _
    $region50: #{basic_block_forward.5} parent=5 // pred_check_branch
      %308 = sbr.rel (%p305) target = $region52
    $region51: #{basic_block_forward.5} parent=5 // pred_region
      %s309 = ssub.s32 %s14, 1
      %p310 = scmp.lt.s32.totalorder %s23, 1
      %s311 = scalar_select %p310, %s23, 1
      %s312 = smul.addr %s311, 32
      %s313 = smul.addr %s312, 8
      %s314 = scalar_lea.vmem %s0, %s313
      %p315 = pneg %p52
      %p316 = pneg %p49
      %p317 = pneg %p73
      %p318 = pneg %p70
      %p319 = pneg %p94
      %p320 = pneg %p91
      %p321 = scmp.lt.s32.totalorder %s24, 0
      %s322 = scalar_select %p321, %s24, 0
      %s323 = smul.addr %s322, 8
      %s324 = scalar_lea.vmem %s3, %s323
      %p325 = pneg %p120
      %p326 = pneg %p117
      %p327 = scmp.lt.s32.totalorder %s23, 1
      %s328 = scalar_select %p327, %s23, 1
      %s329 = smul.addr %s328, 32
      %s330 = smul.addr %s329, 8
      %s331 = scalar_lea.vmem %s4, %s330
      %p332 = pneg %p146
      %p333 = pneg %p143
      %p334 = pneg %p167
      %p335 = pneg %p164
      %p336 = pneg %p188
      %p337 = pneg %p185
      %p338 = scmp.lt.s32.totalorder %s24, 0
      %s339 = scalar_select %p338, %s24, 0
      %s340 = smul.addr %s339, 4
      %s341 = scalar_lea.vmem %s7, %s340
      %p342 = pneg %p214
      %p343 = pneg %p211
      %p344 = pneg %p242
      %p345 = pneg %p239
      %p346 = scmp.lt.s32.totalorder %s23, 1
      %s347 = scalar_select %p346, %s23, 1
      %p348 = scmp.lt.s32.totalorder %s24, 0
      %s349 = scalar_select %p348, %s24, 0
      %s350 = smul.addr %s347, 32
      %s351 = sadd.s32 %s349, %s350
      %s352 = smul.addr %s351, 8
      %s353 = scalar_lea.vmem %s8, %s352
      %p354 = scmp.lt.s32.totalorder %s23, 1
      %s355 = scalar_select %p354, %s23, 1
      %s356 = smul.addr %s355, 32
      %s357 = smul.addr %s356, 8
      %s358 = scalar_lea.vmem %s0, %s357
      %p359 = scmp.lt.s32.totalorder %s24, 0
      %s360 = scalar_select %p359, %s24, 0
      %s361 = smul.addr %s360, 8
      %s362 = scalar_lea.vmem %s3, %s361
      %p363 = scmp.lt.s32.totalorder %s23, 1
      %s364 = scalar_select %p363, %s23, 1
      %s365 = smul.addr %s364, 32
      %s366 = smul.addr %s365, 8
      %s367 = scalar_lea.vmem %s4, %s366
      %p368 = scmp.lt.s32.totalorder %s24, 0
      %s369 = scalar_select %p368, %s24, 0
      %s370 = smul.addr %s369, 4
      %s371 = scalar_lea.vmem %s7, %s370
      %p372 = scmp.lt.s32.totalorder %s23, 1
      %s373 = scalar_select %p372, %s23, 1
      %p374 = scmp.lt.s32.totalorder %s24, 0
      %s375 = scalar_select %p374, %s24, 0
      %s376 = smul.addr %s373, 32
      %s377 = sadd.s32 %s375, %s376
      %s378 = smul.addr %s377, 8
      %s379 = scalar_lea.vmem %s8, %s378
      %p380 = scmp.eq.s32.totalorder %s24, 0
      // Predicated region
      $region53: #{basic_block_forward.5} parent=51 // pred_check
        %p381 = pneg %p380
      $region54: #{basic_block_forward.5} parent=51 // pred_check_branch
        %383 = sbr.rel (%p381) target = $region56
      $region55: #{basic_block_forward.5} parent=51 // pred_region
        %v384 = vld [vmem:[%s358] sm:$0xff]
        %v385 = vld [vmem:[%s358 + $0x8] sm:$0xff]
        %v386 = vld [vmem:[%s358 + $0x10] sm:$0xff]
        %v387 = vld [vmem:[%s358 + $0x18] sm:$0xff]
        %v388 = vld [vmem:[%s358 + $0x20] sm:$0xff]
        %v389 = vld [vmem:[%s358 + $0x28] sm:$0xff]
        %v390 = vld [vmem:[%s358 + $0x30] sm:$0xff]
        %v391 = vld [vmem:[%s358 + $0x38] sm:$0xff]
        %v392 = vld [vmem:[%s358 + $0x40] sm:$0xff]
        %v393 = vld [vmem:[%s358 + $0x48] sm:$0xff]
        %v394 = vld [vmem:[%s358 + $0x50] sm:$0xff]
        %v395 = vld [vmem:[%s358 + $0x58] sm:$0xff]
        %v396 = vld [vmem:[%s358 + $0x60] sm:$0xff]
        %v397 = vld [vmem:[%s358 + $0x68] sm:$0xff]
        %v398 = vld [vmem:[%s358 + $0x70] sm:$0xff]
        %v399 = vld [vmem:[%s358 + $0x78] sm:$0xff]
        %v400 = vld [vmem:[%s358 + $0x80] sm:$0xff]
        %v401 = vld [vmem:[%s358 + $0x88] sm:$0xff]
        %v402 = vld [vmem:[%s358 + $0x90] sm:$0xff]
        %v403 = vld [vmem:[%s358 + $0x98] sm:$0xff]
        %v404 = vld [vmem:[%s358 + $0xa0] sm:$0xff]
        %v405 = vld [vmem:[%s358 + $0xa8] sm:$0xff]
        %v406 = vld [vmem:[%s358 + $0xb0] sm:$0xff]
        %v407 = vld [vmem:[%s358 + $0xb8] sm:$0xff]
        %v408 = vld [vmem:[%s358 + $0xc0] sm:$0xff]
        %v409 = vld [vmem:[%s358 + $0xc8] sm:$0xff]
        %v410 = vld [vmem:[%s358 + $0xd0] sm:$0xff]
        %v411 = vld [vmem:[%s358 + $0xd8] sm:$0xff]
        %v412 = vld [vmem:[%s358 + $0xe0] sm:$0xff]
        %v413 = vld [vmem:[%s358 + $0xe8] sm:$0xff]
        %v414 = vld [vmem:[%s358 + $0xf0] sm:$0xff]
        %v415 = vld [vmem:[%s358 + $0xf8] sm:$0xff]
        %v416 = vld [vmem:[%s1] sm:$0x1]
        %v418 = vlaneseq
        %v419 = vshrl.u32 %v418, 7
        %v420 = vsub.s32 0, %v419
        %v421 = vrot.slane %v416, %v420
        %v423 = vmul.f32 %v384, %v421
        %v424 = vmul.f32 %v385, %v421
        %v425 = vmul.f32 %v386, %v421
        %v426 = vmul.f32 %v387, %v421
        %v427 = vmul.f32 %v388, %v421
        %v428 = vmul.f32 %v389, %v421
        %v429 = vmul.f32 %v390, %v421
        %v430 = vmul.f32 %v391, %v421
        %v431 = vmul.f32 %v392, %v421
        %v432 = vmul.f32 %v393, %v421
        %v433 = vmul.f32 %v394, %v421
        %v434 = vmul.f32 %v395, %v421
        %v435 = vmul.f32 %v396, %v421
        %v436 = vmul.f32 %v397, %v421
        %v437 = vmul.f32 %v398, %v421
        %v438 = vmul.f32 %v399, %v421
        %v439 = vmul.f32 %v400, %v421
        %v440 = vmul.f32 %v401, %v421
        %v441 = vmul.f32 %v402, %v421
        %v442 = vmul.f32 %v403, %v421
        %v443 = vmul.f32 %v404, %v421
        %v444 = vmul.f32 %v405, %v421
        %v445 = vmul.f32 %v406, %v421
        %v446 = vmul.f32 %v407, %v421
        %v447 = vmul.f32 %v408, %v421
        %v448 = vmul.f32 %v409, %v421
        %v449 = vmul.f32 %v410, %v421
        %v450 = vmul.f32 %v411, %v421
        %v451 = vmul.f32 %v412, %v421
        %v452 = vmul.f32 %v413, %v421
        %v453 = vmul.f32 %v414, %v421
        %v454 = vmul.f32 %v415, %v421
        %v455 = vld [vmem:[%s2] sm:$0x1]
        %v457 = vlaneseq
        %v458 = vshrl.u32 %v457, 7
        %v459 = vsub.s32 0, %v458
        %v460 = vrot.slane %v455, %v459
        %v462 = vadd.f32 %v423, %v460
        %v463 = vadd.f32 %v424, %v460
        %v464 = vadd.f32 %v425, %v460
        %v465 = vadd.f32 %v426, %v460
        %v466 = vadd.f32 %v427, %v460
        %v467 = vadd.f32 %v428, %v460
        %v468 = vadd.f32 %v429, %v460
        %v469 = vadd.f32 %v430, %v460
        %v470 = vadd.f32 %v431, %v460
        %v471 = vadd.f32 %v432, %v460
        %v472 = vadd.f32 %v433, %v460
        %v473 = vadd.f32 %v434, %v460
        %v474 = vadd.f32 %v435, %v460
        %v475 = vadd.f32 %v436, %v460
        %v476 = vadd.f32 %v437, %v460
        %v477 = vadd.f32 %v438, %v460
        %v478 = vadd.f32 %v439, %v460
        %v479 = vadd.f32 %v440, %v460
        %v480 = vadd.f32 %v441, %v460
        %v481 = vadd.f32 %v442, %v460
        %v482 = vadd.f32 %v443, %v460
        %v483 = vadd.f32 %v444, %v460
        %v484 = vadd.f32 %v445, %v460
        %v485 = vadd.f32 %v446, %v460
        %v486 = vadd.f32 %v447, %v460
        %v487 = vadd.f32 %v448, %v460
        %v488 = vadd.f32 %v449, %v460
        %v489 = vadd.f32 %v450, %v460
        %v490 = vadd.f32 %v451, %v460
        %v491 = vadd.f32 %v452, %v460
        %v492 = vadd.f32 %v453, %v460
        %v493 = vadd.f32 %v454, %v460
        %v494 = vmax.f32 %v462, 0.0
        %v495 = vmax.f32 %v463, 0.0
        %v496 = vmax.f32 %v464, 0.0
        %v497 = vmax.f32 %v465, 0.0
        %v498 = vmax.f32 %v466, 0.0
        %v499 = vmax.f32 %v467, 0.0
        %v500 = vmax.f32 %v468, 0.0
        %v501 = vmax.f32 %v469, 0.0
        %v502 = vmax.f32 %v470, 0.0
        %v503 = vmax.f32 %v471, 0.0
        %v504 = vmax.f32 %v472, 0.0
        %v505 = vmax.f32 %v473, 0.0
        %v506 = vmax.f32 %v474, 0.0
        %v507 = vmax.f32 %v475, 0.0
        %v508 = vmax.f32 %v476, 0.0
        %v509 = vmax.f32 %v477, 0.0
        %v510 = vmax.f32 %v478, 0.0
        %v511 = vmax.f32 %v479, 0.0
        %v512 = vmax.f32 %v480, 0.0
        %v513 = vmax.f32 %v481, 0.0
        %v514 = vmax.f32 %v482, 0.0
        %v515 = vmax.f32 %v483, 0.0
        %v516 = vmax.f32 %v484, 0.0
        %v517 = vmax.f32 %v485, 0.0
        %v518 = vmax.f32 %v486, 0.0
        %v519 = vmax.f32 %v487, 0.0
        %v520 = vmax.f32 %v488, 0.0
        %v521 = vmax.f32 %v489, 0.0
        %v522 = vmax.f32 %v490, 0.0
        %v523 = vmax.f32 %v491, 0.0
        %v524 = vmax.f32 %v492, 0.0
        %v525 = vmax.f32 %v493, 0.0
        %vm526 = vcmask 64512
        %527 = vst.msk [vmem:[#allocation2] sm:$0xff] %vm526, 0.0
        %528 = vst.msk [vmem:[#allocation2 + $0x8] sm:$0xff] %vm526, 0.0
        %vm529 = vcmask 58368
        %530 = vst.msk [vmem:[#allocation2 + $0x10] sm:$0x3] %vm529, 0.0
        %s531 = scalar_lea.vmem [#allocation2], 408
        %532 = vst.msk [vmem:[%s531] sm:$0xff] %vm526, 0.0
        %533 = vst.msk [vmem:[%s531 + $0x8] sm:$0xff] %vm526, 0.0
        %534 = vst.msk [vmem:[%s531 + $0x10] sm:$0x3] %vm529, 0.0
        %s535 = scalar_lea.vmem [#allocation2], 24
        %vm536 = vcmask 57344
        %537 = vst.msk [vmem:[%s535] sm:$0x1] %vm536, 0.0
        %538 = vst.msk [vmem:[%s535 + $0x18] sm:$0x1] %vm536, 0.0
        %539 = vst.msk [vmem:[%s535 + $0x30] sm:$0x1] %vm536, 0.0
        %540 = vst.msk [vmem:[%s535 + $0x48] sm:$0x1] %vm536, 0.0
        %541 = vst.msk [vmem:[%s535 + $0x60] sm:$0x1] %vm536, 0.0
        %542 = vst.msk [vmem:[%s535 + $0x78] sm:$0x1] %vm536, 0.0
        %543 = vst.msk [vmem:[%s535 + $0x90] sm:$0x1] %vm536, 0.0
        %544 = vst.msk [vmem:[%s535 + $0xa8] sm:$0x1] %vm536, 0.0
        %545 = vst.msk [vmem:[%s535 + $0xc0] sm:$0x1] %vm536, 0.0
        %546 = vst.msk [vmem:[%s535 + $0xd8] sm:$0x1] %vm536, 0.0
        %547 = vst.msk [vmem:[%s535 + $0xf0] sm:$0x1] %vm536, 0.0
        %548 = vst.msk [vmem:[%s535 + $0x108] sm:$0x1] %vm536, 0.0
        %549 = vst.msk [vmem:[%s535 + $0x120] sm:$0x1] %vm536, 0.0
        %550 = vst.msk [vmem:[%s535 + $0x138] sm:$0x1] %vm536, 0.0
        %551 = vst.msk [vmem:[%s535 + $0x150] sm:$0x1] %vm536, 0.0
        %552 = vst.msk [vmem:[%s535 + $0x168] sm:$0x1] %vm536, 0.0
        %553 = vst.msk [vmem:[%s535 + $0x11] sm:$0x1] %vm536, 0.0
        %554 = vst.msk [vmem:[%s535 + $0x29] sm:$0x1] %vm536, 0.0
        %555 = vst.msk [vmem:[%s535 + $0x41] sm:$0x1] %vm536, 0.0
        %556 = vst.msk [vmem:[%s535 + $0x59] sm:$0x1] %vm536, 0.0
        %557 = vst.msk [vmem:[%s535 + $0x71] sm:$0x1] %vm536, 0.0
        %558 = vst.msk [vmem:[%s535 + $0x89] sm:$0x1] %vm536, 0.0
        %559 = vst.msk [vmem:[%s535 + $0xa1] sm:$0x1] %vm536, 0.0
        %560 = vst.msk [vmem:[%s535 + $0xb9] sm:$0x1] %vm536, 0.0
        %561 = vst.msk [vmem:[%s535 + $0xd1] sm:$0x1] %vm536, 0.0
        %562 = vst.msk [vmem:[%s535 + $0xe9] sm:$0x1] %vm536, 0.0
        %563 = vst.msk [vmem:[%s535 + $0x101] sm:$0x1] %vm536, 0.0
        %564 = vst.msk [vmem:[%s535 + $0x119] sm:$0x1] %vm536, 0.0
        %565 = vst.msk [vmem:[%s535 + $0x131] sm:$0x1] %vm536, 0.0
        %566 = vst.msk [vmem:[%s535 + $0x149] sm:$0x1] %vm536, 0.0
        %567 = vst.msk [vmem:[%s535 + $0x161] sm:$0x1] %vm536, 0.0
        %568 = vst.msk [vmem:[%s535 + $0x179] sm:$0x1] %vm536, 0.0
        %569 = vst.msk [vmem:[%s535 + $0x1] sm:$0xff] %vm526, %v494
        %570 = vst.msk [vmem:[%s535 + $0x9] sm:$0xff] %vm526, %v495
        %571 = vst.msk [vmem:[%s535 + $0x19] sm:$0xff] %vm526, %v496
        %572 = vst.msk [vmem:[%s535 + $0x21] sm:$0xff] %vm526, %v497
        %573 = vst.msk [vmem:[%s535 + $0x31] sm:$0xff] %vm526, %v498
        %574 = vst.msk [vmem:[%s535 + $0x39] sm:$0xff] %vm526, %v499
        %575 = vst.msk [vmem:[%s535 + $0x49] sm:$0xff] %vm526, %v500
        %576 = vst.msk [vmem:[%s535 + $0x51] sm:$0xff] %vm526, %v501
        %577 = vst.msk [vmem:[%s535 + $0x61] sm:$0xff] %vm526, %v502
        %578 = vst.msk [vmem:[%s535 + $0x69] sm:$0xff] %vm526, %v503
        %579 = vst.msk [vmem:[%s535 + $0x79] sm:$0xff] %vm526, %v504
        %580 = vst.msk [vmem:[%s535 + $0x81] sm:$0xff] %vm526, %v505
        %581 = vst.msk [vmem:[%s535 + $0x91] sm:$0xff] %vm526, %v506
        %582 = vst.msk [vmem:[%s535 + $0x99] sm:$0xff] %vm526, %v507
        %583 = vst.msk [vmem:[%s535 + $0xa9] sm:$0xff] %vm526, %v508
        %584 = vst.msk [vmem:[%s535 + $0xb1] sm:$0xff] %vm526, %v509
        %585 = vst.msk [vmem:[%s535 + $0xc1] sm:$0xff] %vm526, %v510
        %586 = vst.msk [vmem:[%s535 + $0xc9] sm:$0xff] %vm526, %v511
        %587 = vst.msk [vmem:[%s535 + $0xd9] sm:$0xff] %vm526, %v512
        %588 = vst.msk [vmem:[%s535 + $0xe1] sm:$0xff] %vm526, %v513
        %589 = vst.msk [vmem:[%s535 + $0xf1] sm:$0xff] %vm526, %v514
        %590 = vst.msk [vmem:[%s535 + $0xf9] sm:$0xff] %vm526, %v515
        %591 = vst.msk [vmem:[%s535 + $0x109] sm:$0xff] %vm526, %v516
        %592 = vst.msk [vmem:[%s535 + $0x111] sm:$0xff] %vm526, %v517
        %593 = vst.msk [vmem:[%s535 + $0x121] sm:$0xff] %vm526, %v518
        %594 = vst.msk [vmem:[%s535 + $0x129] sm:$0xff] %vm526, %v519
        %595 = vst.msk [vmem:[%s535 + $0x139] sm:$0xff] %vm526, %v520
        %596 = vst.msk [vmem:[%s535 + $0x141] sm:$0xff] %vm526, %v521
        %597 = vst.msk [vmem:[%s535 + $0x151] sm:$0xff] %vm526, %v522
        %598 = vst.msk [vmem:[%s535 + $0x159] sm:$0xff] %vm526, %v523
        %599 = vst.msk [vmem:[%s535 + $0x169] sm:$0xff] %vm526, %v524
        %600 = vst.msk [vmem:[%s535 + $0x171] sm:$0xff] %vm526, %v525
      $region56: #{basic_block_forward.5} parent=51 // pred_fallthru
        _
      %v601 = vld [vmem:[#allocation2] sm:$0xff]
      %v602 = vld [vmem:[#allocation2 + $0x8] sm:$0xff]
      %v603 = vld [vmem:[#allocation2 + $0x10] sm:$0x3]
      %v604 = vld [vmem:[#allocation2 + $0x18] sm:$0xff]
      %v605 = vld [vmem:[#allocation2 + $0x20] sm:$0xff]
      %v606 = vld [vmem:[#allocation2 + $0x28] sm:$0x3]
      %v607 = vld [vmem:[#allocation2 + $0x30] sm:$0xff]
      %v608 = vld [vmem:[#allocation2 + $0x38] sm:$0xff]
      %v609 = vld [vmem:[#allocation2 + $0x40] sm:$0x3]
      %v610 = vld [vmem:[#allocation2 + $0x48] sm:$0xff]
      %v611 = vld [vmem:[#allocation2 + $0x50] sm:$0xff]
      %v612 = vld [vmem:[#allocation2 + $0x58] sm:$0x3]
      %v613 = vld [vmem:[#allocation2 + $0x60] sm:$0xff]
      %v614 = vld [vmem:[#allocation2 + $0x68] sm:$0xff]
      %v615 = vld [vmem:[#allocation2 + $0x70] sm:$0x3]
      %v616 = vld [vmem:[#allocation2 + $0x78] sm:$0xff]
      %v617 = vld [vmem:[#allocation2 + $0x80] sm:$0xff]
      %v618 = vld [vmem:[#allocation2 + $0x88] sm:$0x3]
      %v619 = vld [vmem:[#allocation2 + $0x90] sm:$0xff]
      %v620 = vld [vmem:[#allocation2 + $0x98] sm:$0xff]
      %v621 = vld [vmem:[#allocation2 + $0xa0] sm:$0x3]
      %v622 = vld [vmem:[#allocation2 + $0xa8] sm:$0xff]
      %v623 = vld [vmem:[#allocation2 + $0xb0] sm:$0xff]
      %v624 = vld [vmem:[#allocation2 + $0xb8] sm:$0x3]
      %v625 = vld [vmem:[#allocation2 + $0xc0] sm:$0xff]
      %v626 = vld [vmem:[#allocation2 + $0xc8] sm:$0xff]
      %v627 = vld [vmem:[#allocation2 + $0xd0] sm:$0x3]
      %v628 = vld [vmem:[#allocation2 + $0xd8] sm:$0xff]
      %v629 = vld [vmem:[#allocation2 + $0xe0] sm:$0xff]
      %v630 = vld [vmem:[#allocation2 + $0xe8] sm:$0x3]
      %v631 = vld [vmem:[#allocation2 + $0xf0] sm:$0xff]
      %v632 = vld [vmem:[#allocation2 + $0xf8] sm:$0xff]
      %v633 = vld [vmem:[#allocation2 + $0x100] sm:$0x3]
      %v634 = vld [vmem:[#allocation2 + $0x108] sm:$0xff]
      %v635 = vld [vmem:[#allocation2 + $0x110] sm:$0xff]
      %v636 = vld [vmem:[#allocation2 + $0x118] sm:$0x3]
      %v637 = vld [vmem:[#allocation2 + $0x120] sm:$0xff]
      %v638 = vld [vmem:[#allocation2 + $0x128] sm:$0xff]
      %v639 = vld [vmem:[#allocation2 + $0x130] sm:$0x3]
      %v640 = vld [vmem:[#allocation2 + $0x138] sm:$0xff]
      %v641 = vld [vmem:[#allocation2 + $0x140] sm:$0xff]
      %v642 = vld [vmem:[#allocation2 + $0x148] sm:$0x3]
      %v643 = vld [vmem:[#allocation2 + $0x150] sm:$0xff]
      %v644 = vld [vmem:[#allocation2 + $0x158] sm:$0xff]
      %v645 = vld [vmem:[#allocation2 + $0x160] sm:$0x3]
      %v646 = vld [vmem:[#allocation2 + $0x168] sm:$0xff]
      %v647 = vld [vmem:[#allocation2 + $0x170] sm:$0xff]
      %v648 = vld [vmem:[#allocation2 + $0x178] sm:$0x3]
      %v649 = vld [vmem:[#allocation2 + $0x180] sm:$0xff]
      %v650 = vld [vmem:[#allocation2 + $0x188] sm:$0xff]
      %v651 = vld [vmem:[#allocation2 + $0x190] sm:$0x3]
      %v652 = vld [vmem:[#allocation2 + $0x198] sm:$0xff]
      %v653 = vld [vmem:[#allocation2 + $0x1a0] sm:$0xff]
      %v654 = vld [vmem:[#allocation2 + $0x1a8] sm:$0x3]
      %v655 = vld [vmem:[%s362] sm:$0xff]
      %vm704 = vcmask 1046528
      %v705 = vrot.slane %v601, 1
      %v706 = vrot.slane %v602, 1
      %v707 = vsel %vm704, %v705, %v706
      %v708 = vrot.slane %v603, 1
      %v709 = vsel %vm704, %v706, %v708
      %v710 = vrot.slane %v604, 1
      %v711 = vrot.slane %v605, 1
      %v712 = vsel %vm704, %v710, %v711
      %v713 = vrot.slane %v606, 1
      %v714 = vsel %vm704, %v711, %v713
      %v715 = vrot.slane %v607, 1
      %v716 = vrot.slane %v608, 1
      %v717 = vsel %vm704, %v715, %v716
      %v718 = vrot.slane %v609, 1
      %v719 = vsel %vm704, %v716, %v718
      %v720 = vrot.slane %v610, 1
      %v721 = vrot.slane %v611, 1
      %v722 = vsel %vm704, %v720, %v721
      %v723 = vrot.slane %v612, 1
      %v724 = vsel %vm704, %v721, %v723
      %v725 = vrot.slane %v613, 1
      %v726 = vrot.slane %v614, 1
      %v727 = vsel %vm704, %v725, %v726
      %v728 = vrot.slane %v615, 1
      %v729 = vsel %vm704, %v726, %v728
      %v730 = vrot.slane %v616, 1
      %v731 = vrot.slane %v617, 1
      %v732 = vsel %vm704, %v730, %v731
      %v733 = vrot.slane %v618, 1
      %v734 = vsel %vm704, %v731, %v733
      %v735 = vrot.slane %v619, 1
      %v736 = vrot.slane %v620, 1
      %v737 = vsel %vm704, %v735, %v736
      %v738 = vrot.slane %v621, 1
      %v739 = vsel %vm704, %v736, %v738
      %v740 = vrot.slane %v622, 1
      %v741 = vrot.slane %v623, 1
      %v742 = vsel %vm704, %v740, %v741
      %v743 = vrot.slane %v624, 1
      %v744 = vsel %vm704, %v741, %v743
      %v745 = vrot.slane %v625, 1
      %v746 = vrot.slane %v626, 1
      %v747 = vsel %vm704, %v745, %v746
      %v748 = vrot.slane %v627, 1
      %v749 = vsel %vm704, %v746, %v748
      %v750 = vrot.slane %v628, 1
      %v751 = vrot.slane %v629, 1
      %v752 = vsel %vm704, %v750, %v751
      %v753 = vrot.slane %v630, 1
      %v754 = vsel %vm704, %v751, %v753
      %v755 = vrot.slane %v631, 1
      %v756 = vrot.slane %v632, 1
      %v757 = vsel %vm704, %v755, %v756
      %v758 = vrot.slane %v633, 1
      %v759 = vsel %vm704, %v756, %v758
      %v760 = vrot.slane %v634, 1
      %v761 = vrot.slane %v635, 1
      %v762 = vsel %vm704, %v760, %v761
      %v763 = vrot.slane %v636, 1
      %v764 = vsel %vm704, %v761, %v763
      %v765 = vrot.slane %v637, 1
      %v766 = vrot.slane %v638, 1
      %v767 = vsel %vm704, %v765, %v766
      %v768 = vrot.slane %v639, 1
      %v769 = vsel %vm704, %v766, %v768
      %v770 = vrot.slane %v640, 1
      %v771 = vrot.slane %v641, 1
      %v772 = vsel %vm704, %v770, %v771
      %v773 = vrot.slane %v642, 1
      %v774 = vsel %vm704, %v771, %v773
      %v775 = vrot.slane %v643, 1
      %v776 = vrot.slane %v644, 1
      %v777 = vsel %vm704, %v775, %v776
      %v778 = vrot.slane %v645, 1
      %v779 = vsel %vm704, %v776, %v778
      %v780 = vrot.slane %v646, 1
      %v781 = vrot.slane %v647, 1
      %v782 = vsel %vm704, %v780, %v781
      %v783 = vrot.slane %v648, 1
      %v784 = vsel %vm704, %v781, %v783
      %v785 = vld [vmem:[%s362 + $0x8] sm:$0xff]
      %vm786 = vcmask 64512
      %v787 = vsel %vm786, %v707, 0
      %v789 = vsel %vm786, %v709, 0
      %v791 = vsel %vm786, %v712, 0
      %v793 = vsel %vm786, %v714, 0
      %v795 = vsel %vm786, %v717, 0
      %v797 = vsel %vm786, %v719, 0
      %v799 = vsel %vm786, %v722, 0
      %v801 = vsel %vm786, %v724, 0
      %v803 = vsel %vm786, %v727, 0
      %v805 = vsel %vm786, %v729, 0
      %v807 = vsel %vm786, %v732, 0
      %v809 = vsel %vm786, %v734, 0
      %v811 = vsel %vm786, %v737, 0
      %v813 = vsel %vm786, %v739, 0
      %v815 = vsel %vm786, %v742, 0
      %v817 = vsel %vm786, %v744, 0
      %v819 = vsel %vm786, %v747, 0
      %v821 = vsel %vm786, %v749, 0
      %v823 = vsel %vm786, %v752, 0
      %v825 = vsel %vm786, %v754, 0
      %v827 = vsel %vm786, %v757, 0
      %v829 = vsel %vm786, %v759, 0
      %v831 = vsel %vm786, %v762, 0
      %v833 = vsel %vm786, %v764, 0
      %v835 = vsel %vm786, %v767, 0
      %v837 = vsel %vm786, %v769, 0
      %v839 = vsel %vm786, %v772, 0
      %v841 = vsel %vm786, %v774, 0
      %v843 = vsel %vm786, %v777, 0
      %v845 = vsel %vm786, %v779, 0
      %v847 = vsel %vm786, %v782, 0
      %v849 = vsel %vm786, %v784, 0
      %851 = vmatprep.subr.mxu0 0.0
      %852 = vmatpush1.msra.mxu0 %v785
      %853 = vmatprep.subr.mxu0 0.0
      %854 = vmatpush1.msra.mxu0 0.0
      %855 = vmatprep.subr.mxu0 0.0
      %856 = vmatpush1.msra.mxu0 0.0
      %857 = vmatprep.subr.mxu0 0.0
      %858 = vmatpush1.msra.mxu0 0.0
      %859 = vmatprep.subr.mxu0 0.0
      %860 = vmatpush1.msra.mxu0 0.0
      %861 = vmatprep.subr.mxu0 0.0
      %862 = vmatpush1.msra.mxu0 0.0
      %863 = vmatprep.subr.mxu0 0.0
      %864 = vmatpush1.msra.mxu0 0.0
      %865 = vmatprep.subr.mxu0 0.0
      %866 = vmatpush1.msra.mxu0 0.0
      %867 = vmatprep.subr.mxu0 0.0
      %868 = vmatpush1.msra.mxu0 0.0
      %869 = vmatprep.subr.mxu0 0.0
      %870 = vmatpush1.msra.mxu0 0.0
      %871 = vmatprep.subr.mxu0 0.0
      %872 = vmatpush1.msra.mxu0 0.0
      %873 = vmatprep.subr.mxu0 0.0
      %874 = vmatpush1.msra.mxu0 0.0
      %875 = vmatprep.subr.mxu0 0.0
      %876 = vmatpush1.msra.mxu0 0.0
      %877 = vmatprep.subr.mxu0 0.0
      %878 = vmatpush1.msra.mxu0 0.0
      %879 = vmatprep.subr.mxu0 0.0
      %880 = vmatpush1.msra.mxu0 0.0
      %881 = vmatprep.subr.mxu0 0.0
      %882 = vmatpush1.msra.mxu0 0.0
      %883 = vmatprep.subr.mxu0 0.0
      %884 = vmatpush1.msra.mxu0 0.0
      %885 = vmatprep.subr.mxu0 0.0
      %886 = vmatpush1.msra.mxu0 0.0
      %887 = vmatprep.subr.mxu0 0.0
      %888 = vmatpush1.msra.mxu0 0.0
      %889 = vmatprep.subr.mxu0 0.0
      %890 = vmatpush1.msra.mxu0 0.0
      %891 = vmatprep.subr.mxu0 0.0
      %892 = vmatpush1.msra.mxu0 0.0
      %893 = vmatprep.subr.mxu0 0.0
      %894 = vmatpush1.msra.mxu0 0.0
      %895 = vmatprep.subr.mxu0 0.0
      %896 = vmatpush1.msra.mxu0 0.0
      %897 = vmatprep.subr.mxu0 0.0
      %898 = vmatpush1.msra.mxu0 0.0
      %899 = vmatprep.subr.mxu0 0.0
      %900 = vmatpush1.msra.mxu0 0.0
      %901 = vmatprep.subr.mxu0 0.0
      %902 = vmatpush1.msra.mxu0 0.0
      %903 = vmatprep.subr.mxu0 0.0
      %904 = vmatpush1.msra.mxu0 0.0
      %905 = vmatprep.subr.mxu0 0.0
      %906 = vmatpush1.msra.mxu0 0.0
      %907 = vmatprep.subr.mxu0 0.0
      %908 = vmatpush1.msra.mxu0 0.0
      %909 = vmatprep.subr.mxu0 0.0
      %910 = vmatpush1.msra.mxu0 0.0
      %911 = vmatprep.subr.mxu0 0.0
      %912 = vmatpush1.msra.mxu0 0.0
      %913 = vmatprep.subr.mxu0 0.0
      %914 = vmatpush1.msra.mxu0 0.0
      %915 = vmatprep.mubr.f32.mxu0 0.0
      %916 = vmatmul.mubr.f32.gmra.mrb[0].mxu0 %v787
      %v917 = vpop.f32.mrb[0].mxu0
      %v918 = vadd.f32 0.0, %v917
      %v919 = vpop.f32.mrb[0].mxu0
      %920 = vmatprep.mubr.f32.mxu0 0.0
      %921 = vmatmul.mubr.f32.gmra.mrb[0].mxu0 %v789
      %v922 = vpop.f32.mrb[0].mxu0
      %v923 = vadd.f32 0.0, %v922
      %v924 = vpop.f32.mrb[0].mxu0
      %925 = vmatprep.mubr.f32.mxu0 0.0
      %926 = vmatmul.mubr.f32.gmra.mrb[0].mxu0 %v791
      %v927 = vpop.f32.mrb[0].mxu0
      %v928 = vadd.f32 0.0, %v927
      %v929 = vpop.f32.mrb[0].mxu0
      %930 = vmatprep.mubr.f32.mxu0 0.0
      %931 = vmatmul.mubr.f32.gmra.mrb[0].mxu0 %v793
      %v932 = vpop.f32.mrb[0].mxu0
      %v933 = vadd.f32 0.0, %v932
      %v934 = vpop.f32.mrb[0].mxu0
      %935 = vmatprep.mubr.f32.mxu0 0.0
      %936 = vmatmul.mubr.f32.gmra.mrb[0].mxu0 %v795
      %v937 = vpop.f32.mrb[0].mxu0
      %v938 = vadd.f32 0.0, %v937
      %v939 = vpop.f32.mrb[0].mxu0
      %940 = vmatprep.mubr.f32.mxu0 0.0
      %941 = vmatmul.mubr.f32.gmra.mrb[0].mxu0 %v797
      %v942 = vpop.f32.mrb[0].mxu0
      %v943 = vadd.f32 0.0, %v942
      %v944 = vpop.f32.mrb[0].mxu0
      %945 = vmatprep.mubr.f32.mxu0 0.0
      %946 = vmatmul.mubr.f32.gmra.mrb[0].mxu0 %v799
      %v947 = vpop.f32.mrb[0].mxu0
      %v948 = vadd.f32 0.0, %v947
      %v949 = vpop.f32.mrb[0].mxu0
      %950 = vmatprep.mubr.f32.mxu0 0.0
      %951 = vmatmul.mubr.f32.gmra.mrb[0].mxu0 %v801
      %v952 = vpop.f32.mrb[0].mxu0
      %v953 = vadd.f32 0.0, %v952
      %v954 = vpop.f32.mrb[0].mxu0
      %955 = vmatprep.mubr.f32.mxu0 0.0
      %956 = vmatmul.mubr.f32.gmra.mrb[0].mxu0 %v803
      %v957 = vpop.f32.mrb[0].mxu0
      %v958 = vadd.f32 0.0, %v957
      %v959 = vpop.f32.mrb[0].mxu0
      %960 = vmatprep.mubr.f32.mxu0 0.0
      %961 = vmatmul.mubr.f32.gmra.mrb[0].mxu0 %v805
      %v962 = vpop.f32.mrb[0].mxu0
      %v963 = vadd.f32 0.0, %v962
      %v964 = vpop.f32.mrb[0].mxu0
      %965 = vmatprep.mubr.f32.mxu0 0.0
      %966 = vmatmul.mubr.f32.gmra.mrb[0].mxu0 %v807
      %v967 = vpop.f32.mrb[0].mxu0
      %v968 = vadd.f32 0.0, %v967
      %v969 = vpop.f32.mrb[0].mxu0
      %970 = vmatprep.mubr.f32.mxu0 0.0
      %971 = vmatmul.mubr.f32.gmra.mrb[0].mxu0 %v809
      %v972 = vpop.f32.mrb[0].mxu0
      %v973 = vadd.f32 0.0, %v972
      %v974 = vpop.f32.mrb[0].mxu0
      %975 = vmatprep.mubr.f32.mxu0 0.0
      %976 = vmatmul.mubr.f32.gmra.mrb[0].mxu0 %v811
      %v977 = vpop.f32.mrb[0].mxu0
      %v978 = vadd.f32 0.0, %v977
      %v979 = vpop.f32.mrb[0].mxu0
      %980 = vmatprep.mubr.f32.mxu0 0.0
      %981 = vmatmul.mubr.f32.gmra.mrb[0].mxu0 %v813
      %v982 = vpop.f32.mrb[0].mxu0
      %v983 = vadd.f32 0.0, %v982
      %v984 = vpop.f32.mrb[0].mxu0
      %985 = vmatprep.mubr.f32.mxu0 0.0
      %986 = vmatmul.mubr.f32.gmra.mrb[0].mxu0 %v815
      %v987 = vpop.f32.mrb[0].mxu0
      %v988 = vadd.f32 0.0, %v987
      %v989 = vpop.f32.mrb[0].mxu0
      %990 = vmatprep.mubr.f32.mxu0 0.0
      %991 = vmatmul.mubr.f32.gmra.mrb[0].mxu0 %v817
      %v992 = vpop.f32.mrb[0].mxu0
      %v993 = vadd.f32 0.0, %v992
      %v994 = vpop.f32.mrb[0].mxu0
      %995 = vmatprep.mubr.f32.mxu0 0.0
      %996 = vmatmul.mubr.f32.gmra.mrb[0].mxu0 %v819
      %v997 = vpop.f32.mrb[0].mxu0
      %v998 = vadd.f32 0.0, %v997
      %v999 = vpop.f32.mrb[0].mxu0
      %1000 = vmatprep.mubr.f32.mxu0 0.0
      %1001 = vmatmul.mubr.f32.gmra.mrb[0].mxu0 %v821
      %v1002 = vpop.f32.mrb[0].mxu0
      %v1003 = vadd.f32 0.0, %v1002
      %v1004 = vpop.f32.mrb[0].mxu0
      %1005 = vmatprep.mubr.f32.mxu0 0.0
      %1006 = vmatmul.mubr.f32.gmra.mrb[0].mxu0 %v823
      %v1007 = vpop.f32.mrb[0].mxu0
      %v1008 = vadd.f32 0.0, %v1007
      %v1009 = vpop.f32.mrb[0].mxu0
      %1010 = vmatprep.mubr.f32.mxu0 0.0
      %1011 = vmatmul.mubr.f32.gmra.mrb[0].mxu0 %v825
      %v1012 = vpop.f32.mrb[0].mxu0
      %v1013 = vadd.f32 0.0, %v1012
      %v1014 = vpop.f32.mrb[0].mxu0
      %1015 = vmatprep.mubr.f32.mxu0 0.0
      %1016 = vmatmul.mubr.f32.gmra.mrb[0].mxu0 %v827
      %v1017 = vpop.f32.mrb[0].mxu0
      %v1018 = vadd.f32 0.0, %v1017
      %v1019 = vpop.f32.mrb[0].mxu0
      %1020 = vmatprep.mubr.f32.mxu0 0.0
      %1021 = vmatmul.mubr.f32.gmra.mrb[0].mxu0 %v829
      %v1022 = vpop.f32.mrb[0].mxu0
      %v1023 = vadd.f32 0.0, %v1022
      %v1024 = vpop.f32.mrb[0].mxu0
      %1025 = vmatprep.mubr.f32.mxu0 0.0
      %1026 = vmatmul.mubr.f32.gmra.mrb[0].mxu0 %v831
      %v1027 = vpop.f32.mrb[0].mxu0
      %v1028 = vadd.f32 0.0, %v1027
      %v1029 = vpop.f32.mrb[0].mxu0
      %1030 = vmatprep.mubr.f32.mxu0 0.0
      %1031 = vmatmul.mubr.f32.gmra.mrb[0].mxu0 %v833
      %v1032 = vpop.f32.mrb[0].mxu0
      %v1033 = vadd.f32 0.0, %v1032
      %v1034 = vpop.f32.mrb[0].mxu0
      %1035 = vmatprep.mubr.f32.mxu0 0.0
      %1036 = vmatmul.mubr.f32.gmra.mrb[0].mxu0 %v835
      %v1037 = vpop.f32.mrb[0].mxu0
      %v1038 = vadd.f32 0.0, %v1037
      %v1039 = vpop.f32.mrb[0].mxu0
      %1040 = vmatprep.mubr.f32.mxu0 0.0
      %1041 = vmatmul.mubr.f32.gmra.mrb[0].mxu0 %v837
      %v1042 = vpop.f32.mrb[0].mxu0
      %v1043 = vadd.f32 0.0, %v1042
      %v1044 = vpop.f32.mrb[0].mxu0
      %1045 = vmatprep.mubr.f32.mxu0 0.0
      %1046 = vmatmul.mubr.f32.gmra.mrb[0].mxu0 %v839
      %v1047 = vpop.f32.mrb[0].mxu0
      %v1048 = vadd.f32 0.0, %v1047
      %v1049 = vpop.f32.mrb[0].mxu0
      %1050 = vmatprep.mubr.f32.mxu0 0.0
      %1051 = vmatmul.mubr.f32.gmra.mrb[0].mxu0 %v841
      %v1052 = vpop.f32.mrb[0].mxu0
      %v1053 = vadd.f32 0.0, %v1052
      %v1054 = vpop.f32.mrb[0].mxu0
      %1055 = vmatprep.mubr.f32.mxu0 0.0
      %1056 = vmatmul.mubr.f32.gmra.mrb[0].mxu0 %v843
      %v1057 = vpop.f32.mrb[0].mxu0
      %v1058 = vadd.f32 0.0, %v1057
      %v1059 = vpop.f32.mrb[0].mxu0
      %1060 = vmatprep.mubr.f32.mxu0 0.0
      %1061 = vmatmul.mubr.f32.gmra.mrb[0].mxu0 %v845
      %v1062 = vpop.f32.mrb[0].mxu0
      %v1063 = vadd.f32 0.0, %v1062
      %v1064 = vpop.f32.mrb[0].mxu0
      %1065 = vmatprep.mubr.f32.mxu0 0.0
      %1066 = vmatmul.mubr.f32.gmra.mrb[0].mxu0 %v847
      %v1067 = vpop.f32.mrb[0].mxu0
      %v1068 = vadd.f32 0.0, %v1067
      %v1069 = vpop.f32.mrb[0].mxu0
      %1070 = vmatprep.mubr.f32.mxu0 0.0
      %1071 = vmatmul.mubr.f32.gmra.mrb[0].mxu0 %v849
      %v1072 = vpop.f32.mrb[0].mxu0
      %v1073 = vadd.f32 0.0, %v1072
      %v1074 = vpop.f32.mrb[0].mxu0
      %1075 = vdwg.mxu0
      %v1076 = vsel %vm786, %v601, 0
      %v1078 = vsel %vm786, %v602, 0
      %v1080 = vsel %vm786, %v604, 0
      %v1082 = vsel %vm786, %v605, 0
      %v1084 = vsel %vm786, %v607, 0
      %v1086 = vsel %vm786, %v608, 0
      %v1088 = vsel %vm786, %v610, 0
      %v1090 = vsel %vm786, %v611, 0
      %v1092 = vsel %vm786, %v613, 0
      %v1094 = vsel %vm786, %v614, 0
      %v1096 = vsel %vm786, %v616, 0
      %v1098 = vsel %vm786, %v617, 0
      %v1100 = vsel %vm786, %v619, 0
      %v1102 = vsel %vm786, %v620, 0
      %v1104 = vsel %vm786, %v622, 0
      %v1106 = vsel %vm786, %v623, 0
      %v1108 = vsel %vm786, %v625, 0
      %v1110 = vsel %vm786, %v626, 0
      %v1112 = vsel %vm786, %v628, 0
      %v1114 = vsel %vm786, %v629, 0
      %v1116 = vsel %vm786, %v631, 0
      %v1118 = vsel %vm786, %v632, 0
      %v1120 = vsel %vm786, %v634, 0
      %v1122 = vsel %vm786, %v635, 0
      %v1124 = vsel %vm786, %v637, 0
      %v1126 = vsel %vm786, %v638, 0
      %v1128 = vsel %vm786, %v640, 0
      %v1130 = vsel %vm786, %v641, 0
      %v1132 = vsel %vm786, %v643, 0
      %v1134 = vsel %vm786, %v644, 0
      %v1136 = vsel %vm786, %v646, 0
      %v1138 = vsel %vm786, %v647, 0
      %1140 = vmatprep.subr.mxu0 0.0
      %1141 = vmatpush1.msra.mxu0 %v655
      %1142 = vmatprep.subr.mxu0 0.0
      %1143 = vmatpush1.msra.mxu0 0.0
      %1144 = vmatprep.subr.mxu0 0.0
      %1145 = vmatpush1.msra.mxu0 0.0
      %1146 = vmatprep.subr.mxu0 0.0
      %1147 = vmatpush1.msra.mxu0 0.0
      %1148 = vmatprep.subr.mxu0 0.0
      %1149 = vmatpush1.msra.mxu0 0.0
      %1150 = vmatprep.subr.mxu0 0.0
      %1151 = vmatpush1.msra.mxu0 0.0
      %1152 = vmatprep.subr.mxu0 0.0
      %1153 = vmatpush1.msra.mxu0 0.0
      %1154 = vmatprep.subr.mxu0 0.0
      %1155 = vmatpush1.msra.mxu0 0.0
      %1156 = vmatprep.subr.mxu0 0.0
      %1157 = vmatpush1.msra.mxu0 0.0
      %1158 = vmatprep.subr.mxu0 0.0
      %1159 = vmatpush1.msra.mxu0 0.0
      %1160 = vmatprep.subr.mxu0 0.0
      %1161 = vmatpush1.msra.mxu0 0.0
      %1162 = vmatprep.subr.mxu0 0.0
      %1163 = vmatpush1.msra.mxu0 0.0
      %1164 = vmatprep.subr.mxu0 0.0
      %1165 = vmatpush1.msra.mxu0 0.0
      %1166 = vmatprep.subr.mxu0 0.0
      %1167 = vmatpush1.msra.mxu0 0.0
      %1168 = vmatprep.subr.mxu0 0.0
      %1169 = vmatpush1.msra.mxu0 0.0
      %1170 = vmatprep.subr.mxu0 0.0
      %1171 = vmatpush1.msra.mxu0 0.0
      %1172 = vmatprep.subr.mxu0 0.0
      %1173 = vmatpush1.msra.mxu0 0.0
      %1174 = vmatprep.subr.mxu0 0.0
      %1175 = vmatpush1.msra.mxu0 0.0
      %1176 = vmatprep.subr.mxu0 0.0
      %1177 = vmatpush1.msra.mxu0 0.0
      %1178 = vmatprep.subr.mxu0 0.0
      %1179 = vmatpush1.msra.mxu0 0.0
      %1180 = vmatprep.subr.mxu0 0.0
      %1181 = vmatpush1.msra.mxu0 0.0
      %1182 = vmatprep.subr.mxu0 0.0
      %1183 = vmatpush1.msra.mxu0 0.0
      %1184 = vmatprep.subr.mxu0 0.0
      %1185 = vmatpush1.msra.mxu0 0.0
      %1186 = vmatprep.subr.mxu0 0.0
      %1187 = vmatpush1.msra.mxu0 0.0
      %1188 = vmatprep.subr.mxu0 0.0
      %1189 = vmatpush1.msra.mxu0 0.0
      %1190 = vmatprep.subr.mxu0 0.0
      %1191 = vmatpush1.msra.mxu0 0.0
      %1192 = vmatprep.subr.mxu0 0.0
      %1193 = vmatpush1.msra.mxu0 0.0
      %1194 = vmatprep.subr.mxu0 0.0
      %1195 = vmatpush1.msra.mxu0 0.0
      %1196 = vmatprep.subr.mxu0 0.0
      %1197 = vmatpush1.msra.mxu0 0.0
      %1198 = vmatprep.subr.mxu0 0.0
      %1199 = vmatpush1.msra.mxu0 0.0
      %1200 = vmatprep.subr.mxu0 0.0
      %1201 = vmatpush1.msra.mxu0 0.0
      %1202 = vmatprep.subr.mxu0 0.0
      %1203 = vmatpush1.msra.mxu0 0.0
      %1204 = vmatprep.mubr.f32.mxu0 0.0
      %1205 = vmatmul.mubr.f32.gmra.mrb[0].mxu0 %v1076
      %v1206 = vpop.f32.mrb[0].mxu0
      %v1207 = vadd.f32 %v918, %v1206
      %v1208 = vpop.f32.mrb[0].mxu0
      %1209 = vmatprep.mubr.f32.mxu0 0.0
      %1210 = vmatmul.mubr.f32.gmra.mrb[0].mxu0 %v1078
      %v1211 = vpop.f32.mrb[0].mxu0
      %v1212 = vadd.f32 %v923, %v1211
      %v1213 = vpop.f32.mrb[0].mxu0
      %1214 = vmatprep.mubr.f32.mxu0 0.0
      %1215 = vmatmul.mubr.f32.gmra.mrb[0].mxu0 %v1080
      %v1216 = vpop.f32.mrb[0].mxu0
      %v1217 = vadd.f32 %v928, %v1216
      %v1218 = vpop.f32.mrb[0].mxu0
      %1219 = vmatprep.mubr.f32.mxu0 0.0
      %1220 = vmatmul.mubr.f32.gmra.mrb[0].mxu0 %v1082
      %v1221 = vpop.f32.mrb[0].mxu0
      %v1222 = vadd.f32 %v933, %v1221
      %v1223 = vpop.f32.mrb[0].mxu0
      %1224 = vmatprep.mubr.f32.mxu0 0.0
      %1225 = vmatmul.mubr.f32.gmra.mrb[0].mxu0 %v1084
      %v1226 = vpop.f32.mrb[0].mxu0
      %v1227 = vadd.f32 %v938, %v1226
      %v1228 = vpop.f32.mrb[0].mxu0
      %1229 = vmatprep.mubr.f32.mxu0 0.0
      %1230 = vmatmul.mubr.f32.gmra.mrb[0].mxu0 %v1086
      %v1231 = vpop.f32.mrb[0].mxu0
      %v1232 = vadd.f32 %v943, %v1231
      %v1233 = vpop.f32.mrb[0].mxu0
      %1234 = vmatprep.mubr.f32.mxu0 0.0
      %1235 = vmatmul.mubr.f32.gmra.mrb[0].mxu0 %v1088
      %v1236 = vpop.f32.mrb[0].mxu0
      %v1237 = vadd.f32 %v948, %v1236
      %v1238 = vpop.f32.mrb[0].mxu0
      %1239 = vmatprep.mubr.f32.mxu0 0.0
      %1240 = vmatmul.mubr.f32.gmra.mrb[0].mxu0 %v1090
      %v1241 = vpop.f32.mrb[0].mxu0
      %v1242 = vadd.f32 %v953, %v1241
      %v1243 = vpop.f32.mrb[0].mxu0
      %1244 = vmatprep.mubr.f32.mxu0 0.0
      %1245 = vmatmul.mubr.f32.gmra.mrb[0].mxu0 %v1092
      %v1246 = vpop.f32.mrb[0].mxu0
      %v1247 = vadd.f32 %v958, %v1246
      %v1248 = vpop.f32.mrb[0].mxu0
      %1249 = vmatprep.mubr.f32.mxu0 0.0
      %1250 = vmatmul.mubr.f32.gmra.mrb[0].mxu0 %v1094
      %v1251 = vpop.f32.mrb[0].mxu0
      %v1252 = vadd.f32 %v963, %v1251
      %v1253 = vpop.f32.mrb[0].mxu0
      %1254 = vmatprep.mubr.f32.mxu0 0.0
      %1255 = vmatmul.mubr.f32.gmra.mrb[0].mxu0 %v1096
      %v1256 = vpop.f32.mrb[0].mxu0
      %v1257 = vadd.f32 %v968, %v1256
      %v1258 = vpop.f32.mrb[0].mxu0
      %1259 = vmatprep.mubr.f32.mxu0 0.0
      %1260 = vmatmul.mubr.f32.gmra.mrb[0].mxu0 %v1098
      %v1261 = vpop.f32.mrb[0].mxu0
      %v1262 = vadd.f32 %v973, %v1261
      %v1263 = vpop.f32.mrb[0].mxu0
      %1264 = vmatprep.mubr.f32.mxu0 0.0
      %1265 = vmatmul.mubr.f32.gmra.mrb[0].mxu0 %v1100
      %v1266 = vpop.f32.mrb[0].mxu0
      %v1267 = vadd.f32 %v978, %v1266
      %v1268 = vpop.f32.mrb[0].mxu0
      %1269 = vmatprep.mubr.f32.mxu0 0.0
      %1270 = vmatmul.mubr.f32.gmra.mrb[0].mxu0 %v1102
      %v1271 = vpop.f32.mrb[0].mxu0
      %v1272 = vadd.f32 %v983, %v1271
      %v1273 = vpop.f32.mrb[0].mxu0
      %1274 = vmatprep.mubr.f32.mxu0 0.0
      %1275 = vmatmul.mubr.f32.gmra.mrb[0].mxu0 %v1104
      %v1276 = vpop.f32.mrb[0].mxu0
      %v1277 = vadd.f32 %v988, %v1276
      %v1278 = vpop.f32.mrb[0].mxu0
      %1279 = vmatprep.mubr.f32.mxu0 0.0
      %1280 = vmatmul.mubr.f32.gmra.mrb[0].mxu0 %v1106
      %v1281 = vpop.f32.mrb[0].mxu0
      %v1282 = vadd.f32 %v993, %v1281
      %v1283 = vpop.f32.mrb[0].mxu0
      %1284 = vmatprep.mubr.f32.mxu0 0.0
      %1285 = vmatmul.mubr.f32.gmra.mrb[0].mxu0 %v1108
      %v1286 = vpop.f32.mrb[0].mxu0
      %v1287 = vadd.f32 %v998, %v1286
      %v1288 = vpop.f32.mrb[0].mxu0
      %1289 = vmatprep.mubr.f32.mxu0 0.0
      %1290 = vmatmul.mubr.f32.gmra.mrb[0].mxu0 %v1110
      %v1291 = vpop.f32.mrb[0].mxu0
      %v1292 = vadd.f32 %v1003, %v1291
      %v1293 = vpop.f32.mrb[0].mxu0
      %1294 = vmatprep.mubr.f32.mxu0 0.0
      %1295 = vmatmul.mubr.f32.gmra.mrb[0].mxu0 %v1112
      %v1296 = vpop.f32.mrb[0].mxu0
      %v1297 = vadd.f32 %v1008, %v1296
      %v1298 = vpop.f32.mrb[0].mxu0
      %1299 = vmatprep.mubr.f32.mxu0 0.0
      %1300 = vmatmul.mubr.f32.gmra.mrb[0].mxu0 %v1114
      %v1301 = vpop.f32.mrb[0].mxu0
      %v1302 = vadd.f32 %v1013, %v1301
      %v1303 = vpop.f32.mrb[0].mxu0
      %1304 = vmatprep.mubr.f32.mxu0 0.0
      %1305 = vmatmul.mubr.f32.gmra.mrb[0].mxu0 %v1116
      %v1306 = vpop.f32.mrb[0].mxu0
      %v1307 = vadd.f32 %v1018, %v1306
      %v1308 = vpop.f32.mrb[0].mxu0
      %1309 = vmatprep.mubr.f32.mxu0 0.0
      %1310 = vmatmul.mubr.f32.gmra.mrb[0].mxu0 %v1118
      %v1311 = vpop.f32.mrb[0].mxu0
      %v1312 = vadd.f32 %v1023, %v1311
      %v1313 = vpop.f32.mrb[0].mxu0
      %1314 = vmatprep.mubr.f32.mxu0 0.0
      %1315 = vmatmul.mubr.f32.gmra.mrb[0].mxu0 %v1120
      %v1316 = vpop.f32.mrb[0].mxu0
      %v1317 = vadd.f32 %v1028, %v1316
      %v1318 = vpop.f32.mrb[0].mxu0
      %1319 = vmatprep.mubr.f32.mxu0 0.0
      %1320 = vmatmul.mubr.f32.gmra.mrb[0].mxu0 %v1122
      %v1321 = vpop.f32.mrb[0].mxu0
      %v1322 = vadd.f32 %v1033, %v1321
      %v1323 = vpop.f32.mrb[0].mxu0
      %1324 = vmatprep.mubr.f32.mxu0 0.0
      %1325 = vmatmul.mubr.f32.gmra.mrb[0].mxu0 %v1124
      %v1326 = vpop.f32.mrb[0].mxu0
      %v1327 = vadd.f32 %v1038, %v1326
      %v1328 = vpop.f32.mrb[0].mxu0
      %1329 = vmatprep.mubr.f32.mxu0 0.0
      %1330 = vmatmul.mubr.f32.gmra.mrb[0].mxu0 %v1126
      %v1331 = vpop.f32.mrb[0].mxu0
      %v1332 = vadd.f32 %v1043, %v1331
      %v1333 = vpop.f32.mrb[0].mxu0
      %1334 = vmatprep.mubr.f32.mxu0 0.0
      %1335 = vmatmul.mubr.f32.gmra.mrb[0].mxu0 %v1128
      %v1336 = vpop.f32.mrb[0].mxu0
      %v1337 = vadd.f32 %v1048, %v1336
      %v1338 = vpop.f32.mrb[0].mxu0
      %1339 = vmatprep.mubr.f32.mxu0 0.0
      %1340 = vmatmul.mubr.f32.gmra.mrb[0].mxu0 %v1130
      %v1341 = vpop.f32.mrb[0].mxu0
      %v1342 = vadd.f32 %v1053, %v1341
      %v1343 = vpop.f32.mrb[0].mxu0
      %1344 = vmatprep.mubr.f32.mxu0 0.0
      %1345 = vmatmul.mubr.f32.gmra.mrb[0].mxu0 %v1132
      %v1346 = vpop.f32.mrb[0].mxu0
      %v1347 = vadd.f32 %v1058, %v1346
      %v1348 = vpop.f32.mrb[0].mxu0
      %1349 = vmatprep.mubr.f32.mxu0 0.0
      %1350 = vmatmul.mubr.f32.gmra.mrb[0].mxu0 %v1134
      %v1351 = vpop.f32.mrb[0].mxu0
      %v1352 = vadd.f32 %v1063, %v1351
      %v1353 = vpop.f32.mrb[0].mxu0
      %1354 = vmatprep.mubr.f32.mxu0 0.0
      %1355 = vmatmul.mubr.f32.gmra.mrb[0].mxu0 %v1136
      %v1356 = vpop.f32.mrb[0].mxu0
      %v1357 = vadd.f32 %v1068, %v1356
      %v1358 = vpop.f32.mrb[0].mxu0
      %1359 = vmatprep.mubr.f32.mxu0 0.0
      %1360 = vmatmul.mubr.f32.gmra.mrb[0].mxu0 %v1138
      %v1361 = vpop.f32.mrb[0].mxu0
      %v1362 = vadd.f32 %v1073, %v1361
      %v1363 = vpop.f32.mrb[0].mxu0
      %1364 = vdwg.mxu0
      %vm1365 = vcmask 1045504
      %v1366 = vrot.slane %v601, 2
      %v1367 = vrot.slane %v602, 2
      %v1368 = vsel %vm1365, %v1366, %v1367
      %v1369 = vrot.slane %v603, 2
      %v1370 = vsel %vm1365, %v1367, %v1369
      %v1371 = vrot.slane %v604, 2
      %v1372 = vrot.slane %v605, 2
      %v1373 = vsel %vm1365, %v1371, %v1372
      %v1374 = vrot.slane %v606, 2
      %v1375 = vsel %vm1365, %v1372, %v1374
      %v1376 = vrot.slane %v607, 2
      %v1377 = vrot.slane %v608, 2
      %v1378 = vsel %vm1365, %v1376, %v1377
      %v1379 = vrot.slane %v609, 2
      %v1380 = vsel %vm1365, %v1377, %v1379
      %v1381 = vrot.slane %v610, 2
      %v1382 = vrot.slane %v611, 2
      %v1383 = vsel %vm1365, %v1381, %v1382
      %v1384 = vrot.slane %v612, 2
      %v1385 = vsel %vm1365, %v1382, %v1384
      %v1386 = vrot.slane %v613, 2
      %v1387 = vrot.slane %v614, 2
      %v1388 = vsel %vm1365, %v1386, %v1387
      %v1389 = vrot.slane %v615, 2
      %v1390 = vsel %vm1365, %v1387, %v1389
      %v1391 = vrot.slane %v616, 2
      %v1392 = vrot.slane %v617, 2
      %v1393 = vsel %vm1365, %v1391, %v1392
      %v1394 = vrot.slane %v618, 2
      %v1395 = vsel %vm1365, %v1392, %v1394
      %v1396 = vrot.slane %v619, 2
      %v1397 = vrot.slane %v620, 2
      %v1398 = vsel %vm1365, %v1396, %v1397
      %v1399 = vrot.slane %v621, 2
      %v1400 = vsel %vm1365, %v1397, %v1399
      %v1401 = vrot.slane %v622, 2
      %v1402 = vrot.slane %v623, 2
      %v1403 = vsel %vm1365, %v1401, %v1402
      %v1404 = vrot.slane %v624, 2
      %v1405 = vsel %vm1365, %v1402, %v1404
      %v1406 = vrot.slane %v625, 2
      %v1407 = vrot.slane %v626, 2
      %v1408 = vsel %vm1365, %v1406, %v1407
      %v1409 = vrot.slane %v627, 2
      %v1410 = vsel %vm1365, %v1407, %v1409
      %v1411 = vrot.slane %v628, 2
      %v1412 = vrot.slane %v629, 2
      %v1413 = vsel %vm1365, %v1411, %v1412
      %v1414 = vrot.slane %v630, 2
      %v1415 = vsel %vm1365, %v1412, %v1414
      %v1416 = vrot.slane %v631, 2
      %v1417 = vrot.slane %v632, 2
      %v1418 = vsel %vm1365, %v1416, %v1417
      %v1419 = vrot.slane %v633, 2
      %v1420 = vsel %vm1365, %v1417, %v1419
      %v1421 = vrot.slane %v634, 2
      %v1422 = vrot.slane %v635, 2
      %v1423 = vsel %vm1365, %v1421, %v1422
      %v1424 = vrot.slane %v636, 2
      %v1425 = vsel %vm1365, %v1422, %v1424
      %v1426 = vrot.slane %v637, 2
      %v1427 = vrot.slane %v638, 2
      %v1428 = vsel %vm1365, %v1426, %v1427
      %v1429 = vrot.slane %v639, 2
      %v1430 = vsel %vm1365, %v1427, %v1429
      %v1431 = vrot.slane %v640, 2
      %v1432 = vrot.slane %v641, 2
      %v1433 = vsel %vm1365, %v1431, %v1432
      %v1434 = vrot.slane %v642, 2
      %v1435 = vsel %vm1365, %v1432, %v1434
      %v1436 = vrot.slane %v643, 2
      %v1437 = vrot.slane %v644, 2
      %v1438 = vsel %vm1365, %v1436, %v1437
      %v1439 = vrot.slane %v645, 2
      %v1440 = vsel %vm1365, %v1437, %v1439
      %v1441 = vrot.slane %v646, 2
      %v1442 = vrot.slane %v647, 2
      %v1443 = vsel %vm1365, %v1441, %v1442
      %v1444 = vrot.slane %v648, 2
      %v1445 = vsel %vm1365, %v1442, %v1444
      %v1446 = vld [vmem:[%s362 + $0x10] sm:$0xff]
      %v1447 = vsel %vm786, %v1368, 0
      %v1449 = vsel %vm786, %v1370, 0
      %v1451 = vsel %vm786, %v1373, 0
      %v1453 = vsel %vm786, %v1375, 0
      %v1455 = vsel %vm786, %v1378, 0
      %v1457 = vsel %vm786, %v1380, 0
      %v1459 = vsel %vm786, %v1383, 0
      %v1461 = vsel %vm786, %v1385, 0
      %v1463 = vsel %vm786, %v1388, 0
      %v1465 = vsel %vm786, %v1390, 0
      %v1467 = vsel %vm786, %v1393, 0
      %v1469 = vsel %vm786, %v1395, 0
      %v1471 = vsel %vm786, %v1398, 0
      %v1473 = vsel %vm786, %v1400, 0
      %v1475 = vsel %vm786, %v1403, 0
      %v1477 = vsel %vm786, %v1405, 0
      %v1479 = vsel %vm786, %v1408, 0
      %v1481 = vsel %vm786, %v1410, 0
      %v1483 = vsel %vm786, %v1413, 0
      %v1485 = vsel %vm786, %v1415, 0
      %v1487 = vsel %vm786, %v1418, 0
      %v1489 = vsel %vm786, %v1420, 0
      %v1491 = vsel %vm786, %v1423, 0
      %v1493 = vsel %vm786, %v1425, 0
      %v1495 = vsel %vm786, %v1428, 0
      %v1497 = vsel %vm786, %v1430, 0
      %v1499 = vsel %vm786, %v1433, 0
      %v1501 = vsel %vm786, %v1435, 0
      %v1503 = vsel %vm786, %v1438, 0
      %v1505 = vsel %vm786, %v1440, 0
      %v1507 = vsel %vm786, %v1443, 0
      %v1509 = vsel %vm786, %v1445, 0
      %1511 = vmatprep.subr.mxu0 0.0
      %1512 = vmatpush1.msra.mxu0 %v1446
      %1513 = vmatprep.subr.mxu0 0.0
      %1514 = vmatpush1.msra.mxu0 0.0
      %1515 = vmatprep.subr.mxu0 0.0
      %1516 = vmatpush1.msra.mxu0 0.0
      %1517 = vmatprep.subr.mxu0 0.0
      %1518 = vmatpush1.msra.mxu0 0.0
      %1519 = vmatprep.subr.mxu0 0.0
      %1520 = vmatpush1.msra.mxu0 0.0
      %1521 = vmatprep.subr.mxu0 0.0
      %1522 = vmatpush1.msra.mxu0 0.0
      %1523 = vmatprep.subr.mxu0 0.0
      %1524 = vmatpush1.msra.mxu0 0.0
      %1525 = vmatprep.subr.mxu0 0.0
      %1526 = vmatpush1.msra.mxu0 0.0
      %1527 = vmatprep.subr.mxu0 0.0
      %1528 = vmatpush1.msra.mxu0 0.0
      %1529 = vmatprep.subr.mxu0 0.0
      %1530 = vmatpush1.msra.mxu0 0.0
      %1531 = vmatprep.subr.mxu0 0.0
      %1532 = vmatpush1.msra.mxu0 0.0
      %1533 = vmatprep.subr.mxu0 0.0
      %1534 = vmatpush1.msra.mxu0 0.0
      %1535 = vmatprep.subr.mxu0 0.0
      %1536 = vmatpush1.msra.mxu0 0.0
      %1537 = vmatprep.subr.mxu0 0.0
      %1538 = vmatpush1.msra.mxu0 0.0
      %1539 = vmatprep.subr.mxu0 0.0
      %1540 = vmatpush1.msra.mxu0 0.0
      %1541 = vmatprep.subr.mxu0 0.0
      %1542 = vmatpush1.msra.mxu0 0.0
      %1543 = vmatprep.subr.mxu0 0.0
      %1544 = vmatpush1.msra.mxu0 0.0
      %1545 = vmatprep.subr.mxu0 0.0
      %1546 = vmatpush1.msra.mxu0 0.0
      %1547 = vmatprep.subr.mxu0 0.0
      %1548 = vmatpush1.msra.mxu0 0.0
      %1549 = vmatprep.subr.mxu0 0.0
      %1550 = vmatpush1.msra.mxu0 0.0
      %1551 = vmatprep.subr.mxu0 0.0
      %1552 = vmatpush1.msra.mxu0 0.0
      %1553 = vmatprep.subr.mxu0 0.0
      %1554 = vmatpush1.msra.mxu0 0.0
      %1555 = vmatprep.subr.mxu0 0.0
      %1556 = vmatpush1.msra.mxu0 0.0
      %1557 = vmatprep.subr.mxu0 0.0
      %1558 = vmatpush1.msra.mxu0 0.0
      %1559 = vmatprep.subr.mxu0 0.0
      %1560 = vmatpush1.msra.mxu0 0.0
      %1561 = vmatprep.subr.mxu0 0.0
      %1562 = vmatpush1.msra.mxu0 0.0
      %1563 = vmatprep.subr.mxu0 0.0
      %1564 = vmatpush1.msra.mxu0 0.0
      %1565 = vmatprep.subr.mxu0 0.0
      %1566 = vmatpush1.msra.mxu0 0.0
      %1567 = vmatprep.subr.mxu0 0.0
      %1568 = vmatpush1.msra.mxu0 0.0
      %1569 = vmatprep.subr.mxu0 0.0
      %1570 = vmatpush1.msra.mxu0 0.0
      %1571 = vmatprep.subr.mxu0 0.0
      %1572 = vmatpush1.msra.mxu0 0.0
      %1573 = vmatprep.subr.mxu0 0.0
      %1574 = vmatpush1.msra.mxu0 0.0
      %1575 = vmatprep.mubr.f32.mxu0 0.0
      %1576 = vmatmul.mubr.f32.gmra.mrb[0].mxu0 %v1447
      %v1577 = vpop.f32.mrb[0].mxu0
      %v1578 = vadd.f32 0.0, %v1577
      %v1579 = vpop.f32.mrb[0].mxu0
      %1580 = vmatprep.mubr.f32.mxu0 0.0
      %1581 = vmatmul.mubr.f32.gmra.mrb[0].mxu0 %v1449
      %v1582 = vpop.f32.mrb[0].mxu0
      %v1583 = vadd.f32 0.0, %v1582
      %v1584 = vpop.f32.mrb[0].mxu0
      %1585 = vmatprep.mubr.f32.mxu0 0.0
      %1586 = vmatmul.mubr.f32.gmra.mrb[0].mxu0 %v1451
      %v1587 = vpop.f32.mrb[0].mxu0
      %v1588 = vadd.f32 0.0, %v1587
      %v1589 = vpop.f32.mrb[0].mxu0
      %1590 = vmatprep.mubr.f32.mxu0 0.0
      %1591 = vmatmul.mubr.f32.gmra.mrb[0].mxu0 %v1453
      %v1592 = vpop.f32.mrb[0].mxu0
      %v1593 = vadd.f32 0.0, %v1592
      %v1594 = vpop.f32.mrb[0].mxu0
      %1595 = vmatprep.mubr.f32.mxu0 0.0
      %1596 = vmatmul.mubr.f32.gmra.mrb[0].mxu0 %v1455
      %v1597 = vpop.f32.mrb[0].mxu0
      %v1598 = vadd.f32 0.0, %v1597
      %v1599 = vpop.f32.mrb[0].mxu0
      %1600 = vmatprep.mubr.f32.mxu0 0.0
      %1601 = vmatmul.mubr.f32.gmra.mrb[0].mxu0 %v1457
      %v1602 = vpop.f32.mrb[0].mxu0
      %v1603 = vadd.f32 0.0, %v1602
      %v1604 = vpop.f32.mrb[0].mxu0
      %1605 = vmatprep.mubr.f32.mxu0 0.0
      %1606 = vmatmul.mubr.f32.gmra.mrb[0].mxu0 %v1459
      %v1607 = vpop.f32.mrb[0].mxu0
      %v1608 = vadd.f32 0.0, %v1607
      %v1609 = vpop.f32.mrb[0].mxu0
      %1610 = vmatprep.mubr.f32.mxu0 0.0
      %1611 = vmatmul.mubr.f32.gmra.mrb[0].mxu0 %v1461
      %v1612 = vpop.f32.mrb[0].mxu0
      %v1613 = vadd.f32 0.0, %v1612
      %v1614 = vpop.f32.mrb[0].mxu0
      %1615 = vmatprep.mubr.f32.mxu0 0.0
      %1616 = vmatmul.mubr.f32.gmra.mrb[0].mxu0 %v1463
      %v1617 = vpop.f32.mrb[0].mxu0
      %v1618 = vadd.f32 0.0, %v1617
      %v1619 = vpop.f32.mrb[0].mxu0
      %1620 = vmatprep.mubr.f32.mxu0 0.0
      %1621 = vmatmul.mubr.f32.gmra.mrb[0].mxu0 %v1465
      %v1622 = vpop.f32.mrb[0].mxu0
      %v1623 = vadd.f32 0.0, %v1622
      %v1624 = vpop.f32.mrb[0].mxu0
      %1625 = vmatprep.mubr.f32.mxu0 0.0
      %1626 = vmatmul.mubr.f32.gmra.mrb[0].mxu0 %v1467
      %v1627 = vpop.f32.mrb[0].mxu0
      %v1628 = vadd.f32 0.0, %v1627
      %v1629 = vpop.f32.mrb[0].mxu0
      %1630 = vmatprep.mubr.f32.mxu0 0.0
      %1631 = vmatmul.mubr.f32.gmra.mrb[0].mxu0 %v1469
      %v1632 = vpop.f32.mrb[0].mxu0
      %v1633 = vadd.f32 0.0, %v1632
      %v1634 = vpop.f32.mrb[0].mxu0
      %1635 = vmatprep.mubr.f32.mxu0 0.0
      %1636 = vmatmul.mubr.f32.gmra.mrb[0].mxu0 %v1471
      %v1637 = vpop.f32.mrb[0].mxu0
      %v1638 = vadd.f32 0.0, %v1637
      %v1639 = vpop.f32.mrb[0].mxu0
      %1640 = vmatprep.mubr.f32.mxu0 0.0
      %1641 = vmatmul.mubr.f32.gmra.mrb[0].mxu0 %v1473
      %v1642 = vpop.f32.mrb[0].mxu0
      %v1643 = vadd.f32 0.0, %v1642
      %v1644 = vpop.f32.mrb[0].mxu0
      %1645 = vmatprep.mubr.f32.mxu0 0.0
      %1646 = vmatmul.mubr.f32.gmra.mrb[0].mxu0 %v1475
      %v1647 = vpop.f32.mrb[0].mxu0
      %v1648 = vadd.f32 0.0, %v1647
      %v1649 = vpop.f32.mrb[0].mxu0
      %1650 = vmatprep.mubr.f32.mxu0 0.0
      %1651 = vmatmul.mubr.f32.gmra.mrb[0].mxu0 %v1477
      %v1652 = vpop.f32.mrb[0].mxu0
      %v1653 = vadd.f32 0.0, %v1652
      %v1654 = vpop.f32.mrb[0].mxu0
      %1655 = vmatprep.mubr.f32.mxu0 0.0
      %1656 = vmatmul.mubr.f32.gmra.mrb[0].mxu0 %v1479
      %v1657 = vpop.f32.mrb[0].mxu0
      %v1658 = vadd.f32 0.0, %v1657
      %v1659 = vpop.f32.mrb[0].mxu0
      %1660 = vmatprep.mubr.f32.mxu0 0.0
      %1661 = vmatmul.mubr.f32.gmra.mrb[0].mxu0 %v1481
      %v1662 = vpop.f32.mrb[0].mxu0
      %v1663 = vadd.f32 0.0, %v1662
      %v1664 = vpop.f32.mrb[0].mxu0
      %1665 = vmatprep.mubr.f32.mxu0 0.0
      %1666 = vmatmul.mubr.f32.gmra.mrb[0].mxu0 %v1483
      %v1667 = vpop.f32.mrb[0].mxu0
      %v1668 = vadd.f32 0.0, %v1667
      %v1669 = vpop.f32.mrb[0].mxu0
      %1670 = vmatprep.mubr.f32.mxu0 0.0
      %1671 = vmatmul.mubr.f32.gmra.mrb[0].mxu0 %v1485
      %v1672 = vpop.f32.mrb[0].mxu0
      %v1673 = vadd.f32 0.0, %v1672
      %v1674 = vpop.f32.mrb[0].mxu0
      %1675 = vmatprep.mubr.f32.mxu0 0.0
      %1676 = vmatmul.mubr.f32.gmra.mrb[0].mxu0 %v1487
      %v1677 = vpop.f32.mrb[0].mxu0
      %v1678 = vadd.f32 0.0, %v1677
      %v1679 = vpop.f32.mrb[0].mxu0
      %1680 = vmatprep.mubr.f32.mxu0 0.0
      %1681 = vmatmul.mubr.f32.gmra.mrb[0].mxu0 %v1489
      %v1682 = vpop.f32.mrb[0].mxu0
      %v1683 = vadd.f32 0.0, %v1682
      %v1684 = vpop.f32.mrb[0].mxu0
      %1685 = vmatprep.mubr.f32.mxu0 0.0
      %1686 = vmatmul.mubr.f32.gmra.mrb[0].mxu0 %v1491
      %v1687 = vpop.f32.mrb[0].mxu0
      %v1688 = vadd.f32 0.0, %v1687
      %v1689 = vpop.f32.mrb[0].mxu0
      %1690 = vmatprep.mubr.f32.mxu0 0.0
      %1691 = vmatmul.mubr.f32.gmra.mrb[0].mxu0 %v1493
      %v1692 = vpop.f32.mrb[0].mxu0
      %v1693 = vadd.f32 0.0, %v1692
      %v1694 = vpop.f32.mrb[0].mxu0
      %1695 = vmatprep.mubr.f32.mxu0 0.0
      %1696 = vmatmul.mubr.f32.gmra.mrb[0].mxu0 %v1495
      %v1697 = vpop.f32.mrb[0].mxu0
      %v1698 = vadd.f32 0.0, %v1697
      %v1699 = vpop.f32.mrb[0].mxu0
      %1700 = vmatprep.mubr.f32.mxu0 0.0
      %1701 = vmatmul.mubr.f32.gmra.mrb[0].mxu0 %v1497
      %v1702 = vpop.f32.mrb[0].mxu0
      %v1703 = vadd.f32 0.0, %v1702
      %v1704 = vpop.f32.mrb[0].mxu0
      %1705 = vmatprep.mubr.f32.mxu0 0.0
      %1706 = vmatmul.mubr.f32.gmra.mrb[0].mxu0 %v1499
      %v1707 = vpop.f32.mrb[0].mxu0
      %v1708 = vadd.f32 0.0, %v1707
      %v1709 = vpop.f32.mrb[0].mxu0
      %1710 = vmatprep.mubr.f32.mxu0 0.0
      %1711 = vmatmul.mubr.f32.gmra.mrb[0].mxu0 %v1501
      %v1712 = vpop.f32.mrb[0].mxu0
      %v1713 = vadd.f32 0.0, %v1712
      %v1714 = vpop.f32.mrb[0].mxu0
      %1715 = vmatprep.mubr.f32.mxu0 0.0
      %1716 = vmatmul.mubr.f32.gmra.mrb[0].mxu0 %v1503
      %v1717 = vpop.f32.mrb[0].mxu0
      %v1718 = vadd.f32 0.0, %v1717
      %v1719 = vpop.f32.mrb[0].mxu0
      %1720 = vmatprep.mubr.f32.mxu0 0.0
      %1721 = vmatmul.mubr.f32.gmra.mrb[0].mxu0 %v1505
      %v1722 = vpop.f32.mrb[0].mxu0
      %v1723 = vadd.f32 0.0, %v1722
      %v1724 = vpop.f32.mrb[0].mxu0
      %1725 = vmatprep.mubr.f32.mxu0 0.0
      %1726 = vmatmul.mubr.f32.gmra.mrb[0].mxu0 %v1507
      %v1727 = vpop.f32.mrb[0].mxu0
      %v1728 = vadd.f32 0.0, %v1727
      %v1729 = vpop.f32.mrb[0].mxu0
      %1730 = vmatprep.mubr.f32.mxu0 0.0
      %1731 = vmatmul.mubr.f32.gmra.mrb[0].mxu0 %v1509
      %v1732 = vpop.f32.mrb[0].mxu0
      %v1733 = vadd.f32 0.0, %v1732
      %v1734 = vpop.f32.mrb[0].mxu0
      %1735 = vdwg.mxu0
      %v1736 = vadd.f32 %v1207, %v1578
      %v1737 = vadd.f32 %v1212, %v1583
      %v1738 = vadd.f32 %v1217, %v1588
      %v1739 = vadd.f32 %v1222, %v1593
      %v1740 = vadd.f32 %v1227, %v1598
      %v1741 = vadd.f32 %v1232, %v1603
      %v1742 = vadd.f32 %v1237, %v1608
      %v1743 = vadd.f32 %v1242, %v1613
      %v1744 = vadd.f32 %v1247, %v1618
      %v1745 = vadd.f32 %v1252, %v1623
      %v1746 = vadd.f32 %v1257, %v1628
      %v1747 = vadd.f32 %v1262, %v1633
      %v1748 = vadd.f32 %v1267, %v1638
      %v1749 = vadd.f32 %v1272, %v1643
      %v1750 = vadd.f32 %v1277, %v1648
      %v1751 = vadd.f32 %v1282, %v1653
      %v1752 = vadd.f32 %v1287, %v1658
      %v1753 = vadd.f32 %v1292, %v1663
      %v1754 = vadd.f32 %v1297, %v1668
      %v1755 = vadd.f32 %v1302, %v1673
      %v1756 = vadd.f32 %v1307, %v1678
      %v1757 = vadd.f32 %v1312, %v1683
      %v1758 = vadd.f32 %v1317, %v1688
      %v1759 = vadd.f32 %v1322, %v1693
      %v1760 = vadd.f32 %v1327, %v1698
      %v1761 = vadd.f32 %v1332, %v1703
      %v1762 = vadd.f32 %v1337, %v1708
      %v1763 = vadd.f32 %v1342, %v1713
      %v1764 = vadd.f32 %v1347, %v1718
      %v1765 = vadd.f32 %v1352, %v1723
      %v1766 = vadd.f32 %v1357, %v1728
      %v1767 = vadd.f32 %v1362, %v1733
      %v1768 = vld [vmem:[%s362 + $0x18] sm:$0xff]
      %v1770 = vsel %vm786, %v649, 0
      %v1773 = vsel %vm786, %v650, 0
      %1775 = vmatprep.subr.mxu0 0.0
      %1776 = vmatpush1.msra.mxu0 %v1768
      %1777 = vmatprep.subr.mxu0 0.0
      %1778 = vmatpush1.msra.mxu0 0.0
      %1779 = vmatprep.subr.mxu0 0.0
      %1780 = vmatpush1.msra.mxu0 0.0
      %1781 = vmatprep.subr.mxu0 0.0
      %1782 = vmatpush1.msra.mxu0 0.0
      %1783 = vmatprep.subr.mxu0 0.0
      %1784 = vmatpush1.msra.mxu0 0.0
      %1785 = vmatprep.subr.mxu0 0.0
      %1786 = vmatpush1.msra.mxu0 0.0
      %1787 = vmatprep.subr.mxu0 0.0
      %1788 = vmatpush1.msra.mxu0 0.0
      %1789 = vmatprep.subr.mxu0 0.0
      %1790 = vmatpush1.msra.mxu0 0.0
      %1791 = vmatprep.subr.mxu0 0.0
      %1792 = vmatpush1.msra.mxu0 0.0
      %1793 = vmatprep.subr.mxu0 0.0
      %1794 = vmatpush1.msra.mxu0 0.0
      %1795 = vmatprep.subr.mxu0 0.0
      %1796 = vmatpush1.msra.mxu0 0.0
      %1797 = vmatprep.subr.mxu0 0.0
      %1798 = vmatpush1.msra.mxu0 0.0
      %1799 = vmatprep.subr.mxu0 0.0
      %1800 = vmatpush1.msra.mxu0 0.0
      %1801 = vmatprep.subr.mxu0 0.0
      %1802 = vmatpush1.msra.mxu0 0.0
      %1803 = vmatprep.subr.mxu0 0.0
      %1804 = vmatpush1.msra.mxu0 0.0
      %1805 = vmatprep.subr.mxu0 0.0
      %1806 = vmatpush1.msra.mxu0 0.0
      %1807 = vmatprep.subr.mxu0 0.0
      %1808 = vmatpush1.msra.mxu0 0.0
      %1809 = vmatprep.subr.mxu0 0.0
      %1810 = vmatpush1.msra.mxu0 0.0
      %1811 = vmatprep.subr.mxu0 0.0
      %1812 = vmatpush1.msra.mxu0 0.0
      %1813 = vmatprep.subr.mxu0 0.0
      %1814 = vmatpush1.msra.mxu0 0.0
      %1815 = vmatprep.subr.mxu0 0.0
      %1816 = vmatpush1.msra.mxu0 0.0
      %1817 = vmatprep.subr.mxu0 0.0
      %1818 = vmatpush1.msra.mxu0 0.0
      %1819 = vmatprep.subr.mxu0 0.0
      %1820 = vmatpush1.msra.mxu0 0.0
      %1821 = vmatprep.subr.mxu0 0.0
      %1822 = vmatpush1.msra.mxu0 0.0
      %1823 = vmatprep.subr.mxu0 0.0
      %1824 = vmatpush1.msra.mxu0 0.0
      %1825 = vmatprep.subr.mxu0 0.0
      %1826 = vmatpush1.msra.mxu0 0.0
      %1827 = vmatprep.subr.mxu0 0.0
      %1828 = vmatpush1.msra.mxu0 0.0
      %1829 = vmatprep.subr.mxu0 0.0
      %1830 = vmatpush1.msra.mxu0 0.0
      %1831 = vmatprep.subr.mxu0 0.0
      %1832 = vmatpush1.msra.mxu0 0.0
      %1833 = vmatprep.subr.mxu0 0.0
      %1834 = vmatpush1.msra.mxu0 0.0
      %1835 = vmatprep.subr.mxu0 0.0
      %1836 = vmatpush1.msra.mxu0 0.0
      %1837 = vmatprep.subr.mxu0 0.0
      %1838 = vmatpush1.msra.mxu0 0.0
      %1839 = vmatprep.mubr.f32.mxu0 0.0
      %1840 = vmatmul.mubr.f32.gmra.mrb[0].mxu0 %v1080
      %v1841 = vpop.f32.mrb[0].mxu0
      %v1842 = vadd.f32 0.0, %v1841
      %v1843 = vpop.f32.mrb[0].mxu0
      %1844 = vmatprep.mubr.f32.mxu0 0.0
      %1845 = vmatmul.mubr.f32.gmra.mrb[0].mxu0 %v1082
      %v1846 = vpop.f32.mrb[0].mxu0
      %v1847 = vadd.f32 0.0, %v1846
      %v1848 = vpop.f32.mrb[0].mxu0
      %1849 = vmatprep.mubr.f32.mxu0 0.0
      %1850 = vmatmul.mubr.f32.gmra.mrb[0].mxu0 %v1084
      %v1851 = vpop.f32.mrb[0].mxu0
      %v1852 = vadd.f32 0.0, %v1851
      %v1853 = vpop.f32.mrb[0].mxu0
      %1854 = vmatprep.mubr.f32.mxu0 0.0
      %1855 = vmatmul.mubr.f32.gmra.mrb[0].mxu0 %v1086
      %v1856 = vpop.f32.mrb[0].mxu0
      %v1857 = vadd.f32 0.0, %v1856
      %v1858 = vpop.f32.mrb[0].mxu0
      %1859 = vmatprep.mubr.f32.mxu0 0.0
      %1860 = vmatmul.mubr.f32.gmra.mrb[0].mxu0 %v1088
      %v1861 = vpop.f32.mrb[0].mxu0
      %v1862 = vadd.f32 0.0, %v1861
      %v1863 = vpop.f32.mrb[0].mxu0
      %1864 = vmatprep.mubr.f32.mxu0 0.0
      %1865 = vmatmul.mubr.f32.gmra.mrb[0].mxu0 %v1090
      %v1866 = vpop.f32.mrb[0].mxu0
      %v1867 = vadd.f32 0.0, %v1866
      %v1868 = vpop.f32.mrb[0].mxu0
      %1869 = vmatprep.mubr.f32.mxu0 0.0
      %1870 = vmatmul.mubr.f32.gmra.mrb[0].mxu0 %v1092
      %v1871 = vpop.f32.mrb[0].mxu0
      %v1872 = vadd.f32 0.0, %v1871
      %v1873 = vpop.f32.mrb[0].mxu0
      %1874 = vmatprep.mubr.f32.mxu0 0.0
      %1875 = vmatmul.mubr.f32.gmra.mrb[0].mxu0 %v1094
      %v1876 = vpop.f32.mrb[0].mxu0
      %v1877 = vadd.f32 0.0, %v1876
      %v1878 = vpop.f32.mrb[0].mxu0
      %1879 = vmatprep.mubr.f32.mxu0 0.0
      %1880 = vmatmul.mubr.f32.gmra.mrb[0].mxu0 %v1096
      %v1881 = vpop.f32.mrb[0].mxu0
      %v1882 = vadd.f32 0.0, %v1881
      %v1883 = vpop.f32.mrb[0].mxu0
      %1884 = vmatprep.mubr.f32.mxu0 0.0
      %1885 = vmatmul.mubr.f32.gmra.mrb[0].mxu0 %v1098
      %v1886 = vpop.f32.mrb[0].mxu0
      %v1887 = vadd.f32 0.0, %v1886
      %v1888 = vpop.f32.mrb[0].mxu0
      %1889 = vmatprep.mubr.f32.mxu0 0.0
      %1890 = vmatmul.mubr.f32.gmra.mrb[0].mxu0 %v1100
      %v1891 = vpop.f32.mrb[0].mxu0
      %v1892 = vadd.f32 0.0, %v1891
      %v1893 = vpop.f32.mrb[0].mxu0
      %1894 = vmatprep.mubr.f32.mxu0 0.0
      %1895 = vmatmul.mubr.f32.gmra.mrb[0].mxu0 %v1102
      %v1896 = vpop.f32.mrb[0].mxu0
      %v1897 = vadd.f32 0.0, %v1896
      %v1898 = vpop.f32.mrb[0].mxu0
      %1899 = vmatprep.mubr.f32.mxu0 0.0
      %1900 = vmatmul.mubr.f32.gmra.mrb[0].mxu0 %v1104
      %v1901 = vpop.f32.mrb[0].mxu0
      %v1902 = vadd.f32 0.0, %v1901
      %v1903 = vpop.f32.mrb[0].mxu0
      %1904 = vmatprep.mubr.f32.mxu0 0.0
      %1905 = vmatmul.mubr.f32.gmra.mrb[0].mxu0 %v1106
      %v1906 = vpop.f32.mrb[0].mxu0
      %v1907 = vadd.f32 0.0, %v1906
      %v1908 = vpop.f32.mrb[0].mxu0
      %1909 = vmatprep.mubr.f32.mxu0 0.0
      %1910 = vmatmul.mubr.f32.gmra.mrb[0].mxu0 %v1108
      %v1911 = vpop.f32.mrb[0].mxu0
      %v1912 = vadd.f32 0.0, %v1911
      %v1913 = vpop.f32.mrb[0].mxu0
      %1914 = vmatprep.mubr.f32.mxu0 0.0
      %1915 = vmatmul.mubr.f32.gmra.mrb[0].mxu0 %v1110
      %v1916 = vpop.f32.mrb[0].mxu0
      %v1917 = vadd.f32 0.0, %v1916
      %v1918 = vpop.f32.mrb[0].mxu0
      %1919 = vmatprep.mubr.f32.mxu0 0.0
      %1920 = vmatmul.mubr.f32.gmra.mrb[0].mxu0 %v1112
      %v1921 = vpop.f32.mrb[0].mxu0
      %v1922 = vadd.f32 0.0, %v1921
      %v1923 = vpop.f32.mrb[0].mxu0
      %1924 = vmatprep.mubr.f32.mxu0 0.0
      %1925 = vmatmul.mubr.f32.gmra.mrb[0].mxu0 %v1114
      %v1926 = vpop.f32.mrb[0].mxu0
      %v1927 = vadd.f32 0.0, %v1926
      %v1928 = vpop.f32.mrb[0].mxu0
      %1929 = vmatprep.mubr.f32.mxu0 0.0
      %1930 = vmatmul.mubr.f32.gmra.mrb[0].mxu0 %v1116
      %v1931 = vpop.f32.mrb[0].mxu0
      %v1932 = vadd.f32 0.0, %v1931
      %v1933 = vpop.f32.mrb[0].mxu0
      %1934 = vmatprep.mubr.f32.mxu0 0.0
      %1935 = vmatmul.mubr.f32.gmra.mrb[0].mxu0 %v1118
      %v1936 = vpop.f32.mrb[0].mxu0
      %v1937 = vadd.f32 0.0, %v1936
      %v1938 = vpop.f32.mrb[0].mxu0
      %1939 = vmatprep.mubr.f32.mxu0 0.0
      %1940 = vmatmul.mubr.f32.gmra.mrb[0].mxu0 %v1120
      %v1941 = vpop.f32.mrb[0].mxu0
      %v1942 = vadd.f32 0.0, %v1941
      %v1943 = vpop.f32.mrb[0].mxu0
      %1944 = vmatprep.mubr.f32.mxu0 0.0
      %1945 = vmatmul.mubr.f32.gmra.mrb[0].mxu0 %v1122
      %v1946 = vpop.f32.mrb[0].mxu0
      %v1947 = vadd.f32 0.0, %v1946
      %v1948 = vpop.f32.mrb[0].mxu0
      %1949 = vmatprep.mubr.f32.mxu0 0.0
      %1950 = vmatmul.mubr.f32.gmra.mrb[0].mxu0 %v1124
      %v1951 = vpop.f32.mrb[0].mxu0
      %v1952 = vadd.f32 0.0, %v1951
      %v1953 = vpop.f32.mrb[0].mxu0
      %1954 = vmatprep.mubr.f32.mxu0 0.0
      %1955 = vmatmul.mubr.f32.gmra.mrb[0].mxu0 %v1126
      %v1956 = vpop.f32.mrb[0].mxu0
      %v1957 = vadd.f32 0.0, %v1956
      %v1958 = vpop.f32.mrb[0].mxu0
      %1959 = vmatprep.mubr.f32.mxu0 0.0
      %1960 = vmatmul.mubr.f32.gmra.mrb[0].mxu0 %v1128
      %v1961 = vpop.f32.mrb[0].mxu0
      %v1962 = vadd.f32 0.0, %v1961
      %v1963 = vpop.f32.mrb[0].mxu0
      %1964 = vmatprep.mubr.f32.mxu0 0.0
      %1965 = vmatmul.mubr.f32.gmra.mrb[0].mxu0 %v1130
      %v1966 = vpop.f32.mrb[0].mxu0
      %v1967 = vadd.f32 0.0, %v1966
      %v1968 = vpop.f32.mrb[0].mxu0
      %1969 = vmatprep.mubr.f32.mxu0 0.0
      %1970 = vmatmul.mubr.f32.gmra.mrb[0].mxu0 %v1132
      %v1971 = vpop.f32.mrb[0].mxu0
      %v1972 = vadd.f32 0.0, %v1971
      %v1973 = vpop.f32.mrb[0].mxu0
      %1974 = vmatprep.mubr.f32.mxu0 0.0
      %1975 = vmatmul.mubr.f32.gmra.mrb[0].mxu0 %v1134
      %v1976 = vpop.f32.mrb[0].mxu0
      %v1977 = vadd.f32 0.0, %v1976
      %v1978 = vpop.f32.mrb[0].mxu0
      %1979 = vmatprep.mubr.f32.mxu0 0.0
      %1980 = vmatmul.mubr.f32.gmra.mrb[0].mxu0 %v1136
      %v1981 = vpop.f32.mrb[0].mxu0
      %v1982 = vadd.f32 0.0, %v1981
      %v1983 = vpop.f32.mrb[0].mxu0
      %1984 = vmatprep.mubr.f32.mxu0 0.0
      %1985 = vmatmul.mubr.f32.gmra.mrb[0].mxu0 %v1138
      %v1986 = vpop.f32.mrb[0].mxu0
      %v1987 = vadd.f32 0.0, %v1986
      %v1988 = vpop.f32.mrb[0].mxu0
      %1989 = vmatprep.mubr.f32.mxu0 0.0
      %1990 = vmatmul.mubr.f32.gmra.mrb[0].mxu0 %v1770
      %v1991 = vpop.f32.mrb[0].mxu0
      %v1992 = vadd.f32 0.0, %v1991
      %v1993 = vpop.f32.mrb[0].mxu0
      %1994 = vmatprep.mubr.f32.mxu0 0.0
      %1995 = vmatmul.mubr.f32.gmra.mrb[0].mxu0 %v1773
      %v1996 = vpop.f32.mrb[0].mxu0
      %v1997 = vadd.f32 0.0, %v1996
      %v1998 = vpop.f32.mrb[0].mxu0
      %1999 = vdwg.mxu0
      %v2000 = vadd.f32 %v1736, %v1842
      %v2001 = vadd.f32 %v1737, %v1847
      %v2002 = vadd.f32 %v1738, %v1852
      %v2003 = vadd.f32 %v1739, %v1857
      %v2004 = vadd.f32 %v1740, %v1862
      %v2005 = vadd.f32 %v1741, %v1867
      %v2006 = vadd.f32 %v1742, %v1872
      %v2007 = vadd.f32 %v1743, %v1877
      %v2008 = vadd.f32 %v1744, %v1882
      %v2009 = vadd.f32 %v1745, %v1887
      %v2010 = vadd.f32 %v1746, %v1892
      %v2011 = vadd.f32 %v1747, %v1897
      %v2012 = vadd.f32 %v1748, %v1902
      %v2013 = vadd.f32 %v1749, %v1907
      %v2014 = vadd.f32 %v1750, %v1912
      %v2015 = vadd.f32 %v1751, %v1917
      %v2016 = vadd.f32 %v1752, %v1922
      %v2017 = vadd.f32 %v1753, %v1927
      %v2018 = vadd.f32 %v1754, %v1932
      %v2019 = vadd.f32 %v1755, %v1937
      %v2020 = vadd.f32 %v1756, %v1942
      %v2021 = vadd.f32 %v1757, %v1947
      %v2022 = vadd.f32 %v1758, %v1952
      %v2023 = vadd.f32 %v1759, %v1957
      %v2024 = vadd.f32 %v1760, %v1962
      %v2025 = vadd.f32 %v1761, %v1967
      %v2026 = vadd.f32 %v1762, %v1972
      %v2027 = vadd.f32 %v1763, %v1977
      %v2028 = vadd.f32 %v1764, %v1982
      %v2029 = vadd.f32 %v1765, %v1987
      %v2030 = vadd.f32 %v1766, %v1992
      %v2031 = vadd.f32 %v1767, %v1997
      %v2033 = vrot.slane %v649, 1
      %v2034 = vrot.slane %v650, 1
      %v2035 = vsel %vm704, %v2033, %v2034
      %v2036 = vrot.slane %v651, 1
      %v2037 = vsel %vm704, %v2034, %v2036
      %v2038 = vld [vmem:[%s362 + $0x20] sm:$0xff]
      %v2039 = vsel %vm786, %v2035, 0
      %v2041 = vsel %vm786, %v2037, 0
      %2043 = vmatprep.subr.mxu0 0.0
      %2044 = vmatpush1.msra.mxu0 %v2038
      %2045 = vmatprep.subr.mxu0 0.0
      %2046 = vmatpush1.msra.mxu0 0.0
      %2047 = vmatprep.subr.mxu0 0.0
      %2048 = vmatpush1.msra.mxu0 0.0
      %2049 = vmatprep.subr.mxu0 0.0
      %2050 = vmatpush1.msra.mxu0 0.0
      %2051 = vmatprep.subr.mxu0 0.0
      %2052 = vmatpush1.msra.mxu0 0.0
      %2053 = vmatprep.subr.mxu0 0.0
      %2054 = vmatpush1.msra.mxu0 0.0
      %2055 = vmatprep.subr.mxu0 0.0
      %2056 = vmatpush1.msra.mxu0 0.0
      %2057 = vmatprep.subr.mxu0 0.0
      %2058 = vmatpush1.msra.mxu0 0.0
      %2059 = vmatprep.subr.mxu0 0.0
      %2060 = vmatpush1.msra.mxu0 0.0
      %2061 = vmatprep.subr.mxu0 0.0
      %2062 = vmatpush1.msra.mxu0 0.0
      %2063 = vmatprep.subr.mxu0 0.0
      %2064 = vmatpush1.msra.mxu0 0.0
      %2065 = vmatprep.subr.mxu0 0.0
      %2066 = vmatpush1.msra.mxu0 0.0
      %2067 = vmatprep.subr.mxu0 0.0
      %2068 = vmatpush1.msra.mxu0 0.0
      %2069 = vmatprep.subr.mxu0 0.0
      %2070 = vmatpush1.msra.mxu0 0.0
      %2071 = vmatprep.subr.mxu0 0.0
      %2072 = vmatpush1.msra.mxu0 0.0
      %2073 = vmatprep.subr.mxu0 0.0
      %2074 = vmatpush1.msra.mxu0 0.0
      %2075 = vmatprep.subr.mxu0 0.0
      %2076 = vmatpush1.msra.mxu0 0.0
      %2077 = vmatprep.subr.mxu0 0.0
      %2078 = vmatpush1.msra.mxu0 0.0
      %2079 = vmatprep.subr.mxu0 0.0
      %2080 = vmatpush1.msra.mxu0 0.0
      %2081 = vmatprep.subr.mxu0 0.0
      %2082 = vmatpush1.msra.mxu0 0.0
      %2083 = vmatprep.subr.mxu0 0.0
      %2084 = vmatpush1.msra.mxu0 0.0
      %2085 = vmatprep.subr.mxu0 0.0
      %2086 = vmatpush1.msra.mxu0 0.0
      %2087 = vmatprep.subr.mxu0 0.0
      %2088 = vmatpush1.msra.mxu0 0.0
      %2089 = vmatprep.subr.mxu0 0.0
      %2090 = vmatpush1.msra.mxu0 0.0
      %2091 = vmatprep.subr.mxu0 0.0
      %2092 = vmatpush1.msra.mxu0 0.0
      %2093 = vmatprep.subr.mxu0 0.0
      %2094 = vmatpush1.msra.mxu0 0.0
      %2095 = vmatprep.subr.mxu0 0.0
      %2096 = vmatpush1.msra.mxu0 0.0
      %2097 = vmatprep.subr.mxu0 0.0
      %2098 = vmatpush1.msra.mxu0 0.0
      %2099 = vmatprep.subr.mxu0 0.0
      %2100 = vmatpush1.msra.mxu0 0.0
      %2101 = vmatprep.subr.mxu0 0.0
      %2102 = vmatpush1.msra.mxu0 0.0
      %2103 = vmatprep.subr.mxu0 0.0
      %2104 = vmatpush1.msra.mxu0 0.0
      %2105 = vmatprep.subr.mxu0 0.0
      %2106 = vmatpush1.msra.mxu0 0.0
      %2107 = vmatprep.mubr.f32.mxu0 0.0
      %2108 = vmatmul.mubr.f32.gmra.mrb[0].mxu0 %v791
      %v2109 = vpop.f32.mrb[0].mxu0
      %v2110 = vadd.f32 0.0, %v2109
      %v2111 = vpop.f32.mrb[0].mxu0
      %2112 = vmatprep.mubr.f32.mxu0 0.0
      %2113 = vmatmul.mubr.f32.gmra.mrb[0].mxu0 %v793
      %v2114 = vpop.f32.mrb[0].mxu0
      %v2115 = vadd.f32 0.0, %v2114
      %v2116 = vpop.f32.mrb[0].mxu0
      %2117 = vmatprep.mubr.f32.mxu0 0.0
      %2118 = vmatmul.mubr.f32.gmra.mrb[0].mxu0 %v795
      %v2119 = vpop.f32.mrb[0].mxu0
      %v2120 = vadd.f32 0.0, %v2119
      %v2121 = vpop.f32.mrb[0].mxu0
      %2122 = vmatprep.mubr.f32.mxu0 0.0
      %2123 = vmatmul.mubr.f32.gmra.mrb[0].mxu0 %v797
      %v2124 = vpop.f32.mrb[0].mxu0
      %v2125 = vadd.f32 0.0, %v2124
      %v2126 = vpop.f32.mrb[0].mxu0
      %2127 = vmatprep.mubr.f32.mxu0 0.0
      %2128 = vmatmul.mubr.f32.gmra.mrb[0].mxu0 %v799
      %v2129 = vpop.f32.mrb[0].mxu0
      %v2130 = vadd.f32 0.0, %v2129
      %v2131 = vpop.f32.mrb[0].mxu0
      %2132 = vmatprep.mubr.f32.mxu0 0.0
      %2133 = vmatmul.mubr.f32.gmra.mrb[0].mxu0 %v801
      %v2134 = vpop.f32.mrb[0].mxu0
      %v2135 = vadd.f32 0.0, %v2134
      %v2136 = vpop.f32.mrb[0].mxu0
      %2137 = vmatprep.mubr.f32.mxu0 0.0
      %2138 = vmatmul.mubr.f32.gmra.mrb[0].mxu0 %v803
      %v2139 = vpop.f32.mrb[0].mxu0
      %v2140 = vadd.f32 0.0, %v2139
      %v2141 = vpop.f32.mrb[0].mxu0
      %2142 = vmatprep.mubr.f32.mxu0 0.0
      %2143 = vmatmul.mubr.f32.gmra.mrb[0].mxu0 %v805
      %v2144 = vpop.f32.mrb[0].mxu0
      %v2145 = vadd.f32 0.0, %v2144
      %v2146 = vpop.f32.mrb[0].mxu0
      %2147 = vmatprep.mubr.f32.mxu0 0.0
      %2148 = vmatmul.mubr.f32.gmra.mrb[0].mxu0 %v807
      %v2149 = vpop.f32.mrb[0].mxu0
      %v2150 = vadd.f32 0.0, %v2149
      %v2151 = vpop.f32.mrb[0].mxu0
      %2152 = vmatprep.mubr.f32.mxu0 0.0
      %2153 = vmatmul.mubr.f32.gmra.mrb[0].mxu0 %v809
      %v2154 = vpop.f32.mrb[0].mxu0
      %v2155 = vadd.f32 0.0, %v2154
      %v2156 = vpop.f32.mrb[0].mxu0
      %2157 = vmatprep.mubr.f32.mxu0 0.0
      %2158 = vmatmul.mubr.f32.gmra.mrb[0].mxu0 %v811
      %v2159 = vpop.f32.mrb[0].mxu0
      %v2160 = vadd.f32 0.0, %v2159
      %v2161 = vpop.f32.mrb[0].mxu0
      %2162 = vmatprep.mubr.f32.mxu0 0.0
      %2163 = vmatmul.mubr.f32.gmra.mrb[0].mxu0 %v813
      %v2164 = vpop.f32.mrb[0].mxu0
      %v2165 = vadd.f32 0.0, %v2164
      %v2166 = vpop.f32.mrb[0].mxu0
      %2167 = vmatprep.mubr.f32.mxu0 0.0
      %2168 = vmatmul.mubr.f32.gmra.mrb[0].mxu0 %v815
      %v2169 = vpop.f32.mrb[0].mxu0
      %v2170 = vadd.f32 0.0, %v2169
      %v2171 = vpop.f32.mrb[0].mxu0
      %2172 = vmatprep.mubr.f32.mxu0 0.0
      %2173 = vmatmul.mubr.f32.gmra.mrb[0].mxu0 %v817
      %v2174 = vpop.f32.mrb[0].mxu0
      %v2175 = vadd.f32 0.0, %v2174
      %v2176 = vpop.f32.mrb[0].mxu0
      %2177 = vmatprep.mubr.f32.mxu0 0.0
      %2178 = vmatmul.mubr.f32.gmra.mrb[0].mxu0 %v819
      %v2179 = vpop.f32.mrb[0].mxu0
      %v2180 = vadd.f32 0.0, %v2179
      %v2181 = vpop.f32.mrb[0].mxu0
      %2182 = vmatprep.mubr.f32.mxu0 0.0
      %2183 = vmatmul.mubr.f32.gmra.mrb[0].mxu0 %v821
      %v2184 = vpop.f32.mrb[0].mxu0
      %v2185 = vadd.f32 0.0, %v2184
      %v2186 = vpop.f32.mrb[0].mxu0
      %2187 = vmatprep.mubr.f32.mxu0 0.0
      %2188 = vmatmul.mubr.f32.gmra.mrb[0].mxu0 %v823
      %v2189 = vpop.f32.mrb[0].mxu0
      %v2190 = vadd.f32 0.0, %v2189
      %v2191 = vpop.f32.mrb[0].mxu0
      %2192 = vmatprep.mubr.f32.mxu0 0.0
      %2193 = vmatmul.mubr.f32.gmra.mrb[0].mxu0 %v825
      %v2194 = vpop.f32.mrb[0].mxu0
      %v2195 = vadd.f32 0.0, %v2194
      %v2196 = vpop.f32.mrb[0].mxu0
      %2197 = vmatprep.mubr.f32.mxu0 0.0
      %2198 = vmatmul.mubr.f32.gmra.mrb[0].mxu0 %v827
      %v2199 = vpop.f32.mrb[0].mxu0
      %v2200 = vadd.f32 0.0, %v2199
      %v2201 = vpop.f32.mrb[0].mxu0
      %2202 = vmatprep.mubr.f32.mxu0 0.0
      %2203 = vmatmul.mubr.f32.gmra.mrb[0].mxu0 %v829
      %v2204 = vpop.f32.mrb[0].mxu0
      %v2205 = vadd.f32 0.0, %v2204
      %v2206 = vpop.f32.mrb[0].mxu0
      %2207 = vmatprep.mubr.f32.mxu0 0.0
      %2208 = vmatmul.mubr.f32.gmra.mrb[0].mxu0 %v831
      %v2209 = vpop.f32.mrb[0].mxu0
      %v2210 = vadd.f32 0.0, %v2209
      %v2211 = vpop.f32.mrb[0].mxu0
      %2212 = vmatprep.mubr.f32.mxu0 0.0
      %2213 = vmatmul.mubr.f32.gmra.mrb[0].mxu0 %v833
      %v2214 = vpop.f32.mrb[0].mxu0
      %v2215 = vadd.f32 0.0, %v2214
      %v2216 = vpop.f32.mrb[0].mxu0
      %2217 = vmatprep.mubr.f32.mxu0 0.0
      %2218 = vmatmul.mubr.f32.gmra.mrb[0].mxu0 %v835
      %v2219 = vpop.f32.mrb[0].mxu0
      %v2220 = vadd.f32 0.0, %v2219
      %v2221 = vpop.f32.mrb[0].mxu0
      %2222 = vmatprep.mubr.f32.mxu0 0.0
      %2223 = vmatmul.mubr.f32.gmra.mrb[0].mxu0 %v837
      %v2224 = vpop.f32.mrb[0].mxu0
      %v2225 = vadd.f32 0.0, %v2224
      %v2226 = vpop.f32.mrb[0].mxu0
      %2227 = vmatprep.mubr.f32.mxu0 0.0
      %2228 = vmatmul.mubr.f32.gmra.mrb[0].mxu0 %v839
      %v2229 = vpop.f32.mrb[0].mxu0
      %v2230 = vadd.f32 0.0, %v2229
      %v2231 = vpop.f32.mrb[0].mxu0
      %2232 = vmatprep.mubr.f32.mxu0 0.0
      %2233 = vmatmul.mubr.f32.gmra.mrb[0].mxu0 %v841
      %v2234 = vpop.f32.mrb[0].mxu0
      %v2235 = vadd.f32 0.0, %v2234
      %v2236 = vpop.f32.mrb[0].mxu0
      %2237 = vmatprep.mubr.f32.mxu0 0.0
      %2238 = vmatmul.mubr.f32.gmra.mrb[0].mxu0 %v843
      %v2239 = vpop.f32.mrb[0].mxu0
      %v2240 = vadd.f32 0.0, %v2239
      %v2241 = vpop.f32.mrb[0].mxu0
      %2242 = vmatprep.mubr.f32.mxu0 0.0
      %2243 = vmatmul.mubr.f32.gmra.mrb[0].mxu0 %v845
      %v2244 = vpop.f32.mrb[0].mxu0
      %v2245 = vadd.f32 0.0, %v2244
      %v2246 = vpop.f32.mrb[0].mxu0
      %2247 = vmatprep.mubr.f32.mxu0 0.0
      %2248 = vmatmul.mubr.f32.gmra.mrb[0].mxu0 %v847
      %v2249 = vpop.f32.mrb[0].mxu0
      %v2250 = vadd.f32 0.0, %v2249
      %v2251 = vpop.f32.mrb[0].mxu0
      %2252 = vmatprep.mubr.f32.mxu0 0.0
      %2253 = vmatmul.mubr.f32.gmra.mrb[0].mxu0 %v849
      %v2254 = vpop.f32.mrb[0].mxu0
      %v2255 = vadd.f32 0.0, %v2254
      %v2256 = vpop.f32.mrb[0].mxu0
      %2257 = vmatprep.mubr.f32.mxu0 0.0
      %2258 = vmatmul.mubr.f32.gmra.mrb[0].mxu0 %v2039
      %v2259 = vpop.f32.mrb[0].mxu0
      %v2260 = vadd.f32 0.0, %v2259
      %v2261 = vpop.f32.mrb[0].mxu0
      %2262 = vmatprep.mubr.f32.mxu0 0.0
      %2263 = vmatmul.mubr.f32.gmra.mrb[0].mxu0 %v2041
      %v2264 = vpop.f32.mrb[0].mxu0
      %v2265 = vadd.f32 0.0, %v2264
      %v2266 = vpop.f32.mrb[0].mxu0
      %2267 = vdwg.mxu0
      %v2268 = vadd.f32 %v2000, %v2110
      %v2269 = vadd.f32 %v2001, %v2115
      %v2270 = vadd.f32 %v2002, %v2120
      %v2271 = vadd.f32 %v2003, %v2125
      %v2272 = vadd.f32 %v2004, %v2130
      %v2273 = vadd.f32 %v2005, %v2135
      %v2274 = vadd.f32 %v2006, %v2140
      %v2275 = vadd.f32 %v2007, %v2145
      %v2276 = vadd.f32 %v2008, %v2150
      %v2277 = vadd.f32 %v2009, %v2155
      %v2278 = vadd.f32 %v2010, %v2160
      %v2279 = vadd.f32 %v2011, %v2165
      %v2280 = vadd.f32 %v2012, %v2170
      %v2281 = vadd.f32 %v2013, %v2175
      %v2282 = vadd.f32 %v2014, %v2180
      %v2283 = vadd.f32 %v2015, %v2185
      %v2284 = vadd.f32 %v2016, %v2190
      %v2285 = vadd.f32 %v2017, %v2195
      %v2286 = vadd.f32 %v2018, %v2200
      %v2287 = vadd.f32 %v2019, %v2205
      %v2288 = vadd.f32 %v2020, %v2210
      %v2289 = vadd.f32 %v2021, %v2215
      %v2290 = vadd.f32 %v2022, %v2220
      %v2291 = vadd.f32 %v2023, %v2225
      %v2292 = vadd.f32 %v2024, %v2230
      %v2293 = vadd.f32 %v2025, %v2235
      %v2294 = vadd.f32 %v2026, %v2240
      %v2295 = vadd.f32 %v2027, %v2245
      %v2296 = vadd.f32 %v2028, %v2250
      %v2297 = vadd.f32 %v2029, %v2255
      %v2298 = vadd.f32 %v2030, %v2260
      %v2299 = vadd.f32 %v2031, %v2265
      %v2300 = vrot.slane %v649, 2
      %v2301 = vrot.slane %v650, 2
      %v2302 = vsel %vm1365, %v2300, %v2301
      %v2303 = vrot.slane %v651, 2
      %v2304 = vsel %vm1365, %v2301, %v2303
      %v2305 = vld [vmem:[%s362 + $0x28] sm:$0xff]
      %v2306 = vsel %vm786, %v2302, 0
      %v2308 = vsel %vm786, %v2304, 0
      %2310 = vmatprep.subr.mxu0 0.0
      %2311 = vmatpush1.msra.mxu0 %v2305
      %2312 = vmatprep.subr.mxu0 0.0
      %2313 = vmatpush1.msra.mxu0 0.0
      %2314 = vmatprep.subr.mxu0 0.0
      %2315 = vmatpush1.msra.mxu0 0.0
      %2316 = vmatprep.subr.mxu0 0.0
      %2317 = vmatpush1.msra.mxu0 0.0
      %2318 = vmatprep.subr.mxu0 0.0
      %2319 = vmatpush1.msra.mxu0 0.0
      %2320 = vmatprep.subr.mxu0 0.0
      %2321 = vmatpush1.msra.mxu0 0.0
      %2322 = vmatprep.subr.mxu0 0.0
      %2323 = vmatpush1.msra.mxu0 0.0
      %2324 = vmatprep.subr.mxu0 0.0
      %2325 = vmatpush1.msra.mxu0 0.0
      %2326 = vmatprep.subr.mxu0 0.0
      %2327 = vmatpush1.msra.mxu0 0.0
      %2328 = vmatprep.subr.mxu0 0.0
      %2329 = vmatpush1.msra.mxu0 0.0
      %2330 = vmatprep.subr.mxu0 0.0
      %2331 = vmatpush1.msra.mxu0 0.0
      %2332 = vmatprep.subr.mxu0 0.0
      %2333 = vmatpush1.msra.mxu0 0.0
      %2334 = vmatprep.subr.mxu0 0.0
      %2335 = vmatpush1.msra.mxu0 0.0
      %2336 = vmatprep.subr.mxu0 0.0
      %2337 = vmatpush1.msra.mxu0 0.0
      %2338 = vmatprep.subr.mxu0 0.0
      %2339 = vmatpush1.msra.mxu0 0.0
      %2340 = vmatprep.subr.mxu0 0.0
      %2341 = vmatpush1.msra.mxu0 0.0
      %2342 = vmatprep.subr.mxu0 0.0
      %2343 = vmatpush1.msra.mxu0 0.0
      %2344 = vmatprep.subr.mxu0 0.0
      %2345 = vmatpush1.msra.mxu0 0.0
      %2346 = vmatprep.subr.mxu0 0.0
      %2347 = vmatpush1.msra.mxu0 0.0
      %2348 = vmatprep.subr.mxu0 0.0
      %2349 = vmatpush1.msra.mxu0 0.0
      %2350 = vmatprep.subr.mxu0 0.0
      %2351 = vmatpush1.msra.mxu0 0.0
      %2352 = vmatprep.subr.mxu0 0.0
      %2353 = vmatpush1.msra.mxu0 0.0
      %2354 = vmatprep.subr.mxu0 0.0
      %2355 = vmatpush1.msra.mxu0 0.0
      %2356 = vmatprep.subr.mxu0 0.0
      %2357 = vmatpush1.msra.mxu0 0.0
      %2358 = vmatprep.subr.mxu0 0.0
      %2359 = vmatpush1.msra.mxu0 0.0
      %2360 = vmatprep.subr.mxu0 0.0
      %2361 = vmatpush1.msra.mxu0 0.0
      %2362 = vmatprep.subr.mxu0 0.0
      %2363 = vmatpush1.msra.mxu0 0.0
      %2364 = vmatprep.subr.mxu0 0.0
      %2365 = vmatpush1.msra.mxu0 0.0
      %2366 = vmatprep.subr.mxu0 0.0
      %2367 = vmatpush1.msra.mxu0 0.0
      %2368 = vmatprep.subr.mxu0 0.0
      %2369 = vmatpush1.msra.mxu0 0.0
      %2370 = vmatprep.subr.mxu0 0.0
      %2371 = vmatpush1.msra.mxu0 0.0
      %2372 = vmatprep.subr.mxu0 0.0
      %2373 = vmatpush1.msra.mxu0 0.0
      %2374 = vmatprep.mubr.f32.mxu0 0.0
      %2375 = vmatmul.mubr.f32.gmra.mrb[0].mxu0 %v1451
      %v2376 = vpop.f32.mrb[0].mxu0
      %v2377 = vadd.f32 0.0, %v2376
      %v2378 = vpop.f32.mrb[0].mxu0
      %2379 = vmatprep.mubr.f32.mxu0 0.0
      %2380 = vmatmul.mubr.f32.gmra.mrb[0].mxu0 %v1453
      %v2381 = vpop.f32.mrb[0].mxu0
      %v2382 = vadd.f32 0.0, %v2381
      %v2383 = vpop.f32.mrb[0].mxu0
      %2384 = vmatprep.mubr.f32.mxu0 0.0
      %2385 = vmatmul.mubr.f32.gmra.mrb[0].mxu0 %v1455
      %v2386 = vpop.f32.mrb[0].mxu0
      %v2387 = vadd.f32 0.0, %v2386
      %v2388 = vpop.f32.mrb[0].mxu0
      %2389 = vmatprep.mubr.f32.mxu0 0.0
      %2390 = vmatmul.mubr.f32.gmra.mrb[0].mxu0 %v1457
      %v2391 = vpop.f32.mrb[0].mxu0
      %v2392 = vadd.f32 0.0, %v2391
      %v2393 = vpop.f32.mrb[0].mxu0
      %2394 = vmatprep.mubr.f32.mxu0 0.0
      %2395 = vmatmul.mubr.f32.gmra.mrb[0].mxu0 %v1459
      %v2396 = vpop.f32.mrb[0].mxu0
      %v2397 = vadd.f32 0.0, %v2396
      %v2398 = vpop.f32.mrb[0].mxu0
      %2399 = vmatprep.mubr.f32.mxu0 0.0
      %2400 = vmatmul.mubr.f32.gmra.mrb[0].mxu0 %v1461
      %v2401 = vpop.f32.mrb[0].mxu0
      %v2402 = vadd.f32 0.0, %v2401
      %v2403 = vpop.f32.mrb[0].mxu0
      %2404 = vmatprep.mubr.f32.mxu0 0.0
      %2405 = vmatmul.mubr.f32.gmra.mrb[0].mxu0 %v1463
      %v2406 = vpop.f32.mrb[0].mxu0
      %v2407 = vadd.f32 0.0, %v2406
      %v2408 = vpop.f32.mrb[0].mxu0
      %2409 = vmatprep.mubr.f32.mxu0 0.0
      %2410 = vmatmul.mubr.f32.gmra.mrb[0].mxu0 %v1465
      %v2411 = vpop.f32.mrb[0].mxu0
      %v2412 = vadd.f32 0.0, %v2411
      %v2413 = vpop.f32.mrb[0].mxu0
      %2414 = vmatprep.mubr.f32.mxu0 0.0
      %2415 = vmatmul.mubr.f32.gmra.mrb[0].mxu0 %v1467
      %v2416 = vpop.f32.mrb[0].mxu0
      %v2417 = vadd.f32 0.0, %v2416
      %v2418 = vpop.f32.mrb[0].mxu0
      %2419 = vmatprep.mubr.f32.mxu0 0.0
      %2420 = vmatmul.mubr.f32.gmra.mrb[0].mxu0 %v1469
      %v2421 = vpop.f32.mrb[0].mxu0
      %v2422 = vadd.f32 0.0, %v2421
      %v2423 = vpop.f32.mrb[0].mxu0
      %2424 = vmatprep.mubr.f32.mxu0 0.0
      %2425 = vmatmul.mubr.f32.gmra.mrb[0].mxu0 %v1471
      %v2426 = vpop.f32.mrb[0].mxu0
      %v2427 = vadd.f32 0.0, %v2426
      %v2428 = vpop.f32.mrb[0].mxu0
      %2429 = vmatprep.mubr.f32.mxu0 0.0
      %2430 = vmatmul.mubr.f32.gmra.mrb[0].mxu0 %v1473
      %v2431 = vpop.f32.mrb[0].mxu0
      %v2432 = vadd.f32 0.0, %v2431
      %v2433 = vpop.f32.mrb[0].mxu0
      %2434 = vmatprep.mubr.f32.mxu0 0.0
      %2435 = vmatmul.mubr.f32.gmra.mrb[0].mxu0 %v1475
      %v2436 = vpop.f32.mrb[0].mxu0
      %v2437 = vadd.f32 0.0, %v2436
      %v2438 = vpop.f32.mrb[0].mxu0
      %2439 = vmatprep.mubr.f32.mxu0 0.0
      %2440 = vmatmul.mubr.f32.gmra.mrb[0].mxu0 %v1477
      %v2441 = vpop.f32.mrb[0].mxu0
      %v2442 = vadd.f32 0.0, %v2441
      %v2443 = vpop.f32.mrb[0].mxu0
      %2444 = vmatprep.mubr.f32.mxu0 0.0
      %2445 = vmatmul.mubr.f32.gmra.mrb[0].mxu0 %v1479
      %v2446 = vpop.f32.mrb[0].mxu0
      %v2447 = vadd.f32 0.0, %v2446
      %v2448 = vpop.f32.mrb[0].mxu0
      %2449 = vmatprep.mubr.f32.mxu0 0.0
      %2450 = vmatmul.mubr.f32.gmra.mrb[0].mxu0 %v1481
      %v2451 = vpop.f32.mrb[0].mxu0
      %v2452 = vadd.f32 0.0, %v2451
      %v2453 = vpop.f32.mrb[0].mxu0
      %2454 = vmatprep.mubr.f32.mxu0 0.0
      %2455 = vmatmul.mubr.f32.gmra.mrb[0].mxu0 %v1483
      %v2456 = vpop.f32.mrb[0].mxu0
      %v2457 = vadd.f32 0.0, %v2456
      %v2458 = vpop.f32.mrb[0].mxu0
      %2459 = vmatprep.mubr.f32.mxu0 0.0
      %2460 = vmatmul.mubr.f32.gmra.mrb[0].mxu0 %v1485
      %v2461 = vpop.f32.mrb[0].mxu0
      %v2462 = vadd.f32 0.0, %v2461
      %v2463 = vpop.f32.mrb[0].mxu0
      %2464 = vmatprep.mubr.f32.mxu0 0.0
      %2465 = vmatmul.mubr.f32.gmra.mrb[0].mxu0 %v1487
      %v2466 = vpop.f32.mrb[0].mxu0
      %v2467 = vadd.f32 0.0, %v2466
      %v2468 = vpop.f32.mrb[0].mxu0
      %2469 = vmatprep.mubr.f32.mxu0 0.0
      %2470 = vmatmul.mubr.f32.gmra.mrb[0].mxu0 %v1489
      %v2471 = vpop.f32.mrb[0].mxu0
      %v2472 = vadd.f32 0.0, %v2471
      %v2473 = vpop.f32.mrb[0].mxu0
      %2474 = vmatprep.mubr.f32.mxu0 0.0
      %2475 = vmatmul.mubr.f32.gmra.mrb[0].mxu0 %v1491
      %v2476 = vpop.f32.mrb[0].mxu0
      %v2477 = vadd.f32 0.0, %v2476
      %v2478 = vpop.f32.mrb[0].mxu0
      %2479 = vmatprep.mubr.f32.mxu0 0.0
      %2480 = vmatmul.mubr.f32.gmra.mrb[0].mxu0 %v1493
      %v2481 = vpop.f32.mrb[0].mxu0
      %v2482 = vadd.f32 0.0, %v2481
      %v2483 = vpop.f32.mrb[0].mxu0
      %2484 = vmatprep.mubr.f32.mxu0 0.0
      %2485 = vmatmul.mubr.f32.gmra.mrb[0].mxu0 %v1495
      %v2486 = vpop.f32.mrb[0].mxu0
      %v2487 = vadd.f32 0.0, %v2486
      %v2488 = vpop.f32.mrb[0].mxu0
      %2489 = vmatprep.mubr.f32.mxu0 0.0
      %2490 = vmatmul.mubr.f32.gmra.mrb[0].mxu0 %v1497
      %v2491 = vpop.f32.mrb[0].mxu0
      %v2492 = vadd.f32 0.0, %v2491
      %v2493 = vpop.f32.mrb[0].mxu0
      %2494 = vmatprep.mubr.f32.mxu0 0.0
      %2495 = vmatmul.mubr.f32.gmra.mrb[0].mxu0 %v1499
      %v2496 = vpop.f32.mrb[0].mxu0
      %v2497 = vadd.f32 0.0, %v2496
      %v2498 = vpop.f32.mrb[0].mxu0
      %2499 = vmatprep.mubr.f32.mxu0 0.0
      %2500 = vmatmul.mubr.f32.gmra.mrb[0].mxu0 %v1501
      %v2501 = vpop.f32.mrb[0].mxu0
      %v2502 = vadd.f32 0.0, %v2501
      %v2503 = vpop.f32.mrb[0].mxu0
      %2504 = vmatprep.mubr.f32.mxu0 0.0
      %2505 = vmatmul.mubr.f32.gmra.mrb[0].mxu0 %v1503
      %v2506 = vpop.f32.mrb[0].mxu0
      %v2507 = vadd.f32 0.0, %v2506
      %v2508 = vpop.f32.mrb[0].mxu0
      %2509 = vmatprep.mubr.f32.mxu0 0.0
      %2510 = vmatmul.mubr.f32.gmra.mrb[0].mxu0 %v1505
      %v2511 = vpop.f32.mrb[0].mxu0
      %v2512 = vadd.f32 0.0, %v2511
      %v2513 = vpop.f32.mrb[0].mxu0
      %2514 = vmatprep.mubr.f32.mxu0 0.0
      %2515 = vmatmul.mubr.f32.gmra.mrb[0].mxu0 %v1507
      %v2516 = vpop.f32.mrb[0].mxu0
      %v2517 = vadd.f32 0.0, %v2516
      %v2518 = vpop.f32.mrb[0].mxu0
      %2519 = vmatprep.mubr.f32.mxu0 0.0
      %2520 = vmatmul.mubr.f32.gmra.mrb[0].mxu0 %v1509
      %v2521 = vpop.f32.mrb[0].mxu0
      %v2522 = vadd.f32 0.0, %v2521
      %v2523 = vpop.f32.mrb[0].mxu0
      %2524 = vmatprep.mubr.f32.mxu0 0.0
      %2525 = vmatmul.mubr.f32.gmra.mrb[0].mxu0 %v2306
      %v2526 = vpop.f32.mrb[0].mxu0
      %v2527 = vadd.f32 0.0, %v2526
      %v2528 = vpop.f32.mrb[0].mxu0
      %2529 = vmatprep.mubr.f32.mxu0 0.0
      %2530 = vmatmul.mubr.f32.gmra.mrb[0].mxu0 %v2308
      %v2531 = vpop.f32.mrb[0].mxu0
      %v2532 = vadd.f32 0.0, %v2531
      %v2533 = vpop.f32.mrb[0].mxu0
      %2534 = vdwg.mxu0
      %v2535 = vadd.f32 %v2268, %v2377
      %v2536 = vadd.f32 %v2269, %v2382
      %v2537 = vadd.f32 %v2270, %v2387
      %v2538 = vadd.f32 %v2271, %v2392
      %v2539 = vadd.f32 %v2272, %v2397
      %v2540 = vadd.f32 %v2273, %v2402
      %v2541 = vadd.f32 %v2274, %v2407
      %v2542 = vadd.f32 %v2275, %v2412
      %v2543 = vadd.f32 %v2276, %v2417
      %v2544 = vadd.f32 %v2277, %v2422
      %v2545 = vadd.f32 %v2278, %v2427
      %v2546 = vadd.f32 %v2279, %v2432
      %v2547 = vadd.f32 %v2280, %v2437
      %v2548 = vadd.f32 %v2281, %v2442
      %v2549 = vadd.f32 %v2282, %v2447
      %v2550 = vadd.f32 %v2283, %v2452
      %v2551 = vadd.f32 %v2284, %v2457
      %v2552 = vadd.f32 %v2285, %v2462
      %v2553 = vadd.f32 %v2286, %v2467
      %v2554 = vadd.f32 %v2287, %v2472
      %v2555 = vadd.f32 %v2288, %v2477
      %v2556 = vadd.f32 %v2289, %v2482
      %v2557 = vadd.f32 %v2290, %v2487
      %v2558 = vadd.f32 %v2291, %v2492
      %v2559 = vadd.f32 %v2292, %v2497
      %v2560 = vadd.f32 %v2293, %v2502
      %v2561 = vadd.f32 %v2294, %v2507
      %v2562 = vadd.f32 %v2295, %v2512
      %v2563 = vadd.f32 %v2296, %v2517
      %v2564 = vadd.f32 %v2297, %v2522
      %v2565 = vadd.f32 %v2298, %v2527
      %v2566 = vadd.f32 %v2299, %v2532
      %v2567 = vld [vmem:[%s362 + $0x30] sm:$0xff]
      %v2569 = vsel %vm786, %v652, 0
      %v2572 = vsel %vm786, %v653, 0
      %2574 = vmatprep.subr.mxu0 0.0
      %2575 = vmatpush1.msra.mxu0 %v2567
      %2576 = vmatprep.subr.mxu0 0.0
      %2577 = vmatpush1.msra.mxu0 0.0
      %2578 = vmatprep.subr.mxu0 0.0
      %2579 = vmatpush1.msra.mxu0 0.0
      %2580 = vmatprep.subr.mxu0 0.0
      %2581 = vmatpush1.msra.mxu0 0.0
      %2582 = vmatprep.subr.mxu0 0.0
      %2583 = vmatpush1.msra.mxu0 0.0
      %2584 = vmatprep.subr.mxu0 0.0
      %2585 = vmatpush1.msra.mxu0 0.0
      %2586 = vmatprep.subr.mxu0 0.0
      %2587 = vmatpush1.msra.mxu0 0.0
      %2588 = vmatprep.subr.mxu0 0.0
      %2589 = vmatpush1.msra.mxu0 0.0
      %2590 = vmatprep.subr.mxu0 0.0
      %2591 = vmatpush1.msra.mxu0 0.0
      %2592 = vmatprep.subr.mxu0 0.0
      %2593 = vmatpush1.msra.mxu0 0.0
      %2594 = vmatprep.subr.mxu0 0.0
      %2595 = vmatpush1.msra.mxu0 0.0
      %2596 = vmatprep.subr.mxu0 0.0
      %2597 = vmatpush1.msra.mxu0 0.0
      %2598 = vmatprep.subr.mxu0 0.0
      %2599 = vmatpush1.msra.mxu0 0.0
      %2600 = vmatprep.subr.mxu0 0.0
      %2601 = vmatpush1.msra.mxu0 0.0
      %2602 = vmatprep.subr.mxu0 0.0
      %2603 = vmatpush1.msra.mxu0 0.0
      %2604 = vmatprep.subr.mxu0 0.0
      %2605 = vmatpush1.msra.mxu0 0.0
      %2606 = vmatprep.subr.mxu0 0.0
      %2607 = vmatpush1.msra.mxu0 0.0
      %2608 = vmatprep.subr.mxu0 0.0
      %2609 = vmatpush1.msra.mxu0 0.0
      %2610 = vmatprep.subr.mxu0 0.0
      %2611 = vmatpush1.msra.mxu0 0.0
      %2612 = vmatprep.subr.mxu0 0.0
      %2613 = vmatpush1.msra.mxu0 0.0
      %2614 = vmatprep.subr.mxu0 0.0
      %2615 = vmatpush1.msra.mxu0 0.0
      %2616 = vmatprep.subr.mxu0 0.0
      %2617 = vmatpush1.msra.mxu0 0.0
      %2618 = vmatprep.subr.mxu0 0.0
      %2619 = vmatpush1.msra.mxu0 0.0
      %2620 = vmatprep.subr.mxu0 0.0
      %2621 = vmatpush1.msra.mxu0 0.0
      %2622 = vmatprep.subr.mxu0 0.0
      %2623 = vmatpush1.msra.mxu0 0.0
      %2624 = vmatprep.subr.mxu0 0.0
      %2625 = vmatpush1.msra.mxu0 0.0
      %2626 = vmatprep.subr.mxu0 0.0
      %2627 = vmatpush1.msra.mxu0 0.0
      %2628 = vmatprep.subr.mxu0 0.0
      %2629 = vmatpush1.msra.mxu0 0.0
      %2630 = vmatprep.subr.mxu0 0.0
      %2631 = vmatpush1.msra.mxu0 0.0
      %2632 = vmatprep.subr.mxu0 0.0
      %2633 = vmatpush1.msra.mxu0 0.0
      %2634 = vmatprep.subr.mxu0 0.0
      %2635 = vmatpush1.msra.mxu0 0.0
      %2636 = vmatprep.subr.mxu0 0.0
      %2637 = vmatpush1.msra.mxu0 0.0
      %2638 = vmatprep.mubr.f32.mxu0 0.0
      %2639 = vmatmul.mubr.f32.gmra.mrb[0].mxu0 %v1084
      %v2640 = vpop.f32.mrb[0].mxu0
      %v2641 = vadd.f32 0.0, %v2640
      %v2642 = vpop.f32.mrb[0].mxu0
      %2643 = vmatprep.mubr.f32.mxu0 0.0
      %2644 = vmatmul.mubr.f32.gmra.mrb[0].mxu0 %v1086
      %v2645 = vpop.f32.mrb[0].mxu0
      %v2646 = vadd.f32 0.0, %v2645
      %v2647 = vpop.f32.mrb[0].mxu0
      %2648 = vmatprep.mubr.f32.mxu0 0.0
      %2649 = vmatmul.mubr.f32.gmra.mrb[0].mxu0 %v1088
      %v2650 = vpop.f32.mrb[0].mxu0
      %v2651 = vadd.f32 0.0, %v2650
      %v2652 = vpop.f32.mrb[0].mxu0
      %2653 = vmatprep.mubr.f32.mxu0 0.0
      %2654 = vmatmul.mubr.f32.gmra.mrb[0].mxu0 %v1090
      %v2655 = vpop.f32.mrb[0].mxu0
      %v2656 = vadd.f32 0.0, %v2655
      %v2657 = vpop.f32.mrb[0].mxu0
      %2658 = vmatprep.mubr.f32.mxu0 0.0
      %2659 = vmatmul.mubr.f32.gmra.mrb[0].mxu0 %v1092
      %v2660 = vpop.f32.mrb[0].mxu0
      %v2661 = vadd.f32 0.0, %v2660
      %v2662 = vpop.f32.mrb[0].mxu0
      %2663 = vmatprep.mubr.f32.mxu0 0.0
      %2664 = vmatmul.mubr.f32.gmra.mrb[0].mxu0 %v1094
      %v2665 = vpop.f32.mrb[0].mxu0
      %v2666 = vadd.f32 0.0, %v2665
      %v2667 = vpop.f32.mrb[0].mxu0
      %2668 = vmatprep.mubr.f32.mxu0 0.0
      %2669 = vmatmul.mubr.f32.gmra.mrb[0].mxu0 %v1096
      %v2670 = vpop.f32.mrb[0].mxu0
      %v2671 = vadd.f32 0.0, %v2670
      %v2672 = vpop.f32.mrb[0].mxu0
      %2673 = vmatprep.mubr.f32.mxu0 0.0
      %2674 = vmatmul.mubr.f32.gmra.mrb[0].mxu0 %v1098
      %v2675 = vpop.f32.mrb[0].mxu0
      %v2676 = vadd.f32 0.0, %v2675
      %v2677 = vpop.f32.mrb[0].mxu0
      %2678 = vmatprep.mubr.f32.mxu0 0.0
      %2679 = vmatmul.mubr.f32.gmra.mrb[0].mxu0 %v1100
      %v2680 = vpop.f32.mrb[0].mxu0
      %v2681 = vadd.f32 0.0, %v2680
      %v2682 = vpop.f32.mrb[0].mxu0
      %2683 = vmatprep.mubr.f32.mxu0 0.0
      %2684 = vmatmul.mubr.f32.gmra.mrb[0].mxu0 %v1102
      %v2685 = vpop.f32.mrb[0].mxu0
      %v2686 = vadd.f32 0.0, %v2685
      %v2687 = vpop.f32.mrb[0].mxu0
      %2688 = vmatprep.mubr.f32.mxu0 0.0
      %2689 = vmatmul.mubr.f32.gmra.mrb[0].mxu0 %v1104
      %v2690 = vpop.f32.mrb[0].mxu0
      %v2691 = vadd.f32 0.0, %v2690
      %v2692 = vpop.f32.mrb[0].mxu0
      %2693 = vmatprep.mubr.f32.mxu0 0.0
      %2694 = vmatmul.mubr.f32.gmra.mrb[0].mxu0 %v1106
      %v2695 = vpop.f32.mrb[0].mxu0
      %v2696 = vadd.f32 0.0, %v2695
      %v2697 = vpop.f32.mrb[0].mxu0
      %2698 = vmatprep.mubr.f32.mxu0 0.0
      %2699 = vmatmul.mubr.f32.gmra.mrb[0].mxu0 %v1108
      %v2700 = vpop.f32.mrb[0].mxu0
      %v2701 = vadd.f32 0.0, %v2700
      %v2702 = vpop.f32.mrb[0].mxu0
      %2703 = vmatprep.mubr.f32.mxu0 0.0
      %2704 = vmatmul.mubr.f32.gmra.mrb[0].mxu0 %v1110
      %v2705 = vpop.f32.mrb[0].mxu0
      %v2706 = vadd.f32 0.0, %v2705
      %v2707 = vpop.f32.mrb[0].mxu0
      %2708 = vmatprep.mubr.f32.mxu0 0.0
      %2709 = vmatmul.mubr.f32.gmra.mrb[0].mxu0 %v1112
      %v2710 = vpop.f32.mrb[0].mxu0
      %v2711 = vadd.f32 0.0, %v2710
      %v2712 = vpop.f32.mrb[0].mxu0
      %2713 = vmatprep.mubr.f32.mxu0 0.0
      %2714 = vmatmul.mubr.f32.gmra.mrb[0].mxu0 %v1114
      %v2715 = vpop.f32.mrb[0].mxu0
      %v2716 = vadd.f32 0.0, %v2715
      %v2717 = vpop.f32.mrb[0].mxu0
      %2718 = vmatprep.mubr.f32.mxu0 0.0
      %2719 = vmatmul.mubr.f32.gmra.mrb[0].mxu0 %v1116
      %v2720 = vpop.f32.mrb[0].mxu0
      %v2721 = vadd.f32 0.0, %v2720
      %v2722 = vpop.f32.mrb[0].mxu0
      %2723 = vmatprep.mubr.f32.mxu0 0.0
      %2724 = vmatmul.mubr.f32.gmra.mrb[0].mxu0 %v1118
      %v2725 = vpop.f32.mrb[0].mxu0
      %v2726 = vadd.f32 0.0, %v2725
      %v2727 = vpop.f32.mrb[0].mxu0
      %2728 = vmatprep.mubr.f32.mxu0 0.0
      %2729 = vmatmul.mubr.f32.gmra.mrb[0].mxu0 %v1120
      %v2730 = vpop.f32.mrb[0].mxu0
      %v2731 = vadd.f32 0.0, %v2730
      %v2732 = vpop.f32.mrb[0].mxu0
      %2733 = vmatprep.mubr.f32.mxu0 0.0
      %2734 = vmatmul.mubr.f32.gmra.mrb[0].mxu0 %v1122
      %v2735 = vpop.f32.mrb[0].mxu0
      %v2736 = vadd.f32 0.0, %v2735
      %v2737 = vpop.f32.mrb[0].mxu0
      %2738 = vmatprep.mubr.f32.mxu0 0.0
      %2739 = vmatmul.mubr.f32.gmra.mrb[0].mxu0 %v1124
      %v2740 = vpop.f32.mrb[0].mxu0
      %v2741 = vadd.f32 0.0, %v2740
      %v2742 = vpop.f32.mrb[0].mxu0
      %2743 = vmatprep.mubr.f32.mxu0 0.0
      %2744 = vmatmul.mubr.f32.gmra.mrb[0].mxu0 %v1126
      %v2745 = vpop.f32.mrb[0].mxu0
      %v2746 = vadd.f32 0.0, %v2745
      %v2747 = vpop.f32.mrb[0].mxu0
      %2748 = vmatprep.mubr.f32.mxu0 0.0
      %2749 = vmatmul.mubr.f32.gmra.mrb[0].mxu0 %v1128
      %v2750 = vpop.f32.mrb[0].mxu0
      %v2751 = vadd.f32 0.0, %v2750
      %v2752 = vpop.f32.mrb[0].mxu0
      %2753 = vmatprep.mubr.f32.mxu0 0.0
      %2754 = vmatmul.mubr.f32.gmra.mrb[0].mxu0 %v1130
      %v2755 = vpop.f32.mrb[0].mxu0
      %v2756 = vadd.f32 0.0, %v2755
      %v2757 = vpop.f32.mrb[0].mxu0
      %2758 = vmatprep.mubr.f32.mxu0 0.0
      %2759 = vmatmul.mubr.f32.gmra.mrb[0].mxu0 %v1132
      %v2760 = vpop.f32.mrb[0].mxu0
      %v2761 = vadd.f32 0.0, %v2760
      %v2762 = vpop.f32.mrb[0].mxu0
      %2763 = vmatprep.mubr.f32.mxu0 0.0
      %2764 = vmatmul.mubr.f32.gmra.mrb[0].mxu0 %v1134
      %v2765 = vpop.f32.mrb[0].mxu0
      %v2766 = vadd.f32 0.0, %v2765
      %v2767 = vpop.f32.mrb[0].mxu0
      %2768 = vmatprep.mubr.f32.mxu0 0.0
      %2769 = vmatmul.mubr.f32.gmra.mrb[0].mxu0 %v1136
      %v2770 = vpop.f32.mrb[0].mxu0
      %v2771 = vadd.f32 0.0, %v2770
      %v2772 = vpop.f32.mrb[0].mxu0
      %2773 = vmatprep.mubr.f32.mxu0 0.0
      %2774 = vmatmul.mubr.f32.gmra.mrb[0].mxu0 %v1138
      %v2775 = vpop.f32.mrb[0].mxu0
      %v2776 = vadd.f32 0.0, %v2775
      %v2777 = vpop.f32.mrb[0].mxu0
      %2778 = vmatprep.mubr.f32.mxu0 0.0
      %2779 = vmatmul.mubr.f32.gmra.mrb[0].mxu0 %v1770
      %v2780 = vpop.f32.mrb[0].mxu0
      %v2781 = vadd.f32 0.0, %v2780
      %v2782 = vpop.f32.mrb[0].mxu0
      %2783 = vmatprep.mubr.f32.mxu0 0.0
      %2784 = vmatmul.mubr.f32.gmra.mrb[0].mxu0 %v1773
      %v2785 = vpop.f32.mrb[0].mxu0
      %v2786 = vadd.f32 0.0, %v2785
      %v2787 = vpop.f32.mrb[0].mxu0
      %2788 = vmatprep.mubr.f32.mxu0 0.0
      %2789 = vmatmul.mubr.f32.gmra.mrb[0].mxu0 %v2569
      %v2790 = vpop.f32.mrb[0].mxu0
      %v2791 = vadd.f32 0.0, %v2790
      %v2792 = vpop.f32.mrb[0].mxu0
      %2793 = vmatprep.mubr.f32.mxu0 0.0
      %2794 = vmatmul.mubr.f32.gmra.mrb[0].mxu0 %v2572
      %v2795 = vpop.f32.mrb[0].mxu0
      %v2796 = vadd.f32 0.0, %v2795
      %v2797 = vpop.f32.mrb[0].mxu0
      %2798 = vdwg.mxu0
      %v2799 = vadd.f32 %v2535, %v2641
      %v2800 = vadd.f32 %v2536, %v2646
      %v2801 = vadd.f32 %v2537, %v2651
      %v2802 = vadd.f32 %v2538, %v2656
      %v2803 = vadd.f32 %v2539, %v2661
      %v2804 = vadd.f32 %v2540, %v2666
      %v2805 = vadd.f32 %v2541, %v2671
      %v2806 = vadd.f32 %v2542, %v2676
      %v2807 = vadd.f32 %v2543, %v2681
      %v2808 = vadd.f32 %v2544, %v2686
      %v2809 = vadd.f32 %v2545, %v2691
      %v2810 = vadd.f32 %v2546, %v2696
      %v2811 = vadd.f32 %v2547, %v2701
      %v2812 = vadd.f32 %v2548, %v2706
      %v2813 = vadd.f32 %v2549, %v2711
      %v2814 = vadd.f32 %v2550, %v2716
      %v2815 = vadd.f32 %v2551, %v2721
      %v2816 = vadd.f32 %v2552, %v2726
      %v2817 = vadd.f32 %v2553, %v2731
      %v2818 = vadd.f32 %v2554, %v2736
      %v2819 = vadd.f32 %v2555, %v2741
      %v2820 = vadd.f32 %v2556, %v2746
      %v2821 = vadd.f32 %v2557, %v2751
      %v2822 = vadd.f32 %v2558, %v2756
      %v2823 = vadd.f32 %v2559, %v2761
      %v2824 = vadd.f32 %v2560, %v2766
      %v2825 = vadd.f32 %v2561, %v2771
      %v2826 = vadd.f32 %v2562, %v2776
      %v2827 = vadd.f32 %v2563, %v2781
      %v2828 = vadd.f32 %v2564, %v2786
      %v2829 = vadd.f32 %v2565, %v2791
      %v2830 = vadd.f32 %v2566, %v2796
      %v2832 = vrot.slane %v652, 1
      %v2833 = vrot.slane %v653, 1
      %v2834 = vsel %vm704, %v2832, %v2833
      %v2835 = vrot.slane %v654, 1
      %v2836 = vsel %vm704, %v2833, %v2835
      %v2837 = vld [vmem:[%s362 + $0x38] sm:$0xff]
      %v2838 = vsel %vm786, %v2834, 0
      %v2840 = vsel %vm786, %v2836, 0
      %2842 = vmatprep.subr.mxu0 0.0
      %2843 = vmatpush1.msra.mxu0 %v2837
      %2844 = vmatprep.subr.mxu0 0.0
      %2845 = vmatpush1.msra.mxu0 0.0
      %2846 = vmatprep.subr.mxu0 0.0
      %2847 = vmatpush1.msra.mxu0 0.0
      %2848 = vmatprep.subr.mxu0 0.0
      %2849 = vmatpush1.msra.mxu0 0.0
      %2850 = vmatprep.subr.mxu0 0.0
      %2851 = vmatpush1.msra.mxu0 0.0
      %2852 = vmatprep.subr.mxu0 0.0
      %2853 = vmatpush1.msra.mxu0 0.0
      %2854 = vmatprep.subr.mxu0 0.0
      %2855 = vmatpush1.msra.mxu0 0.0
      %2856 = vmatprep.subr.mxu0 0.0
      %2857 = vmatpush1.msra.mxu0 0.0
      %2858 = vmatprep.subr.mxu0 0.0
      %2859 = vmatpush1.msra.mxu0 0.0
      %2860 = vmatprep.subr.mxu0 0.0
      %2861 = vmatpush1.msra.mxu0 0.0
      %2862 = vmatprep.subr.mxu0 0.0
      %2863 = vmatpush1.msra.mxu0 0.0
      %2864 = vmatprep.subr.mxu0 0.0
      %2865 = vmatpush1.msra.mxu0 0.0
      %2866 = vmatprep.subr.mxu0 0.0
      %2867 = vmatpush1.msra.mxu0 0.0
      %2868 = vmatprep.subr.mxu0 0.0
      %2869 = vmatpush1.msra.mxu0 0.0
      %2870 = vmatprep.subr.mxu0 0.0
      %2871 = vmatpush1.msra.mxu0 0.0
      %2872 = vmatprep.subr.mxu0 0.0
      %2873 = vmatpush1.msra.mxu0 0.0
      %2874 = vmatprep.subr.mxu0 0.0
      %2875 = vmatpush1.msra.mxu0 0.0
      %2876 = vmatprep.subr.mxu0 0.0
      %2877 = vmatpush1.msra.mxu0 0.0
      %2878 = vmatprep.subr.mxu0 0.0
      %2879 = vmatpush1.msra.mxu0 0.0
      %2880 = vmatprep.subr.mxu0 0.0
      %2881 = vmatpush1.msra.mxu0 0.0
      %2882 = vmatprep.subr.mxu0 0.0
      %2883 = vmatpush1.msra.mxu0 0.0
      %2884 = vmatprep.subr.mxu0 0.0
      %2885 = vmatpush1.msra.mxu0 0.0
      %2886 = vmatprep.subr.mxu0 0.0
      %2887 = vmatpush1.msra.mxu0 0.0
      %2888 = vmatprep.subr.mxu0 0.0
      %2889 = vmatpush1.msra.mxu0 0.0
      %2890 = vmatprep.subr.mxu0 0.0
      %2891 = vmatpush1.msra.mxu0 0.0
      %2892 = vmatprep.subr.mxu0 0.0
      %2893 = vmatpush1.msra.mxu0 0.0
      %2894 = vmatprep.subr.mxu0 0.0
      %2895 = vmatpush1.msra.mxu0 0.0
      %2896 = vmatprep.subr.mxu0 0.0
      %2897 = vmatpush1.msra.mxu0 0.0
      %2898 = vmatprep.subr.mxu0 0.0
      %2899 = vmatpush1.msra.mxu0 0.0
      %2900 = vmatprep.subr.mxu0 0.0
      %2901 = vmatpush1.msra.mxu0 0.0
      %2902 = vmatprep.subr.mxu0 0.0
      %2903 = vmatpush1.msra.mxu0 0.0
      %2904 = vmatprep.subr.mxu0 0.0
      %2905 = vmatpush1.msra.mxu0 0.0
      %2906 = vmatprep.mubr.f32.mxu0 0.0
      %2907 = vmatmul.mubr.f32.gmra.mrb[0].mxu0 %v795
      %v2908 = vpop.f32.mrb[0].mxu0
      %v2909 = vadd.f32 0.0, %v2908
      %v2910 = vpop.f32.mrb[0].mxu0
      %2911 = vmatprep.mubr.f32.mxu0 0.0
      %2912 = vmatmul.mubr.f32.gmra.mrb[0].mxu0 %v797
      %v2913 = vpop.f32.mrb[0].mxu0
      %v2914 = vadd.f32 0.0, %v2913
      %v2915 = vpop.f32.mrb[0].mxu0
      %2916 = vmatprep.mubr.f32.mxu0 0.0
      %2917 = vmatmul.mubr.f32.gmra.mrb[0].mxu0 %v799
      %v2918 = vpop.f32.mrb[0].mxu0
      %v2919 = vadd.f32 0.0, %v2918
      %v2920 = vpop.f32.mrb[0].mxu0
      %2921 = vmatprep.mubr.f32.mxu0 0.0
      %2922 = vmatmul.mubr.f32.gmra.mrb[0].mxu0 %v801
      %v2923 = vpop.f32.mrb[0].mxu0
      %v2924 = vadd.f32 0.0, %v2923
      %v2925 = vpop.f32.mrb[0].mxu0
      %2926 = vmatprep.mubr.f32.mxu0 0.0
      %2927 = vmatmul.mubr.f32.gmra.mrb[0].mxu0 %v803
      %v2928 = vpop.f32.mrb[0].mxu0
      %v2929 = vadd.f32 0.0, %v2928
      %v2930 = vpop.f32.mrb[0].mxu0
      %2931 = vmatprep.mubr.f32.mxu0 0.0
      %2932 = vmatmul.mubr.f32.gmra.mrb[0].mxu0 %v805
      %v2933 = vpop.f32.mrb[0].mxu0
      %v2934 = vadd.f32 0.0, %v2933
      %v2935 = vpop.f32.mrb[0].mxu0
      %2936 = vmatprep.mubr.f32.mxu0 0.0
      %2937 = vmatmul.mubr.f32.gmra.mrb[0].mxu0 %v807
      %v2938 = vpop.f32.mrb[0].mxu0
      %v2939 = vadd.f32 0.0, %v2938
      %v2940 = vpop.f32.mrb[0].mxu0
      %2941 = vmatprep.mubr.f32.mxu0 0.0
      %2942 = vmatmul.mubr.f32.gmra.mrb[0].mxu0 %v809
      %v2943 = vpop.f32.mrb[0].mxu0
      %v2944 = vadd.f32 0.0, %v2943
      %v2945 = vpop.f32.mrb[0].mxu0
      %2946 = vmatprep.mubr.f32.mxu0 0.0
      %2947 = vmatmul.mubr.f32.gmra.mrb[0].mxu0 %v811
      %v2948 = vpop.f32.mrb[0].mxu0
      %v2949 = vadd.f32 0.0, %v2948
      %v2950 = vpop.f32.mrb[0].mxu0
      %2951 = vmatprep.mubr.f32.mxu0 0.0
      %2952 = vmatmul.mubr.f32.gmra.mrb[0].mxu0 %v813
      %v2953 = vpop.f32.mrb[0].mxu0
      %v2954 = vadd.f32 0.0, %v2953
      %v2955 = vpop.f32.mrb[0].mxu0
      %2956 = vmatprep.mubr.f32.mxu0 0.0
      %2957 = vmatmul.mubr.f32.gmra.mrb[0].mxu0 %v815
      %v2958 = vpop.f32.mrb[0].mxu0
      %v2959 = vadd.f32 0.0, %v2958
      %v2960 = vpop.f32.mrb[0].mxu0
      %2961 = vmatprep.mubr.f32.mxu0 0.0
      %2962 = vmatmul.mubr.f32.gmra.mrb[0].mxu0 %v817
      %v2963 = vpop.f32.mrb[0].mxu0
      %v2964 = vadd.f32 0.0, %v2963
      %v2965 = vpop.f32.mrb[0].mxu0
      %2966 = vmatprep.mubr.f32.mxu0 0.0
      %2967 = vmatmul.mubr.f32.gmra.mrb[0].mxu0 %v819
      %v2968 = vpop.f32.mrb[0].mxu0
      %v2969 = vadd.f32 0.0, %v2968
      %v2970 = vpop.f32.mrb[0].mxu0
      %2971 = vmatprep.mubr.f32.mxu0 0.0
      %2972 = vmatmul.mubr.f32.gmra.mrb[0].mxu0 %v821
      %v2973 = vpop.f32.mrb[0].mxu0
      %v2974 = vadd.f32 0.0, %v2973
      %v2975 = vpop.f32.mrb[0].mxu0
      %2976 = vmatprep.mubr.f32.mxu0 0.0
      %2977 = vmatmul.mubr.f32.gmra.mrb[0].mxu0 %v823
      %v2978 = vpop.f32.mrb[0].mxu0
      %v2979 = vadd.f32 0.0, %v2978
      %v2980 = vpop.f32.mrb[0].mxu0
      %2981 = vmatprep.mubr.f32.mxu0 0.0
      %2982 = vmatmul.mubr.f32.gmra.mrb[0].mxu0 %v825
      %v2983 = vpop.f32.mrb[0].mxu0
      %v2984 = vadd.f32 0.0, %v2983
      %v2985 = vpop.f32.mrb[0].mxu0
      %2986 = vmatprep.mubr.f32.mxu0 0.0
      %2987 = vmatmul.mubr.f32.gmra.mrb[0].mxu0 %v827
      %v2988 = vpop.f32.mrb[0].mxu0
      %v2989 = vadd.f32 0.0, %v2988
      %v2990 = vpop.f32.mrb[0].mxu0
      %2991 = vmatprep.mubr.f32.mxu0 0.0
      %2992 = vmatmul.mubr.f32.gmra.mrb[0].mxu0 %v829
      %v2993 = vpop.f32.mrb[0].mxu0
      %v2994 = vadd.f32 0.0, %v2993
      %v2995 = vpop.f32.mrb[0].mxu0
      %2996 = vmatprep.mubr.f32.mxu0 0.0
      %2997 = vmatmul.mubr.f32.gmra.mrb[0].mxu0 %v831
      %v2998 = vpop.f32.mrb[0].mxu0
      %v2999 = vadd.f32 0.0, %v2998
      %v3000 = vpop.f32.mrb[0].mxu0
      %3001 = vmatprep.mubr.f32.mxu0 0.0
      %3002 = vmatmul.mubr.f32.gmra.mrb[0].mxu0 %v833
      %v3003 = vpop.f32.mrb[0].mxu0
      %v3004 = vadd.f32 0.0, %v3003
      %v3005 = vpop.f32.mrb[0].mxu0
      %3006 = vmatprep.mubr.f32.mxu0 0.0
      %3007 = vmatmul.mubr.f32.gmra.mrb[0].mxu0 %v835
      %v3008 = vpop.f32.mrb[0].mxu0
      %v3009 = vadd.f32 0.0, %v3008
      %v3010 = vpop.f32.mrb[0].mxu0
      %3011 = vmatprep.mubr.f32.mxu0 0.0
      %3012 = vmatmul.mubr.f32.gmra.mrb[0].mxu0 %v837
      %v3013 = vpop.f32.mrb[0].mxu0
      %v3014 = vadd.f32 0.0, %v3013
      %v3015 = vpop.f32.mrb[0].mxu0
      %3016 = vmatprep.mubr.f32.mxu0 0.0
      %3017 = vmatmul.mubr.f32.gmra.mrb[0].mxu0 %v839
      %v3018 = vpop.f32.mrb[0].mxu0
      %v3019 = vadd.f32 0.0, %v3018
      %v3020 = vpop.f32.mrb[0].mxu0
      %3021 = vmatprep.mubr.f32.mxu0 0.0
      %3022 = vmatmul.mubr.f32.gmra.mrb[0].mxu0 %v841
      %v3023 = vpop.f32.mrb[0].mxu0
      %v3024 = vadd.f32 0.0, %v3023
      %v3025 = vpop.f32.mrb[0].mxu0
      %3026 = vmatprep.mubr.f32.mxu0 0.0
      %3027 = vmatmul.mubr.f32.gmra.mrb[0].mxu0 %v843
      %v3028 = vpop.f32.mrb[0].mxu0
      %v3029 = vadd.f32 0.0, %v3028
      %v3030 = vpop.f32.mrb[0].mxu0
      %3031 = vmatprep.mubr.f32.mxu0 0.0
      %3032 = vmatmul.mubr.f32.gmra.mrb[0].mxu0 %v845
      %v3033 = vpop.f32.mrb[0].mxu0
      %v3034 = vadd.f32 0.0, %v3033
      %v3035 = vpop.f32.mrb[0].mxu0
      %3036 = vmatprep.mubr.f32.mxu0 0.0
      %3037 = vmatmul.mubr.f32.gmra.mrb[0].mxu0 %v847
      %v3038 = vpop.f32.mrb[0].mxu0
      %v3039 = vadd.f32 0.0, %v3038
      %v3040 = vpop.f32.mrb[0].mxu0
      %3041 = vmatprep.mubr.f32.mxu0 0.0
      %3042 = vmatmul.mubr.f32.gmra.mrb[0].mxu0 %v849
      %v3043 = vpop.f32.mrb[0].mxu0
      %v3044 = vadd.f32 0.0, %v3043
      %v3045 = vpop.f32.mrb[0].mxu0
      %3046 = vmatprep.mubr.f32.mxu0 0.0
      %3047 = vmatmul.mubr.f32.gmra.mrb[0].mxu0 %v2039
      %v3048 = vpop.f32.mrb[0].mxu0
      %v3049 = vadd.f32 0.0, %v3048
      %v3050 = vpop.f32.mrb[0].mxu0
      %3051 = vmatprep.mubr.f32.mxu0 0.0
      %3052 = vmatmul.mubr.f32.gmra.mrb[0].mxu0 %v2041
      %v3053 = vpop.f32.mrb[0].mxu0
      %v3054 = vadd.f32 0.0, %v3053
      %v3055 = vpop.f32.mrb[0].mxu0
      %3056 = vmatprep.mubr.f32.mxu0 0.0
      %3057 = vmatmul.mubr.f32.gmra.mrb[0].mxu0 %v2838
      %v3058 = vpop.f32.mrb[0].mxu0
      %v3059 = vadd.f32 0.0, %v3058
      %v3060 = vpop.f32.mrb[0].mxu0
      %3061 = vmatprep.mubr.f32.mxu0 0.0
      %3062 = vmatmul.mubr.f32.gmra.mrb[0].mxu0 %v2840
      %v3063 = vpop.f32.mrb[0].mxu0
      %v3064 = vadd.f32 0.0, %v3063
      %v3065 = vpop.f32.mrb[0].mxu0
      %3066 = vdwg.mxu0
      %v3067 = vadd.f32 %v2799, %v2909
      %v3068 = vadd.f32 %v2800, %v2914
      %v3069 = vadd.f32 %v2801, %v2919
      %v3070 = vadd.f32 %v2802, %v2924
      %v3071 = vadd.f32 %v2803, %v2929
      %v3072 = vadd.f32 %v2804, %v2934
      %v3073 = vadd.f32 %v2805, %v2939
      %v3074 = vadd.f32 %v2806, %v2944
      %v3075 = vadd.f32 %v2807, %v2949
      %v3076 = vadd.f32 %v2808, %v2954
      %v3077 = vadd.f32 %v2809, %v2959
      %v3078 = vadd.f32 %v2810, %v2964
      %v3079 = vadd.f32 %v2811, %v2969
      %v3080 = vadd.f32 %v2812, %v2974
      %v3081 = vadd.f32 %v2813, %v2979
      %v3082 = vadd.f32 %v2814, %v2984
      %v3083 = vadd.f32 %v2815, %v2989
      %v3084 = vadd.f32 %v2816, %v2994
      %v3085 = vadd.f32 %v2817, %v2999
      %v3086 = vadd.f32 %v2818, %v3004
      %v3087 = vadd.f32 %v2819, %v3009
      %v3088 = vadd.f32 %v2820, %v3014
      %v3089 = vadd.f32 %v2821, %v3019
      %v3090 = vadd.f32 %v2822, %v3024
      %v3091 = vadd.f32 %v2823, %v3029
      %v3092 = vadd.f32 %v2824, %v3034
      %v3093 = vadd.f32 %v2825, %v3039
      %v3094 = vadd.f32 %v2826, %v3044
      %v3095 = vadd.f32 %v2827, %v3049
      %v3096 = vadd.f32 %v2828, %v3054
      %v3097 = vadd.f32 %v2829, %v3059
      %v3098 = vadd.f32 %v2830, %v3064
      %v3099 = vrot.slane %v652, 2
      %v3100 = vrot.slane %v653, 2
      %v3101 = vsel %vm1365, %v3099, %v3100
      %v3102 = vrot.slane %v654, 2
      %v3103 = vsel %vm1365, %v3100, %v3102
      %v3104 = vld [vmem:[%s362 + $0x40] sm:$0xff]
      %v3105 = vsel %vm786, %v3101, 0
      %v3107 = vsel %vm786, %v3103, 0
      %3109 = vmatprep.subr.mxu0 0.0
      %3110 = vmatpush1.msra.mxu0 %v3104
      %3111 = vmatprep.subr.mxu0 0.0
      %3112 = vmatpush1.msra.mxu0 0.0
      %3113 = vmatprep.subr.mxu0 0.0
      %3114 = vmatpush1.msra.mxu0 0.0
      %3115 = vmatprep.subr.mxu0 0.0
      %3116 = vmatpush1.msra.mxu0 0.0
      %3117 = vmatprep.subr.mxu0 0.0
      %3118 = vmatpush1.msra.mxu0 0.0
      %3119 = vmatprep.subr.mxu0 0.0
      %3120 = vmatpush1.msra.mxu0 0.0
      %3121 = vmatprep.subr.mxu0 0.0
      %3122 = vmatpush1.msra.mxu0 0.0
      %3123 = vmatprep.subr.mxu0 0.0
      %3124 = vmatpush1.msra.mxu0 0.0
      %3125 = vmatprep.subr.mxu0 0.0
      %3126 = vmatpush1.msra.mxu0 0.0
      %3127 = vmatprep.subr.mxu0 0.0
      %3128 = vmatpush1.msra.mxu0 0.0
      %3129 = vmatprep.subr.mxu0 0.0
      %3130 = vmatpush1.msra.mxu0 0.0
      %3131 = vmatprep.subr.mxu0 0.0
      %3132 = vmatpush1.msra.mxu0 0.0
      %3133 = vmatprep.subr.mxu0 0.0
      %3134 = vmatpush1.msra.mxu0 0.0
      %3135 = vmatprep.subr.mxu0 0.0
      %3136 = vmatpush1.msra.mxu0 0.0
      %3137 = vmatprep.subr.mxu0 0.0
      %3138 = vmatpush1.msra.mxu0 0.0
      %3139 = vmatprep.subr.mxu0 0.0
      %3140 = vmatpush1.msra.mxu0 0.0
      %3141 = vmatprep.subr.mxu0 0.0
      %3142 = vmatpush1.msra.mxu0 0.0
      %3143 = vmatprep.subr.mxu0 0.0
      %3144 = vmatpush1.msra.mxu0 0.0
      %3145 = vmatprep.subr.mxu0 0.0
      %3146 = vmatpush1.msra.mxu0 0.0
      %3147 = vmatprep.subr.mxu0 0.0
      %3148 = vmatpush1.msra.mxu0 0.0
      %3149 = vmatprep.subr.mxu0 0.0
      %3150 = vmatpush1.msra.mxu0 0.0
      %3151 = vmatprep.subr.mxu0 0.0
      %3152 = vmatpush1.msra.mxu0 0.0
      %3153 = vmatprep.subr.mxu0 0.0
      %3154 = vmatpush1.msra.mxu0 0.0
      %3155 = vmatprep.subr.mxu0 0.0
      %3156 = vmatpush1.msra.mxu0 0.0
      %3157 = vmatprep.subr.mxu0 0.0
      %3158 = vmatpush1.msra.mxu0 0.0
      %3159 = vmatprep.subr.mxu0 0.0
      %3160 = vmatpush1.msra.mxu0 0.0
      %3161 = vmatprep.subr.mxu0 0.0
      %3162 = vmatpush1.msra.mxu0 0.0
      %3163 = vmatprep.subr.mxu0 0.0
      %3164 = vmatpush1.msra.mxu0 0.0
      %3165 = vmatprep.subr.mxu0 0.0
      %3166 = vmatpush1.msra.mxu0 0.0
      %3167 = vmatprep.subr.mxu0 0.0
      %3168 = vmatpush1.msra.mxu0 0.0
      %3169 = vmatprep.subr.mxu0 0.0
      %3170 = vmatpush1.msra.mxu0 0.0
      %3171 = vmatprep.subr.mxu0 0.0
      %3172 = vmatpush1.msra.mxu0 0.0
      %3173 = vmatprep.mubr.f32.mxu0 0.0
      %3174 = vmatmul.mubr.f32.gmra.mrb[0].mxu0 %v1455
      %v3175 = vpop.f32.mrb[0].mxu0
      %v3176 = vadd.f32 0.0, %v3175
      %v3177 = vpop.f32.mrb[0].mxu0
      %3178 = vmatprep.mubr.f32.mxu0 0.0
      %3179 = vmatmul.mubr.f32.gmra.mrb[0].mxu0 %v1457
      %v3180 = vpop.f32.mrb[0].mxu0
      %v3181 = vadd.f32 0.0, %v3180
      %v3182 = vpop.f32.mrb[0].mxu0
      %3183 = vmatprep.mubr.f32.mxu0 0.0
      %3184 = vmatmul.mubr.f32.gmra.mrb[0].mxu0 %v1459
      %v3185 = vpop.f32.mrb[0].mxu0
      %v3186 = vadd.f32 0.0, %v3185
      %v3187 = vpop.f32.mrb[0].mxu0
      %3188 = vmatprep.mubr.f32.mxu0 0.0
      %3189 = vmatmul.mubr.f32.gmra.mrb[0].mxu0 %v1461
      %v3190 = vpop.f32.mrb[0].mxu0
      %v3191 = vadd.f32 0.0, %v3190
      %v3192 = vpop.f32.mrb[0].mxu0
      %3193 = vmatprep.mubr.f32.mxu0 0.0
      %3194 = vmatmul.mubr.f32.gmra.mrb[0].mxu0 %v1463
      %v3195 = vpop.f32.mrb[0].mxu0
      %v3196 = vadd.f32 0.0, %v3195
      %v3197 = vpop.f32.mrb[0].mxu0
      %3198 = vmatprep.mubr.f32.mxu0 0.0
      %3199 = vmatmul.mubr.f32.gmra.mrb[0].mxu0 %v1465
      %v3200 = vpop.f32.mrb[0].mxu0
      %v3201 = vadd.f32 0.0, %v3200
      %v3202 = vpop.f32.mrb[0].mxu0
      %3203 = vmatprep.mubr.f32.mxu0 0.0
      %3204 = vmatmul.mubr.f32.gmra.mrb[0].mxu0 %v1467
      %v3205 = vpop.f32.mrb[0].mxu0
      %v3206 = vadd.f32 0.0, %v3205
      %v3207 = vpop.f32.mrb[0].mxu0
      %3208 = vmatprep.mubr.f32.mxu0 0.0
      %3209 = vmatmul.mubr.f32.gmra.mrb[0].mxu0 %v1469
      %v3210 = vpop.f32.mrb[0].mxu0
      %v3211 = vadd.f32 0.0, %v3210
      %v3212 = vpop.f32.mrb[0].mxu0
      %3213 = vmatprep.mubr.f32.mxu0 0.0
      %3214 = vmatmul.mubr.f32.gmra.mrb[0].mxu0 %v1471
      %v3215 = vpop.f32.mrb[0].mxu0
      %v3216 = vadd.f32 0.0, %v3215
      %v3217 = vpop.f32.mrb[0].mxu0
      %3218 = vmatprep.mubr.f32.mxu0 0.0
      %3219 = vmatmul.mubr.f32.gmra.mrb[0].mxu0 %v1473
      %v3220 = vpop.f32.mrb[0].mxu0
      %v3221 = vadd.f32 0.0, %v3220
      %v3222 = vpop.f32.mrb[0].mxu0
      %3223 = vmatprep.mubr.f32.mxu0 0.0
      %3224 = vmatmul.mubr.f32.gmra.mrb[0].mxu0 %v1475
      %v3225 = vpop.f32.mrb[0].mxu0
      %v3226 = vadd.f32 0.0, %v3225
      %v3227 = vpop.f32.mrb[0].mxu0
      %3228 = vmatprep.mubr.f32.mxu0 0.0
      %3229 = vmatmul.mubr.f32.gmra.mrb[0].mxu0 %v1477
      %v3230 = vpop.f32.mrb[0].mxu0
      %v3231 = vadd.f32 0.0, %v3230
      %v3232 = vpop.f32.mrb[0].mxu0
      %3233 = vmatprep.mubr.f32.mxu0 0.0
      %3234 = vmatmul.mubr.f32.gmra.mrb[0].mxu0 %v1479
      %v3235 = vpop.f32.mrb[0].mxu0
      %v3236 = vadd.f32 0.0, %v3235
      %v3237 = vpop.f32.mrb[0].mxu0
      %3238 = vmatprep.mubr.f32.mxu0 0.0
      %3239 = vmatmul.mubr.f32.gmra.mrb[0].mxu0 %v1481
      %v3240 = vpop.f32.mrb[0].mxu0
      %v3241 = vadd.f32 0.0, %v3240
      %v3242 = vpop.f32.mrb[0].mxu0
      %3243 = vmatprep.mubr.f32.mxu0 0.0
      %3244 = vmatmul.mubr.f32.gmra.mrb[0].mxu0 %v1483
      %v3245 = vpop.f32.mrb[0].mxu0
      %v3246 = vadd.f32 0.0, %v3245
      %v3247 = vpop.f32.mrb[0].mxu0
      %3248 = vmatprep.mubr.f32.mxu0 0.0
      %3249 = vmatmul.mubr.f32.gmra.mrb[0].mxu0 %v1485
      %v3250 = vpop.f32.mrb[0].mxu0
      %v3251 = vadd.f32 0.0, %v3250
      %v3252 = vpop.f32.mrb[0].mxu0
      %3253 = vmatprep.mubr.f32.mxu0 0.0
      %3254 = vmatmul.mubr.f32.gmra.mrb[0].mxu0 %v1487
      %v3255 = vpop.f32.mrb[0].mxu0
      %v3256 = vadd.f32 0.0, %v3255
      %v3257 = vpop.f32.mrb[0].mxu0
      %3258 = vmatprep.mubr.f32.mxu0 0.0
      %3259 = vmatmul.mubr.f32.gmra.mrb[0].mxu0 %v1489
      %v3260 = vpop.f32.mrb[0].mxu0
      %v3261 = vadd.f32 0.0, %v3260
      %v3262 = vpop.f32.mrb[0].mxu0
      %3263 = vmatprep.mubr.f32.mxu0 0.0
      %3264 = vmatmul.mubr.f32.gmra.mrb[0].mxu0 %v1491
      %v3265 = vpop.f32.mrb[0].mxu0
      %v3266 = vadd.f32 0.0, %v3265
      %v3267 = vpop.f32.mrb[0].mxu0
      %3268 = vmatprep.mubr.f32.mxu0 0.0
      %3269 = vmatmul.mubr.f32.gmra.mrb[0].mxu0 %v1493
      %v3270 = vpop.f32.mrb[0].mxu0
      %v3271 = vadd.f32 0.0, %v3270
      %v3272 = vpop.f32.mrb[0].mxu0
      %3273 = vmatprep.mubr.f32.mxu0 0.0
      %3274 = vmatmul.mubr.f32.gmra.mrb[0].mxu0 %v1495
      %v3275 = vpop.f32.mrb[0].mxu0
      %v3276 = vadd.f32 0.0, %v3275
      %v3277 = vpop.f32.mrb[0].mxu0
      %3278 = vmatprep.mubr.f32.mxu0 0.0
      %3279 = vmatmul.mubr.f32.gmra.mrb[0].mxu0 %v1497
      %v3280 = vpop.f32.mrb[0].mxu0
      %v3281 = vadd.f32 0.0, %v3280
      %v3282 = vpop.f32.mrb[0].mxu0
      %3283 = vmatprep.mubr.f32.mxu0 0.0
      %3284 = vmatmul.mubr.f32.gmra.mrb[0].mxu0 %v1499
      %v3285 = vpop.f32.mrb[0].mxu0
      %v3286 = vadd.f32 0.0, %v3285
      %v3287 = vpop.f32.mrb[0].mxu0
      %3288 = vmatprep.mubr.f32.mxu0 0.0
      %3289 = vmatmul.mubr.f32.gmra.mrb[0].mxu0 %v1501
      %v3290 = vpop.f32.mrb[0].mxu0
      %v3291 = vadd.f32 0.0, %v3290
      %v3292 = vpop.f32.mrb[0].mxu0
      %3293 = vmatprep.mubr.f32.mxu0 0.0
      %3294 = vmatmul.mubr.f32.gmra.mrb[0].mxu0 %v1503
      %v3295 = vpop.f32.mrb[0].mxu0
      %v3296 = vadd.f32 0.0, %v3295
      %v3297 = vpop.f32.mrb[0].mxu0
      %3298 = vmatprep.mubr.f32.mxu0 0.0
      %3299 = vmatmul.mubr.f32.gmra.mrb[0].mxu0 %v1505
      %v3300 = vpop.f32.mrb[0].mxu0
      %v3301 = vadd.f32 0.0, %v3300
      %v3302 = vpop.f32.mrb[0].mxu0
      %3303 = vmatprep.mubr.f32.mxu0 0.0
      %3304 = vmatmul.mubr.f32.gmra.mrb[0].mxu0 %v1507
      %v3305 = vpop.f32.mrb[0].mxu0
      %v3306 = vadd.f32 0.0, %v3305
      %v3307 = vpop.f32.mrb[0].mxu0
      %3308 = vmatprep.mubr.f32.mxu0 0.0
      %3309 = vmatmul.mubr.f32.gmra.mrb[0].mxu0 %v1509
      %v3310 = vpop.f32.mrb[0].mxu0
      %v3311 = vadd.f32 0.0, %v3310
      %v3312 = vpop.f32.mrb[0].mxu0
      %3313 = vmatprep.mubr.f32.mxu0 0.0
      %3314 = vmatmul.mubr.f32.gmra.mrb[0].mxu0 %v2306
      %v3315 = vpop.f32.mrb[0].mxu0
      %v3316 = vadd.f32 0.0, %v3315
      %v3317 = vpop.f32.mrb[0].mxu0
      %3318 = vmatprep.mubr.f32.mxu0 0.0
      %3319 = vmatmul.mubr.f32.gmra.mrb[0].mxu0 %v2308
      %v3320 = vpop.f32.mrb[0].mxu0
      %v3321 = vadd.f32 0.0, %v3320
      %v3322 = vpop.f32.mrb[0].mxu0
      %3323 = vmatprep.mubr.f32.mxu0 0.0
      %3324 = vmatmul.mubr.f32.gmra.mrb[0].mxu0 %v3105
      %v3325 = vpop.f32.mrb[0].mxu0
      %v3326 = vadd.f32 0.0, %v3325
      %v3327 = vpop.f32.mrb[0].mxu0
      %3328 = vmatprep.mubr.f32.mxu0 0.0
      %3329 = vmatmul.mubr.f32.gmra.mrb[0].mxu0 %v3107
      %v3330 = vpop.f32.mrb[0].mxu0
      %v3331 = vadd.f32 0.0, %v3330
      %v3332 = vpop.f32.mrb[0].mxu0
      %3333 = vdwg.mxu0
      %v3334 = vadd.f32 %v3067, %v3176
      %v3335 = vadd.f32 %v3068, %v3181
      %v3336 = vadd.f32 %v3069, %v3186
      %v3337 = vadd.f32 %v3070, %v3191
      %v3338 = vadd.f32 %v3071, %v3196
      %v3339 = vadd.f32 %v3072, %v3201
      %v3340 = vadd.f32 %v3073, %v3206
      %v3341 = vadd.f32 %v3074, %v3211
      %v3342 = vadd.f32 %v3075, %v3216
      %v3343 = vadd.f32 %v3076, %v3221
      %v3344 = vadd.f32 %v3077, %v3226
      %v3345 = vadd.f32 %v3078, %v3231
      %v3346 = vadd.f32 %v3079, %v3236
      %v3347 = vadd.f32 %v3080, %v3241
      %v3348 = vadd.f32 %v3081, %v3246
      %v3349 = vadd.f32 %v3082, %v3251
      %v3350 = vadd.f32 %v3083, %v3256
      %v3351 = vadd.f32 %v3084, %v3261
      %v3352 = vadd.f32 %v3085, %v3266
      %v3353 = vadd.f32 %v3086, %v3271
      %v3354 = vadd.f32 %v3087, %v3276
      %v3355 = vadd.f32 %v3088, %v3281
      %v3356 = vadd.f32 %v3089, %v3286
      %v3357 = vadd.f32 %v3090, %v3291
      %v3358 = vadd.f32 %v3091, %v3296
      %v3359 = vadd.f32 %v3092, %v3301
      %v3360 = vadd.f32 %v3093, %v3306
      %v3361 = vadd.f32 %v3094, %v3311
      %v3362 = vadd.f32 %v3095, %v3316
      %v3363 = vadd.f32 %v3096, %v3321
      %v3364 = vadd.f32 %v3097, %v3326
      %v3365 = vadd.f32 %v3098, %v3331
      %v3366 = vld [vmem:[%s367] sm:$0xff]
      %v3367 = vld [vmem:[%s367 + $0x8] sm:$0xff]
      %v3368 = vld [vmem:[%s367 + $0x10] sm:$0xff]
      %v3369 = vld [vmem:[%s367 + $0x18] sm:$0xff]
      %v3370 = vld [vmem:[%s367 + $0x20] sm:$0xff]
      %v3371 = vld [vmem:[%s367 + $0x28] sm:$0xff]
      %v3372 = vld [vmem:[%s367 + $0x30] sm:$0xff]
      %v3373 = vld [vmem:[%s367 + $0x38] sm:$0xff]
      %v3374 = vld [vmem:[%s367 + $0x40] sm:$0xff]
      %v3375 = vld [vmem:[%s367 + $0x48] sm:$0xff]
      %v3376 = vld [vmem:[%s367 + $0x50] sm:$0xff]
      %v3377 = vld [vmem:[%s367 + $0x58] sm:$0xff]
      %v3378 = vld [vmem:[%s367 + $0x60] sm:$0xff]
      %v3379 = vld [vmem:[%s367 + $0x68] sm:$0xff]
      %v3380 = vld [vmem:[%s367 + $0x70] sm:$0xff]
      %v3381 = vld [vmem:[%s367 + $0x78] sm:$0xff]
      %v3382 = vld [vmem:[%s367 + $0x80] sm:$0xff]
      %v3383 = vld [vmem:[%s367 + $0x88] sm:$0xff]
      %v3384 = vld [vmem:[%s367 + $0x90] sm:$0xff]
      %v3385 = vld [vmem:[%s367 + $0x98] sm:$0xff]
      %v3386 = vld [vmem:[%s367 + $0xa0] sm:$0xff]
      %v3387 = vld [vmem:[%s367 + $0xa8] sm:$0xff]
      %v3388 = vld [vmem:[%s367 + $0xb0] sm:$0xff]
      %v3389 = vld [vmem:[%s367 + $0xb8] sm:$0xff]
      %v3390 = vld [vmem:[%s367 + $0xc0] sm:$0xff]
      %v3391 = vld [vmem:[%s367 + $0xc8] sm:$0xff]
      %v3392 = vld [vmem:[%s367 + $0xd0] sm:$0xff]
      %v3393 = vld [vmem:[%s367 + $0xd8] sm:$0xff]
      %v3394 = vld [vmem:[%s367 + $0xe0] sm:$0xff]
      %v3395 = vld [vmem:[%s367 + $0xe8] sm:$0xff]
      %v3396 = vld [vmem:[%s367 + $0xf0] sm:$0xff]
      %v3397 = vld [vmem:[%s367 + $0xf8] sm:$0xff]
      %v3398 = vld [vmem:[%s5] sm:$0x1]
      %v3400 = vlaneseq
      %v3401 = vshrl.u32 %v3400, 7
      %v3402 = vsub.s32 0, %v3401
      %v3403 = vrot.slane %v3398, %v3402
      %v3405 = vmul.f32 %v3366, %v3403
      %v3406 = vmul.f32 %v3367, %v3403
      %v3407 = vmul.f32 %v3368, %v3403
      %v3408 = vmul.f32 %v3369, %v3403
      %v3409 = vmul.f32 %v3370, %v3403
      %v3410 = vmul.f32 %v3371, %v3403
      %v3411 = vmul.f32 %v3372, %v3403
      %v3412 = vmul.f32 %v3373, %v3403
      %v3413 = vmul.f32 %v3374, %v3403
      %v3414 = vmul.f32 %v3375, %v3403
      %v3415 = vmul.f32 %v3376, %v3403
      %v3416 = vmul.f32 %v3377, %v3403
      %v3417 = vmul.f32 %v3378, %v3403
      %v3418 = vmul.f32 %v3379, %v3403
      %v3419 = vmul.f32 %v3380, %v3403
      %v3420 = vmul.f32 %v3381, %v3403
      %v3421 = vmul.f32 %v3382, %v3403
      %v3422 = vmul.f32 %v3383, %v3403
      %v3423 = vmul.f32 %v3384, %v3403
      %v3424 = vmul.f32 %v3385, %v3403
      %v3425 = vmul.f32 %v3386, %v3403
      %v3426 = vmul.f32 %v3387, %v3403
      %v3427 = vmul.f32 %v3388, %v3403
      %v3428 = vmul.f32 %v3389, %v3403
      %v3429 = vmul.f32 %v3390, %v3403
      %v3430 = vmul.f32 %v3391, %v3403
      %v3431 = vmul.f32 %v3392, %v3403
      %v3432 = vmul.f32 %v3393, %v3403
      %v3433 = vmul.f32 %v3394, %v3403
      %v3434 = vmul.f32 %v3395, %v3403
      %v3435 = vmul.f32 %v3396, %v3403
      %v3436 = vmul.f32 %v3397, %v3403
      %v3437 = vld [vmem:[%s6] sm:$0x1]
      %v3439 = vlaneseq
      %v3440 = vshrl.u32 %v3439, 7
      %v3441 = vsub.s32 0, %v3440
      %v3442 = vrot.slane %v3437, %v3441
      %v3444 = vadd.f32 %v3405, %v3442
      %v3445 = vadd.f32 %v3406, %v3442
      %v3446 = vadd.f32 %v3407, %v3442
      %v3447 = vadd.f32 %v3408, %v3442
      %v3448 = vadd.f32 %v3409, %v3442
      %v3449 = vadd.f32 %v3410, %v3442
      %v3450 = vadd.f32 %v3411, %v3442
      %v3451 = vadd.f32 %v3412, %v3442
      %v3452 = vadd.f32 %v3413, %v3442
      %v3453 = vadd.f32 %v3414, %v3442
      %v3454 = vadd.f32 %v3415, %v3442
      %v3455 = vadd.f32 %v3416, %v3442
      %v3456 = vadd.f32 %v3417, %v3442
      %v3457 = vadd.f32 %v3418, %v3442
      %v3458 = vadd.f32 %v3419, %v3442
      %v3459 = vadd.f32 %v3420, %v3442
      %v3460 = vadd.f32 %v3421, %v3442
      %v3461 = vadd.f32 %v3422, %v3442
      %v3462 = vadd.f32 %v3423, %v3442
      %v3463 = vadd.f32 %v3424, %v3442
      %v3464 = vadd.f32 %v3425, %v3442
      %v3465 = vadd.f32 %v3426, %v3442
      %v3466 = vadd.f32 %v3427, %v3442
      %v3467 = vadd.f32 %v3428, %v3442
      %v3468 = vadd.f32 %v3429, %v3442
      %v3469 = vadd.f32 %v3430, %v3442
      %v3470 = vadd.f32 %v3431, %v3442
      %v3471 = vadd.f32 %v3432, %v3442
      %v3472 = vadd.f32 %v3433, %v3442
      %v3473 = vadd.f32 %v3434, %v3442
      %v3474 = vadd.f32 %v3435, %v3442
      %v3475 = vadd.f32 %v3436, %v3442
      %v3476 = vmax.f32 %v3444, 0.0
      %v3477 = vmax.f32 %v3445, 0.0
      %v3478 = vmax.f32 %v3446, 0.0
      %v3479 = vmax.f32 %v3447, 0.0
      %v3480 = vmax.f32 %v3448, 0.0
      %v3481 = vmax.f32 %v3449, 0.0
      %v3482 = vmax.f32 %v3450, 0.0
      %v3483 = vmax.f32 %v3451, 0.0
      %v3484 = vmax.f32 %v3452, 0.0
      %v3485 = vmax.f32 %v3453, 0.0
      %v3486 = vmax.f32 %v3454, 0.0
      %v3487 = vmax.f32 %v3455, 0.0
      %v3488 = vmax.f32 %v3456, 0.0
      %v3489 = vmax.f32 %v3457, 0.0
      %v3490 = vmax.f32 %v3458, 0.0
      %v3491 = vmax.f32 %v3459, 0.0
      %v3492 = vmax.f32 %v3460, 0.0
      %v3493 = vmax.f32 %v3461, 0.0
      %v3494 = vmax.f32 %v3462, 0.0
      %v3495 = vmax.f32 %v3463, 0.0
      %v3496 = vmax.f32 %v3464, 0.0
      %v3497 = vmax.f32 %v3465, 0.0
      %v3498 = vmax.f32 %v3466, 0.0
      %v3499 = vmax.f32 %v3467, 0.0
      %v3500 = vmax.f32 %v3468, 0.0
      %v3501 = vmax.f32 %v3469, 0.0
      %v3502 = vmax.f32 %v3470, 0.0
      %v3503 = vmax.f32 %v3471, 0.0
      %v3504 = vmax.f32 %v3472, 0.0
      %v3505 = vmax.f32 %v3473, 0.0
      %v3506 = vmax.f32 %v3474, 0.0
      %v3507 = vmax.f32 %v3475, 0.0
      %v3508 = vld [vmem:[%s371] sm:$0xf]
      %vm3509 = vcmask 31744
      %v3511 = vsel %vm3509, %v3476, 0
      %v3514 = vsel %vm3509, %v3477, 0
      %v3517 = vsel %vm3509, %v3478, 0
      %v3520 = vsel %vm3509, %v3479, 0
      %v3523 = vsel %vm3509, %v3480, 0
      %v3526 = vsel %vm3509, %v3481, 0
      %v3529 = vsel %vm3509, %v3482, 0
      %v3532 = vsel %vm3509, %v3483, 0
      %v3535 = vsel %vm3509, %v3484, 0
      %v3538 = vsel %vm3509, %v3485, 0
      %v3541 = vsel %vm3509, %v3486, 0
      %v3544 = vsel %vm3509, %v3487, 0
      %v3547 = vsel %vm3509, %v3488, 0
      %v3550 = vsel %vm3509, %v3489, 0
      %v3553 = vsel %vm3509, %v3490, 0
      %v3556 = vsel %vm3509, %v3491, 0
      %v3559 = vsel %vm3509, %v3492, 0
      %v3562 = vsel %vm3509, %v3493, 0
      %v3565 = vsel %vm3509, %v3494, 0
      %v3568 = vsel %vm3509, %v3495, 0
      %v3571 = vsel %vm3509, %v3496, 0
      %v3574 = vsel %vm3509, %v3497, 0
      %v3577 = vsel %vm3509, %v3498, 0
      %v3580 = vsel %vm3509, %v3499, 0
      %v3583 = vsel %vm3509, %v3500, 0
      %v3586 = vsel %vm3509, %v3501, 0
      %v3589 = vsel %vm3509, %v3502, 0
      %v3592 = vsel %vm3509, %v3503, 0
      %v3595 = vsel %vm3509, %v3504, 0
      %v3598 = vsel %vm3509, %v3505, 0
      %v3601 = vsel %vm3509, %v3506, 0
      %v3604 = vsel %vm3509, %v3507, 0
      %vm3606 = vcmask 1043456
      %v3608 = vsel %vm3606, %v3508, 0
      %3610 = vmatprep.subr.mxu0 0.0
      %3611 = vmatpush1.msra.mxu0 %v3608
      %3612 = vmatprep.subr.mxu0 0.0
      %3613 = vmatpush1.msra.mxu0 0.0
      %3614 = vmatprep.subr.mxu0 0.0
      %3615 = vmatpush1.msra.mxu0 0.0
      %3616 = vmatprep.subr.mxu0 0.0
      %3617 = vmatpush1.msra.mxu0 0.0
      %3618 = vmatprep.subr.mxu0 0.0
      %3619 = vmatpush1.msra.mxu0 0.0
      %3620 = vmatprep.subr.mxu0 0.0
      %3621 = vmatpush1.msra.mxu0 0.0
      %3622 = vmatprep.subr.mxu0 0.0
      %3623 = vmatpush1.msra.mxu0 0.0
      %3624 = vmatprep.subr.mxu0 0.0
      %3625 = vmatpush1.msra.mxu0 0.0
      %3626 = vmatprep.subr.mxu0 0.0
      %3627 = vmatpush1.msra.mxu0 0.0
      %3628 = vmatprep.subr.mxu0 0.0
      %3629 = vmatpush1.msra.mxu0 0.0
      %3630 = vmatprep.subr.mxu0 0.0
      %3631 = vmatpush1.msra.mxu0 0.0
      %3632 = vmatprep.subr.mxu0 0.0
      %3633 = vmatpush1.msra.mxu0 0.0
      %3634 = vmatprep.subr.mxu0 0.0
      %3635 = vmatpush1.msra.mxu0 0.0
      %3636 = vmatprep.subr.mxu0 0.0
      %3637 = vmatpush1.msra.mxu0 0.0
      %3638 = vmatprep.subr.mxu0 0.0
      %3639 = vmatpush1.msra.mxu0 0.0
      %3640 = vmatprep.subr.mxu0 0.0
      %3641 = vmatpush1.msra.mxu0 0.0
      %3642 = vmatprep.subr.mxu0 0.0
      %3643 = vmatpush1.msra.mxu0 0.0
      %3644 = vmatprep.subr.mxu0 0.0
      %3645 = vmatpush1.msra.mxu0 0.0
      %3646 = vmatprep.subr.mxu0 0.0
      %3647 = vmatpush1.msra.mxu0 0.0
      %3648 = vmatprep.subr.mxu0 0.0
      %3649 = vmatpush1.msra.mxu0 0.0
      %3650 = vmatprep.subr.mxu0 0.0
      %3651 = vmatpush1.msra.mxu0 0.0
      %3652 = vmatprep.subr.mxu0 0.0
      %3653 = vmatpush1.msra.mxu0 0.0
      %3654 = vmatprep.subr.mxu0 0.0
      %3655 = vmatpush1.msra.mxu0 0.0
      %3656 = vmatprep.subr.mxu0 0.0
      %3657 = vmatpush1.msra.mxu0 0.0
      %3658 = vmatprep.subr.mxu0 0.0
      %3659 = vmatpush1.msra.mxu0 0.0
      %3660 = vmatprep.subr.mxu0 0.0
      %3661 = vmatpush1.msra.mxu0 0.0
      %3662 = vmatprep.subr.mxu0 0.0
      %3663 = vmatpush1.msra.mxu0 0.0
      %3664 = vmatprep.subr.mxu0 0.0
      %3665 = vmatpush1.msra.mxu0 0.0
      %3666 = vmatprep.subr.mxu0 0.0
      %3667 = vmatpush1.msra.mxu0 0.0
      %3668 = vmatprep.subr.mxu0 0.0
      %3669 = vmatpush1.msra.mxu0 0.0
      %3670 = vmatprep.subr.mxu0 0.0
      %3671 = vmatpush1.msra.mxu0 0.0
      %3672 = vmatprep.subr.mxu0 0.0
      %3673 = vmatpush1.msra.mxu0 0.0
      %3674 = vmatprep.mubr.f32.mxu0 0.0
      %3675 = vmatmul.mubr.f32.gmra.mrb[0].mxu0 %v3511
      %v3676 = vpop.f32.mrb[0].mxu0
      %v3677 = vadd.f32 0.0, %v3676
      %v3678 = vpop.f32.mrb[0].mxu0
      %3679 = vmatprep.mubr.f32.mxu0 0.0
      %3680 = vmatmul.mubr.f32.gmra.mrb[0].mxu0 %v3514
      %v3681 = vpop.f32.mrb[0].mxu0
      %v3682 = vadd.f32 0.0, %v3681
      %v3683 = vpop.f32.mrb[0].mxu0
      %3684 = vmatprep.mubr.f32.mxu0 0.0
      %3685 = vmatmul.mubr.f32.gmra.mrb[0].mxu0 %v3517
      %v3686 = vpop.f32.mrb[0].mxu0
      %v3687 = vadd.f32 0.0, %v3686
      %v3688 = vpop.f32.mrb[0].mxu0
      %3689 = vmatprep.mubr.f32.mxu0 0.0
      %3690 = vmatmul.mubr.f32.gmra.mrb[0].mxu0 %v3520
      %v3691 = vpop.f32.mrb[0].mxu0
      %v3692 = vadd.f32 0.0, %v3691
      %v3693 = vpop.f32.mrb[0].mxu0
      %3694 = vmatprep.mubr.f32.mxu0 0.0
      %3695 = vmatmul.mubr.f32.gmra.mrb[0].mxu0 %v3523
      %v3696 = vpop.f32.mrb[0].mxu0
      %v3697 = vadd.f32 0.0, %v3696
      %v3698 = vpop.f32.mrb[0].mxu0
      %3699 = vmatprep.mubr.f32.mxu0 0.0
      %3700 = vmatmul.mubr.f32.gmra.mrb[0].mxu0 %v3526
      %v3701 = vpop.f32.mrb[0].mxu0
      %v3702 = vadd.f32 0.0, %v3701
      %v3703 = vpop.f32.mrb[0].mxu0
      %3704 = vmatprep.mubr.f32.mxu0 0.0
      %3705 = vmatmul.mubr.f32.gmra.mrb[0].mxu0 %v3529
      %v3706 = vpop.f32.mrb[0].mxu0
      %v3707 = vadd.f32 0.0, %v3706
      %v3708 = vpop.f32.mrb[0].mxu0
      %3709 = vmatprep.mubr.f32.mxu0 0.0
      %3710 = vmatmul.mubr.f32.gmra.mrb[0].mxu0 %v3532
      %v3711 = vpop.f32.mrb[0].mxu0
      %v3712 = vadd.f32 0.0, %v3711
      %v3713 = vpop.f32.mrb[0].mxu0
      %3714 = vmatprep.mubr.f32.mxu0 0.0
      %3715 = vmatmul.mubr.f32.gmra.mrb[0].mxu0 %v3535
      %v3716 = vpop.f32.mrb[0].mxu0
      %v3717 = vadd.f32 0.0, %v3716
      %v3718 = vpop.f32.mrb[0].mxu0
      %3719 = vmatprep.mubr.f32.mxu0 0.0
      %3720 = vmatmul.mubr.f32.gmra.mrb[0].mxu0 %v3538
      %v3721 = vpop.f32.mrb[0].mxu0
      %v3722 = vadd.f32 0.0, %v3721
      %v3723 = vpop.f32.mrb[0].mxu0
      %3724 = vmatprep.mubr.f32.mxu0 0.0
      %3725 = vmatmul.mubr.f32.gmra.mrb[0].mxu0 %v3541
      %v3726 = vpop.f32.mrb[0].mxu0
      %v3727 = vadd.f32 0.0, %v3726
      %v3728 = vpop.f32.mrb[0].mxu0
      %3729 = vmatprep.mubr.f32.mxu0 0.0
      %3730 = vmatmul.mubr.f32.gmra.mrb[0].mxu0 %v3544
      %v3731 = vpop.f32.mrb[0].mxu0
      %v3732 = vadd.f32 0.0, %v3731
      %v3733 = vpop.f32.mrb[0].mxu0
      %3734 = vmatprep.mubr.f32.mxu0 0.0
      %3735 = vmatmul.mubr.f32.gmra.mrb[0].mxu0 %v3547
      %v3736 = vpop.f32.mrb[0].mxu0
      %v3737 = vadd.f32 0.0, %v3736
      %v3738 = vpop.f32.mrb[0].mxu0
      %3739 = vmatprep.mubr.f32.mxu0 0.0
      %3740 = vmatmul.mubr.f32.gmra.mrb[0].mxu0 %v3550
      %v3741 = vpop.f32.mrb[0].mxu0
      %v3742 = vadd.f32 0.0, %v3741
      %v3743 = vpop.f32.mrb[0].mxu0
      %3744 = vmatprep.mubr.f32.mxu0 0.0
      %3745 = vmatmul.mubr.f32.gmra.mrb[0].mxu0 %v3553
      %v3746 = vpop.f32.mrb[0].mxu0
      %v3747 = vadd.f32 0.0, %v3746
      %v3748 = vpop.f32.mrb[0].mxu0
      %3749 = vmatprep.mubr.f32.mxu0 0.0
      %3750 = vmatmul.mubr.f32.gmra.mrb[0].mxu0 %v3556
      %v3751 = vpop.f32.mrb[0].mxu0
      %v3752 = vadd.f32 0.0, %v3751
      %v3753 = vpop.f32.mrb[0].mxu0
      %3754 = vmatprep.mubr.f32.mxu0 0.0
      %3755 = vmatmul.mubr.f32.gmra.mrb[0].mxu0 %v3559
      %v3756 = vpop.f32.mrb[0].mxu0
      %v3757 = vadd.f32 0.0, %v3756
      %v3758 = vpop.f32.mrb[0].mxu0
      %3759 = vmatprep.mubr.f32.mxu0 0.0
      %3760 = vmatmul.mubr.f32.gmra.mrb[0].mxu0 %v3562
      %v3761 = vpop.f32.mrb[0].mxu0
      %v3762 = vadd.f32 0.0, %v3761
      %v3763 = vpop.f32.mrb[0].mxu0
      %3764 = vmatprep.mubr.f32.mxu0 0.0
      %3765 = vmatmul.mubr.f32.gmra.mrb[0].mxu0 %v3565
      %v3766 = vpop.f32.mrb[0].mxu0
      %v3767 = vadd.f32 0.0, %v3766
      %v3768 = vpop.f32.mrb[0].mxu0
      %3769 = vmatprep.mubr.f32.mxu0 0.0
      %3770 = vmatmul.mubr.f32.gmra.mrb[0].mxu0 %v3568
      %v3771 = vpop.f32.mrb[0].mxu0
      %v3772 = vadd.f32 0.0, %v3771
      %v3773 = vpop.f32.mrb[0].mxu0
      %3774 = vmatprep.mubr.f32.mxu0 0.0
      %3775 = vmatmul.mubr.f32.gmra.mrb[0].mxu0 %v3571
      %v3776 = vpop.f32.mrb[0].mxu0
      %v3777 = vadd.f32 0.0, %v3776
      %v3778 = vpop.f32.mrb[0].mxu0
      %3779 = vmatprep.mubr.f32.mxu0 0.0
      %3780 = vmatmul.mubr.f32.gmra.mrb[0].mxu0 %v3574
      %v3781 = vpop.f32.mrb[0].mxu0
      %v3782 = vadd.f32 0.0, %v3781
      %v3783 = vpop.f32.mrb[0].mxu0
      %3784 = vmatprep.mubr.f32.mxu0 0.0
      %3785 = vmatmul.mubr.f32.gmra.mrb[0].mxu0 %v3577
      %v3786 = vpop.f32.mrb[0].mxu0
      %v3787 = vadd.f32 0.0, %v3786
      %v3788 = vpop.f32.mrb[0].mxu0
      %3789 = vmatprep.mubr.f32.mxu0 0.0
      %3790 = vmatmul.mubr.f32.gmra.mrb[0].mxu0 %v3580
      %v3791 = vpop.f32.mrb[0].mxu0
      %v3792 = vadd.f32 0.0, %v3791
      %v3793 = vpop.f32.mrb[0].mxu0
      %3794 = vmatprep.mubr.f32.mxu0 0.0
      %3795 = vmatmul.mubr.f32.gmra.mrb[0].mxu0 %v3583
      %v3796 = vpop.f32.mrb[0].mxu0
      %v3797 = vadd.f32 0.0, %v3796
      %v3798 = vpop.f32.mrb[0].mxu0
      %3799 = vmatprep.mubr.f32.mxu0 0.0
      %3800 = vmatmul.mubr.f32.gmra.mrb[0].mxu0 %v3586
      %v3801 = vpop.f32.mrb[0].mxu0
      %v3802 = vadd.f32 0.0, %v3801
      %v3803 = vpop.f32.mrb[0].mxu0
      %3804 = vmatprep.mubr.f32.mxu0 0.0
      %3805 = vmatmul.mubr.f32.gmra.mrb[0].mxu0 %v3589
      %v3806 = vpop.f32.mrb[0].mxu0
      %v3807 = vadd.f32 0.0, %v3806
      %v3808 = vpop.f32.mrb[0].mxu0
      %3809 = vmatprep.mubr.f32.mxu0 0.0
      %3810 = vmatmul.mubr.f32.gmra.mrb[0].mxu0 %v3592
      %v3811 = vpop.f32.mrb[0].mxu0
      %v3812 = vadd.f32 0.0, %v3811
      %v3813 = vpop.f32.mrb[0].mxu0
      %3814 = vmatprep.mubr.f32.mxu0 0.0
      %3815 = vmatmul.mubr.f32.gmra.mrb[0].mxu0 %v3595
      %v3816 = vpop.f32.mrb[0].mxu0
      %v3817 = vadd.f32 0.0, %v3816
      %v3818 = vpop.f32.mrb[0].mxu0
      %3819 = vmatprep.mubr.f32.mxu0 0.0
      %3820 = vmatmul.mubr.f32.gmra.mrb[0].mxu0 %v3598
      %v3821 = vpop.f32.mrb[0].mxu0
      %v3822 = vadd.f32 0.0, %v3821
      %v3823 = vpop.f32.mrb[0].mxu0
      %3824 = vmatprep.mubr.f32.mxu0 0.0
      %3825 = vmatmul.mubr.f32.gmra.mrb[0].mxu0 %v3601
      %v3826 = vpop.f32.mrb[0].mxu0
      %v3827 = vadd.f32 0.0, %v3826
      %v3828 = vpop.f32.mrb[0].mxu0
      %3829 = vmatprep.mubr.f32.mxu0 0.0
      %3830 = vmatmul.mubr.f32.gmra.mrb[0].mxu0 %v3604
      %v3831 = vpop.f32.mrb[0].mxu0
      %v3832 = vadd.f32 0.0, %v3831
      %v3833 = vpop.f32.mrb[0].mxu0
      %3834 = vdwg.mxu0
      %v3835 = vadd.f32 %v3334, %v3677
      %v3836 = vadd.f32 %v3335, %v3682
      %v3837 = vadd.f32 %v3336, %v3687
      %v3838 = vadd.f32 %v3337, %v3692
      %v3839 = vadd.f32 %v3338, %v3697
      %v3840 = vadd.f32 %v3339, %v3702
      %v3841 = vadd.f32 %v3340, %v3707
      %v3842 = vadd.f32 %v3341, %v3712
      %v3843 = vadd.f32 %v3342, %v3717
      %v3844 = vadd.f32 %v3343, %v3722
      %v3845 = vadd.f32 %v3344, %v3727
      %v3846 = vadd.f32 %v3345, %v3732
      %v3847 = vadd.f32 %v3346, %v3737
      %v3848 = vadd.f32 %v3347, %v3742
      %v3849 = vadd.f32 %v3348, %v3747
      %v3850 = vadd.f32 %v3349, %v3752
      %v3851 = vadd.f32 %v3350, %v3757
      %v3852 = vadd.f32 %v3351, %v3762
      %v3853 = vadd.f32 %v3352, %v3767
      %v3854 = vadd.f32 %v3353, %v3772
      %v3855 = vadd.f32 %v3354, %v3777
      %v3856 = vadd.f32 %v3355, %v3782
      %v3857 = vadd.f32 %v3356, %v3787
      %v3858 = vadd.f32 %v3357, %v3792
      %v3859 = vadd.f32 %v3358, %v3797
      %v3860 = vadd.f32 %v3359, %v3802
      %v3861 = vadd.f32 %v3360, %v3807
      %v3862 = vadd.f32 %v3361, %v3812
      %v3863 = vadd.f32 %v3362, %v3817
      %v3864 = vadd.f32 %v3363, %v3822
      %v3865 = vadd.f32 %v3364, %v3827
      %v3866 = vadd.f32 %v3365, %v3832
      %3867 = vst.msk [vmem:[%s379] sm:$0xff] %vm786, %v3835
      %3868 = vst.msk [vmem:[%s379 + $0x8] sm:$0xff] %vm786, %v3836
      %3869 = vst.msk [vmem:[%s379 + $0x10] sm:$0xff] %vm786, %v3837
      %3870 = vst.msk [vmem:[%s379 + $0x18] sm:$0xff] %vm786, %v3838
      %3871 = vst.msk [vmem:[%s379 + $0x20] sm:$0xff] %vm786, %v3839
      %3872 = vst.msk [vmem:[%s379 + $0x28] sm:$0xff] %vm786, %v3840
      %3873 = vst.msk [vmem:[%s379 + $0x30] sm:$0xff] %vm786, %v3841
      %3874 = vst.msk [vmem:[%s379 + $0x38] sm:$0xff] %vm786, %v3842
      %3875 = vst.msk [vmem:[%s379 + $0x40] sm:$0xff] %vm786, %v3843
      %3876 = vst.msk [vmem:[%s379 + $0x48] sm:$0xff] %vm786, %v3844
      %3877 = vst.msk [vmem:[%s379 + $0x50] sm:$0xff] %vm786, %v3845
      %3878 = vst.msk [vmem:[%s379 + $0x58] sm:$0xff] %vm786, %v3846
      %3879 = vst.msk [vmem:[%s379 + $0x60] sm:$0xff] %vm786, %v3847
      %3880 = vst.msk [vmem:[%s379 + $0x68] sm:$0xff] %vm786, %v3848
      %3881 = vst.msk [vmem:[%s379 + $0x70] sm:$0xff] %vm786, %v3849
      %3882 = vst.msk [vmem:[%s379 + $0x78] sm:$0xff] %vm786, %v3850
      %3883 = vst.msk [vmem:[%s379 + $0x80] sm:$0xff] %vm786, %v3851
      %3884 = vst.msk [vmem:[%s379 + $0x88] sm:$0xff] %vm786, %v3852
      %3885 = vst.msk [vmem:[%s379 + $0x90] sm:$0xff] %vm786, %v3853
      %3886 = vst.msk [vmem:[%s379 + $0x98] sm:$0xff] %vm786, %v3854
      %3887 = vst.msk [vmem:[%s379 + $0xa0] sm:$0xff] %vm786, %v3855
      %3888 = vst.msk [vmem:[%s379 + $0xa8] sm:$0xff] %vm786, %v3856
      %3889 = vst.msk [vmem:[%s379 + $0xb0] sm:$0xff] %vm786, %v3857
      %3890 = vst.msk [vmem:[%s379 + $0xb8] sm:$0xff] %vm786, %v3858
      %3891 = vst.msk [vmem:[%s379 + $0xc0] sm:$0xff] %vm786, %v3859
      %3892 = vst.msk [vmem:[%s379 + $0xc8] sm:$0xff] %vm786, %v3860
      %3893 = vst.msk [vmem:[%s379 + $0xd0] sm:$0xff] %vm786, %v3861
      %3894 = vst.msk [vmem:[%s379 + $0xd8] sm:$0xff] %vm786, %v3862
      %3895 = vst.msk [vmem:[%s379 + $0xe0] sm:$0xff] %vm786, %v3863
      %3896 = vst.msk [vmem:[%s379 + $0xe8] sm:$0xff] %vm786, %v3864
      %3897 = vst.msk [vmem:[%s379 + $0xf0] sm:$0xff] %vm786, %v3865
      %3898 = vst.msk [vmem:[%s379 + $0xf8] sm:$0xff] %vm786, %v3866
      %p3899 = scmp.lt.s32.totalorder %s23, 1
      %s3900 = scalar_select %p3899, %s23, 1
      %p3901 = scmp.lt.s32.totalorder %s24, 0
      %s3902 = scalar_select %p3901, %s24, 0
      %s3903 = smul.addr %s3900, 32
      %s3904 = sadd.s32 %s3902, %s3903
      %s3905 = smul.addr %s3904, 8
      %s3906 = scalar_lea.vmem %s8, %s3905
      // Predicated region
      $region57: #{basic_block_forward.5} parent=51 // pred_check
        %p3907 = pneg %p239
      $region58: #{basic_block_forward.5} parent=51 // pred_check_branch
        %3909 = sbr.rel (%p3907) target = $region60
      $region59: #{basic_block_forward.5} parent=51 // pred_region
        _
      $region60: #{basic_block_forward.5} parent=51 // pred_fallthru
        _
    $region52: #{basic_block_forward.5} parent=5 // pred_fallthru
      _
    %p3910 = scmp.le.s32.totalorder 2, %s14
    // Predicated region
    $region61: #{basic_block_forward.5} parent=5 // pred_check
      %p3911 = pneg %p3910
    $region62: #{basic_block_forward.5} parent=5 // pred_check_branch
      %3913 = sbr.rel (%p3911) target = $region64
    $region63: #{basic_block_forward.5} parent=5 // pred_region
      %s3914 = ssub.s32 %s14, 2
      // Predicated region
      $region65: #{basic_block_forward.5} parent=63 // pred_check
        %p3915 = pneg %p245
      $region66: #{basic_block_forward.5} parent=63 // pred_check_branch
        %3917 = sbr.rel (%p3915) target = $region68
      $region67: #{basic_block_forward.5} parent=63 // pred_region
        %p3918 = scmp.lt.s32.totalorder %s25, 1
        %s3919 = scalar_select %p3918, %s25, 1
        %p3920 = scmp.lt.s32.totalorder %s26, 0
        %s3921 = scalar_select %p3920, %s26, 0
        %s3922 = smul.addr %s3919, 32
        %s3923 = sadd.s32 %s3921, %s3922
        %s3924 = smul.addr %s3923, 8
        %s3925 = scalar_lea.vmem %s8, %s3924
      $region68: #{basic_block_forward.5} parent=63 // pred_fallthru
        _
    $region64: #{basic_block_forward.5} parent=5 // pred_fallthru
      _
  $region6: #{basic_block_forward.5} parent=0 // loop_footer
    %s18 = sadd.s32 1, %s14
  $region7: #{basic_block_forward.5} parent=0 // loop_footer_branch
    %13 = sbr.rel target = $region3
  $region8: #{basic_block_forward.5} parent=0 // loop_exit
    _

// kernel: basic_block_forward.4
$region0: #{basic_block_forward.4}
  #allocation0 [shape = 'u32[]', space=smem, size = 0x4, offset = 0x4, fixed_abs, tag = 'smem constant byte address 0x4 - core index']
  #allocation1 [shape = 'u32[144,128]{1,0:T(1,128)}', space=vmem, size = 0x12000, scoped, tag = 'internal scratch']
  #allocation2 [shape = 'f32[18,18,4]{2,1,0:T(8,128)}', space=vmem, size = 0x36000, scoped, tag = 'scratch operand']
  %s0 = inlined_call_operand.vmem [shape: f32[2,16,16,4], index: 0, kind: input, shape index: {}]
  %s1 = inlined_call_operand.vmem [shape: f32[1,4], index: 1, kind: input, shape index: {}]
  %s2 = inlined_call_operand.vmem [shape: f32[1,4], index: 2, kind: input, shape index: {}]
  %s3 = inlined_call_operand.vmem [shape: f32[36,8], index: 3, kind: input, shape index: {}]
  %s4 = inlined_call_operand.vmem [shape: f32[2,16,16,8], index: 4, kind: output, shape index: {0}]
  %s5 = inlined_call_operand.vmem [shape: f32[1,8], index: 5, kind: output, shape index: {1}]
  %s6 = inlined_call_operand.vmem [shape: f32[1,8], index: 6, kind: output, shape index: {2}]
  %7 = xla_tuple %s4, %s5, %s6
  %s8 = sld [smem:[#allocation0]]
  $region69: #{basic_block_forward.4} parent=0
    _
  %s10 = ssub.s32 1, %s8
  %s11 = scalar_select 0, %s10, %s8
  loop: start=0, step=1, limit=4
  $region2: #{basic_block_forward.4} parent=0 // loop_pre_header
    _
  $region3: #{basic_block_forward.4} parent=0 // loop_header
    %s13 = sphi 0, %s17
    %p14 = scmp.ge.s32.totalorder %s13, 4
    %s23 = sphi 0, %s25
    %s26 = sphi 0, %s23
    %s27 = sphi 0, %s26
    %s43 = sphi 0, %s27
    %s47 = sphi 0, %s47
    %s49 = sphi 0, %s47
    %s50 = sphi 0, %s49
    %s64 = sphi 0, %s50
    %s68 = sphi 0, %s68
    %s70 = sphi 0, %s68
    %s71 = sphi 0, %s70
    %s85 = sphi 0, %s71
    %s89 = sphi 0, %s89
    %s91 = sphi 0, %s89
    %s92 = sphi 0, %s91
    %s106 = sphi 0, %s92
    %s112 = sphi 0, %s114
    %s115 = sphi 0, %s112
    %s116 = sphi 0, %s115
    %s132 = sphi 0, %s116
    %s136 = sphi 0, %s136
    %s138 = sphi 0, %s136
    %s139 = sphi 0, %s138
    %s153 = sphi 0, %s139
    %s157 = sphi 0, %s157
    %s159 = sphi 0, %s157
    %s160 = sphi 0, %s159
    %s174 = sphi 0, %s160
  $region4: #{basic_block_forward.4} parent=0 // loop_header_branch
    %16 = sbr.rel (%p14) target = $region8
  $region5: #{basic_block_forward.4} parent=0 // loop_body
    %s18 = ssub.s32 %s13, 1
    %s19 = ssub.s32 %s13, 2
    %s20 = sadd.s32 %s13, 1
    %s21 = ssub.s32 %s13, %s20
    %p22 = scmp.eq.s32.totalorder %s21, 0
    %s24 = sadd.s32 %s23, 1
    %s25 = scalar_select %p22, %s23, %s24
    %p28 = pneg %p22
    %p29 = scmp.eq.s32.totalorder %s13, 1
    %p30 = por %p28, %p29
    %p31 = scmp.ne.s32.totalorder %s23, %s26
    %p32 = scmp.eq.s32.totalorder %s13, 0
    %p33 = por %p31, %p32
    %p34 = scmp.ne.s32.totalorder %s23, %s26
    %p35 = scmp.eq.s32.totalorder %s18, 1
    %p36 = por %p34, %p35
    %p37 = scmp.ne.s32.totalorder %s26, %s27
    %p38 = scmp.eq.s32.totalorder %s18, 0
    %p39 = por %p37, %p38
    %p40 = scmp.ne.s32.totalorder %s26, %s27
    %p41 = scmp.eq.s32.totalorder %s19, 1
    %p42 = por %p40, %p41
    %p44 = scmp.ne.s32.totalorder %s27, %s43
    %p45 = scmp.eq.s32.totalorder %s19, 0
    %p46 = por %p44, %p45
    %s48 = sadd.s32 %s47, 1
    %p51 = scmp.eq.s32.totalorder %s13, 1
    %p52 = scmp.ne.s32.totalorder %s47, %s49
    %p53 = scmp.eq.s32.totalorder %s13, 0
    %p54 = por %p52, %p53
    %p55 = scmp.ne.s32.totalorder %s47, %s49
    %p56 = scmp.eq.s32.totalorder %s18, 1
    %p57 = por %p55, %p56
    %p58 = scmp.ne.s32.totalorder %s49, %s50
    %p59 = scmp.eq.s32.totalorder %s18, 0
    %p60 = por %p58, %p59
    %p61 = scmp.ne.s32.totalorder %s49, %s50
    %p62 = scmp.eq.s32.totalorder %s19, 1
    %p63 = por %p61, %p62
    %p65 = scmp.ne.s32.totalorder %s50, %s64
    %p66 = scmp.eq.s32.totalorder %s19, 0
    %p67 = por %p65, %p66
    %s69 = sadd.s32 %s68, 1
    %p72 = scmp.eq.s32.totalorder %s13, 1
    %p73 = scmp.ne.s32.totalorder %s68, %s70
    %p74 = scmp.eq.s32.totalorder %s13, 0
    %p75 = por %p73, %p74
    %p76 = scmp.ne.s32.totalorder %s68, %s70
    %p77 = scmp.eq.s32.totalorder %s18, 1
    %p78 = por %p76, %p77
    %p79 = scmp.ne.s32.totalorder %s70, %s71
    %p80 = scmp.eq.s32.totalorder %s18, 0
    %p81 = por %p79, %p80
    %p82 = scmp.ne.s32.totalorder %s70, %s71
    %p83 = scmp.eq.s32.totalorder %s19, 1
    %p84 = por %p82, %p83
    %p86 = scmp.ne.s32.totalorder %s71, %s85
    %p87 = scmp.eq.s32.totalorder %s19, 0
    %p88 = por %p86, %p87
    %s90 = sadd.s32 %s89, 1
    %p93 = scmp.eq.s32.totalorder %s13, 1
    %p94 = scmp.ne.s32.totalorder %s89, %s91
    %p95 = scmp.eq.s32.totalorder %s13, 0
    %p96 = por %p94, %p95
    %p97 = scmp.ne.s32.totalorder %s89, %s91
    %p98 = scmp.eq.s32.totalorder %s18, 1
    %p99 = por %p97, %p98
    %p100 = scmp.ne.s32.totalorder %s91, %s92
    %p101 = scmp.eq.s32.totalorder %s18, 0
    %p102 = por %p100, %p101
    %p103 = scmp.ne.s32.totalorder %s91, %s92
    %p104 = scmp.eq.s32.totalorder %s19, 1
    %p105 = por %p103, %p104
    %p107 = scmp.ne.s32.totalorder %s92, %s106
    %p108 = scmp.eq.s32.totalorder %s19, 0
    %p109 = por %p107, %p108
    %s110 = ssub.s32 %s13, %s20
    %p111 = scmp.eq.s32.totalorder %s110, 0
    %s113 = sadd.s32 %s112, 1
    %s114 = scalar_select %p111, %s112, %s113
    %p117 = pneg %p111
    %p118 = scmp.eq.s32.totalorder %s13, 1
    %p119 = por %p117, %p118
    %p120 = scmp.ne.s32.totalorder %s112, %s115
    %p121 = scmp.eq.s32.totalorder %s13, 0
    %p122 = por %p120, %p121
    %p123 = scmp.ne.s32.totalorder %s112, %s115
    %p124 = scmp.eq.s32.totalorder %s18, 1
    %p125 = por %p123, %p124
    %p126 = scmp.ne.s32.totalorder %s115, %s116
    %p127 = scmp.eq.s32.totalorder %s18, 0
    %p128 = por %p126, %p127
    %p129 = scmp.ne.s32.totalorder %s115, %s116
    %p130 = scmp.eq.s32.totalorder %s19, 1
    %p131 = por %p129, %p130
    %p133 = scmp.ne.s32.totalorder %s116, %s132
    %p134 = scmp.eq.s32.totalorder %s19, 0
    %p135 = por %p133, %p134
    %s137 = sadd.s32 %s136, 1
    %p140 = scmp.eq.s32.totalorder %s13, 1
    %p141 = scmp.ne.s32.totalorder %s136, %s138
    %p142 = scmp.eq.s32.totalorder %s13, 0
    %p143 = por %p141, %p142
    %p144 = scmp.ne.s32.totalorder %s136, %s138
    %p145 = scmp.eq.s32.totalorder %s18, 1
    %p146 = por %p144, %p145
    %p147 = scmp.ne.s32.totalorder %s138, %s139
    %p148 = scmp.eq.s32.totalorder %s18, 0
    %p149 = por %p147, %p148
    %p150 = scmp.ne.s32.totalorder %s138, %s139
    %p151 = scmp.eq.s32.totalorder %s19, 1
    %p152 = por %p150, %p151
    %p154 = scmp.ne.s32.totalorder %s139, %s153
    %p155 = scmp.eq.s32.totalorder %s19, 0
    %p156 = por %p154, %p155
    %s158 = sadd.s32 %s157, 1
    %p161 = scmp.eq.s32.totalorder %s13, 1
    %p162 = scmp.ne.s32.totalorder %s157, %s159
    %p163 = scmp.eq.s32.totalorder %s13, 0
    %p164 = por %p162, %p163
    %p165 = scmp.ne.s32.totalorder %s157, %s159
    %p166 = scmp.eq.s32.totalorder %s18, 1
    %p167 = por %p165, %p166
    %p168 = scmp.ne.s32.totalorder %s159, %s160
    %p169 = scmp.eq.s32.totalorder %s18, 0
    %p170 = por %p168, %p169
    %p171 = scmp.ne.s32.totalorder %s159, %s160
    %p172 = scmp.eq.s32.totalorder %s19, 1
    %p173 = por %p171, %p172
    %p175 = scmp.ne.s32.totalorder %s160, %s174
    %p176 = scmp.eq.s32.totalorder %s19, 0
    %p177 = por %p175, %p176
    %p178 = scmp.le.s32.totalorder 1, %s13
    %p179 = scmp.lt.s32.totalorder %s13, 3
    %p180 = pnand %p178, %p179
    %p181 = pneg %p180
    // Predicated region
    $region9: #{basic_block_forward.4} parent=5 // pred_check
      _
    $region10: #{basic_block_forward.4} parent=5 // pred_check_branch
      %183 = sbr.rel (%p180) target = $region12
    $region11: #{basic_block_forward.4} parent=5 // pred_region
      %s184 = ssub.s32 %s13, 1
      // Predicated region
      $region13: #{basic_block_forward.4} parent=11 // pred_check
        %p185 = pneg %p60
      $region14: #{basic_block_forward.4} parent=11 // pred_check_branch
        %187 = sbr.rel (%p185) target = $region16
      $region15: #{basic_block_forward.4} parent=11 // pred_region
        _
      $region16: #{basic_block_forward.4} parent=11 // pred_fallthru
        _
      // Predicated region
      $region17: #{basic_block_forward.4} parent=11 // pred_check
        %p188 = pneg %p81
      $region18: #{basic_block_forward.4} parent=11 // pred_check_branch
        %190 = sbr.rel (%p188) target = $region20
      $region19: #{basic_block_forward.4} parent=11 // pred_region
        _
      $region20: #{basic_block_forward.4} parent=11 // pred_fallthru
        _
      // Predicated region
      $region21: #{basic_block_forward.4} parent=11 // pred_check
        %p191 = pneg %p102
      $region22: #{basic_block_forward.4} parent=11 // pred_check_branch
        %193 = sbr.rel (%p191) target = $region24
      $region23: #{basic_block_forward.4} parent=11 // pred_region
        _
      $region24: #{basic_block_forward.4} parent=11 // pred_fallthru
        _
    $region12: #{basic_block_forward.4} parent=5 // pred_fallthru
      _
    %p194 = scmp.lt.s32.totalorder %s13, 2
    // Predicated region
    $region25: #{basic_block_forward.4} parent=5 // pred_check
      %p195 = pneg %p194
    $region26: #{basic_block_forward.4} parent=5 // pred_check_branch
      %197 = sbr.rel (%p195) target = $region28
    $region27: #{basic_block_forward.4} parent=5 // pred_region
      // Predicated region
      $region29: #{basic_block_forward.4} parent=27 // pred_check
        %p198 = pneg %p33
      $region30: #{basic_block_forward.4} parent=27 // pred_check_branch
        %200 = sbr.rel (%p198) target = $region32
      $region31: #{basic_block_forward.4} parent=27 // pred_region
        %p201 = scmp.lt.s32.totalorder %s13, 1
        %s202 = scalar_select %p201, %s13, 1
        %s203 = smul.addr %s202, 32
        %s204 = smul.addr %s203, 8
        %s205 = scalar_lea.vmem %s0, %s204
      $region32: #{basic_block_forward.4} parent=27 // pred_fallthru
        _
    $region28: #{basic_block_forward.4} parent=5 // pred_fallthru
      _
    %p206 = scmp.le.s32.totalorder 1, %s13
    %p207 = scmp.lt.s32.totalorder %s13, 3
    %p208 = pnand %p206, %p207
    %p209 = pneg %p208
    // Predicated region
    $region33: #{basic_block_forward.4} parent=5 // pred_check
      _
    $region34: #{basic_block_forward.4} parent=5 // pred_check_branch
      %211 = sbr.rel (%p208) target = $region36
    $region35: #{basic_block_forward.4} parent=5 // pred_region
      %s212 = ssub.s32 %s13, 1
      %p213 = scmp.lt.s32.totalorder %s18, 1
      %s214 = scalar_select %p213, %s18, 1
      %s215 = smul.addr %s214, 32
      %s216 = smul.addr %s215, 8
      %s217 = scalar_lea.vmem %s0, %s216
      %p218 = pneg %p39
      %p219 = pneg %p36
      %p220 = pneg %p60
      %p221 = pneg %p57
      %p222 = pneg %p81
      %p223 = pneg %p78
      %p224 = pneg %p102
      %p225 = pneg %p99
      %p226 = pneg %p128
      %p227 = pneg %p125
      %p228 = scmp.lt.s32.totalorder %s18, 1
      %s229 = scalar_select %p228, %s18, 1
      %s230 = smul.addr %s229, 32
      %s231 = smul.addr %s230, 8
      %s232 = scalar_lea.vmem %s4, %s231
      %p233 = pneg %p149
      %p234 = pneg %p146
      %p235 = pneg %p170
      %p236 = pneg %p167
      %p237 = scmp.lt.s32.totalorder %s18, 1
      %s238 = scalar_select %p237, %s18, 1
      %s239 = smul.addr %s238, 32
      %s240 = smul.addr %s239, 8
      %s241 = scalar_lea.vmem %s0, %s240
      %p242 = scmp.lt.s32.totalorder %s18, 1
      %s243 = scalar_select %p242, %s18, 1
      %s244 = smul.addr %s243, 32
      %s245 = smul.addr %s244, 8
      %s246 = scalar_lea.vmem %s4, %s245
      %p247 = scmp.eq.s32.totalorder %s18, 0
      // Predicated region
      $region37: #{basic_block_forward.4} parent=35 // pred_check
        %p248 = pneg %p247
      $region38: #{basic_block_forward.4} parent=35 // pred_check_branch
        %250 = sbr.rel (%p248) target = $region40
      $region39: #{basic_block_forward.4} parent=35 // pred_region
        %vm251 = vcmask 57344
        %252 = vst.msk [vmem:[%s5] sm:$0x1] %vm251, 0.0
        %253 = vst.msk [vmem:[%s6] sm:$0x1] %vm251, 0.0
      $region40: #{basic_block_forward.4} parent=35 // pred_fallthru
        _
      %v254 = vld [vmem:[%s241] sm:$0xff]
      %v255 = vld [vmem:[%s241 + $0x8] sm:$0xff]
      %v256 = vld [vmem:[%s241 + $0x10] sm:$0xff]
      %v257 = vld [vmem:[%s241 + $0x18] sm:$0xff]
      %v258 = vld [vmem:[%s241 + $0x20] sm:$0xff]
      %v259 = vld [vmem:[%s241 + $0x28] sm:$0xff]
      %v260 = vld [vmem:[%s241 + $0x30] sm:$0xff]
      %v261 = vld [vmem:[%s241 + $0x38] sm:$0xff]
      %v262 = vld [vmem:[%s241 + $0x40] sm:$0xff]
      %v263 = vld [vmem:[%s241 + $0x48] sm:$0xff]
      %v264 = vld [vmem:[%s241 + $0x50] sm:$0xff]
      %v265 = vld [vmem:[%s241 + $0x58] sm:$0xff]
      %v266 = vld [vmem:[%s241 + $0x60] sm:$0xff]
      %v267 = vld [vmem:[%s241 + $0x68] sm:$0xff]
      %v268 = vld [vmem:[%s241 + $0x70] sm:$0xff]
      %v269 = vld [vmem:[%s241 + $0x78] sm:$0xff]
      %v270 = vld [vmem:[%s241 + $0x80] sm:$0xff]
      %v271 = vld [vmem:[%s241 + $0x88] sm:$0xff]
      %v272 = vld [vmem:[%s241 + $0x90] sm:$0xff]
      %v273 = vld [vmem:[%s241 + $0x98] sm:$0xff]
      %v274 = vld [vmem:[%s241 + $0xa0] sm:$0xff]
      %v275 = vld [vmem:[%s241 + $0xa8] sm:$0xff]
      %v276 = vld [vmem:[%s241 + $0xb0] sm:$0xff]
      %v277 = vld [vmem:[%s241 + $0xb8] sm:$0xff]
      %v278 = vld [vmem:[%s241 + $0xc0] sm:$0xff]
      %v279 = vld [vmem:[%s241 + $0xc8] sm:$0xff]
      %v280 = vld [vmem:[%s241 + $0xd0] sm:$0xff]
      %v281 = vld [vmem:[%s241 + $0xd8] sm:$0xff]
      %v282 = vld [vmem:[%s241 + $0xe0] sm:$0xff]
      %v283 = vld [vmem:[%s241 + $0xe8] sm:$0xff]
      %v284 = vld [vmem:[%s241 + $0xf0] sm:$0xff]
      %v285 = vld [vmem:[%s241 + $0xf8] sm:$0xff]
      %v286 = vld [vmem:[%s1] sm:$0x1]
      %v288 = vlaneseq
      %v289 = vshrl.u32 %v288, 7
      %v290 = vsub.s32 0, %v289
      %v291 = vrot.slane %v286, %v290
      %v293 = vmul.f32 %v254, %v291
      %v294 = vmul.f32 %v255, %v291
      %v295 = vmul.f32 %v256, %v291
      %v296 = vmul.f32 %v257, %v291
      %v297 = vmul.f32 %v258, %v291
      %v298 = vmul.f32 %v259, %v291
      %v299 = vmul.f32 %v260, %v291
      %v300 = vmul.f32 %v261, %v291
      %v301 = vmul.f32 %v262, %v291
      %v302 = vmul.f32 %v263, %v291
      %v303 = vmul.f32 %v264, %v291
      %v304 = vmul.f32 %v265, %v291
      %v305 = vmul.f32 %v266, %v291
      %v306 = vmul.f32 %v267, %v291
      %v307 = vmul.f32 %v268, %v291
      %v308 = vmul.f32 %v269, %v291
      %v309 = vmul.f32 %v270, %v291
      %v310 = vmul.f32 %v271, %v291
      %v311 = vmul.f32 %v272, %v291
      %v312 = vmul.f32 %v273, %v291
      %v313 = vmul.f32 %v274, %v291
      %v314 = vmul.f32 %v275, %v291
      %v315 = vmul.f32 %v276, %v291
      %v316 = vmul.f32 %v277, %v291
      %v317 = vmul.f32 %v278, %v291
      %v318 = vmul.f32 %v279, %v291
      %v319 = vmul.f32 %v280, %v291
      %v320 = vmul.f32 %v281, %v291
      %v321 = vmul.f32 %v282, %v291
      %v322 = vmul.f32 %v283, %v291
      %v323 = vmul.f32 %v284, %v291
      %v324 = vmul.f32 %v285, %v291
      %v325 = vld [vmem:[%s2] sm:$0x1]
      %v327 = vlaneseq
      %v328 = vshrl.u32 %v327, 7
      %v329 = vsub.s32 0, %v328
      %v330 = vrot.slane %v325, %v329
      %v332 = vadd.f32 %v293, %v330
      %v333 = vadd.f32 %v294, %v330
      %v334 = vadd.f32 %v295, %v330
      %v335 = vadd.f32 %v296, %v330
      %v336 = vadd.f32 %v297, %v330
      %v337 = vadd.f32 %v298, %v330
      %v338 = vadd.f32 %v299, %v330
      %v339 = vadd.f32 %v300, %v330
      %v340 = vadd.f32 %v301, %v330
      %v341 = vadd.f32 %v302, %v330
      %v342 = vadd.f32 %v303, %v330
      %v343 = vadd.f32 %v304, %v330
      %v344 = vadd.f32 %v305, %v330
      %v345 = vadd.f32 %v306, %v330
      %v346 = vadd.f32 %v307, %v330
      %v347 = vadd.f32 %v308, %v330
      %v348 = vadd.f32 %v309, %v330
      %v349 = vadd.f32 %v310, %v330
      %v350 = vadd.f32 %v311, %v330
      %v351 = vadd.f32 %v312, %v330
      %v352 = vadd.f32 %v313, %v330
      %v353 = vadd.f32 %v314, %v330
      %v354 = vadd.f32 %v315, %v330
      %v355 = vadd.f32 %v316, %v330
      %v356 = vadd.f32 %v317, %v330
      %v357 = vadd.f32 %v318, %v330
      %v358 = vadd.f32 %v319, %v330
      %v359 = vadd.f32 %v320, %v330
      %v360 = vadd.f32 %v321, %v330
      %v361 = vadd.f32 %v322, %v330
      %v362 = vadd.f32 %v323, %v330
      %v363 = vadd.f32 %v324, %v330
      %v364 = vmax.f32 %v332, 0.0
      %v365 = vmax.f32 %v333, 0.0
      %v366 = vmax.f32 %v334, 0.0
      %v367 = vmax.f32 %v335, 0.0
      %v368 = vmax.f32 %v336, 0.0
      %v369 = vmax.f32 %v337, 0.0
      %v370 = vmax.f32 %v338, 0.0
      %v371 = vmax.f32 %v339, 0.0
      %v372 = vmax.f32 %v340, 0.0
      %v373 = vmax.f32 %v341, 0.0
      %v374 = vmax.f32 %v342, 0.0
      %v375 = vmax.f32 %v343, 0.0
      %v376 = vmax.f32 %v344, 0.0
      %v377 = vmax.f32 %v345, 0.0
      %v378 = vmax.f32 %v346, 0.0
      %v379 = vmax.f32 %v347, 0.0
      %v380 = vmax.f32 %v348, 0.0
      %v381 = vmax.f32 %v349, 0.0
      %v382 = vmax.f32 %v350, 0.0
      %v383 = vmax.f32 %v351, 0.0
      %v384 = vmax.f32 %v352, 0.0
      %v385 = vmax.f32 %v353, 0.0
      %v386 = vmax.f32 %v354, 0.0
      %v387 = vmax.f32 %v355, 0.0
      %v388 = vmax.f32 %v356, 0.0
      %v389 = vmax.f32 %v357, 0.0
      %v390 = vmax.f32 %v358, 0.0
      %v391 = vmax.f32 %v359, 0.0
      %v392 = vmax.f32 %v360, 0.0
      %v393 = vmax.f32 %v361, 0.0
      %v394 = vmax.f32 %v362, 0.0
      %v395 = vmax.f32 %v363, 0.0
      %vm396 = vcmask 31744
      %397 = vst.msk [vmem:[#allocation2] sm:$0xff] %vm396, 0.0
      %398 = vst.msk [vmem:[#allocation2 + $0x8] sm:$0xff] %vm396, 0.0
      %vm399 = vcmask 25600
      %400 = vst.msk [vmem:[#allocation2 + $0x10] sm:$0x3] %vm399, 0.0
      %s401 = scalar_lea.vmem [#allocation2], 408
      %402 = vst.msk [vmem:[%s401] sm:$0xff] %vm396, 0.0
      %403 = vst.msk [vmem:[%s401 + $0x8] sm:$0xff] %vm396, 0.0
      %404 = vst.msk [vmem:[%s401 + $0x10] sm:$0x3] %vm399, 0.0
      %s405 = scalar_lea.vmem [#allocation2], 24
      %vm406 = vcmask 24576
      %407 = vst.msk [vmem:[%s405] sm:$0x1] %vm406, 0.0
      %408 = vst.msk [vmem:[%s405 + $0x18] sm:$0x1] %vm406, 0.0
      %409 = vst.msk [vmem:[%s405 + $0x30] sm:$0x1] %vm406, 0.0
      %410 = vst.msk [vmem:[%s405 + $0x48] sm:$0x1] %vm406, 0.0
      %411 = vst.msk [vmem:[%s405 + $0x60] sm:$0x1] %vm406, 0.0
      %412 = vst.msk [vmem:[%s405 + $0x78] sm:$0x1] %vm406, 0.0
      %413 = vst.msk [vmem:[%s405 + $0x90] sm:$0x1] %vm406, 0.0
      %414 = vst.msk [vmem:[%s405 + $0xa8] sm:$0x1] %vm406, 0.0
      %415 = vst.msk [vmem:[%s405 + $0xc0] sm:$0x1] %vm406, 0.0
      %416 = vst.msk [vmem:[%s405 + $0xd8] sm:$0x1] %vm406, 0.0
      %417 = vst.msk [vmem:[%s405 + $0xf0] sm:$0x1] %vm406, 0.0
      %418 = vst.msk [vmem:[%s405 + $0x108] sm:$0x1] %vm406, 0.0
      %419 = vst.msk [vmem:[%s405 + $0x120] sm:$0x1] %vm406, 0.0
      %420 = vst.msk [vmem:[%s405 + $0x138] sm:$0x1] %vm406, 0.0
      %421 = vst.msk [vmem:[%s405 + $0x150] sm:$0x1] %vm406, 0.0
      %422 = vst.msk [vmem:[%s405 + $0x168] sm:$0x1] %vm406, 0.0
      %423 = vst.msk [vmem:[%s405 + $0x11] sm:$0x1] %vm406, 0.0
      %424 = vst.msk [vmem:[%s405 + $0x29] sm:$0x1] %vm406, 0.0
      %425 = vst.msk [vmem:[%s405 + $0x41] sm:$0x1] %vm406, 0.0
      %426 = vst.msk [vmem:[%s405 + $0x59] sm:$0x1] %vm406, 0.0
      %427 = vst.msk [vmem:[%s405 + $0x71] sm:$0x1] %vm406, 0.0
      %428 = vst.msk [vmem:[%s405 + $0x89] sm:$0x1] %vm406, 0.0
      %429 = vst.msk [vmem:[%s405 + $0xa1] sm:$0x1] %vm406, 0.0
      %430 = vst.msk [vmem:[%s405 + $0xb9] sm:$0x1] %vm406, 0.0
      %431 = vst.msk [vmem:[%s405 + $0xd1] sm:$0x1] %vm406, 0.0
      %432 = vst.msk [vmem:[%s405 + $0xe9] sm:$0x1] %vm406, 0.0
      %433 = vst.msk [vmem:[%s405 + $0x101] sm:$0x1] %vm406, 0.0
      %434 = vst.msk [vmem:[%s405 + $0x119] sm:$0x1] %vm406, 0.0
      %435 = vst.msk [vmem:[%s405 + $0x131] sm:$0x1] %vm406, 0.0
      %436 = vst.msk [vmem:[%s405 + $0x149] sm:$0x1] %vm406, 0.0
      %437 = vst.msk [vmem:[%s405 + $0x161] sm:$0x1] %vm406, 0.0
      %438 = vst.msk [vmem:[%s405 + $0x179] sm:$0x1] %vm406, 0.0
      %439 = vst.msk [vmem:[%s405 + $0x1] sm:$0xff] %vm396, %v364
      %440 = vst.msk [vmem:[%s405 + $0x9] sm:$0xff] %vm396, %v365
      %441 = vst.msk [vmem:[%s405 + $0x19] sm:$0xff] %vm396, %v366
      %442 = vst.msk [vmem:[%s405 + $0x21] sm:$0xff] %vm396, %v367
      %443 = vst.msk [vmem:[%s405 + $0x31] sm:$0xff] %vm396, %v368
      %444 = vst.msk [vmem:[%s405 + $0x39] sm:$0xff] %vm396, %v369
      %445 = vst.msk [vmem:[%s405 + $0x49] sm:$0xff] %vm396, %v370
      %446 = vst.msk [vmem:[%s405 + $0x51] sm:$0xff] %vm396, %v371
      %447 = vst.msk [vmem:[%s405 + $0x61] sm:$0xff] %vm396, %v372
      %448 = vst.msk [vmem:[%s405 + $0x69] sm:$0xff] %vm396, %v373
      %449 = vst.msk [vmem:[%s405 + $0x79] sm:$0xff] %vm396, %v374
      %450 = vst.msk [vmem:[%s405 + $0x81] sm:$0xff] %vm396, %v375
      %451 = vst.msk [vmem:[%s405 + $0x91] sm:$0xff] %vm396, %v376
      %452 = vst.msk [vmem:[%s405 + $0x99] sm:$0xff] %vm396, %v377
      %453 = vst.msk [vmem:[%s405 + $0xa9] sm:$0xff] %vm396, %v378
      %454 = vst.msk [vmem:[%s405 + $0xb1] sm:$0xff] %vm396, %v379
      %455 = vst.msk [vmem:[%s405 + $0xc1] sm:$0xff] %vm396, %v380
      %456 = vst.msk [vmem:[%s405 + $0xc9] sm:$0xff] %vm396, %v381
      %457 = vst.msk [vmem:[%s405 + $0xd9] sm:$0xff] %vm396, %v382
      %458 = vst.msk [vmem:[%s405 + $0xe1] sm:$0xff] %vm396, %v383
      %459 = vst.msk [vmem:[%s405 + $0xf1] sm:$0xff] %vm396, %v384
      %460 = vst.msk [vmem:[%s405 + $0xf9] sm:$0xff] %vm396, %v385
      %461 = vst.msk [vmem:[%s405 + $0x109] sm:$0xff] %vm396, %v386
      %462 = vst.msk [vmem:[%s405 + $0x111] sm:$0xff] %vm396, %v387
      %463 = vst.msk [vmem:[%s405 + $0x121] sm:$0xff] %vm396, %v388
      %464 = vst.msk [vmem:[%s405 + $0x129] sm:$0xff] %vm396, %v389
      %465 = vst.msk [vmem:[%s405 + $0x139] sm:$0xff] %vm396, %v390
      %466 = vst.msk [vmem:[%s405 + $0x141] sm:$0xff] %vm396, %v391
      %467 = vst.msk [vmem:[%s405 + $0x151] sm:$0xff] %vm396, %v392
      %468 = vst.msk [vmem:[%s405 + $0x159] sm:$0xff] %vm396, %v393
      %469 = vst.msk [vmem:[%s405 + $0x169] sm:$0xff] %vm396, %v394
      %470 = vst.msk [vmem:[%s405 + $0x171] sm:$0xff] %vm396, %v395
      %v471 = vld [vmem:[#allocation2] sm:$0xff]
      %v472 = vld [vmem:[#allocation2 + $0x8] sm:$0xff]
      %v473 = vld [vmem:[#allocation2 + $0x10] sm:$0x3]
      %v474 = vld [vmem:[#allocation2 + $0x18] sm:$0xff]
      %v475 = vld [vmem:[#allocation2 + $0x20] sm:$0xff]
      %v476 = vld [vmem:[#allocation2 + $0x28] sm:$0x3]
      %v477 = vld [vmem:[#allocation2 + $0x30] sm:$0xff]
      %v478 = vld [vmem:[#allocation2 + $0x38] sm:$0xff]
      %v479 = vld [vmem:[#allocation2 + $0x40] sm:$0x3]
      %v480 = vld [vmem:[#allocation2 + $0x48] sm:$0xff]
      %v481 = vld [vmem:[#allocation2 + $0x50] sm:$0xff]
      %v482 = vld [vmem:[#allocation2 + $0x58] sm:$0x3]
      %v483 = vld [vmem:[#allocation2 + $0x60] sm:$0xff]
      %v484 = vld [vmem:[#allocation2 + $0x68] sm:$0xff]
      %v485 = vld [vmem:[#allocation2 + $0x70] sm:$0x3]
      %v486 = vld [vmem:[#allocation2 + $0x78] sm:$0xff]
      %v487 = vld [vmem:[#allocation2 + $0x80] sm:$0xff]
      %v488 = vld [vmem:[#allocation2 + $0x88] sm:$0x3]
      %v489 = vld [vmem:[#allocation2 + $0x90] sm:$0xff]
      %v490 = vld [vmem:[#allocation2 + $0x98] sm:$0xff]
      %v491 = vld [vmem:[#allocation2 + $0xa0] sm:$0x3]
      %v492 = vld [vmem:[#allocation2 + $0xa8] sm:$0xff]
      %v493 = vld [vmem:[#allocation2 + $0xb0] sm:$0xff]
      %v494 = vld [vmem:[#allocation2 + $0xb8] sm:$0x3]
      %v495 = vld [vmem:[#allocation2 + $0xc0] sm:$0xff]
      %v496 = vld [vmem:[#allocation2 + $0xc8] sm:$0xff]
      %v497 = vld [vmem:[#allocation2 + $0xd0] sm:$0x3]
      %v498 = vld [vmem:[#allocation2 + $0xd8] sm:$0xff]
      %v499 = vld [vmem:[#allocation2 + $0xe0] sm:$0xff]
      %v500 = vld [vmem:[#allocation2 + $0xe8] sm:$0x3]
      %v501 = vld [vmem:[#allocation2 + $0xf0] sm:$0xff]
      %v502 = vld [vmem:[#allocation2 + $0xf8] sm:$0xff]
      %v503 = vld [vmem:[#allocation2 + $0x100] sm:$0x3]
      %v504 = vld [vmem:[#allocation2 + $0x108] sm:$0xff]
      %v505 = vld [vmem:[#allocation2 + $0x110] sm:$0xff]
      %v506 = vld [vmem:[#allocation2 + $0x118] sm:$0x3]
      %v507 = vld [vmem:[#allocation2 + $0x120] sm:$0xff]
      %v508 = vld [vmem:[#allocation2 + $0x128] sm:$0xff]
      %v509 = vld [vmem:[#allocation2 + $0x130] sm:$0x3]
      %v510 = vld [vmem:[#allocation2 + $0x138] sm:$0xff]
      %v511 = vld [vmem:[#allocation2 + $0x140] sm:$0xff]
      %v512 = vld [vmem:[#allocation2 + $0x148] sm:$0x3]
      %v513 = vld [vmem:[#allocation2 + $0x150] sm:$0xff]
      %v514 = vld [vmem:[#allocation2 + $0x158] sm:$0xff]
      %v515 = vld [vmem:[#allocation2 + $0x160] sm:$0x3]
      %v516 = vld [vmem:[#allocation2 + $0x168] sm:$0xff]
      %v517 = vld [vmem:[#allocation2 + $0x170] sm:$0xff]
      %v518 = vld [vmem:[#allocation2 + $0x178] sm:$0x3]
      %v519 = vld [vmem:[#allocation2 + $0x180] sm:$0xff]
      %v520 = vld [vmem:[#allocation2 + $0x188] sm:$0xff]
      %v521 = vld [vmem:[#allocation2 + $0x190] sm:$0x3]
      %v522 = vld [vmem:[#allocation2 + $0x198] sm:$0xff]
      %v523 = vld [vmem:[#allocation2 + $0x1a0] sm:$0xff]
      %v524 = vld [vmem:[#allocation2 + $0x1a8] sm:$0x3]
      %v525 = vld [vmem:[%s3] sm:$0xf]
      %vm574 = vcmask 1046528
      %v575 = vrot.slane %v471, 1
      %v576 = vrot.slane %v472, 1
      %v577 = vsel %vm574, %v575, %v576
      %v578 = vrot.slane %v473, 1
      %v579 = vsel %vm574, %v576, %v578
      %v580 = vrot.slane %v474, 1
      %v581 = vrot.slane %v475, 1
      %v582 = vsel %vm574, %v580, %v581
      %v583 = vrot.slane %v476, 1
      %v584 = vsel %vm574, %v581, %v583
      %v585 = vrot.slane %v477, 1
      %v586 = vrot.slane %v478, 1
      %v587 = vsel %vm574, %v585, %v586
      %v588 = vrot.slane %v479, 1
      %v589 = vsel %vm574, %v586, %v588
      %v590 = vrot.slane %v480, 1
      %v591 = vrot.slane %v481, 1
      %v592 = vsel %vm574, %v590, %v591
      %v593 = vrot.slane %v482, 1
      %v594 = vsel %vm574, %v591, %v593
      %v595 = vrot.slane %v483, 1
      %v596 = vrot.slane %v484, 1
      %v597 = vsel %vm574, %v595, %v596
      %v598 = vrot.slane %v485, 1
      %v599 = vsel %vm574, %v596, %v598
      %v600 = vrot.slane %v486, 1
      %v601 = vrot.slane %v487, 1
      %v602 = vsel %vm574, %v600, %v601
      %v603 = vrot.slane %v488, 1
      %v604 = vsel %vm574, %v601, %v603
      %v605 = vrot.slane %v489, 1
      %v606 = vrot.slane %v490, 1
      %v607 = vsel %vm574, %v605, %v606
      %v608 = vrot.slane %v491, 1
      %v609 = vsel %vm574, %v606, %v608
      %v610 = vrot.slane %v492, 1
      %v611 = vrot.slane %v493, 1
      %v612 = vsel %vm574, %v610, %v611
      %v613 = vrot.slane %v494, 1
      %v614 = vsel %vm574, %v611, %v613
      %v615 = vrot.slane %v495, 1
      %v616 = vrot.slane %v496, 1
      %v617 = vsel %vm574, %v615, %v616
      %v618 = vrot.slane %v497, 1
      %v619 = vsel %vm574, %v616, %v618
      %v620 = vrot.slane %v498, 1
      %v621 = vrot.slane %v499, 1
      %v622 = vsel %vm574, %v620, %v621
      %v623 = vrot.slane %v500, 1
      %v624 = vsel %vm574, %v621, %v623
      %v625 = vrot.slane %v501, 1
      %v626 = vrot.slane %v502, 1
      %v627 = vsel %vm574, %v625, %v626
      %v628 = vrot.slane %v503, 1
      %v629 = vsel %vm574, %v626, %v628
      %v630 = vrot.slane %v504, 1
      %v631 = vrot.slane %v505, 1
      %v632 = vsel %vm574, %v630, %v631
      %v633 = vrot.slane %v506, 1
      %v634 = vsel %vm574, %v631, %v633
      %v635 = vrot.slane %v507, 1
      %v636 = vrot.slane %v508, 1
      %v637 = vsel %vm574, %v635, %v636
      %v638 = vrot.slane %v509, 1
      %v639 = vsel %vm574, %v636, %v638
      %v640 = vrot.slane %v510, 1
      %v641 = vrot.slane %v511, 1
      %v642 = vsel %vm574, %v640, %v641
      %v643 = vrot.slane %v512, 1
      %v644 = vsel %vm574, %v641, %v643
      %v645 = vrot.slane %v513, 1
      %v646 = vrot.slane %v514, 1
      %v647 = vsel %vm574, %v645, %v646
      %v648 = vrot.slane %v515, 1
      %v649 = vsel %vm574, %v646, %v648
      %v650 = vrot.slane %v516, 1
      %v651 = vrot.slane %v517, 1
      %v652 = vsel %vm574, %v650, %v651
      %v653 = vrot.slane %v518, 1
      %v654 = vsel %vm574, %v651, %v653
      %v655 = vld [vmem:[%s3 + $0x4] sm:$0xf]
      %v656 = vsel %vm396, %v577, 0
      %v658 = vsel %vm396, %v579, 0
      %v660 = vsel %vm396, %v582, 0
      %v662 = vsel %vm396, %v584, 0
      %v664 = vsel %vm396, %v587, 0
      %v666 = vsel %vm396, %v589, 0
      %v668 = vsel %vm396, %v592, 0
      %v670 = vsel %vm396, %v594, 0
      %v672 = vsel %vm396, %v597, 0
      %v674 = vsel %vm396, %v599, 0
      %v676 = vsel %vm396, %v602, 0
      %v678 = vsel %vm396, %v604, 0
      %v680 = vsel %vm396, %v607, 0
      %v682 = vsel %vm396, %v609, 0
      %v684 = vsel %vm396, %v612, 0
      %v686 = vsel %vm396, %v614, 0
      %v688 = vsel %vm396, %v617, 0
      %v690 = vsel %vm396, %v619, 0
      %v692 = vsel %vm396, %v622, 0
      %v694 = vsel %vm396, %v624, 0
      %v696 = vsel %vm396, %v627, 0
      %v698 = vsel %vm396, %v629, 0
      %v700 = vsel %vm396, %v632, 0
      %v702 = vsel %vm396, %v634, 0
      %v704 = vsel %vm396, %v637, 0
      %v706 = vsel %vm396, %v639, 0
      %v708 = vsel %vm396, %v642, 0
      %v710 = vsel %vm396, %v644, 0
      %v712 = vsel %vm396, %v647, 0
      %v714 = vsel %vm396, %v649, 0
      %v716 = vsel %vm396, %v652, 0
      %v718 = vsel %vm396, %v654, 0
      %vm720 = vcmask 1043456
      %v722 = vsel %vm720, %v655, 0
      %724 = vmatprep.subr.mxu0 0.0
      %725 = vmatpush1.msra.mxu0 %v722
      %726 = vmatprep.subr.mxu0 0.0
      %727 = vmatpush1.msra.mxu0 0.0
      %728 = vmatprep.subr.mxu0 0.0
      %729 = vmatpush1.msra.mxu0 0.0
      %730 = vmatprep.subr.mxu0 0.0
      %731 = vmatpush1.msra.mxu0 0.0
      %732 = vmatprep.subr.mxu0 0.0
      %733 = vmatpush1.msra.mxu0 0.0
      %734 = vmatprep.subr.mxu0 0.0
      %735 = vmatpush1.msra.mxu0 0.0
      %736 = vmatprep.subr.mxu0 0.0
      %737 = vmatpush1.msra.mxu0 0.0
      %738 = vmatprep.subr.mxu0 0.0
      %739 = vmatpush1.msra.mxu0 0.0
      %740 = vmatprep.subr.mxu0 0.0
      %741 = vmatpush1.msra.mxu0 0.0
      %742 = vmatprep.subr.mxu0 0.0
      %743 = vmatpush1.msra.mxu0 0.0
      %744 = vmatprep.subr.mxu0 0.0
      %745 = vmatpush1.msra.mxu0 0.0
      %746 = vmatprep.subr.mxu0 0.0
      %747 = vmatpush1.msra.mxu0 0.0
      %748 = vmatprep.subr.mxu0 0.0
      %749 = vmatpush1.msra.mxu0 0.0
      %750 = vmatprep.subr.mxu0 0.0
      %751 = vmatpush1.msra.mxu0 0.0
      %752 = vmatprep.subr.mxu0 0.0
      %753 = vmatpush1.msra.mxu0 0.0
      %754 = vmatprep.subr.mxu0 0.0
      %755 = vmatpush1.msra.mxu0 0.0
      %756 = vmatprep.subr.mxu0 0.0
      %757 = vmatpush1.msra.mxu0 0.0
      %758 = vmatprep.subr.mxu0 0.0
      %759 = vmatpush1.msra.mxu0 0.0
      %760 = vmatprep.subr.mxu0 0.0
      %761 = vmatpush1.msra.mxu0 0.0
      %762 = vmatprep.subr.mxu0 0.0
      %763 = vmatpush1.msra.mxu0 0.0
      %764 = vmatprep.subr.mxu0 0.0
      %765 = vmatpush1.msra.mxu0 0.0
      %766 = vmatprep.subr.mxu0 0.0
      %767 = vmatpush1.msra.mxu0 0.0
      %768 = vmatprep.subr.mxu0 0.0
      %769 = vmatpush1.msra.mxu0 0.0
      %770 = vmatprep.subr.mxu0 0.0
      %771 = vmatpush1.msra.mxu0 0.0
      %772 = vmatprep.subr.mxu0 0.0
      %773 = vmatpush1.msra.mxu0 0.0
      %774 = vmatprep.subr.mxu0 0.0
      %775 = vmatpush1.msra.mxu0 0.0
      %776 = vmatprep.subr.mxu0 0.0
      %777 = vmatpush1.msra.mxu0 0.0
      %778 = vmatprep.subr.mxu0 0.0
      %779 = vmatpush1.msra.mxu0 0.0
      %780 = vmatprep.subr.mxu0 0.0
      %781 = vmatpush1.msra.mxu0 0.0
      %782 = vmatprep.subr.mxu0 0.0
      %783 = vmatpush1.msra.mxu0 0.0
      %784 = vmatprep.subr.mxu0 0.0
      %785 = vmatpush1.msra.mxu0 0.0
      %786 = vmatprep.subr.mxu0 0.0
      %787 = vmatpush1.msra.mxu0 0.0
      %788 = vmatprep.mubr.f32.mxu0 0.0
      %789 = vmatmul.mubr.f32.gmra.mrb[0].mxu0 %v656
      %v790 = vpop.f32.mrb[0].mxu0
      %v791 = vadd.f32 0.0, %v790
      %v792 = vpop.f32.mrb[0].mxu0
      %793 = vmatprep.mubr.f32.mxu0 0.0
      %794 = vmatmul.mubr.f32.gmra.mrb[0].mxu0 %v658
      %v795 = vpop.f32.mrb[0].mxu0
      %v796 = vadd.f32 0.0, %v795
      %v797 = vpop.f32.mrb[0].mxu0
      %798 = vmatprep.mubr.f32.mxu0 0.0
      %799 = vmatmul.mubr.f32.gmra.mrb[0].mxu0 %v660
      %v800 = vpop.f32.mrb[0].mxu0
      %v801 = vadd.f32 0.0, %v800
      %v802 = vpop.f32.mrb[0].mxu0
      %803 = vmatprep.mubr.f32.mxu0 0.0
      %804 = vmatmul.mubr.f32.gmra.mrb[0].mxu0 %v662
      %v805 = vpop.f32.mrb[0].mxu0
      %v806 = vadd.f32 0.0, %v805
      %v807 = vpop.f32.mrb[0].mxu0
      %808 = vmatprep.mubr.f32.mxu0 0.0
      %809 = vmatmul.mubr.f32.gmra.mrb[0].mxu0 %v664
      %v810 = vpop.f32.mrb[0].mxu0
      %v811 = vadd.f32 0.0, %v810
      %v812 = vpop.f32.mrb[0].mxu0
      %813 = vmatprep.mubr.f32.mxu0 0.0
      %814 = vmatmul.mubr.f32.gmra.mrb[0].mxu0 %v666
      %v815 = vpop.f32.mrb[0].mxu0
      %v816 = vadd.f32 0.0, %v815
      %v817 = vpop.f32.mrb[0].mxu0
      %818 = vmatprep.mubr.f32.mxu0 0.0
      %819 = vmatmul.mubr.f32.gmra.mrb[0].mxu0 %v668
      %v820 = vpop.f32.mrb[0].mxu0
      %v821 = vadd.f32 0.0, %v820
      %v822 = vpop.f32.mrb[0].mxu0
      %823 = vmatprep.mubr.f32.mxu0 0.0
      %824 = vmatmul.mubr.f32.gmra.mrb[0].mxu0 %v670
      %v825 = vpop.f32.mrb[0].mxu0
      %v826 = vadd.f32 0.0, %v825
      %v827 = vpop.f32.mrb[0].mxu0
      %828 = vmatprep.mubr.f32.mxu0 0.0
      %829 = vmatmul.mubr.f32.gmra.mrb[0].mxu0 %v672
      %v830 = vpop.f32.mrb[0].mxu0
      %v831 = vadd.f32 0.0, %v830
      %v832 = vpop.f32.mrb[0].mxu0
      %833 = vmatprep.mubr.f32.mxu0 0.0
      %834 = vmatmul.mubr.f32.gmra.mrb[0].mxu0 %v674
      %v835 = vpop.f32.mrb[0].mxu0
      %v836 = vadd.f32 0.0, %v835
      %v837 = vpop.f32.mrb[0].mxu0
      %838 = vmatprep.mubr.f32.mxu0 0.0
      %839 = vmatmul.mubr.f32.gmra.mrb[0].mxu0 %v676
      %v840 = vpop.f32.mrb[0].mxu0
      %v841 = vadd.f32 0.0, %v840
      %v842 = vpop.f32.mrb[0].mxu0
      %843 = vmatprep.mubr.f32.mxu0 0.0
      %844 = vmatmul.mubr.f32.gmra.mrb[0].mxu0 %v678
      %v845 = vpop.f32.mrb[0].mxu0
      %v846 = vadd.f32 0.0, %v845
      %v847 = vpop.f32.mrb[0].mxu0
      %848 = vmatprep.mubr.f32.mxu0 0.0
      %849 = vmatmul.mubr.f32.gmra.mrb[0].mxu0 %v680
      %v850 = vpop.f32.mrb[0].mxu0
      %v851 = vadd.f32 0.0, %v850
      %v852 = vpop.f32.mrb[0].mxu0
      %853 = vmatprep.mubr.f32.mxu0 0.0
      %854 = vmatmul.mubr.f32.gmra.mrb[0].mxu0 %v682
      %v855 = vpop.f32.mrb[0].mxu0
      %v856 = vadd.f32 0.0, %v855
      %v857 = vpop.f32.mrb[0].mxu0
      %858 = vmatprep.mubr.f32.mxu0 0.0
      %859 = vmatmul.mubr.f32.gmra.mrb[0].mxu0 %v684
      %v860 = vpop.f32.mrb[0].mxu0
      %v861 = vadd.f32 0.0, %v860
      %v862 = vpop.f32.mrb[0].mxu0
      %863 = vmatprep.mubr.f32.mxu0 0.0
      %864 = vmatmul.mubr.f32.gmra.mrb[0].mxu0 %v686
      %v865 = vpop.f32.mrb[0].mxu0
      %v866 = vadd.f32 0.0, %v865
      %v867 = vpop.f32.mrb[0].mxu0
      %868 = vmatprep.mubr.f32.mxu0 0.0
      %869 = vmatmul.mubr.f32.gmra.mrb[0].mxu0 %v688
      %v870 = vpop.f32.mrb[0].mxu0
      %v871 = vadd.f32 0.0, %v870
      %v872 = vpop.f32.mrb[0].mxu0
      %873 = vmatprep.mubr.f32.mxu0 0.0
      %874 = vmatmul.mubr.f32.gmra.mrb[0].mxu0 %v690
      %v875 = vpop.f32.mrb[0].mxu0
      %v876 = vadd.f32 0.0, %v875
      %v877 = vpop.f32.mrb[0].mxu0
      %878 = vmatprep.mubr.f32.mxu0 0.0
      %879 = vmatmul.mubr.f32.gmra.mrb[0].mxu0 %v692
      %v880 = vpop.f32.mrb[0].mxu0
      %v881 = vadd.f32 0.0, %v880
      %v882 = vpop.f32.mrb[0].mxu0
      %883 = vmatprep.mubr.f32.mxu0 0.0
      %884 = vmatmul.mubr.f32.gmra.mrb[0].mxu0 %v694
      %v885 = vpop.f32.mrb[0].mxu0
      %v886 = vadd.f32 0.0, %v885
      %v887 = vpop.f32.mrb[0].mxu0
      %888 = vmatprep.mubr.f32.mxu0 0.0
      %889 = vmatmul.mubr.f32.gmra.mrb[0].mxu0 %v696
      %v890 = vpop.f32.mrb[0].mxu0
      %v891 = vadd.f32 0.0, %v890
      %v892 = vpop.f32.mrb[0].mxu0
      %893 = vmatprep.mubr.f32.mxu0 0.0
      %894 = vmatmul.mubr.f32.gmra.mrb[0].mxu0 %v698
      %v895 = vpop.f32.mrb[0].mxu0
      %v896 = vadd.f32 0.0, %v895
      %v897 = vpop.f32.mrb[0].mxu0
      %898 = vmatprep.mubr.f32.mxu0 0.0
      %899 = vmatmul.mubr.f32.gmra.mrb[0].mxu0 %v700
      %v900 = vpop.f32.mrb[0].mxu0
      %v901 = vadd.f32 0.0, %v900
      %v902 = vpop.f32.mrb[0].mxu0
      %903 = vmatprep.mubr.f32.mxu0 0.0
      %904 = vmatmul.mubr.f32.gmra.mrb[0].mxu0 %v702
      %v905 = vpop.f32.mrb[0].mxu0
      %v906 = vadd.f32 0.0, %v905
      %v907 = vpop.f32.mrb[0].mxu0
      %908 = vmatprep.mubr.f32.mxu0 0.0
      %909 = vmatmul.mubr.f32.gmra.mrb[0].mxu0 %v704
      %v910 = vpop.f32.mrb[0].mxu0
      %v911 = vadd.f32 0.0, %v910
      %v912 = vpop.f32.mrb[0].mxu0
      %913 = vmatprep.mubr.f32.mxu0 0.0
      %914 = vmatmul.mubr.f32.gmra.mrb[0].mxu0 %v706
      %v915 = vpop.f32.mrb[0].mxu0
      %v916 = vadd.f32 0.0, %v915
      %v917 = vpop.f32.mrb[0].mxu0
      %918 = vmatprep.mubr.f32.mxu0 0.0
      %919 = vmatmul.mubr.f32.gmra.mrb[0].mxu0 %v708
      %v920 = vpop.f32.mrb[0].mxu0
      %v921 = vadd.f32 0.0, %v920
      %v922 = vpop.f32.mrb[0].mxu0
      %923 = vmatprep.mubr.f32.mxu0 0.0
      %924 = vmatmul.mubr.f32.gmra.mrb[0].mxu0 %v710
      %v925 = vpop.f32.mrb[0].mxu0
      %v926 = vadd.f32 0.0, %v925
      %v927 = vpop.f32.mrb[0].mxu0
      %928 = vmatprep.mubr.f32.mxu0 0.0
      %929 = vmatmul.mubr.f32.gmra.mrb[0].mxu0 %v712
      %v930 = vpop.f32.mrb[0].mxu0
      %v931 = vadd.f32 0.0, %v930
      %v932 = vpop.f32.mrb[0].mxu0
      %933 = vmatprep.mubr.f32.mxu0 0.0
      %934 = vmatmul.mubr.f32.gmra.mrb[0].mxu0 %v714
      %v935 = vpop.f32.mrb[0].mxu0
      %v936 = vadd.f32 0.0, %v935
      %v937 = vpop.f32.mrb[0].mxu0
      %938 = vmatprep.mubr.f32.mxu0 0.0
      %939 = vmatmul.mubr.f32.gmra.mrb[0].mxu0 %v716
      %v940 = vpop.f32.mrb[0].mxu0
      %v941 = vadd.f32 0.0, %v940
      %v942 = vpop.f32.mrb[0].mxu0
      %943 = vmatprep.mubr.f32.mxu0 0.0
      %944 = vmatmul.mubr.f32.gmra.mrb[0].mxu0 %v718
      %v945 = vpop.f32.mrb[0].mxu0
      %v946 = vadd.f32 0.0, %v945
      %v947 = vpop.f32.mrb[0].mxu0
      %948 = vdwg.mxu0
      %v949 = vsel %vm396, %v471, 0
      %v951 = vsel %vm396, %v472, 0
      %v953 = vsel %vm396, %v474, 0
      %v955 = vsel %vm396, %v475, 0
      %v957 = vsel %vm396, %v477, 0
      %v959 = vsel %vm396, %v478, 0
      %v961 = vsel %vm396, %v480, 0
      %v963 = vsel %vm396, %v481, 0
      %v965 = vsel %vm396, %v483, 0
      %v967 = vsel %vm396, %v484, 0
      %v969 = vsel %vm396, %v486, 0
      %v971 = vsel %vm396, %v487, 0
      %v973 = vsel %vm396, %v489, 0
      %v975 = vsel %vm396, %v490, 0
      %v977 = vsel %vm396, %v492, 0
      %v979 = vsel %vm396, %v493, 0
      %v981 = vsel %vm396, %v495, 0
      %v983 = vsel %vm396, %v496, 0
      %v985 = vsel %vm396, %v498, 0
      %v987 = vsel %vm396, %v499, 0
      %v989 = vsel %vm396, %v501, 0
      %v991 = vsel %vm396, %v502, 0
      %v993 = vsel %vm396, %v504, 0
      %v995 = vsel %vm396, %v505, 0
      %v997 = vsel %vm396, %v507, 0
      %v999 = vsel %vm396, %v508, 0
      %v1001 = vsel %vm396, %v510, 0
      %v1003 = vsel %vm396, %v511, 0
      %v1005 = vsel %vm396, %v513, 0
      %v1007 = vsel %vm396, %v514, 0
      %v1009 = vsel %vm396, %v516, 0
      %v1011 = vsel %vm396, %v517, 0
      %v1014 = vsel %vm720, %v525, 0
      %1016 = vmatprep.subr.mxu0 0.0
      %1017 = vmatpush1.msra.mxu0 %v1014
      %1018 = vmatprep.subr.mxu0 0.0
      %1019 = vmatpush1.msra.mxu0 0.0
      %1020 = vmatprep.subr.mxu0 0.0
      %1021 = vmatpush1.msra.mxu0 0.0
      %1022 = vmatprep.subr.mxu0 0.0
      %1023 = vmatpush1.msra.mxu0 0.0
      %1024 = vmatprep.subr.mxu0 0.0
      %1025 = vmatpush1.msra.mxu0 0.0
      %1026 = vmatprep.subr.mxu0 0.0
      %1027 = vmatpush1.msra.mxu0 0.0
      %1028 = vmatprep.subr.mxu0 0.0
      %1029 = vmatpush1.msra.mxu0 0.0
      %1030 = vmatprep.subr.mxu0 0.0
      %1031 = vmatpush1.msra.mxu0 0.0
      %1032 = vmatprep.subr.mxu0 0.0
      %1033 = vmatpush1.msra.mxu0 0.0
      %1034 = vmatprep.subr.mxu0 0.0
      %1035 = vmatpush1.msra.mxu0 0.0
      %1036 = vmatprep.subr.mxu0 0.0
      %1037 = vmatpush1.msra.mxu0 0.0
      %1038 = vmatprep.subr.mxu0 0.0
      %1039 = vmatpush1.msra.mxu0 0.0
      %1040 = vmatprep.subr.mxu0 0.0
      %1041 = vmatpush1.msra.mxu0 0.0
      %1042 = vmatprep.subr.mxu0 0.0
      %1043 = vmatpush1.msra.mxu0 0.0
      %1044 = vmatprep.subr.mxu0 0.0
      %1045 = vmatpush1.msra.mxu0 0.0
      %1046 = vmatprep.subr.mxu0 0.0
      %1047 = vmatpush1.msra.mxu0 0.0
      %1048 = vmatprep.subr.mxu0 0.0
      %1049 = vmatpush1.msra.mxu0 0.0
      %1050 = vmatprep.subr.mxu0 0.0
      %1051 = vmatpush1.msra.mxu0 0.0
      %1052 = vmatprep.subr.mxu0 0.0
      %1053 = vmatpush1.msra.mxu0 0.0
      %1054 = vmatprep.subr.mxu0 0.0
      %1055 = vmatpush1.msra.mxu0 0.0
      %1056 = vmatprep.subr.mxu0 0.0
      %1057 = vmatpush1.msra.mxu0 0.0
      %1058 = vmatprep.subr.mxu0 0.0
      %1059 = vmatpush1.msra.mxu0 0.0
      %1060 = vmatprep.subr.mxu0 0.0
      %1061 = vmatpush1.msra.mxu0 0.0
      %1062 = vmatprep.subr.mxu0 0.0
      %1063 = vmatpush1.msra.mxu0 0.0
      %1064 = vmatprep.subr.mxu0 0.0
      %1065 = vmatpush1.msra.mxu0 0.0
      %1066 = vmatprep.subr.mxu0 0.0
      %1067 = vmatpush1.msra.mxu0 0.0
      %1068 = vmatprep.subr.mxu0 0.0
      %1069 = vmatpush1.msra.mxu0 0.0
      %1070 = vmatprep.subr.mxu0 0.0
      %1071 = vmatpush1.msra.mxu0 0.0
      %1072 = vmatprep.subr.mxu0 0.0
      %1073 = vmatpush1.msra.mxu0 0.0
      %1074 = vmatprep.subr.mxu0 0.0
      %1075 = vmatpush1.msra.mxu0 0.0
      %1076 = vmatprep.subr.mxu0 0.0
      %1077 = vmatpush1.msra.mxu0 0.0
      %1078 = vmatprep.subr.mxu0 0.0
      %1079 = vmatpush1.msra.mxu0 0.0
      %1080 = vmatprep.mubr.f32.mxu0 0.0
      %1081 = vmatmul.mubr.f32.gmra.mrb[0].mxu0 %v949
      %v1082 = vpop.f32.mrb[0].mxu0
      %v1083 = vadd.f32 %v791, %v1082
      %v1084 = vpop.f32.mrb[0].mxu0
      %1085 = vmatprep.mubr.f32.mxu0 0.0
      %1086 = vmatmul.mubr.f32.gmra.mrb[0].mxu0 %v951
      %v1087 = vpop.f32.mrb[0].mxu0
      %v1088 = vadd.f32 %v796, %v1087
      %v1089 = vpop.f32.mrb[0].mxu0
      %1090 = vmatprep.mubr.f32.mxu0 0.0
      %1091 = vmatmul.mubr.f32.gmra.mrb[0].mxu0 %v953
      %v1092 = vpop.f32.mrb[0].mxu0
      %v1093 = vadd.f32 %v801, %v1092
      %v1094 = vpop.f32.mrb[0].mxu0
      %1095 = vmatprep.mubr.f32.mxu0 0.0
      %1096 = vmatmul.mubr.f32.gmra.mrb[0].mxu0 %v955
      %v1097 = vpop.f32.mrb[0].mxu0
      %v1098 = vadd.f32 %v806, %v1097
      %v1099 = vpop.f32.mrb[0].mxu0
      %1100 = vmatprep.mubr.f32.mxu0 0.0
      %1101 = vmatmul.mubr.f32.gmra.mrb[0].mxu0 %v957
      %v1102 = vpop.f32.mrb[0].mxu0
      %v1103 = vadd.f32 %v811, %v1102
      %v1104 = vpop.f32.mrb[0].mxu0
      %1105 = vmatprep.mubr.f32.mxu0 0.0
      %1106 = vmatmul.mubr.f32.gmra.mrb[0].mxu0 %v959
      %v1107 = vpop.f32.mrb[0].mxu0
      %v1108 = vadd.f32 %v816, %v1107
      %v1109 = vpop.f32.mrb[0].mxu0
      %1110 = vmatprep.mubr.f32.mxu0 0.0
      %1111 = vmatmul.mubr.f32.gmra.mrb[0].mxu0 %v961
      %v1112 = vpop.f32.mrb[0].mxu0
      %v1113 = vadd.f32 %v821, %v1112
      %v1114 = vpop.f32.mrb[0].mxu0
      %1115 = vmatprep.mubr.f32.mxu0 0.0
      %1116 = vmatmul.mubr.f32.gmra.mrb[0].mxu0 %v963
      %v1117 = vpop.f32.mrb[0].mxu0
      %v1118 = vadd.f32 %v826, %v1117
      %v1119 = vpop.f32.mrb[0].mxu0
      %1120 = vmatprep.mubr.f32.mxu0 0.0
      %1121 = vmatmul.mubr.f32.gmra.mrb[0].mxu0 %v965
      %v1122 = vpop.f32.mrb[0].mxu0
      %v1123 = vadd.f32 %v831, %v1122
      %v1124 = vpop.f32.mrb[0].mxu0
      %1125 = vmatprep.mubr.f32.mxu0 0.0
      %1126 = vmatmul.mubr.f32.gmra.mrb[0].mxu0 %v967
      %v1127 = vpop.f32.mrb[0].mxu0
      %v1128 = vadd.f32 %v836, %v1127
      %v1129 = vpop.f32.mrb[0].mxu0
      %1130 = vmatprep.mubr.f32.mxu0 0.0
      %1131 = vmatmul.mubr.f32.gmra.mrb[0].mxu0 %v969
      %v1132 = vpop.f32.mrb[0].mxu0
      %v1133 = vadd.f32 %v841, %v1132
      %v1134 = vpop.f32.mrb[0].mxu0
      %1135 = vmatprep.mubr.f32.mxu0 0.0
      %1136 = vmatmul.mubr.f32.gmra.mrb[0].mxu0 %v971
      %v1137 = vpop.f32.mrb[0].mxu0
      %v1138 = vadd.f32 %v846, %v1137
      %v1139 = vpop.f32.mrb[0].mxu0
      %1140 = vmatprep.mubr.f32.mxu0 0.0
      %1141 = vmatmul.mubr.f32.gmra.mrb[0].mxu0 %v973
      %v1142 = vpop.f32.mrb[0].mxu0
      %v1143 = vadd.f32 %v851, %v1142
      %v1144 = vpop.f32.mrb[0].mxu0
      %1145 = vmatprep.mubr.f32.mxu0 0.0
      %1146 = vmatmul.mubr.f32.gmra.mrb[0].mxu0 %v975
      %v1147 = vpop.f32.mrb[0].mxu0
      %v1148 = vadd.f32 %v856, %v1147
      %v1149 = vpop.f32.mrb[0].mxu0
      %1150 = vmatprep.mubr.f32.mxu0 0.0
      %1151 = vmatmul.mubr.f32.gmra.mrb[0].mxu0 %v977
      %v1152 = vpop.f32.mrb[0].mxu0
      %v1153 = vadd.f32 %v861, %v1152
      %v1154 = vpop.f32.mrb[0].mxu0
      %1155 = vmatprep.mubr.f32.mxu0 0.0
      %1156 = vmatmul.mubr.f32.gmra.mrb[0].mxu0 %v979
      %v1157 = vpop.f32.mrb[0].mxu0
      %v1158 = vadd.f32 %v866, %v1157
      %v1159 = vpop.f32.mrb[0].mxu0
      %1160 = vmatprep.mubr.f32.mxu0 0.0
      %1161 = vmatmul.mubr.f32.gmra.mrb[0].mxu0 %v981
      %v1162 = vpop.f32.mrb[0].mxu0
      %v1163 = vadd.f32 %v871, %v1162
      %v1164 = vpop.f32.mrb[0].mxu0
      %1165 = vmatprep.mubr.f32.mxu0 0.0
      %1166 = vmatmul.mubr.f32.gmra.mrb[0].mxu0 %v983
      %v1167 = vpop.f32.mrb[0].mxu0
      %v1168 = vadd.f32 %v876, %v1167
      %v1169 = vpop.f32.mrb[0].mxu0
      %1170 = vmatprep.mubr.f32.mxu0 0.0
      %1171 = vmatmul.mubr.f32.gmra.mrb[0].mxu0 %v985
      %v1172 = vpop.f32.mrb[0].mxu0
      %v1173 = vadd.f32 %v881, %v1172
      %v1174 = vpop.f32.mrb[0].mxu0
      %1175 = vmatprep.mubr.f32.mxu0 0.0
      %1176 = vmatmul.mubr.f32.gmra.mrb[0].mxu0 %v987
      %v1177 = vpop.f32.mrb[0].mxu0
      %v1178 = vadd.f32 %v886, %v1177
      %v1179 = vpop.f32.mrb[0].mxu0
      %1180 = vmatprep.mubr.f32.mxu0 0.0
      %1181 = vmatmul.mubr.f32.gmra.mrb[0].mxu0 %v989
      %v1182 = vpop.f32.mrb[0].mxu0
      %v1183 = vadd.f32 %v891, %v1182
      %v1184 = vpop.f32.mrb[0].mxu0
      %1185 = vmatprep.mubr.f32.mxu0 0.0
      %1186 = vmatmul.mubr.f32.gmra.mrb[0].mxu0 %v991
      %v1187 = vpop.f32.mrb[0].mxu0
      %v1188 = vadd.f32 %v896, %v1187
      %v1189 = vpop.f32.mrb[0].mxu0
      %1190 = vmatprep.mubr.f32.mxu0 0.0
      %1191 = vmatmul.mubr.f32.gmra.mrb[0].mxu0 %v993
      %v1192 = vpop.f32.mrb[0].mxu0
      %v1193 = vadd.f32 %v901, %v1192
      %v1194 = vpop.f32.mrb[0].mxu0
      %1195 = vmatprep.mubr.f32.mxu0 0.0
      %1196 = vmatmul.mubr.f32.gmra.mrb[0].mxu0 %v995
      %v1197 = vpop.f32.mrb[0].mxu0
      %v1198 = vadd.f32 %v906, %v1197
      %v1199 = vpop.f32.mrb[0].mxu0
      %1200 = vmatprep.mubr.f32.mxu0 0.0
      %1201 = vmatmul.mubr.f32.gmra.mrb[0].mxu0 %v997
      %v1202 = vpop.f32.mrb[0].mxu0
      %v1203 = vadd.f32 %v911, %v1202
      %v1204 = vpop.f32.mrb[0].mxu0
      %1205 = vmatprep.mubr.f32.mxu0 0.0
      %1206 = vmatmul.mubr.f32.gmra.mrb[0].mxu0 %v999
      %v1207 = vpop.f32.mrb[0].mxu0
      %v1208 = vadd.f32 %v916, %v1207
      %v1209 = vpop.f32.mrb[0].mxu0
      %1210 = vmatprep.mubr.f32.mxu0 0.0
      %1211 = vmatmul.mubr.f32.gmra.mrb[0].mxu0 %v1001
      %v1212 = vpop.f32.mrb[0].mxu0
      %v1213 = vadd.f32 %v921, %v1212
      %v1214 = vpop.f32.mrb[0].mxu0
      %1215 = vmatprep.mubr.f32.mxu0 0.0
      %1216 = vmatmul.mubr.f32.gmra.mrb[0].mxu0 %v1003
      %v1217 = vpop.f32.mrb[0].mxu0
      %v1218 = vadd.f32 %v926, %v1217
      %v1219 = vpop.f32.mrb[0].mxu0
      %1220 = vmatprep.mubr.f32.mxu0 0.0
      %1221 = vmatmul.mubr.f32.gmra.mrb[0].mxu0 %v1005
      %v1222 = vpop.f32.mrb[0].mxu0
      %v1223 = vadd.f32 %v931, %v1222
      %v1224 = vpop.f32.mrb[0].mxu0
      %1225 = vmatprep.mubr.f32.mxu0 0.0
      %1226 = vmatmul.mubr.f32.gmra.mrb[0].mxu0 %v1007
      %v1227 = vpop.f32.mrb[0].mxu0
      %v1228 = vadd.f32 %v936, %v1227
      %v1229 = vpop.f32.mrb[0].mxu0
      %1230 = vmatprep.mubr.f32.mxu0 0.0
      %1231 = vmatmul.mubr.f32.gmra.mrb[0].mxu0 %v1009
      %v1232 = vpop.f32.mrb[0].mxu0
      %v1233 = vadd.f32 %v941, %v1232
      %v1234 = vpop.f32.mrb[0].mxu0
      %1235 = vmatprep.mubr.f32.mxu0 0.0
      %1236 = vmatmul.mubr.f32.gmra.mrb[0].mxu0 %v1011
      %v1237 = vpop.f32.mrb[0].mxu0
      %v1238 = vadd.f32 %v946, %v1237
      %v1239 = vpop.f32.mrb[0].mxu0
      %1240 = vdwg.mxu0
      %vm1241 = vcmask 1045504
      %v1242 = vrot.slane %v471, 2
      %v1243 = vrot.slane %v472, 2
      %v1244 = vsel %vm1241, %v1242, %v1243
      %v1245 = vrot.slane %v473, 2
      %v1246 = vsel %vm1241, %v1243, %v1245
      %v1247 = vrot.slane %v474, 2
      %v1248 = vrot.slane %v475, 2
      %v1249 = vsel %vm1241, %v1247, %v1248
      %v1250 = vrot.slane %v476, 2
      %v1251 = vsel %vm1241, %v1248, %v1250
      %v1252 = vrot.slane %v477, 2
      %v1253 = vrot.slane %v478, 2
      %v1254 = vsel %vm1241, %v1252, %v1253
      %v1255 = vrot.slane %v479, 2
      %v1256 = vsel %vm1241, %v1253, %v1255
      %v1257 = vrot.slane %v480, 2
      %v1258 = vrot.slane %v481, 2
      %v1259 = vsel %vm1241, %v1257, %v1258
      %v1260 = vrot.slane %v482, 2
      %v1261 = vsel %vm1241, %v1258, %v1260
      %v1262 = vrot.slane %v483, 2
      %v1263 = vrot.slane %v484, 2
      %v1264 = vsel %vm1241, %v1262, %v1263
      %v1265 = vrot.slane %v485, 2
      %v1266 = vsel %vm1241, %v1263, %v1265
      %v1267 = vrot.slane %v486, 2
      %v1268 = vrot.slane %v487, 2
      %v1269 = vsel %vm1241, %v1267, %v1268
      %v1270 = vrot.slane %v488, 2
      %v1271 = vsel %vm1241, %v1268, %v1270
      %v1272 = vrot.slane %v489, 2
      %v1273 = vrot.slane %v490, 2
      %v1274 = vsel %vm1241, %v1272, %v1273
      %v1275 = vrot.slane %v491, 2
      %v1276 = vsel %vm1241, %v1273, %v1275
      %v1277 = vrot.slane %v492, 2
      %v1278 = vrot.slane %v493, 2
      %v1279 = vsel %vm1241, %v1277, %v1278
      %v1280 = vrot.slane %v494, 2
      %v1281 = vsel %vm1241, %v1278, %v1280
      %v1282 = vrot.slane %v495, 2
      %v1283 = vrot.slane %v496, 2
      %v1284 = vsel %vm1241, %v1282, %v1283
      %v1285 = vrot.slane %v497, 2
      %v1286 = vsel %vm1241, %v1283, %v1285
      %v1287 = vrot.slane %v498, 2
      %v1288 = vrot.slane %v499, 2
      %v1289 = vsel %vm1241, %v1287, %v1288
      %v1290 = vrot.slane %v500, 2
      %v1291 = vsel %vm1241, %v1288, %v1290
      %v1292 = vrot.slane %v501, 2
      %v1293 = vrot.slane %v502, 2
      %v1294 = vsel %vm1241, %v1292, %v1293
      %v1295 = vrot.slane %v503, 2
      %v1296 = vsel %vm1241, %v1293, %v1295
      %v1297 = vrot.slane %v504, 2
      %v1298 = vrot.slane %v505, 2
      %v1299 = vsel %vm1241, %v1297, %v1298
      %v1300 = vrot.slane %v506, 2
      %v1301 = vsel %vm1241, %v1298, %v1300
      %v1302 = vrot.slane %v507, 2
      %v1303 = vrot.slane %v508, 2
      %v1304 = vsel %vm1241, %v1302, %v1303
      %v1305 = vrot.slane %v509, 2
      %v1306 = vsel %vm1241, %v1303, %v1305
      %v1307 = vrot.slane %v510, 2
      %v1308 = vrot.slane %v511, 2
      %v1309 = vsel %vm1241, %v1307, %v1308
      %v1310 = vrot.slane %v512, 2
      %v1311 = vsel %vm1241, %v1308, %v1310
      %v1312 = vrot.slane %v513, 2
      %v1313 = vrot.slane %v514, 2
      %v1314 = vsel %vm1241, %v1312, %v1313
      %v1315 = vrot.slane %v515, 2
      %v1316 = vsel %vm1241, %v1313, %v1315
      %v1317 = vrot.slane %v516, 2
      %v1318 = vrot.slane %v517, 2
      %v1319 = vsel %vm1241, %v1317, %v1318
      %v1320 = vrot.slane %v518, 2
      %v1321 = vsel %vm1241, %v1318, %v1320
      %v1322 = vld [vmem:[%s3 + $0x8] sm:$0xf]
      %v1323 = vsel %vm396, %v1244, 0
      %v1325 = vsel %vm396, %v1246, 0
      %v1327 = vsel %vm396, %v1249, 0
      %v1329 = vsel %vm396, %v1251, 0
      %v1331 = vsel %vm396, %v1254, 0
      %v1333 = vsel %vm396, %v1256, 0
      %v1335 = vsel %vm396, %v1259, 0
      %v1337 = vsel %vm396, %v1261, 0
      %v1339 = vsel %vm396, %v1264, 0
      %v1341 = vsel %vm396, %v1266, 0
      %v1343 = vsel %vm396, %v1269, 0
      %v1345 = vsel %vm396, %v1271, 0
      %v1347 = vsel %vm396, %v1274, 0
      %v1349 = vsel %vm396, %v1276, 0
      %v1351 = vsel %vm396, %v1279, 0
      %v1353 = vsel %vm396, %v1281, 0
      %v1355 = vsel %vm396, %v1284, 0
      %v1357 = vsel %vm396, %v1286, 0
      %v1359 = vsel %vm396, %v1289, 0
      %v1361 = vsel %vm396, %v1291, 0
      %v1363 = vsel %vm396, %v1294, 0
      %v1365 = vsel %vm396, %v1296, 0
      %v1367 = vsel %vm396, %v1299, 0
      %v1369 = vsel %vm396, %v1301, 0
      %v1371 = vsel %vm396, %v1304, 0
      %v1373 = vsel %vm396, %v1306, 0
      %v1375 = vsel %vm396, %v1309, 0
      %v1377 = vsel %vm396, %v1311, 0
      %v1379 = vsel %vm396, %v1314, 0
      %v1381 = vsel %vm396, %v1316, 0
      %v1383 = vsel %vm396, %v1319, 0
      %v1385 = vsel %vm396, %v1321, 0
      %v1388 = vsel %vm720, %v1322, 0
      %1390 = vmatprep.subr.mxu0 0.0
      %1391 = vmatpush1.msra.mxu0 %v1388
      %1392 = vmatprep.subr.mxu0 0.0
      %1393 = vmatpush1.msra.mxu0 0.0
      %1394 = vmatprep.subr.mxu0 0.0
      %1395 = vmatpush1.msra.mxu0 0.0
      %1396 = vmatprep.subr.mxu0 0.0
      %1397 = vmatpush1.msra.mxu0 0.0
      %1398 = vmatprep.subr.mxu0 0.0
      %1399 = vmatpush1.msra.mxu0 0.0
      %1400 = vmatprep.subr.mxu0 0.0
      %1401 = vmatpush1.msra.mxu0 0.0
      %1402 = vmatprep.subr.mxu0 0.0
      %1403 = vmatpush1.msra.mxu0 0.0
      %1404 = vmatprep.subr.mxu0 0.0
      %1405 = vmatpush1.msra.mxu0 0.0
      %1406 = vmatprep.subr.mxu0 0.0
      %1407 = vmatpush1.msra.mxu0 0.0
      %1408 = vmatprep.subr.mxu0 0.0
      %1409 = vmatpush1.msra.mxu0 0.0
      %1410 = vmatprep.subr.mxu0 0.0
      %1411 = vmatpush1.msra.mxu0 0.0
      %1412 = vmatprep.subr.mxu0 0.0
      %1413 = vmatpush1.msra.mxu0 0.0
      %1414 = vmatprep.subr.mxu0 0.0
      %1415 = vmatpush1.msra.mxu0 0.0
      %1416 = vmatprep.subr.mxu0 0.0
      %1417 = vmatpush1.msra.mxu0 0.0
      %1418 = vmatprep.subr.mxu0 0.0
      %1419 = vmatpush1.msra.mxu0 0.0
      %1420 = vmatprep.subr.mxu0 0.0
      %1421 = vmatpush1.msra.mxu0 0.0
      %1422 = vmatprep.subr.mxu0 0.0
      %1423 = vmatpush1.msra.mxu0 0.0
      %1424 = vmatprep.subr.mxu0 0.0
      %1425 = vmatpush1.msra.mxu0 0.0
      %1426 = vmatprep.subr.mxu0 0.0
      %1427 = vmatpush1.msra.mxu0 0.0
      %1428 = vmatprep.subr.mxu0 0.0
      %1429 = vmatpush1.msra.mxu0 0.0
      %1430 = vmatprep.subr.mxu0 0.0
      %1431 = vmatpush1.msra.mxu0 0.0
      %1432 = vmatprep.subr.mxu0 0.0
      %1433 = vmatpush1.msra.mxu0 0.0
      %1434 = vmatprep.subr.mxu0 0.0
      %1435 = vmatpush1.msra.mxu0 0.0
      %1436 = vmatprep.subr.mxu0 0.0
      %1437 = vmatpush1.msra.mxu0 0.0
      %1438 = vmatprep.subr.mxu0 0.0
      %1439 = vmatpush1.msra.mxu0 0.0
      %1440 = vmatprep.subr.mxu0 0.0
      %1441 = vmatpush1.msra.mxu0 0.0
      %1442 = vmatprep.subr.mxu0 0.0
      %1443 = vmatpush1.msra.mxu0 0.0
      %1444 = vmatprep.subr.mxu0 0.0
      %1445 = vmatpush1.msra.mxu0 0.0
      %1446 = vmatprep.subr.mxu0 0.0
      %1447 = vmatpush1.msra.mxu0 0.0
      %1448 = vmatprep.subr.mxu0 0.0
      %1449 = vmatpush1.msra.mxu0 0.0
      %1450 = vmatprep.subr.mxu0 0.0
      %1451 = vmatpush1.msra.mxu0 0.0
      %1452 = vmatprep.subr.mxu0 0.0
      %1453 = vmatpush1.msra.mxu0 0.0
      %1454 = vmatprep.mubr.f32.mxu0 0.0
      %1455 = vmatmul.mubr.f32.gmra.mrb[0].mxu0 %v1323
      %v1456 = vpop.f32.mrb[0].mxu0
      %v1457 = vadd.f32 0.0, %v1456
      %v1458 = vpop.f32.mrb[0].mxu0
      %1459 = vmatprep.mubr.f32.mxu0 0.0
      %1460 = vmatmul.mubr.f32.gmra.mrb[0].mxu0 %v1325
      %v1461 = vpop.f32.mrb[0].mxu0
      %v1462 = vadd.f32 0.0, %v1461
      %v1463 = vpop.f32.mrb[0].mxu0
      %1464 = vmatprep.mubr.f32.mxu0 0.0
      %1465 = vmatmul.mubr.f32.gmra.mrb[0].mxu0 %v1327
      %v1466 = vpop.f32.mrb[0].mxu0
      %v1467 = vadd.f32 0.0, %v1466
      %v1468 = vpop.f32.mrb[0].mxu0
      %1469 = vmatprep.mubr.f32.mxu0 0.0
      %1470 = vmatmul.mubr.f32.gmra.mrb[0].mxu0 %v1329
      %v1471 = vpop.f32.mrb[0].mxu0
      %v1472 = vadd.f32 0.0, %v1471
      %v1473 = vpop.f32.mrb[0].mxu0
      %1474 = vmatprep.mubr.f32.mxu0 0.0
      %1475 = vmatmul.mubr.f32.gmra.mrb[0].mxu0 %v1331
      %v1476 = vpop.f32.mrb[0].mxu0
      %v1477 = vadd.f32 0.0, %v1476
      %v1478 = vpop.f32.mrb[0].mxu0
      %1479 = vmatprep.mubr.f32.mxu0 0.0
      %1480 = vmatmul.mubr.f32.gmra.mrb[0].mxu0 %v1333
      %v1481 = vpop.f32.mrb[0].mxu0
      %v1482 = vadd.f32 0.0, %v1481
      %v1483 = vpop.f32.mrb[0].mxu0
      %1484 = vmatprep.mubr.f32.mxu0 0.0
      %1485 = vmatmul.mubr.f32.gmra.mrb[0].mxu0 %v1335
      %v1486 = vpop.f32.mrb[0].mxu0
      %v1487 = vadd.f32 0.0, %v1486
      %v1488 = vpop.f32.mrb[0].mxu0
      %1489 = vmatprep.mubr.f32.mxu0 0.0
      %1490 = vmatmul.mubr.f32.gmra.mrb[0].mxu0 %v1337
      %v1491 = vpop.f32.mrb[0].mxu0
      %v1492 = vadd.f32 0.0, %v1491
      %v1493 = vpop.f32.mrb[0].mxu0
      %1494 = vmatprep.mubr.f32.mxu0 0.0
      %1495 = vmatmul.mubr.f32.gmra.mrb[0].mxu0 %v1339
      %v1496 = vpop.f32.mrb[0].mxu0
      %v1497 = vadd.f32 0.0, %v1496
      %v1498 = vpop.f32.mrb[0].mxu0
      %1499 = vmatprep.mubr.f32.mxu0 0.0
      %1500 = vmatmul.mubr.f32.gmra.mrb[0].mxu0 %v1341
      %v1501 = vpop.f32.mrb[0].mxu0
      %v1502 = vadd.f32 0.0, %v1501
      %v1503 = vpop.f32.mrb[0].mxu0
      %1504 = vmatprep.mubr.f32.mxu0 0.0
      %1505 = vmatmul.mubr.f32.gmra.mrb[0].mxu0 %v1343
      %v1506 = vpop.f32.mrb[0].mxu0
      %v1507 = vadd.f32 0.0, %v1506
      %v1508 = vpop.f32.mrb[0].mxu0
      %1509 = vmatprep.mubr.f32.mxu0 0.0
      %1510 = vmatmul.mubr.f32.gmra.mrb[0].mxu0 %v1345
      %v1511 = vpop.f32.mrb[0].mxu0
      %v1512 = vadd.f32 0.0, %v1511
      %v1513 = vpop.f32.mrb[0].mxu0
      %1514 = vmatprep.mubr.f32.mxu0 0.0
      %1515 = vmatmul.mubr.f32.gmra.mrb[0].mxu0 %v1347
      %v1516 = vpop.f32.mrb[0].mxu0
      %v1517 = vadd.f32 0.0, %v1516
      %v1518 = vpop.f32.mrb[0].mxu0
      %1519 = vmatprep.mubr.f32.mxu0 0.0
      %1520 = vmatmul.mubr.f32.gmra.mrb[0].mxu0 %v1349
      %v1521 = vpop.f32.mrb[0].mxu0
      %v1522 = vadd.f32 0.0, %v1521
      %v1523 = vpop.f32.mrb[0].mxu0
      %1524 = vmatprep.mubr.f32.mxu0 0.0
      %1525 = vmatmul.mubr.f32.gmra.mrb[0].mxu0 %v1351
      %v1526 = vpop.f32.mrb[0].mxu0
      %v1527 = vadd.f32 0.0, %v1526
      %v1528 = vpop.f32.mrb[0].mxu0
      %1529 = vmatprep.mubr.f32.mxu0 0.0
      %1530 = vmatmul.mubr.f32.gmra.mrb[0].mxu0 %v1353
      %v1531 = vpop.f32.mrb[0].mxu0
      %v1532 = vadd.f32 0.0, %v1531
      %v1533 = vpop.f32.mrb[0].mxu0
      %1534 = vmatprep.mubr.f32.mxu0 0.0
      %1535 = vmatmul.mubr.f32.gmra.mrb[0].mxu0 %v1355
      %v1536 = vpop.f32.mrb[0].mxu0
      %v1537 = vadd.f32 0.0, %v1536
      %v1538 = vpop.f32.mrb[0].mxu0
      %1539 = vmatprep.mubr.f32.mxu0 0.0
      %1540 = vmatmul.mubr.f32.gmra.mrb[0].mxu0 %v1357
      %v1541 = vpop.f32.mrb[0].mxu0
      %v1542 = vadd.f32 0.0, %v1541
      %v1543 = vpop.f32.mrb[0].mxu0
      %1544 = vmatprep.mubr.f32.mxu0 0.0
      %1545 = vmatmul.mubr.f32.gmra.mrb[0].mxu0 %v1359
      %v1546 = vpop.f32.mrb[0].mxu0
      %v1547 = vadd.f32 0.0, %v1546
      %v1548 = vpop.f32.mrb[0].mxu0
      %1549 = vmatprep.mubr.f32.mxu0 0.0
      %1550 = vmatmul.mubr.f32.gmra.mrb[0].mxu0 %v1361
      %v1551 = vpop.f32.mrb[0].mxu0
      %v1552 = vadd.f32 0.0, %v1551
      %v1553 = vpop.f32.mrb[0].mxu0
      %1554 = vmatprep.mubr.f32.mxu0 0.0
      %1555 = vmatmul.mubr.f32.gmra.mrb[0].mxu0 %v1363
      %v1556 = vpop.f32.mrb[0].mxu0
      %v1557 = vadd.f32 0.0, %v1556
      %v1558 = vpop.f32.mrb[0].mxu0
      %1559 = vmatprep.mubr.f32.mxu0 0.0
      %1560 = vmatmul.mubr.f32.gmra.mrb[0].mxu0 %v1365
      %v1561 = vpop.f32.mrb[0].mxu0
      %v1562 = vadd.f32 0.0, %v1561
      %v1563 = vpop.f32.mrb[0].mxu0
      %1564 = vmatprep.mubr.f32.mxu0 0.0
      %1565 = vmatmul.mubr.f32.gmra.mrb[0].mxu0 %v1367
      %v1566 = vpop.f32.mrb[0].mxu0
      %v1567 = vadd.f32 0.0, %v1566
      %v1568 = vpop.f32.mrb[0].mxu0
      %1569 = vmatprep.mubr.f32.mxu0 0.0
      %1570 = vmatmul.mubr.f32.gmra.mrb[0].mxu0 %v1369
      %v1571 = vpop.f32.mrb[0].mxu0
      %v1572 = vadd.f32 0.0, %v1571
      %v1573 = vpop.f32.mrb[0].mxu0
      %1574 = vmatprep.mubr.f32.mxu0 0.0
      %1575 = vmatmul.mubr.f32.gmra.mrb[0].mxu0 %v1371
      %v1576 = vpop.f32.mrb[0].mxu0
      %v1577 = vadd.f32 0.0, %v1576
      %v1578 = vpop.f32.mrb[0].mxu0
      %1579 = vmatprep.mubr.f32.mxu0 0.0
      %1580 = vmatmul.mubr.f32.gmra.mrb[0].mxu0 %v1373
      %v1581 = vpop.f32.mrb[0].mxu0
      %v1582 = vadd.f32 0.0, %v1581
      %v1583 = vpop.f32.mrb[0].mxu0
      %1584 = vmatprep.mubr.f32.mxu0 0.0
      %1585 = vmatmul.mubr.f32.gmra.mrb[0].mxu0 %v1375
      %v1586 = vpop.f32.mrb[0].mxu0
      %v1587 = vadd.f32 0.0, %v1586
      %v1588 = vpop.f32.mrb[0].mxu0
      %1589 = vmatprep.mubr.f32.mxu0 0.0
      %1590 = vmatmul.mubr.f32.gmra.mrb[0].mxu0 %v1377
      %v1591 = vpop.f32.mrb[0].mxu0
      %v1592 = vadd.f32 0.0, %v1591
      %v1593 = vpop.f32.mrb[0].mxu0
      %1594 = vmatprep.mubr.f32.mxu0 0.0
      %1595 = vmatmul.mubr.f32.gmra.mrb[0].mxu0 %v1379
      %v1596 = vpop.f32.mrb[0].mxu0
      %v1597 = vadd.f32 0.0, %v1596
      %v1598 = vpop.f32.mrb[0].mxu0
      %1599 = vmatprep.mubr.f32.mxu0 0.0
      %1600 = vmatmul.mubr.f32.gmra.mrb[0].mxu0 %v1381
      %v1601 = vpop.f32.mrb[0].mxu0
      %v1602 = vadd.f32 0.0, %v1601
      %v1603 = vpop.f32.mrb[0].mxu0
      %1604 = vmatprep.mubr.f32.mxu0 0.0
      %1605 = vmatmul.mubr.f32.gmra.mrb[0].mxu0 %v1383
      %v1606 = vpop.f32.mrb[0].mxu0
      %v1607 = vadd.f32 0.0, %v1606
      %v1608 = vpop.f32.mrb[0].mxu0
      %1609 = vmatprep.mubr.f32.mxu0 0.0
      %1610 = vmatmul.mubr.f32.gmra.mrb[0].mxu0 %v1385
      %v1611 = vpop.f32.mrb[0].mxu0
      %v1612 = vadd.f32 0.0, %v1611
      %v1613 = vpop.f32.mrb[0].mxu0
      %1614 = vdwg.mxu0
      %v1615 = vadd.f32 %v1083, %v1457
      %v1616 = vadd.f32 %v1088, %v1462
      %v1617 = vadd.f32 %v1093, %v1467
      %v1618 = vadd.f32 %v1098, %v1472
      %v1619 = vadd.f32 %v1103, %v1477
      %v1620 = vadd.f32 %v1108, %v1482
      %v1621 = vadd.f32 %v1113, %v1487
      %v1622 = vadd.f32 %v1118, %v1492
      %v1623 = vadd.f32 %v1123, %v1497
      %v1624 = vadd.f32 %v1128, %v1502
      %v1625 = vadd.f32 %v1133, %v1507
      %v1626 = vadd.f32 %v1138, %v1512
      %v1627 = vadd.f32 %v1143, %v1517
      %v1628 = vadd.f32 %v1148, %v1522
      %v1629 = vadd.f32 %v1153, %v1527
      %v1630 = vadd.f32 %v1158, %v1532
      %v1631 = vadd.f32 %v1163, %v1537
      %v1632 = vadd.f32 %v1168, %v1542
      %v1633 = vadd.f32 %v1173, %v1547
      %v1634 = vadd.f32 %v1178, %v1552
      %v1635 = vadd.f32 %v1183, %v1557
      %v1636 = vadd.f32 %v1188, %v1562
      %v1637 = vadd.f32 %v1193, %v1567
      %v1638 = vadd.f32 %v1198, %v1572
      %v1639 = vadd.f32 %v1203, %v1577
      %v1640 = vadd.f32 %v1208, %v1582
      %v1641 = vadd.f32 %v1213, %v1587
      %v1642 = vadd.f32 %v1218, %v1592
      %v1643 = vadd.f32 %v1223, %v1597
      %v1644 = vadd.f32 %v1228, %v1602
      %v1645 = vadd.f32 %v1233, %v1607
      %v1646 = vadd.f32 %v1238, %v1612
      %v1647 = vld [vmem:[%s3 + $0xc] sm:$0xf]
      %v1649 = vsel %vm396, %v519, 0
      %v1652 = vsel %vm396, %v520, 0
      %v1655 = vsel %vm720, %v1647, 0
      %1657 = vmatprep.subr.mxu0 0.0
      %1658 = vmatpush1.msra.mxu0 %v1655
      %1659 = vmatprep.subr.mxu0 0.0
      %1660 = vmatpush1.msra.mxu0 0.0
      %1661 = vmatprep.subr.mxu0 0.0
      %1662 = vmatpush1.msra.mxu0 0.0
      %1663 = vmatprep.subr.mxu0 0.0
      %1664 = vmatpush1.msra.mxu0 0.0
      %1665 = vmatprep.subr.mxu0 0.0
      %1666 = vmatpush1.msra.mxu0 0.0
      %1667 = vmatprep.subr.mxu0 0.0
      %1668 = vmatpush1.msra.mxu0 0.0
      %1669 = vmatprep.subr.mxu0 0.0
      %1670 = vmatpush1.msra.mxu0 0.0
      %1671 = vmatprep.subr.mxu0 0.0
      %1672 = vmatpush1.msra.mxu0 0.0
      %1673 = vmatprep.subr.mxu0 0.0
      %1674 = vmatpush1.msra.mxu0 0.0
      %1675 = vmatprep.subr.mxu0 0.0
      %1676 = vmatpush1.msra.mxu0 0.0
      %1677 = vmatprep.subr.mxu0 0.0
      %1678 = vmatpush1.msra.mxu0 0.0
      %1679 = vmatprep.subr.mxu0 0.0
      %1680 = vmatpush1.msra.mxu0 0.0
      %1681 = vmatprep.subr.mxu0 0.0
      %1682 = vmatpush1.msra.mxu0 0.0
      %1683 = vmatprep.subr.mxu0 0.0
      %1684 = vmatpush1.msra.mxu0 0.0
      %1685 = vmatprep.subr.mxu0 0.0
      %1686 = vmatpush1.msra.mxu0 0.0
      %1687 = vmatprep.subr.mxu0 0.0
      %1688 = vmatpush1.msra.mxu0 0.0
      %1689 = vmatprep.subr.mxu0 0.0
      %1690 = vmatpush1.msra.mxu0 0.0
      %1691 = vmatprep.subr.mxu0 0.0
      %1692 = vmatpush1.msra.mxu0 0.0
      %1693 = vmatprep.subr.mxu0 0.0
      %1694 = vmatpush1.msra.mxu0 0.0
      %1695 = vmatprep.subr.mxu0 0.0
      %1696 = vmatpush1.msra.mxu0 0.0
      %1697 = vmatprep.subr.mxu0 0.0
      %1698 = vmatpush1.msra.mxu0 0.0
      %1699 = vmatprep.subr.mxu0 0.0
      %1700 = vmatpush1.msra.mxu0 0.0
      %1701 = vmatprep.subr.mxu0 0.0
      %1702 = vmatpush1.msra.mxu0 0.0
      %1703 = vmatprep.subr.mxu0 0.0
      %1704 = vmatpush1.msra.mxu0 0.0
      %1705 = vmatprep.subr.mxu0 0.0
      %1706 = vmatpush1.msra.mxu0 0.0
      %1707 = vmatprep.subr.mxu0 0.0
      %1708 = vmatpush1.msra.mxu0 0.0
      %1709 = vmatprep.subr.mxu0 0.0
      %1710 = vmatpush1.msra.mxu0 0.0
      %1711 = vmatprep.subr.mxu0 0.0
      %1712 = vmatpush1.msra.mxu0 0.0
      %1713 = vmatprep.subr.mxu0 0.0
      %1714 = vmatpush1.msra.mxu0 0.0
      %1715 = vmatprep.subr.mxu0 0.0
      %1716 = vmatpush1.msra.mxu0 0.0
      %1717 = vmatprep.subr.mxu0 0.0
      %1718 = vmatpush1.msra.mxu0 0.0
      %1719 = vmatprep.subr.mxu0 0.0
      %1720 = vmatpush1.msra.mxu0 0.0
      %1721 = vmatprep.mubr.f32.mxu0 0.0
      %1722 = vmatmul.mubr.f32.gmra.mrb[0].mxu0 %v953
      %v1723 = vpop.f32.mrb[0].mxu0
      %v1724 = vadd.f32 0.0, %v1723
      %v1725 = vpop.f32.mrb[0].mxu0
      %1726 = vmatprep.mubr.f32.mxu0 0.0
      %1727 = vmatmul.mubr.f32.gmra.mrb[0].mxu0 %v955
      %v1728 = vpop.f32.mrb[0].mxu0
      %v1729 = vadd.f32 0.0, %v1728
      %v1730 = vpop.f32.mrb[0].mxu0
      %1731 = vmatprep.mubr.f32.mxu0 0.0
      %1732 = vmatmul.mubr.f32.gmra.mrb[0].mxu0 %v957
      %v1733 = vpop.f32.mrb[0].mxu0
      %v1734 = vadd.f32 0.0, %v1733
      %v1735 = vpop.f32.mrb[0].mxu0
      %1736 = vmatprep.mubr.f32.mxu0 0.0
      %1737 = vmatmul.mubr.f32.gmra.mrb[0].mxu0 %v959
      %v1738 = vpop.f32.mrb[0].mxu0
      %v1739 = vadd.f32 0.0, %v1738
      %v1740 = vpop.f32.mrb[0].mxu0
      %1741 = vmatprep.mubr.f32.mxu0 0.0
      %1742 = vmatmul.mubr.f32.gmra.mrb[0].mxu0 %v961
      %v1743 = vpop.f32.mrb[0].mxu0
      %v1744 = vadd.f32 0.0, %v1743
      %v1745 = vpop.f32.mrb[0].mxu0
      %1746 = vmatprep.mubr.f32.mxu0 0.0
      %1747 = vmatmul.mubr.f32.gmra.mrb[0].mxu0 %v963
      %v1748 = vpop.f32.mrb[0].mxu0
      %v1749 = vadd.f32 0.0, %v1748
      %v1750 = vpop.f32.mrb[0].mxu0
      %1751 = vmatprep.mubr.f32.mxu0 0.0
      %1752 = vmatmul.mubr.f32.gmra.mrb[0].mxu0 %v965
      %v1753 = vpop.f32.mrb[0].mxu0
      %v1754 = vadd.f32 0.0, %v1753
      %v1755 = vpop.f32.mrb[0].mxu0
      %1756 = vmatprep.mubr.f32.mxu0 0.0
      %1757 = vmatmul.mubr.f32.gmra.mrb[0].mxu0 %v967
      %v1758 = vpop.f32.mrb[0].mxu0
      %v1759 = vadd.f32 0.0, %v1758
      %v1760 = vpop.f32.mrb[0].mxu0
      %1761 = vmatprep.mubr.f32.mxu0 0.0
      %1762 = vmatmul.mubr.f32.gmra.mrb[0].mxu0 %v969
      %v1763 = vpop.f32.mrb[0].mxu0
      %v1764 = vadd.f32 0.0, %v1763
      %v1765 = vpop.f32.mrb[0].mxu0
      %1766 = vmatprep.mubr.f32.mxu0 0.0
      %1767 = vmatmul.mubr.f32.gmra.mrb[0].mxu0 %v971
      %v1768 = vpop.f32.mrb[0].mxu0
      %v1769 = vadd.f32 0.0, %v1768
      %v1770 = vpop.f32.mrb[0].mxu0
      %1771 = vmatprep.mubr.f32.mxu0 0.0
      %1772 = vmatmul.mubr.f32.gmra.mrb[0].mxu0 %v973
      %v1773 = vpop.f32.mrb[0].mxu0
      %v1774 = vadd.f32 0.0, %v1773
      %v1775 = vpop.f32.mrb[0].mxu0
      %1776 = vmatprep.mubr.f32.mxu0 0.0
      %1777 = vmatmul.mubr.f32.gmra.mrb[0].mxu0 %v975
      %v1778 = vpop.f32.mrb[0].mxu0
      %v1779 = vadd.f32 0.0, %v1778
      %v1780 = vpop.f32.mrb[0].mxu0
      %1781 = vmatprep.mubr.f32.mxu0 0.0
      %1782 = vmatmul.mubr.f32.gmra.mrb[0].mxu0 %v977
      %v1783 = vpop.f32.mrb[0].mxu0
      %v1784 = vadd.f32 0.0, %v1783
      %v1785 = vpop.f32.mrb[0].mxu0
      %1786 = vmatprep.mubr.f32.mxu0 0.0
      %1787 = vmatmul.mubr.f32.gmra.mrb[0].mxu0 %v979
      %v1788 = vpop.f32.mrb[0].mxu0
      %v1789 = vadd.f32 0.0, %v1788
      %v1790 = vpop.f32.mrb[0].mxu0
      %1791 = vmatprep.mubr.f32.mxu0 0.0
      %1792 = vmatmul.mubr.f32.gmra.mrb[0].mxu0 %v981
      %v1793 = vpop.f32.mrb[0].mxu0
      %v1794 = vadd.f32 0.0, %v1793
      %v1795 = vpop.f32.mrb[0].mxu0
      %1796 = vmatprep.mubr.f32.mxu0 0.0
      %1797 = vmatmul.mubr.f32.gmra.mrb[0].mxu0 %v983
      %v1798 = vpop.f32.mrb[0].mxu0
      %v1799 = vadd.f32 0.0, %v1798
      %v1800 = vpop.f32.mrb[0].mxu0
      %1801 = vmatprep.mubr.f32.mxu0 0.0
      %1802 = vmatmul.mubr.f32.gmra.mrb[0].mxu0 %v985
      %v1803 = vpop.f32.mrb[0].mxu0
      %v1804 = vadd.f32 0.0, %v1803
      %v1805 = vpop.f32.mrb[0].mxu0
      %1806 = vmatprep.mubr.f32.mxu0 0.0
      %1807 = vmatmul.mubr.f32.gmra.mrb[0].mxu0 %v987
      %v1808 = vpop.f32.mrb[0].mxu0
      %v1809 = vadd.f32 0.0, %v1808
      %v1810 = vpop.f32.mrb[0].mxu0
      %1811 = vmatprep.mubr.f32.mxu0 0.0
      %1812 = vmatmul.mubr.f32.gmra.mrb[0].mxu0 %v989
      %v1813 = vpop.f32.mrb[0].mxu0
      %v1814 = vadd.f32 0.0, %v1813
      %v1815 = vpop.f32.mrb[0].mxu0
      %1816 = vmatprep.mubr.f32.mxu0 0.0
      %1817 = vmatmul.mubr.f32.gmra.mrb[0].mxu0 %v991
      %v1818 = vpop.f32.mrb[0].mxu0
      %v1819 = vadd.f32 0.0, %v1818
      %v1820 = vpop.f32.mrb[0].mxu0
      %1821 = vmatprep.mubr.f32.mxu0 0.0
      %1822 = vmatmul.mubr.f32.gmra.mrb[0].mxu0 %v993
      %v1823 = vpop.f32.mrb[0].mxu0
      %v1824 = vadd.f32 0.0, %v1823
      %v1825 = vpop.f32.mrb[0].mxu0
      %1826 = vmatprep.mubr.f32.mxu0 0.0
      %1827 = vmatmul.mubr.f32.gmra.mrb[0].mxu0 %v995
      %v1828 = vpop.f32.mrb[0].mxu0
      %v1829 = vadd.f32 0.0, %v1828
      %v1830 = vpop.f32.mrb[0].mxu0
      %1831 = vmatprep.mubr.f32.mxu0 0.0
      %1832 = vmatmul.mubr.f32.gmra.mrb[0].mxu0 %v997
      %v1833 = vpop.f32.mrb[0].mxu0
      %v1834 = vadd.f32 0.0, %v1833
      %v1835 = vpop.f32.mrb[0].mxu0
      %1836 = vmatprep.mubr.f32.mxu0 0.0
      %1837 = vmatmul.mubr.f32.gmra.mrb[0].mxu0 %v999
      %v1838 = vpop.f32.mrb[0].mxu0
      %v1839 = vadd.f32 0.0, %v1838
      %v1840 = vpop.f32.mrb[0].mxu0
      %1841 = vmatprep.mubr.f32.mxu0 0.0
      %1842 = vmatmul.mubr.f32.gmra.mrb[0].mxu0 %v1001
      %v1843 = vpop.f32.mrb[0].mxu0
      %v1844 = vadd.f32 0.0, %v1843
      %v1845 = vpop.f32.mrb[0].mxu0
      %1846 = vmatprep.mubr.f32.mxu0 0.0
      %1847 = vmatmul.mubr.f32.gmra.mrb[0].mxu0 %v1003
      %v1848 = vpop.f32.mrb[0].mxu0
      %v1849 = vadd.f32 0.0, %v1848
      %v1850 = vpop.f32.mrb[0].mxu0
      %1851 = vmatprep.mubr.f32.mxu0 0.0
      %1852 = vmatmul.mubr.f32.gmra.mrb[0].mxu0 %v1005
      %v1853 = vpop.f32.mrb[0].mxu0
      %v1854 = vadd.f32 0.0, %v1853
      %v1855 = vpop.f32.mrb[0].mxu0
      %1856 = vmatprep.mubr.f32.mxu0 0.0
      %1857 = vmatmul.mubr.f32.gmra.mrb[0].mxu0 %v1007
      %v1858 = vpop.f32.mrb[0].mxu0
      %v1859 = vadd.f32 0.0, %v1858
      %v1860 = vpop.f32.mrb[0].mxu0
      %1861 = vmatprep.mubr.f32.mxu0 0.0
      %1862 = vmatmul.mubr.f32.gmra.mrb[0].mxu0 %v1009
      %v1863 = vpop.f32.mrb[0].mxu0
      %v1864 = vadd.f32 0.0, %v1863
      %v1865 = vpop.f32.mrb[0].mxu0
      %1866 = vmatprep.mubr.f32.mxu0 0.0
      %1867 = vmatmul.mubr.f32.gmra.mrb[0].mxu0 %v1011
      %v1868 = vpop.f32.mrb[0].mxu0
      %v1869 = vadd.f32 0.0, %v1868
      %v1870 = vpop.f32.mrb[0].mxu0
      %1871 = vmatprep.mubr.f32.mxu0 0.0
      %1872 = vmatmul.mubr.f32.gmra.mrb[0].mxu0 %v1649
      %v1873 = vpop.f32.mrb[0].mxu0
      %v1874 = vadd.f32 0.0, %v1873
      %v1875 = vpop.f32.mrb[0].mxu0
      %1876 = vmatprep.mubr.f32.mxu0 0.0
      %1877 = vmatmul.mubr.f32.gmra.mrb[0].mxu0 %v1652
      %v1878 = vpop.f32.mrb[0].mxu0
      %v1879 = vadd.f32 0.0, %v1878
      %v1880 = vpop.f32.mrb[0].mxu0
      %1881 = vdwg.mxu0
      %v1882 = vadd.f32 %v1615, %v1724
      %v1883 = vadd.f32 %v1616, %v1729
      %v1884 = vadd.f32 %v1617, %v1734
      %v1885 = vadd.f32 %v1618, %v1739
      %v1886 = vadd.f32 %v1619, %v1744
      %v1887 = vadd.f32 %v1620, %v1749
      %v1888 = vadd.f32 %v1621, %v1754
      %v1889 = vadd.f32 %v1622, %v1759
      %v1890 = vadd.f32 %v1623, %v1764
      %v1891 = vadd.f32 %v1624, %v1769
      %v1892 = vadd.f32 %v1625, %v1774
      %v1893 = vadd.f32 %v1626, %v1779
      %v1894 = vadd.f32 %v1627, %v1784
      %v1895 = vadd.f32 %v1628, %v1789
      %v1896 = vadd.f32 %v1629, %v1794
      %v1897 = vadd.f32 %v1630, %v1799
      %v1898 = vadd.f32 %v1631, %v1804
      %v1899 = vadd.f32 %v1632, %v1809
      %v1900 = vadd.f32 %v1633, %v1814
      %v1901 = vadd.f32 %v1634, %v1819
      %v1902 = vadd.f32 %v1635, %v1824
      %v1903 = vadd.f32 %v1636, %v1829
      %v1904 = vadd.f32 %v1637, %v1834
      %v1905 = vadd.f32 %v1638, %v1839
      %v1906 = vadd.f32 %v1639, %v1844
      %v1907 = vadd.f32 %v1640, %v1849
      %v1908 = vadd.f32 %v1641, %v1854
      %v1909 = vadd.f32 %v1642, %v1859
      %v1910 = vadd.f32 %v1643, %v1864
      %v1911 = vadd.f32 %v1644, %v1869
      %v1912 = vadd.f32 %v1645, %v1874
      %v1913 = vadd.f32 %v1646, %v1879
      %v1915 = vrot.slane %v519, 1
      %v1916 = vrot.slane %v520, 1
      %v1917 = vsel %vm574, %v1915, %v1916
      %v1918 = vrot.slane %v521, 1
      %v1919 = vsel %vm574, %v1916, %v1918
      %v1920 = vld [vmem:[%s3 + $0x10] sm:$0xf]
      %v1921 = vsel %vm396, %v1917, 0
      %v1923 = vsel %vm396, %v1919, 0
      %v1926 = vsel %vm720, %v1920, 0
      %1928 = vmatprep.subr.mxu0 0.0
      %1929 = vmatpush1.msra.mxu0 %v1926
      %1930 = vmatprep.subr.mxu0 0.0
      %1931 = vmatpush1.msra.mxu0 0.0
      %1932 = vmatprep.subr.mxu0 0.0
      %1933 = vmatpush1.msra.mxu0 0.0
      %1934 = vmatprep.subr.mxu0 0.0
      %1935 = vmatpush1.msra.mxu0 0.0
      %1936 = vmatprep.subr.mxu0 0.0
      %1937 = vmatpush1.msra.mxu0 0.0
      %1938 = vmatprep.subr.mxu0 0.0
      %1939 = vmatpush1.msra.mxu0 0.0
      %1940 = vmatprep.subr.mxu0 0.0
      %1941 = vmatpush1.msra.mxu0 0.0
      %1942 = vmatprep.subr.mxu0 0.0
      %1943 = vmatpush1.msra.mxu0 0.0
      %1944 = vmatprep.subr.mxu0 0.0
      %1945 = vmatpush1.msra.mxu0 0.0
      %1946 = vmatprep.subr.mxu0 0.0
      %1947 = vmatpush1.msra.mxu0 0.0
      %1948 = vmatprep.subr.mxu0 0.0
      %1949 = vmatpush1.msra.mxu0 0.0
      %1950 = vmatprep.subr.mxu0 0.0
      %1951 = vmatpush1.msra.mxu0 0.0
      %1952 = vmatprep.subr.mxu0 0.0
      %1953 = vmatpush1.msra.mxu0 0.0
      %1954 = vmatprep.subr.mxu0 0.0
      %1955 = vmatpush1.msra.mxu0 0.0
      %1956 = vmatprep.subr.mxu0 0.0
      %1957 = vmatpush1.msra.mxu0 0.0
      %1958 = vmatprep.subr.mxu0 0.0
      %1959 = vmatpush1.msra.mxu0 0.0
      %1960 = vmatprep.subr.mxu0 0.0
      %1961 = vmatpush1.msra.mxu0 0.0
      %1962 = vmatprep.subr.mxu0 0.0
      %1963 = vmatpush1.msra.mxu0 0.0
      %1964 = vmatprep.subr.mxu0 0.0
      %1965 = vmatpush1.msra.mxu0 0.0
      %1966 = vmatprep.subr.mxu0 0.0
      %1967 = vmatpush1.msra.mxu0 0.0
      %1968 = vmatprep.subr.mxu0 0.0
      %1969 = vmatpush1.msra.mxu0 0.0
      %1970 = vmatprep.subr.mxu0 0.0
      %1971 = vmatpush1.msra.mxu0 0.0
      %1972 = vmatprep.subr.mxu0 0.0
      %1973 = vmatpush1.msra.mxu0 0.0
      %1974 = vmatprep.subr.mxu0 0.0
      %1975 = vmatpush1.msra.mxu0 0.0
      %1976 = vmatprep.subr.mxu0 0.0
      %1977 = vmatpush1.msra.mxu0 0.0
      %1978 = vmatprep.subr.mxu0 0.0
      %1979 = vmatpush1.msra.mxu0 0.0
      %1980 = vmatprep.subr.mxu0 0.0
      %1981 = vmatpush1.msra.mxu0 0.0
      %1982 = vmatprep.subr.mxu0 0.0
      %1983 = vmatpush1.msra.mxu0 0.0
      %1984 = vmatprep.subr.mxu0 0.0
      %1985 = vmatpush1.msra.mxu0 0.0
      %1986 = vmatprep.subr.mxu0 0.0
      %1987 = vmatpush1.msra.mxu0 0.0
      %1988 = vmatprep.subr.mxu0 0.0
      %1989 = vmatpush1.msra.mxu0 0.0
      %1990 = vmatprep.subr.mxu0 0.0
      %1991 = vmatpush1.msra.mxu0 0.0
      %1992 = vmatprep.mubr.f32.mxu0 0.0
      %1993 = vmatmul.mubr.f32.gmra.mrb[0].mxu0 %v660
      %v1994 = vpop.f32.mrb[0].mxu0
      %v1995 = vadd.f32 0.0, %v1994
      %v1996 = vpop.f32.mrb[0].mxu0
      %1997 = vmatprep.mubr.f32.mxu0 0.0
      %1998 = vmatmul.mubr.f32.gmra.mrb[0].mxu0 %v662
      %v1999 = vpop.f32.mrb[0].mxu0
      %v2000 = vadd.f32 0.0, %v1999
      %v2001 = vpop.f32.mrb[0].mxu0
      %2002 = vmatprep.mubr.f32.mxu0 0.0
      %2003 = vmatmul.mubr.f32.gmra.mrb[0].mxu0 %v664
      %v2004 = vpop.f32.mrb[0].mxu0
      %v2005 = vadd.f32 0.0, %v2004
      %v2006 = vpop.f32.mrb[0].mxu0
      %2007 = vmatprep.mubr.f32.mxu0 0.0
      %2008 = vmatmul.mubr.f32.gmra.mrb[0].mxu0 %v666
      %v2009 = vpop.f32.mrb[0].mxu0
      %v2010 = vadd.f32 0.0, %v2009
      %v2011 = vpop.f32.mrb[0].mxu0
      %2012 = vmatprep.mubr.f32.mxu0 0.0
      %2013 = vmatmul.mubr.f32.gmra.mrb[0].mxu0 %v668
      %v2014 = vpop.f32.mrb[0].mxu0
      %v2015 = vadd.f32 0.0, %v2014
      %v2016 = vpop.f32.mrb[0].mxu0
      %2017 = vmatprep.mubr.f32.mxu0 0.0
      %2018 = vmatmul.mubr.f32.gmra.mrb[0].mxu0 %v670
      %v2019 = vpop.f32.mrb[0].mxu0
      %v2020 = vadd.f32 0.0, %v2019
      %v2021 = vpop.f32.mrb[0].mxu0
      %2022 = vmatprep.mubr.f32.mxu0 0.0
      %2023 = vmatmul.mubr.f32.gmra.mrb[0].mxu0 %v672
      %v2024 = vpop.f32.mrb[0].mxu0
      %v2025 = vadd.f32 0.0, %v2024
      %v2026 = vpop.f32.mrb[0].mxu0
      %2027 = vmatprep.mubr.f32.mxu0 0.0
      %2028 = vmatmul.mubr.f32.gmra.mrb[0].mxu0 %v674
      %v2029 = vpop.f32.mrb[0].mxu0
      %v2030 = vadd.f32 0.0, %v2029
      %v2031 = vpop.f32.mrb[0].mxu0
      %2032 = vmatprep.mubr.f32.mxu0 0.0
      %2033 = vmatmul.mubr.f32.gmra.mrb[0].mxu0 %v676
      %v2034 = vpop.f32.mrb[0].mxu0
      %v2035 = vadd.f32 0.0, %v2034
      %v2036 = vpop.f32.mrb[0].mxu0
      %2037 = vmatprep.mubr.f32.mxu0 0.0
      %2038 = vmatmul.mubr.f32.gmra.mrb[0].mxu0 %v678
      %v2039 = vpop.f32.mrb[0].mxu0
      %v2040 = vadd.f32 0.0, %v2039
      %v2041 = vpop.f32.mrb[0].mxu0
      %2042 = vmatprep.mubr.f32.mxu0 0.0
      %2043 = vmatmul.mubr.f32.gmra.mrb[0].mxu0 %v680
      %v2044 = vpop.f32.mrb[0].mxu0
      %v2045 = vadd.f32 0.0, %v2044
      %v2046 = vpop.f32.mrb[0].mxu0
      %2047 = vmatprep.mubr.f32.mxu0 0.0
      %2048 = vmatmul.mubr.f32.gmra.mrb[0].mxu0 %v682
      %v2049 = vpop.f32.mrb[0].mxu0
      %v2050 = vadd.f32 0.0, %v2049
      %v2051 = vpop.f32.mrb[0].mxu0
      %2052 = vmatprep.mubr.f32.mxu0 0.0
      %2053 = vmatmul.mubr.f32.gmra.mrb[0].mxu0 %v684
      %v2054 = vpop.f32.mrb[0].mxu0
      %v2055 = vadd.f32 0.0, %v2054
      %v2056 = vpop.f32.mrb[0].mxu0
      %2057 = vmatprep.mubr.f32.mxu0 0.0
      %2058 = vmatmul.mubr.f32.gmra.mrb[0].mxu0 %v686
      %v2059 = vpop.f32.mrb[0].mxu0
      %v2060 = vadd.f32 0.0, %v2059
      %v2061 = vpop.f32.mrb[0].mxu0
      %2062 = vmatprep.mubr.f32.mxu0 0.0
      %2063 = vmatmul.mubr.f32.gmra.mrb[0].mxu0 %v688
      %v2064 = vpop.f32.mrb[0].mxu0
      %v2065 = vadd.f32 0.0, %v2064
      %v2066 = vpop.f32.mrb[0].mxu0
      %2067 = vmatprep.mubr.f32.mxu0 0.0
      %2068 = vmatmul.mubr.f32.gmra.mrb[0].mxu0 %v690
      %v2069 = vpop.f32.mrb[0].mxu0
      %v2070 = vadd.f32 0.0, %v2069
      %v2071 = vpop.f32.mrb[0].mxu0
      %2072 = vmatprep.mubr.f32.mxu0 0.0
      %2073 = vmatmul.mubr.f32.gmra.mrb[0].mxu0 %v692
      %v2074 = vpop.f32.mrb[0].mxu0
      %v2075 = vadd.f32 0.0, %v2074
      %v2076 = vpop.f32.mrb[0].mxu0
      %2077 = vmatprep.mubr.f32.mxu0 0.0
      %2078 = vmatmul.mubr.f32.gmra.mrb[0].mxu0 %v694
      %v2079 = vpop.f32.mrb[0].mxu0
      %v2080 = vadd.f32 0.0, %v2079
      %v2081 = vpop.f32.mrb[0].mxu0
      %2082 = vmatprep.mubr.f32.mxu0 0.0
      %2083 = vmatmul.mubr.f32.gmra.mrb[0].mxu0 %v696
      %v2084 = vpop.f32.mrb[0].mxu0
      %v2085 = vadd.f32 0.0, %v2084
      %v2086 = vpop.f32.mrb[0].mxu0
      %2087 = vmatprep.mubr.f32.mxu0 0.0
      %2088 = vmatmul.mubr.f32.gmra.mrb[0].mxu0 %v698
      %v2089 = vpop.f32.mrb[0].mxu0
      %v2090 = vadd.f32 0.0, %v2089
      %v2091 = vpop.f32.mrb[0].mxu0
      %2092 = vmatprep.mubr.f32.mxu0 0.0
      %2093 = vmatmul.mubr.f32.gmra.mrb[0].mxu0 %v700
      %v2094 = vpop.f32.mrb[0].mxu0
      %v2095 = vadd.f32 0.0, %v2094
      %v2096 = vpop.f32.mrb[0].mxu0
      %2097 = vmatprep.mubr.f32.mxu0 0.0
      %2098 = vmatmul.mubr.f32.gmra.mrb[0].mxu0 %v702
      %v2099 = vpop.f32.mrb[0].mxu0
      %v2100 = vadd.f32 0.0, %v2099
      %v2101 = vpop.f32.mrb[0].mxu0
      %2102 = vmatprep.mubr.f32.mxu0 0.0
      %2103 = vmatmul.mubr.f32.gmra.mrb[0].mxu0 %v704
      %v2104 = vpop.f32.mrb[0].mxu0
      %v2105 = vadd.f32 0.0, %v2104
      %v2106 = vpop.f32.mrb[0].mxu0
      %2107 = vmatprep.mubr.f32.mxu0 0.0
      %2108 = vmatmul.mubr.f32.gmra.mrb[0].mxu0 %v706
      %v2109 = vpop.f32.mrb[0].mxu0
      %v2110 = vadd.f32 0.0, %v2109
      %v2111 = vpop.f32.mrb[0].mxu0
      %2112 = vmatprep.mubr.f32.mxu0 0.0
      %2113 = vmatmul.mubr.f32.gmra.mrb[0].mxu0 %v708
      %v2114 = vpop.f32.mrb[0].mxu0
      %v2115 = vadd.f32 0.0, %v2114
      %v2116 = vpop.f32.mrb[0].mxu0
      %2117 = vmatprep.mubr.f32.mxu0 0.0
      %2118 = vmatmul.mubr.f32.gmra.mrb[0].mxu0 %v710
      %v2119 = vpop.f32.mrb[0].mxu0
      %v2120 = vadd.f32 0.0, %v2119
      %v2121 = vpop.f32.mrb[0].mxu0
      %2122 = vmatprep.mubr.f32.mxu0 0.0
      %2123 = vmatmul.mubr.f32.gmra.mrb[0].mxu0 %v712
      %v2124 = vpop.f32.mrb[0].mxu0
      %v2125 = vadd.f32 0.0, %v2124
      %v2126 = vpop.f32.mrb[0].mxu0
      %2127 = vmatprep.mubr.f32.mxu0 0.0
      %2128 = vmatmul.mubr.f32.gmra.mrb[0].mxu0 %v714
      %v2129 = vpop.f32.mrb[0].mxu0
      %v2130 = vadd.f32 0.0, %v2129
      %v2131 = vpop.f32.mrb[0].mxu0
      %2132 = vmatprep.mubr.f32.mxu0 0.0
      %2133 = vmatmul.mubr.f32.gmra.mrb[0].mxu0 %v716
      %v2134 = vpop.f32.mrb[0].mxu0
      %v2135 = vadd.f32 0.0, %v2134
      %v2136 = vpop.f32.mrb[0].mxu0
      %2137 = vmatprep.mubr.f32.mxu0 0.0
      %2138 = vmatmul.mubr.f32.gmra.mrb[0].mxu0 %v718
      %v2139 = vpop.f32.mrb[0].mxu0
      %v2140 = vadd.f32 0.0, %v2139
      %v2141 = vpop.f32.mrb[0].mxu0
      %2142 = vmatprep.mubr.f32.mxu0 0.0
      %2143 = vmatmul.mubr.f32.gmra.mrb[0].mxu0 %v1921
      %v2144 = vpop.f32.mrb[0].mxu0
      %v2145 = vadd.f32 0.0, %v2144
      %v2146 = vpop.f32.mrb[0].mxu0
      %2147 = vmatprep.mubr.f32.mxu0 0.0
      %2148 = vmatmul.mubr.f32.gmra.mrb[0].mxu0 %v1923
      %v2149 = vpop.f32.mrb[0].mxu0
      %v2150 = vadd.f32 0.0, %v2149
      %v2151 = vpop.f32.mrb[0].mxu0
      %2152 = vdwg.mxu0
      %v2153 = vadd.f32 %v1882, %v1995
      %v2154 = vadd.f32 %v1883, %v2000
      %v2155 = vadd.f32 %v1884, %v2005
      %v2156 = vadd.f32 %v1885, %v2010
      %v2157 = vadd.f32 %v1886, %v2015
      %v2158 = vadd.f32 %v1887, %v2020
      %v2159 = vadd.f32 %v1888, %v2025
      %v2160 = vadd.f32 %v1889, %v2030
      %v2161 = vadd.f32 %v1890, %v2035
      %v2162 = vadd.f32 %v1891, %v2040
      %v2163 = vadd.f32 %v1892, %v2045
      %v2164 = vadd.f32 %v1893, %v2050
      %v2165 = vadd.f32 %v1894, %v2055
      %v2166 = vadd.f32 %v1895, %v2060
      %v2167 = vadd.f32 %v1896, %v2065
      %v2168 = vadd.f32 %v1897, %v2070
      %v2169 = vadd.f32 %v1898, %v2075
      %v2170 = vadd.f32 %v1899, %v2080
      %v2171 = vadd.f32 %v1900, %v2085
      %v2172 = vadd.f32 %v1901, %v2090
      %v2173 = vadd.f32 %v1902, %v2095
      %v2174 = vadd.f32 %v1903, %v2100
      %v2175 = vadd.f32 %v1904, %v2105
      %v2176 = vadd.f32 %v1905, %v2110
      %v2177 = vadd.f32 %v1906, %v2115
      %v2178 = vadd.f32 %v1907, %v2120
      %v2179 = vadd.f32 %v1908, %v2125
      %v2180 = vadd.f32 %v1909, %v2130
      %v2181 = vadd.f32 %v1910, %v2135
      %v2182 = vadd.f32 %v1911, %v2140
      %v2183 = vadd.f32 %v1912, %v2145
      %v2184 = vadd.f32 %v1913, %v2150
      %v2185 = vrot.slane %v519, 2
      %v2186 = vrot.slane %v520, 2
      %v2187 = vsel %vm1241, %v2185, %v2186
      %v2188 = vrot.slane %v521, 2
      %v2189 = vsel %vm1241, %v2186, %v2188
      %v2190 = vld [vmem:[%s3 + $0x14] sm:$0xf]
      %v2191 = vsel %vm396, %v2187, 0
      %v2193 = vsel %vm396, %v2189, 0
      %v2196 = vsel %vm720, %v2190, 0
      %2198 = vmatprep.subr.mxu0 0.0
      %2199 = vmatpush1.msra.mxu0 %v2196
      %2200 = vmatprep.subr.mxu0 0.0
      %2201 = vmatpush1.msra.mxu0 0.0
      %2202 = vmatprep.subr.mxu0 0.0
      %2203 = vmatpush1.msra.mxu0 0.0
      %2204 = vmatprep.subr.mxu0 0.0
      %2205 = vmatpush1.msra.mxu0 0.0
      %2206 = vmatprep.subr.mxu0 0.0
      %2207 = vmatpush1.msra.mxu0 0.0
      %2208 = vmatprep.subr.mxu0 0.0
      %2209 = vmatpush1.msra.mxu0 0.0
      %2210 = vmatprep.subr.mxu0 0.0
      %2211 = vmatpush1.msra.mxu0 0.0
      %2212 = vmatprep.subr.mxu0 0.0
      %2213 = vmatpush1.msra.mxu0 0.0
      %2214 = vmatprep.subr.mxu0 0.0
      %2215 = vmatpush1.msra.mxu0 0.0
      %2216 = vmatprep.subr.mxu0 0.0
      %2217 = vmatpush1.msra.mxu0 0.0
      %2218 = vmatprep.subr.mxu0 0.0
      %2219 = vmatpush1.msra.mxu0 0.0
      %2220 = vmatprep.subr.mxu0 0.0
      %2221 = vmatpush1.msra.mxu0 0.0
      %2222 = vmatprep.subr.mxu0 0.0
      %2223 = vmatpush1.msra.mxu0 0.0
      %2224 = vmatprep.subr.mxu0 0.0
      %2225 = vmatpush1.msra.mxu0 0.0
      %2226 = vmatprep.subr.mxu0 0.0
      %2227 = vmatpush1.msra.mxu0 0.0
      %2228 = vmatprep.subr.mxu0 0.0
      %2229 = vmatpush1.msra.mxu0 0.0
      %2230 = vmatprep.subr.mxu0 0.0
      %2231 = vmatpush1.msra.mxu0 0.0
      %2232 = vmatprep.subr.mxu0 0.0
      %2233 = vmatpush1.msra.mxu0 0.0
      %2234 = vmatprep.subr.mxu0 0.0
      %2235 = vmatpush1.msra.mxu0 0.0
      %2236 = vmatprep.subr.mxu0 0.0
      %2237 = vmatpush1.msra.mxu0 0.0
      %2238 = vmatprep.subr.mxu0 0.0
      %2239 = vmatpush1.msra.mxu0 0.0
      %2240 = vmatprep.subr.mxu0 0.0
      %2241 = vmatpush1.msra.mxu0 0.0
      %2242 = vmatprep.subr.mxu0 0.0
      %2243 = vmatpush1.msra.mxu0 0.0
      %2244 = vmatprep.subr.mxu0 0.0
      %2245 = vmatpush1.msra.mxu0 0.0
      %2246 = vmatprep.subr.mxu0 0.0
      %2247 = vmatpush1.msra.mxu0 0.0
      %2248 = vmatprep.subr.mxu0 0.0
      %2249 = vmatpush1.msra.mxu0 0.0
      %2250 = vmatprep.subr.mxu0 0.0
      %2251 = vmatpush1.msra.mxu0 0.0
      %2252 = vmatprep.subr.mxu0 0.0
      %2253 = vmatpush1.msra.mxu0 0.0
      %2254 = vmatprep.subr.mxu0 0.0
      %2255 = vmatpush1.msra.mxu0 0.0
      %2256 = vmatprep.subr.mxu0 0.0
      %2257 = vmatpush1.msra.mxu0 0.0
      %2258 = vmatprep.subr.mxu0 0.0
      %2259 = vmatpush1.msra.mxu0 0.0
      %2260 = vmatprep.subr.mxu0 0.0
      %2261 = vmatpush1.msra.mxu0 0.0
      %2262 = vmatprep.mubr.f32.mxu0 0.0
      %2263 = vmatmul.mubr.f32.gmra.mrb[0].mxu0 %v1327
      %v2264 = vpop.f32.mrb[0].mxu0
      %v2265 = vadd.f32 0.0, %v2264
      %v2266 = vpop.f32.mrb[0].mxu0
      %2267 = vmatprep.mubr.f32.mxu0 0.0
      %2268 = vmatmul.mubr.f32.gmra.mrb[0].mxu0 %v1329
      %v2269 = vpop.f32.mrb[0].mxu0
      %v2270 = vadd.f32 0.0, %v2269
      %v2271 = vpop.f32.mrb[0].mxu0
      %2272 = vmatprep.mubr.f32.mxu0 0.0
      %2273 = vmatmul.mubr.f32.gmra.mrb[0].mxu0 %v1331
      %v2274 = vpop.f32.mrb[0].mxu0
      %v2275 = vadd.f32 0.0, %v2274
      %v2276 = vpop.f32.mrb[0].mxu0
      %2277 = vmatprep.mubr.f32.mxu0 0.0
      %2278 = vmatmul.mubr.f32.gmra.mrb[0].mxu0 %v1333
      %v2279 = vpop.f32.mrb[0].mxu0
      %v2280 = vadd.f32 0.0, %v2279
      %v2281 = vpop.f32.mrb[0].mxu0
      %2282 = vmatprep.mubr.f32.mxu0 0.0
      %2283 = vmatmul.mubr.f32.gmra.mrb[0].mxu0 %v1335
      %v2284 = vpop.f32.mrb[0].mxu0
      %v2285 = vadd.f32 0.0, %v2284
      %v2286 = vpop.f32.mrb[0].mxu0
      %2287 = vmatprep.mubr.f32.mxu0 0.0
      %2288 = vmatmul.mubr.f32.gmra.mrb[0].mxu0 %v1337
      %v2289 = vpop.f32.mrb[0].mxu0
      %v2290 = vadd.f32 0.0, %v2289
      %v2291 = vpop.f32.mrb[0].mxu0
      %2292 = vmatprep.mubr.f32.mxu0 0.0
      %2293 = vmatmul.mubr.f32.gmra.mrb[0].mxu0 %v1339
      %v2294 = vpop.f32.mrb[0].mxu0
      %v2295 = vadd.f32 0.0, %v2294
      %v2296 = vpop.f32.mrb[0].mxu0
      %2297 = vmatprep.mubr.f32.mxu0 0.0
      %2298 = vmatmul.mubr.f32.gmra.mrb[0].mxu0 %v1341
      %v2299 = vpop.f32.mrb[0].mxu0
      %v2300 = vadd.f32 0.0, %v2299
      %v2301 = vpop.f32.mrb[0].mxu0
      %2302 = vmatprep.mubr.f32.mxu0 0.0
      %2303 = vmatmul.mubr.f32.gmra.mrb[0].mxu0 %v1343
      %v2304 = vpop.f32.mrb[0].mxu0
      %v2305 = vadd.f32 0.0, %v2304
      %v2306 = vpop.f32.mrb[0].mxu0
      %2307 = vmatprep.mubr.f32.mxu0 0.0
      %2308 = vmatmul.mubr.f32.gmra.mrb[0].mxu0 %v1345
      %v2309 = vpop.f32.mrb[0].mxu0
      %v2310 = vadd.f32 0.0, %v2309
      %v2311 = vpop.f32.mrb[0].mxu0
      %2312 = vmatprep.mubr.f32.mxu0 0.0
      %2313 = vmatmul.mubr.f32.gmra.mrb[0].mxu0 %v1347
      %v2314 = vpop.f32.mrb[0].mxu0
      %v2315 = vadd.f32 0.0, %v2314
      %v2316 = vpop.f32.mrb[0].mxu0
      %2317 = vmatprep.mubr.f32.mxu0 0.0
      %2318 = vmatmul.mubr.f32.gmra.mrb[0].mxu0 %v1349
      %v2319 = vpop.f32.mrb[0].mxu0
      %v2320 = vadd.f32 0.0, %v2319
      %v2321 = vpop.f32.mrb[0].mxu0
      %2322 = vmatprep.mubr.f32.mxu0 0.0
      %2323 = vmatmul.mubr.f32.gmra.mrb[0].mxu0 %v1351
      %v2324 = vpop.f32.mrb[0].mxu0
      %v2325 = vadd.f32 0.0, %v2324
      %v2326 = vpop.f32.mrb[0].mxu0
      %2327 = vmatprep.mubr.f32.mxu0 0.0
      %2328 = vmatmul.mubr.f32.gmra.mrb[0].mxu0 %v1353
      %v2329 = vpop.f32.mrb[0].mxu0
      %v2330 = vadd.f32 0.0, %v2329
      %v2331 = vpop.f32.mrb[0].mxu0
      %2332 = vmatprep.mubr.f32.mxu0 0.0
      %2333 = vmatmul.mubr.f32.gmra.mrb[0].mxu0 %v1355
      %v2334 = vpop.f32.mrb[0].mxu0
      %v2335 = vadd.f32 0.0, %v2334
      %v2336 = vpop.f32.mrb[0].mxu0
      %2337 = vmatprep.mubr.f32.mxu0 0.0
      %2338 = vmatmul.mubr.f32.gmra.mrb[0].mxu0 %v1357
      %v2339 = vpop.f32.mrb[0].mxu0
      %v2340 = vadd.f32 0.0, %v2339
      %v2341 = vpop.f32.mrb[0].mxu0
      %2342 = vmatprep.mubr.f32.mxu0 0.0
      %2343 = vmatmul.mubr.f32.gmra.mrb[0].mxu0 %v1359
      %v2344 = vpop.f32.mrb[0].mxu0
      %v2345 = vadd.f32 0.0, %v2344
      %v2346 = vpop.f32.mrb[0].mxu0
      %2347 = vmatprep.mubr.f32.mxu0 0.0
      %2348 = vmatmul.mubr.f32.gmra.mrb[0].mxu0 %v1361
      %v2349 = vpop.f32.mrb[0].mxu0
      %v2350 = vadd.f32 0.0, %v2349
      %v2351 = vpop.f32.mrb[0].mxu0
      %2352 = vmatprep.mubr.f32.mxu0 0.0
      %2353 = vmatmul.mubr.f32.gmra.mrb[0].mxu0 %v1363
      %v2354 = vpop.f32.mrb[0].mxu0
      %v2355 = vadd.f32 0.0, %v2354
      %v2356 = vpop.f32.mrb[0].mxu0
      %2357 = vmatprep.mubr.f32.mxu0 0.0
      %2358 = vmatmul.mubr.f32.gmra.mrb[0].mxu0 %v1365
      %v2359 = vpop.f32.mrb[0].mxu0
      %v2360 = vadd.f32 0.0, %v2359
      %v2361 = vpop.f32.mrb[0].mxu0
      %2362 = vmatprep.mubr.f32.mxu0 0.0
      %2363 = vmatmul.mubr.f32.gmra.mrb[0].mxu0 %v1367
      %v2364 = vpop.f32.mrb[0].mxu0
      %v2365 = vadd.f32 0.0, %v2364
      %v2366 = vpop.f32.mrb[0].mxu0
      %2367 = vmatprep.mubr.f32.mxu0 0.0
      %2368 = vmatmul.mubr.f32.gmra.mrb[0].mxu0 %v1369
      %v2369 = vpop.f32.mrb[0].mxu0
      %v2370 = vadd.f32 0.0, %v2369
      %v2371 = vpop.f32.mrb[0].mxu0
      %2372 = vmatprep.mubr.f32.mxu0 0.0
      %2373 = vmatmul.mubr.f32.gmra.mrb[0].mxu0 %v1371
      %v2374 = vpop.f32.mrb[0].mxu0
      %v2375 = vadd.f32 0.0, %v2374
      %v2376 = vpop.f32.mrb[0].mxu0
      %2377 = vmatprep.mubr.f32.mxu0 0.0
      %2378 = vmatmul.mubr.f32.gmra.mrb[0].mxu0 %v1373
      %v2379 = vpop.f32.mrb[0].mxu0
      %v2380 = vadd.f32 0.0, %v2379
      %v2381 = vpop.f32.mrb[0].mxu0
      %2382 = vmatprep.mubr.f32.mxu0 0.0
      %2383 = vmatmul.mubr.f32.gmra.mrb[0].mxu0 %v1375
      %v2384 = vpop.f32.mrb[0].mxu0
      %v2385 = vadd.f32 0.0, %v2384
      %v2386 = vpop.f32.mrb[0].mxu0
      %2387 = vmatprep.mubr.f32.mxu0 0.0
      %2388 = vmatmul.mubr.f32.gmra.mrb[0].mxu0 %v1377
      %v2389 = vpop.f32.mrb[0].mxu0
      %v2390 = vadd.f32 0.0, %v2389
      %v2391 = vpop.f32.mrb[0].mxu0
      %2392 = vmatprep.mubr.f32.mxu0 0.0
      %2393 = vmatmul.mubr.f32.gmra.mrb[0].mxu0 %v1379
      %v2394 = vpop.f32.mrb[0].mxu0
      %v2395 = vadd.f32 0.0, %v2394
      %v2396 = vpop.f32.mrb[0].mxu0
      %2397 = vmatprep.mubr.f32.mxu0 0.0
      %2398 = vmatmul.mubr.f32.gmra.mrb[0].mxu0 %v1381
      %v2399 = vpop.f32.mrb[0].mxu0
      %v2400 = vadd.f32 0.0, %v2399
      %v2401 = vpop.f32.mrb[0].mxu0
      %2402 = vmatprep.mubr.f32.mxu0 0.0
      %2403 = vmatmul.mubr.f32.gmra.mrb[0].mxu0 %v1383
      %v2404 = vpop.f32.mrb[0].mxu0
      %v2405 = vadd.f32 0.0, %v2404
      %v2406 = vpop.f32.mrb[0].mxu0
      %2407 = vmatprep.mubr.f32.mxu0 0.0
      %2408 = vmatmul.mubr.f32.gmra.mrb[0].mxu0 %v1385
      %v2409 = vpop.f32.mrb[0].mxu0
      %v2410 = vadd.f32 0.0, %v2409
      %v2411 = vpop.f32.mrb[0].mxu0
      %2412 = vmatprep.mubr.f32.mxu0 0.0
      %2413 = vmatmul.mubr.f32.gmra.mrb[0].mxu0 %v2191
      %v2414 = vpop.f32.mrb[0].mxu0
      %v2415 = vadd.f32 0.0, %v2414
      %v2416 = vpop.f32.mrb[0].mxu0
      %2417 = vmatprep.mubr.f32.mxu0 0.0
      %2418 = vmatmul.mubr.f32.gmra.mrb[0].mxu0 %v2193
      %v2419 = vpop.f32.mrb[0].mxu0
      %v2420 = vadd.f32 0.0, %v2419
      %v2421 = vpop.f32.mrb[0].mxu0
      %2422 = vdwg.mxu0
      %v2423 = vadd.f32 %v2153, %v2265
      %v2424 = vadd.f32 %v2154, %v2270
      %v2425 = vadd.f32 %v2155, %v2275
      %v2426 = vadd.f32 %v2156, %v2280
      %v2427 = vadd.f32 %v2157, %v2285
      %v2428 = vadd.f32 %v2158, %v2290
      %v2429 = vadd.f32 %v2159, %v2295
      %v2430 = vadd.f32 %v2160, %v2300
      %v2431 = vadd.f32 %v2161, %v2305
      %v2432 = vadd.f32 %v2162, %v2310
      %v2433 = vadd.f32 %v2163, %v2315
      %v2434 = vadd.f32 %v2164, %v2320
      %v2435 = vadd.f32 %v2165, %v2325
      %v2436 = vadd.f32 %v2166, %v2330
      %v2437 = vadd.f32 %v2167, %v2335
      %v2438 = vadd.f32 %v2168, %v2340
      %v2439 = vadd.f32 %v2169, %v2345
      %v2440 = vadd.f32 %v2170, %v2350
      %v2441 = vadd.f32 %v2171, %v2355
      %v2442 = vadd.f32 %v2172, %v2360
      %v2443 = vadd.f32 %v2173, %v2365
      %v2444 = vadd.f32 %v2174, %v2370
      %v2445 = vadd.f32 %v2175, %v2375
      %v2446 = vadd.f32 %v2176, %v2380
      %v2447 = vadd.f32 %v2177, %v2385
      %v2448 = vadd.f32 %v2178, %v2390
      %v2449 = vadd.f32 %v2179, %v2395
      %v2450 = vadd.f32 %v2180, %v2400
      %v2451 = vadd.f32 %v2181, %v2405
      %v2452 = vadd.f32 %v2182, %v2410
      %v2453 = vadd.f32 %v2183, %v2415
      %v2454 = vadd.f32 %v2184, %v2420
      %v2455 = vld [vmem:[%s3 + $0x18] sm:$0xf]
      %v2457 = vsel %vm396, %v522, 0
      %v2460 = vsel %vm396, %v523, 0
      %v2463 = vsel %vm720, %v2455, 0
      %2465 = vmatprep.subr.mxu0 0.0
      %2466 = vmatpush1.msra.mxu0 %v2463
      %2467 = vmatprep.subr.mxu0 0.0
      %2468 = vmatpush1.msra.mxu0 0.0
      %2469 = vmatprep.subr.mxu0 0.0
      %2470 = vmatpush1.msra.mxu0 0.0
      %2471 = vmatprep.subr.mxu0 0.0
      %2472 = vmatpush1.msra.mxu0 0.0
      %2473 = vmatprep.subr.mxu0 0.0
      %2474 = vmatpush1.msra.mxu0 0.0
      %2475 = vmatprep.subr.mxu0 0.0
      %2476 = vmatpush1.msra.mxu0 0.0
      %2477 = vmatprep.subr.mxu0 0.0
      %2478 = vmatpush1.msra.mxu0 0.0
      %2479 = vmatprep.subr.mxu0 0.0
      %2480 = vmatpush1.msra.mxu0 0.0
      %2481 = vmatprep.subr.mxu0 0.0
      %2482 = vmatpush1.msra.mxu0 0.0
      %2483 = vmatprep.subr.mxu0 0.0
      %2484 = vmatpush1.msra.mxu0 0.0
      %2485 = vmatprep.subr.mxu0 0.0
      %2486 = vmatpush1.msra.mxu0 0.0
      %2487 = vmatprep.subr.mxu0 0.0
      %2488 = vmatpush1.msra.mxu0 0.0
      %2489 = vmatprep.subr.mxu0 0.0
      %2490 = vmatpush1.msra.mxu0 0.0
      %2491 = vmatprep.subr.mxu0 0.0
      %2492 = vmatpush1.msra.mxu0 0.0
      %2493 = vmatprep.subr.mxu0 0.0
      %2494 = vmatpush1.msra.mxu0 0.0
      %2495 = vmatprep.subr.mxu0 0.0
      %2496 = vmatpush1.msra.mxu0 0.0
      %2497 = vmatprep.subr.mxu0 0.0
      %2498 = vmatpush1.msra.mxu0 0.0
      %2499 = vmatprep.subr.mxu0 0.0
      %2500 = vmatpush1.msra.mxu0 0.0
      %2501 = vmatprep.subr.mxu0 0.0
      %2502 = vmatpush1.msra.mxu0 0.0
      %2503 = vmatprep.subr.mxu0 0.0
      %2504 = vmatpush1.msra.mxu0 0.0
      %2505 = vmatprep.subr.mxu0 0.0
      %2506 = vmatpush1.msra.mxu0 0.0
      %2507 = vmatprep.subr.mxu0 0.0
      %2508 = vmatpush1.msra.mxu0 0.0
      %2509 = vmatprep.subr.mxu0 0.0
      %2510 = vmatpush1.msra.mxu0 0.0
      %2511 = vmatprep.subr.mxu0 0.0
      %2512 = vmatpush1.msra.mxu0 0.0
      %2513 = vmatprep.subr.mxu0 0.0
      %2514 = vmatpush1.msra.mxu0 0.0
      %2515 = vmatprep.subr.mxu0 0.0
      %2516 = vmatpush1.msra.mxu0 0.0
      %2517 = vmatprep.subr.mxu0 0.0
      %2518 = vmatpush1.msra.mxu0 0.0
      %2519 = vmatprep.subr.mxu0 0.0
      %2520 = vmatpush1.msra.mxu0 0.0
      %2521 = vmatprep.subr.mxu0 0.0
      %2522 = vmatpush1.msra.mxu0 0.0
      %2523 = vmatprep.subr.mxu0 0.0
      %2524 = vmatpush1.msra.mxu0 0.0
      %2525 = vmatprep.subr.mxu0 0.0
      %2526 = vmatpush1.msra.mxu0 0.0
      %2527 = vmatprep.subr.mxu0 0.0
      %2528 = vmatpush1.msra.mxu0 0.0
      %2529 = vmatprep.mubr.f32.mxu0 0.0
      %2530 = vmatmul.mubr.f32.gmra.mrb[0].mxu0 %v957
      %v2531 = vpop.f32.mrb[0].mxu0
      %v2532 = vadd.f32 0.0, %v2531
      %v2533 = vpop.f32.mrb[0].mxu0
      %2534 = vmatprep.mubr.f32.mxu0 0.0
      %2535 = vmatmul.mubr.f32.gmra.mrb[0].mxu0 %v959
      %v2536 = vpop.f32.mrb[0].mxu0
      %v2537 = vadd.f32 0.0, %v2536
      %v2538 = vpop.f32.mrb[0].mxu0
      %2539 = vmatprep.mubr.f32.mxu0 0.0
      %2540 = vmatmul.mubr.f32.gmra.mrb[0].mxu0 %v961
      %v2541 = vpop.f32.mrb[0].mxu0
      %v2542 = vadd.f32 0.0, %v2541
      %v2543 = vpop.f32.mrb[0].mxu0
      %2544 = vmatprep.mubr.f32.mxu0 0.0
      %2545 = vmatmul.mubr.f32.gmra.mrb[0].mxu0 %v963
      %v2546 = vpop.f32.mrb[0].mxu0
      %v2547 = vadd.f32 0.0, %v2546
      %v2548 = vpop.f32.mrb[0].mxu0
      %2549 = vmatprep.mubr.f32.mxu0 0.0
      %2550 = vmatmul.mubr.f32.gmra.mrb[0].mxu0 %v965
      %v2551 = vpop.f32.mrb[0].mxu0
      %v2552 = vadd.f32 0.0, %v2551
      %v2553 = vpop.f32.mrb[0].mxu0
      %2554 = vmatprep.mubr.f32.mxu0 0.0
      %2555 = vmatmul.mubr.f32.gmra.mrb[0].mxu0 %v967
      %v2556 = vpop.f32.mrb[0].mxu0
      %v2557 = vadd.f32 0.0, %v2556
      %v2558 = vpop.f32.mrb[0].mxu0
      %2559 = vmatprep.mubr.f32.mxu0 0.0
      %2560 = vmatmul.mubr.f32.gmra.mrb[0].mxu0 %v969
      %v2561 = vpop.f32.mrb[0].mxu0
      %v2562 = vadd.f32 0.0, %v2561
      %v2563 = vpop.f32.mrb[0].mxu0
      %2564 = vmatprep.mubr.f32.mxu0 0.0
      %2565 = vmatmul.mubr.f32.gmra.mrb[0].mxu0 %v971
      %v2566 = vpop.f32.mrb[0].mxu0
      %v2567 = vadd.f32 0.0, %v2566
      %v2568 = vpop.f32.mrb[0].mxu0
      %2569 = vmatprep.mubr.f32.mxu0 0.0
      %2570 = vmatmul.mubr.f32.gmra.mrb[0].mxu0 %v973
      %v2571 = vpop.f32.mrb[0].mxu0
      %v2572 = vadd.f32 0.0, %v2571
      %v2573 = vpop.f32.mrb[0].mxu0
      %2574 = vmatprep.mubr.f32.mxu0 0.0
      %2575 = vmatmul.mubr.f32.gmra.mrb[0].mxu0 %v975
      %v2576 = vpop.f32.mrb[0].mxu0
      %v2577 = vadd.f32 0.0, %v2576
      %v2578 = vpop.f32.mrb[0].mxu0
      %2579 = vmatprep.mubr.f32.mxu0 0.0
      %2580 = vmatmul.mubr.f32.gmra.mrb[0].mxu0 %v977
      %v2581 = vpop.f32.mrb[0].mxu0
      %v2582 = vadd.f32 0.0, %v2581
      %v2583 = vpop.f32.mrb[0].mxu0
      %2584 = vmatprep.mubr.f32.mxu0 0.0
      %2585 = vmatmul.mubr.f32.gmra.mrb[0].mxu0 %v979
      %v2586 = vpop.f32.mrb[0].mxu0
      %v2587 = vadd.f32 0.0, %v2586
      %v2588 = vpop.f32.mrb[0].mxu0
      %2589 = vmatprep.mubr.f32.mxu0 0.0
      %2590 = vmatmul.mubr.f32.gmra.mrb[0].mxu0 %v981
      %v2591 = vpop.f32.mrb[0].mxu0
      %v2592 = vadd.f32 0.0, %v2591
      %v2593 = vpop.f32.mrb[0].mxu0
      %2594 = vmatprep.mubr.f32.mxu0 0.0
      %2595 = vmatmul.mubr.f32.gmra.mrb[0].mxu0 %v983
      %v2596 = vpop.f32.mrb[0].mxu0
      %v2597 = vadd.f32 0.0, %v2596
      %v2598 = vpop.f32.mrb[0].mxu0
      %2599 = vmatprep.mubr.f32.mxu0 0.0
      %2600 = vmatmul.mubr.f32.gmra.mrb[0].mxu0 %v985
      %v2601 = vpop.f32.mrb[0].mxu0
      %v2602 = vadd.f32 0.0, %v2601
      %v2603 = vpop.f32.mrb[0].mxu0
      %2604 = vmatprep.mubr.f32.mxu0 0.0
      %2605 = vmatmul.mubr.f32.gmra.mrb[0].mxu0 %v987
      %v2606 = vpop.f32.mrb[0].mxu0
      %v2607 = vadd.f32 0.0, %v2606
      %v2608 = vpop.f32.mrb[0].mxu0
      %2609 = vmatprep.mubr.f32.mxu0 0.0
      %2610 = vmatmul.mubr.f32.gmra.mrb[0].mxu0 %v989
      %v2611 = vpop.f32.mrb[0].mxu0
      %v2612 = vadd.f32 0.0, %v2611
      %v2613 = vpop.f32.mrb[0].mxu0
      %2614 = vmatprep.mubr.f32.mxu0 0.0
      %2615 = vmatmul.mubr.f32.gmra.mrb[0].mxu0 %v991
      %v2616 = vpop.f32.mrb[0].mxu0
      %v2617 = vadd.f32 0.0, %v2616
      %v2618 = vpop.f32.mrb[0].mxu0
      %2619 = vmatprep.mubr.f32.mxu0 0.0
      %2620 = vmatmul.mubr.f32.gmra.mrb[0].mxu0 %v993
      %v2621 = vpop.f32.mrb[0].mxu0
      %v2622 = vadd.f32 0.0, %v2621
      %v2623 = vpop.f32.mrb[0].mxu0
      %2624 = vmatprep.mubr.f32.mxu0 0.0
      %2625 = vmatmul.mubr.f32.gmra.mrb[0].mxu0 %v995
      %v2626 = vpop.f32.mrb[0].mxu0
      %v2627 = vadd.f32 0.0, %v2626
      %v2628 = vpop.f32.mrb[0].mxu0
      %2629 = vmatprep.mubr.f32.mxu0 0.0
      %2630 = vmatmul.mubr.f32.gmra.mrb[0].mxu0 %v997
      %v2631 = vpop.f32.mrb[0].mxu0
      %v2632 = vadd.f32 0.0, %v2631
      %v2633 = vpop.f32.mrb[0].mxu0
      %2634 = vmatprep.mubr.f32.mxu0 0.0
      %2635 = vmatmul.mubr.f32.gmra.mrb[0].mxu0 %v999
      %v2636 = vpop.f32.mrb[0].mxu0
      %v2637 = vadd.f32 0.0, %v2636
      %v2638 = vpop.f32.mrb[0].mxu0
      %2639 = vmatprep.mubr.f32.mxu0 0.0
      %2640 = vmatmul.mubr.f32.gmra.mrb[0].mxu0 %v1001
      %v2641 = vpop.f32.mrb[0].mxu0
      %v2642 = vadd.f32 0.0, %v2641
      %v2643 = vpop.f32.mrb[0].mxu0
      %2644 = vmatprep.mubr.f32.mxu0 0.0
      %2645 = vmatmul.mubr.f32.gmra.mrb[0].mxu0 %v1003
      %v2646 = vpop.f32.mrb[0].mxu0
      %v2647 = vadd.f32 0.0, %v2646
      %v2648 = vpop.f32.mrb[0].mxu0
      %2649 = vmatprep.mubr.f32.mxu0 0.0
      %2650 = vmatmul.mubr.f32.gmra.mrb[0].mxu0 %v1005
      %v2651 = vpop.f32.mrb[0].mxu0
      %v2652 = vadd.f32 0.0, %v2651
      %v2653 = vpop.f32.mrb[0].mxu0
      %2654 = vmatprep.mubr.f32.mxu0 0.0
      %2655 = vmatmul.mubr.f32.gmra.mrb[0].mxu0 %v1007
      %v2656 = vpop.f32.mrb[0].mxu0
      %v2657 = vadd.f32 0.0, %v2656
      %v2658 = vpop.f32.mrb[0].mxu0
      %2659 = vmatprep.mubr.f32.mxu0 0.0
      %2660 = vmatmul.mubr.f32.gmra.mrb[0].mxu0 %v1009
      %v2661 = vpop.f32.mrb[0].mxu0
      %v2662 = vadd.f32 0.0, %v2661
      %v2663 = vpop.f32.mrb[0].mxu0
      %2664 = vmatprep.mubr.f32.mxu0 0.0
      %2665 = vmatmul.mubr.f32.gmra.mrb[0].mxu0 %v1011
      %v2666 = vpop.f32.mrb[0].mxu0
      %v2667 = vadd.f32 0.0, %v2666
      %v2668 = vpop.f32.mrb[0].mxu0
      %2669 = vmatprep.mubr.f32.mxu0 0.0
      %2670 = vmatmul.mubr.f32.gmra.mrb[0].mxu0 %v1649
      %v2671 = vpop.f32.mrb[0].mxu0
      %v2672 = vadd.f32 0.0, %v2671
      %v2673 = vpop.f32.mrb[0].mxu0
      %2674 = vmatprep.mubr.f32.mxu0 0.0
      %2675 = vmatmul.mubr.f32.gmra.mrb[0].mxu0 %v1652
      %v2676 = vpop.f32.mrb[0].mxu0
      %v2677 = vadd.f32 0.0, %v2676
      %v2678 = vpop.f32.mrb[0].mxu0
      %2679 = vmatprep.mubr.f32.mxu0 0.0
      %2680 = vmatmul.mubr.f32.gmra.mrb[0].mxu0 %v2457
      %v2681 = vpop.f32.mrb[0].mxu0
      %v2682 = vadd.f32 0.0, %v2681
      %v2683 = vpop.f32.mrb[0].mxu0
      %2684 = vmatprep.mubr.f32.mxu0 0.0
      %2685 = vmatmul.mubr.f32.gmra.mrb[0].mxu0 %v2460
      %v2686 = vpop.f32.mrb[0].mxu0
      %v2687 = vadd.f32 0.0, %v2686
      %v2688 = vpop.f32.mrb[0].mxu0
      %2689 = vdwg.mxu0
      %v2690 = vadd.f32 %v2423, %v2532
      %v2691 = vadd.f32 %v2424, %v2537
      %v2692 = vadd.f32 %v2425, %v2542
      %v2693 = vadd.f32 %v2426, %v2547
      %v2694 = vadd.f32 %v2427, %v2552
      %v2695 = vadd.f32 %v2428, %v2557
      %v2696 = vadd.f32 %v2429, %v2562
      %v2697 = vadd.f32 %v2430, %v2567
      %v2698 = vadd.f32 %v2431, %v2572
      %v2699 = vadd.f32 %v2432, %v2577
      %v2700 = vadd.f32 %v2433, %v2582
      %v2701 = vadd.f32 %v2434, %v2587
      %v2702 = vadd.f32 %v2435, %v2592
      %v2703 = vadd.f32 %v2436, %v2597
      %v2704 = vadd.f32 %v2437, %v2602
      %v2705 = vadd.f32 %v2438, %v2607
      %v2706 = vadd.f32 %v2439, %v2612
      %v2707 = vadd.f32 %v2440, %v2617
      %v2708 = vadd.f32 %v2441, %v2622
      %v2709 = vadd.f32 %v2442, %v2627
      %v2710 = vadd.f32 %v2443, %v2632
      %v2711 = vadd.f32 %v2444, %v2637
      %v2712 = vadd.f32 %v2445, %v2642
      %v2713 = vadd.f32 %v2446, %v2647
      %v2714 = vadd.f32 %v2447, %v2652
      %v2715 = vadd.f32 %v2448, %v2657
      %v2716 = vadd.f32 %v2449, %v2662
      %v2717 = vadd.f32 %v2450, %v2667
      %v2718 = vadd.f32 %v2451, %v2672
      %v2719 = vadd.f32 %v2452, %v2677
      %v2720 = vadd.f32 %v2453, %v2682
      %v2721 = vadd.f32 %v2454, %v2687
      %v2723 = vrot.slane %v522, 1
      %v2724 = vrot.slane %v523, 1
      %v2725 = vsel %vm574, %v2723, %v2724
      %v2726 = vrot.slane %v524, 1
      %v2727 = vsel %vm574, %v2724, %v2726
      %v2728 = vld [vmem:[%s3 + $0x1c] sm:$0xf]
      %v2729 = vsel %vm396, %v2725, 0
      %v2731 = vsel %vm396, %v2727, 0
      %v2734 = vsel %vm720, %v2728, 0
      %2736 = vmatprep.subr.mxu0 0.0
      %2737 = vmatpush1.msra.mxu0 %v2734
      %2738 = vmatprep.subr.mxu0 0.0
      %2739 = vmatpush1.msra.mxu0 0.0
      %2740 = vmatprep.subr.mxu0 0.0
      %2741 = vmatpush1.msra.mxu0 0.0
      %2742 = vmatprep.subr.mxu0 0.0
      %2743 = vmatpush1.msra.mxu0 0.0
      %2744 = vmatprep.subr.mxu0 0.0
      %2745 = vmatpush1.msra.mxu0 0.0
      %2746 = vmatprep.subr.mxu0 0.0
      %2747 = vmatpush1.msra.mxu0 0.0
      %2748 = vmatprep.subr.mxu0 0.0
      %2749 = vmatpush1.msra.mxu0 0.0
      %2750 = vmatprep.subr.mxu0 0.0
      %2751 = vmatpush1.msra.mxu0 0.0
      %2752 = vmatprep.subr.mxu0 0.0
      %2753 = vmatpush1.msra.mxu0 0.0
      %2754 = vmatprep.subr.mxu0 0.0
      %2755 = vmatpush1.msra.mxu0 0.0
      %2756 = vmatprep.subr.mxu0 0.0
      %2757 = vmatpush1.msra.mxu0 0.0
      %2758 = vmatprep.subr.mxu0 0.0
      %2759 = vmatpush1.msra.mxu0 0.0
      %2760 = vmatprep.subr.mxu0 0.0
      %2761 = vmatpush1.msra.mxu0 0.0
      %2762 = vmatprep.subr.mxu0 0.0
      %2763 = vmatpush1.msra.mxu0 0.0
      %2764 = vmatprep.subr.mxu0 0.0
      %2765 = vmatpush1.msra.mxu0 0.0
      %2766 = vmatprep.subr.mxu0 0.0
      %2767 = vmatpush1.msra.mxu0 0.0
      %2768 = vmatprep.subr.mxu0 0.0
      %2769 = vmatpush1.msra.mxu0 0.0
      %2770 = vmatprep.subr.mxu0 0.0
      %2771 = vmatpush1.msra.mxu0 0.0
      %2772 = vmatprep.subr.mxu0 0.0
      %2773 = vmatpush1.msra.mxu0 0.0
      %2774 = vmatprep.subr.mxu0 0.0
      %2775 = vmatpush1.msra.mxu0 0.0
      %2776 = vmatprep.subr.mxu0 0.0
      %2777 = vmatpush1.msra.mxu0 0.0
      %2778 = vmatprep.subr.mxu0 0.0
      %2779 = vmatpush1.msra.mxu0 0.0
      %2780 = vmatprep.subr.mxu0 0.0
      %2781 = vmatpush1.msra.mxu0 0.0
      %2782 = vmatprep.subr.mxu0 0.0
      %2783 = vmatpush1.msra.mxu0 0.0
      %2784 = vmatprep.subr.mxu0 0.0
      %2785 = vmatpush1.msra.mxu0 0.0
      %2786 = vmatprep.subr.mxu0 0.0
      %2787 = vmatpush1.msra.mxu0 0.0
      %2788 = vmatprep.subr.mxu0 0.0
      %2789 = vmatpush1.msra.mxu0 0.0
      %2790 = vmatprep.subr.mxu0 0.0
      %2791 = vmatpush1.msra.mxu0 0.0
      %2792 = vmatprep.subr.mxu0 0.0
      %2793 = vmatpush1.msra.mxu0 0.0
      %2794 = vmatprep.subr.mxu0 0.0
      %2795 = vmatpush1.msra.mxu0 0.0
      %2796 = vmatprep.subr.mxu0 0.0
      %2797 = vmatpush1.msra.mxu0 0.0
      %2798 = vmatprep.subr.mxu0 0.0
      %2799 = vmatpush1.msra.mxu0 0.0
      %2800 = vmatprep.mubr.f32.mxu0 0.0
      %2801 = vmatmul.mubr.f32.gmra.mrb[0].mxu0 %v664
      %v2802 = vpop.f32.mrb[0].mxu0
      %v2803 = vadd.f32 0.0, %v2802
      %v2804 = vpop.f32.mrb[0].mxu0
      %2805 = vmatprep.mubr.f32.mxu0 0.0
      %2806 = vmatmul.mubr.f32.gmra.mrb[0].mxu0 %v666
      %v2807 = vpop.f32.mrb[0].mxu0
      %v2808 = vadd.f32 0.0, %v2807
      %v2809 = vpop.f32.mrb[0].mxu0
      %2810 = vmatprep.mubr.f32.mxu0 0.0
      %2811 = vmatmul.mubr.f32.gmra.mrb[0].mxu0 %v668
      %v2812 = vpop.f32.mrb[0].mxu0
      %v2813 = vadd.f32 0.0, %v2812
      %v2814 = vpop.f32.mrb[0].mxu0
      %2815 = vmatprep.mubr.f32.mxu0 0.0
      %2816 = vmatmul.mubr.f32.gmra.mrb[0].mxu0 %v670
      %v2817 = vpop.f32.mrb[0].mxu0
      %v2818 = vadd.f32 0.0, %v2817
      %v2819 = vpop.f32.mrb[0].mxu0
      %2820 = vmatprep.mubr.f32.mxu0 0.0
      %2821 = vmatmul.mubr.f32.gmra.mrb[0].mxu0 %v672
      %v2822 = vpop.f32.mrb[0].mxu0
      %v2823 = vadd.f32 0.0, %v2822
      %v2824 = vpop.f32.mrb[0].mxu0
      %2825 = vmatprep.mubr.f32.mxu0 0.0
      %2826 = vmatmul.mubr.f32.gmra.mrb[0].mxu0 %v674
      %v2827 = vpop.f32.mrb[0].mxu0
      %v2828 = vadd.f32 0.0, %v2827
      %v2829 = vpop.f32.mrb[0].mxu0
      %2830 = vmatprep.mubr.f32.mxu0 0.0
      %2831 = vmatmul.mubr.f32.gmra.mrb[0].mxu0 %v676
      %v2832 = vpop.f32.mrb[0].mxu0
      %v2833 = vadd.f32 0.0, %v2832
      %v2834 = vpop.f32.mrb[0].mxu0
      %2835 = vmatprep.mubr.f32.mxu0 0.0
      %2836 = vmatmul.mubr.f32.gmra.mrb[0].mxu0 %v678
      %v2837 = vpop.f32.mrb[0].mxu0
      %v2838 = vadd.f32 0.0, %v2837
      %v2839 = vpop.f32.mrb[0].mxu0
      %2840 = vmatprep.mubr.f32.mxu0 0.0
      %2841 = vmatmul.mubr.f32.gmra.mrb[0].mxu0 %v680
      %v2842 = vpop.f32.mrb[0].mxu0
      %v2843 = vadd.f32 0.0, %v2842
      %v2844 = vpop.f32.mrb[0].mxu0
      %2845 = vmatprep.mubr.f32.mxu0 0.0
      %2846 = vmatmul.mubr.f32.gmra.mrb[0].mxu0 %v682
      %v2847 = vpop.f32.mrb[0].mxu0
      %v2848 = vadd.f32 0.0, %v2847
      %v2849 = vpop.f32.mrb[0].mxu0
      %2850 = vmatprep.mubr.f32.mxu0 0.0
      %2851 = vmatmul.mubr.f32.gmra.mrb[0].mxu0 %v684
      %v2852 = vpop.f32.mrb[0].mxu0
      %v2853 = vadd.f32 0.0, %v2852
      %v2854 = vpop.f32.mrb[0].mxu0
      %2855 = vmatprep.mubr.f32.mxu0 0.0
      %2856 = vmatmul.mubr.f32.gmra.mrb[0].mxu0 %v686
      %v2857 = vpop.f32.mrb[0].mxu0
      %v2858 = vadd.f32 0.0, %v2857
      %v2859 = vpop.f32.mrb[0].mxu0
      %2860 = vmatprep.mubr.f32.mxu0 0.0
      %2861 = vmatmul.mubr.f32.gmra.mrb[0].mxu0 %v688
      %v2862 = vpop.f32.mrb[0].mxu0
      %v2863 = vadd.f32 0.0, %v2862
      %v2864 = vpop.f32.mrb[0].mxu0
      %2865 = vmatprep.mubr.f32.mxu0 0.0
      %2866 = vmatmul.mubr.f32.gmra.mrb[0].mxu0 %v690
      %v2867 = vpop.f32.mrb[0].mxu0
      %v2868 = vadd.f32 0.0, %v2867
      %v2869 = vpop.f32.mrb[0].mxu0
      %2870 = vmatprep.mubr.f32.mxu0 0.0
      %2871 = vmatmul.mubr.f32.gmra.mrb[0].mxu0 %v692
      %v2872 = vpop.f32.mrb[0].mxu0
      %v2873 = vadd.f32 0.0, %v2872
      %v2874 = vpop.f32.mrb[0].mxu0
      %2875 = vmatprep.mubr.f32.mxu0 0.0
      %2876 = vmatmul.mubr.f32.gmra.mrb[0].mxu0 %v694
      %v2877 = vpop.f32.mrb[0].mxu0
      %v2878 = vadd.f32 0.0, %v2877
      %v2879 = vpop.f32.mrb[0].mxu0
      %2880 = vmatprep.mubr.f32.mxu0 0.0
      %2881 = vmatmul.mubr.f32.gmra.mrb[0].mxu0 %v696
      %v2882 = vpop.f32.mrb[0].mxu0
      %v2883 = vadd.f32 0.0, %v2882
      %v2884 = vpop.f32.mrb[0].mxu0
      %2885 = vmatprep.mubr.f32.mxu0 0.0
      %2886 = vmatmul.mubr.f32.gmra.mrb[0].mxu0 %v698
      %v2887 = vpop.f32.mrb[0].mxu0
      %v2888 = vadd.f32 0.0, %v2887
      %v2889 = vpop.f32.mrb[0].mxu0
      %2890 = vmatprep.mubr.f32.mxu0 0.0
      %2891 = vmatmul.mubr.f32.gmra.mrb[0].mxu0 %v700
      %v2892 = vpop.f32.mrb[0].mxu0
      %v2893 = vadd.f32 0.0, %v2892
      %v2894 = vpop.f32.mrb[0].mxu0
      %2895 = vmatprep.mubr.f32.mxu0 0.0
      %2896 = vmatmul.mubr.f32.gmra.mrb[0].mxu0 %v702
      %v2897 = vpop.f32.mrb[0].mxu0
      %v2898 = vadd.f32 0.0, %v2897
      %v2899 = vpop.f32.mrb[0].mxu0
      %2900 = vmatprep.mubr.f32.mxu0 0.0
      %2901 = vmatmul.mubr.f32.gmra.mrb[0].mxu0 %v704
      %v2902 = vpop.f32.mrb[0].mxu0
      %v2903 = vadd.f32 0.0, %v2902
      %v2904 = vpop.f32.mrb[0].mxu0
      %2905 = vmatprep.mubr.f32.mxu0 0.0
      %2906 = vmatmul.mubr.f32.gmra.mrb[0].mxu0 %v706
      %v2907 = vpop.f32.mrb[0].mxu0
      %v2908 = vadd.f32 0.0, %v2907
      %v2909 = vpop.f32.mrb[0].mxu0
      %2910 = vmatprep.mubr.f32.mxu0 0.0
      %2911 = vmatmul.mubr.f32.gmra.mrb[0].mxu0 %v708
      %v2912 = vpop.f32.mrb[0].mxu0
      %v2913 = vadd.f32 0.0, %v2912
      %v2914 = vpop.f32.mrb[0].mxu0
      %2915 = vmatprep.mubr.f32.mxu0 0.0
      %2916 = vmatmul.mubr.f32.gmra.mrb[0].mxu0 %v710
      %v2917 = vpop.f32.mrb[0].mxu0
      %v2918 = vadd.f32 0.0, %v2917
      %v2919 = vpop.f32.mrb[0].mxu0
      %2920 = vmatprep.mubr.f32.mxu0 0.0
      %2921 = vmatmul.mubr.f32.gmra.mrb[0].mxu0 %v712
      %v2922 = vpop.f32.mrb[0].mxu0
      %v2923 = vadd.f32 0.0, %v2922
      %v2924 = vpop.f32.mrb[0].mxu0
      %2925 = vmatprep.mubr.f32.mxu0 0.0
      %2926 = vmatmul.mubr.f32.gmra.mrb[0].mxu0 %v714
      %v2927 = vpop.f32.mrb[0].mxu0
      %v2928 = vadd.f32 0.0, %v2927
      %v2929 = vpop.f32.mrb[0].mxu0
      %2930 = vmatprep.mubr.f32.mxu0 0.0
      %2931 = vmatmul.mubr.f32.gmra.mrb[0].mxu0 %v716
      %v2932 = vpop.f32.mrb[0].mxu0
      %v2933 = vadd.f32 0.0, %v2932
      %v2934 = vpop.f32.mrb[0].mxu0
      %2935 = vmatprep.mubr.f32.mxu0 0.0
      %2936 = vmatmul.mubr.f32.gmra.mrb[0].mxu0 %v718
      %v2937 = vpop.f32.mrb[0].mxu0
      %v2938 = vadd.f32 0.0, %v2937
      %v2939 = vpop.f32.mrb[0].mxu0
      %2940 = vmatprep.mubr.f32.mxu0 0.0
      %2941 = vmatmul.mubr.f32.gmra.mrb[0].mxu0 %v1921
      %v2942 = vpop.f32.mrb[0].mxu0
      %v2943 = vadd.f32 0.0, %v2942
      %v2944 = vpop.f32.mrb[0].mxu0
      %2945 = vmatprep.mubr.f32.mxu0 0.0
      %2946 = vmatmul.mubr.f32.gmra.mrb[0].mxu0 %v1923
      %v2947 = vpop.f32.mrb[0].mxu0
      %v2948 = vadd.f32 0.0, %v2947
      %v2949 = vpop.f32.mrb[0].mxu0
      %2950 = vmatprep.mubr.f32.mxu0 0.0
      %2951 = vmatmul.mubr.f32.gmra.mrb[0].mxu0 %v2729
      %v2952 = vpop.f32.mrb[0].mxu0
      %v2953 = vadd.f32 0.0, %v2952
      %v2954 = vpop.f32.mrb[0].mxu0
      %2955 = vmatprep.mubr.f32.mxu0 0.0
      %2956 = vmatmul.mubr.f32.gmra.mrb[0].mxu0 %v2731
      %v2957 = vpop.f32.mrb[0].mxu0
      %v2958 = vadd.f32 0.0, %v2957
      %v2959 = vpop.f32.mrb[0].mxu0
      %2960 = vdwg.mxu0
      %v2961 = vadd.f32 %v2690, %v2803
      %v2962 = vadd.f32 %v2691, %v2808
      %v2963 = vadd.f32 %v2692, %v2813
      %v2964 = vadd.f32 %v2693, %v2818
      %v2965 = vadd.f32 %v2694, %v2823
      %v2966 = vadd.f32 %v2695, %v2828
      %v2967 = vadd.f32 %v2696, %v2833
      %v2968 = vadd.f32 %v2697, %v2838
      %v2969 = vadd.f32 %v2698, %v2843
      %v2970 = vadd.f32 %v2699, %v2848
      %v2971 = vadd.f32 %v2700, %v2853
      %v2972 = vadd.f32 %v2701, %v2858
      %v2973 = vadd.f32 %v2702, %v2863
      %v2974 = vadd.f32 %v2703, %v2868
      %v2975 = vadd.f32 %v2704, %v2873
      %v2976 = vadd.f32 %v2705, %v2878
      %v2977 = vadd.f32 %v2706, %v2883
      %v2978 = vadd.f32 %v2707, %v2888
      %v2979 = vadd.f32 %v2708, %v2893
      %v2980 = vadd.f32 %v2709, %v2898
      %v2981 = vadd.f32 %v2710, %v2903
      %v2982 = vadd.f32 %v2711, %v2908
      %v2983 = vadd.f32 %v2712, %v2913
      %v2984 = vadd.f32 %v2713, %v2918
      %v2985 = vadd.f32 %v2714, %v2923
      %v2986 = vadd.f32 %v2715, %v2928
      %v2987 = vadd.f32 %v2716, %v2933
      %v2988 = vadd.f32 %v2717, %v2938
      %v2989 = vadd.f32 %v2718, %v2943
      %v2990 = vadd.f32 %v2719, %v2948
      %v2991 = vadd.f32 %v2720, %v2953
      %v2992 = vadd.f32 %v2721, %v2958
      %v2993 = vrot.slane %v522, 2
      %v2994 = vrot.slane %v523, 2
      %v2995 = vsel %vm1241, %v2993, %v2994
      %v2996 = vrot.slane %v524, 2
      %v2997 = vsel %vm1241, %v2994, %v2996
      %v2998 = vld [vmem:[%s3 + $0x20] sm:$0xf]
      %v2999 = vsel %vm396, %v2995, 0
      %v3001 = vsel %vm396, %v2997, 0
      %v3004 = vsel %vm720, %v2998, 0
      %3006 = vmatprep.subr.mxu0 0.0
      %3007 = vmatpush1.msra.mxu0 %v3004
      %3008 = vmatprep.subr.mxu0 0.0
      %3009 = vmatpush1.msra.mxu0 0.0
      %3010 = vmatprep.subr.mxu0 0.0
      %3011 = vmatpush1.msra.mxu0 0.0
      %3012 = vmatprep.subr.mxu0 0.0
      %3013 = vmatpush1.msra.mxu0 0.0
      %3014 = vmatprep.subr.mxu0 0.0
      %3015 = vmatpush1.msra.mxu0 0.0
      %3016 = vmatprep.subr.mxu0 0.0
      %3017 = vmatpush1.msra.mxu0 0.0
      %3018 = vmatprep.subr.mxu0 0.0
      %3019 = vmatpush1.msra.mxu0 0.0
      %3020 = vmatprep.subr.mxu0 0.0
      %3021 = vmatpush1.msra.mxu0 0.0
      %3022 = vmatprep.subr.mxu0 0.0
      %3023 = vmatpush1.msra.mxu0 0.0
      %3024 = vmatprep.subr.mxu0 0.0
      %3025 = vmatpush1.msra.mxu0 0.0
      %3026 = vmatprep.subr.mxu0 0.0
      %3027 = vmatpush1.msra.mxu0 0.0
      %3028 = vmatprep.subr.mxu0 0.0
      %3029 = vmatpush1.msra.mxu0 0.0
      %3030 = vmatprep.subr.mxu0 0.0
      %3031 = vmatpush1.msra.mxu0 0.0
      %3032 = vmatprep.subr.mxu0 0.0
      %3033 = vmatpush1.msra.mxu0 0.0
      %3034 = vmatprep.subr.mxu0 0.0
      %3035 = vmatpush1.msra.mxu0 0.0
      %3036 = vmatprep.subr.mxu0 0.0
      %3037 = vmatpush1.msra.mxu0 0.0
      %3038 = vmatprep.subr.mxu0 0.0
      %3039 = vmatpush1.msra.mxu0 0.0
      %3040 = vmatprep.subr.mxu0 0.0
      %3041 = vmatpush1.msra.mxu0 0.0
      %3042 = vmatprep.subr.mxu0 0.0
      %3043 = vmatpush1.msra.mxu0 0.0
      %3044 = vmatprep.subr.mxu0 0.0
      %3045 = vmatpush1.msra.mxu0 0.0
      %3046 = vmatprep.subr.mxu0 0.0
      %3047 = vmatpush1.msra.mxu0 0.0
      %3048 = vmatprep.subr.mxu0 0.0
      %3049 = vmatpush1.msra.mxu0 0.0
      %3050 = vmatprep.subr.mxu0 0.0
      %3051 = vmatpush1.msra.mxu0 0.0
      %3052 = vmatprep.subr.mxu0 0.0
      %3053 = vmatpush1.msra.mxu0 0.0
      %3054 = vmatprep.subr.mxu0 0.0
      %3055 = vmatpush1.msra.mxu0 0.0
      %3056 = vmatprep.subr.mxu0 0.0
      %3057 = vmatpush1.msra.mxu0 0.0
      %3058 = vmatprep.subr.mxu0 0.0
      %3059 = vmatpush1.msra.mxu0 0.0
      %3060 = vmatprep.subr.mxu0 0.0
      %3061 = vmatpush1.msra.mxu0 0.0
      %3062 = vmatprep.subr.mxu0 0.0
      %3063 = vmatpush1.msra.mxu0 0.0
      %3064 = vmatprep.subr.mxu0 0.0
      %3065 = vmatpush1.msra.mxu0 0.0
      %3066 = vmatprep.subr.mxu0 0.0
      %3067 = vmatpush1.msra.mxu0 0.0
      %3068 = vmatprep.subr.mxu0 0.0
      %3069 = vmatpush1.msra.mxu0 0.0
      %3070 = vmatprep.mubr.f32.mxu0 0.0
      %3071 = vmatmul.mubr.f32.gmra.mrb[0].mxu0 %v1331
      %v3072 = vpop.f32.mrb[0].mxu0
      %v3073 = vadd.f32 0.0, %v3072
      %v3074 = vpop.f32.mrb[0].mxu0
      %3075 = vmatprep.mubr.f32.mxu0 0.0
      %3076 = vmatmul.mubr.f32.gmra.mrb[0].mxu0 %v1333
      %v3077 = vpop.f32.mrb[0].mxu0
      %v3078 = vadd.f32 0.0, %v3077
      %v3079 = vpop.f32.mrb[0].mxu0
      %3080 = vmatprep.mubr.f32.mxu0 0.0
      %3081 = vmatmul.mubr.f32.gmra.mrb[0].mxu0 %v1335
      %v3082 = vpop.f32.mrb[0].mxu0
      %v3083 = vadd.f32 0.0, %v3082
      %v3084 = vpop.f32.mrb[0].mxu0
      %3085 = vmatprep.mubr.f32.mxu0 0.0
      %3086 = vmatmul.mubr.f32.gmra.mrb[0].mxu0 %v1337
      %v3087 = vpop.f32.mrb[0].mxu0
      %v3088 = vadd.f32 0.0, %v3087
      %v3089 = vpop.f32.mrb[0].mxu0
      %3090 = vmatprep.mubr.f32.mxu0 0.0
      %3091 = vmatmul.mubr.f32.gmra.mrb[0].mxu0 %v1339
      %v3092 = vpop.f32.mrb[0].mxu0
      %v3093 = vadd.f32 0.0, %v3092
      %v3094 = vpop.f32.mrb[0].mxu0
      %3095 = vmatprep.mubr.f32.mxu0 0.0
      %3096 = vmatmul.mubr.f32.gmra.mrb[0].mxu0 %v1341
      %v3097 = vpop.f32.mrb[0].mxu0
      %v3098 = vadd.f32 0.0, %v3097
      %v3099 = vpop.f32.mrb[0].mxu0
      %3100 = vmatprep.mubr.f32.mxu0 0.0
      %3101 = vmatmul.mubr.f32.gmra.mrb[0].mxu0 %v1343
      %v3102 = vpop.f32.mrb[0].mxu0
      %v3103 = vadd.f32 0.0, %v3102
      %v3104 = vpop.f32.mrb[0].mxu0
      %3105 = vmatprep.mubr.f32.mxu0 0.0
      %3106 = vmatmul.mubr.f32.gmra.mrb[0].mxu0 %v1345
      %v3107 = vpop.f32.mrb[0].mxu0
      %v3108 = vadd.f32 0.0, %v3107
      %v3109 = vpop.f32.mrb[0].mxu0
      %3110 = vmatprep.mubr.f32.mxu0 0.0
      %3111 = vmatmul.mubr.f32.gmra.mrb[0].mxu0 %v1347
      %v3112 = vpop.f32.mrb[0].mxu0
      %v3113 = vadd.f32 0.0, %v3112
      %v3114 = vpop.f32.mrb[0].mxu0
      %3115 = vmatprep.mubr.f32.mxu0 0.0
      %3116 = vmatmul.mubr.f32.gmra.mrb[0].mxu0 %v1349
      %v3117 = vpop.f32.mrb[0].mxu0
      %v3118 = vadd.f32 0.0, %v3117
      %v3119 = vpop.f32.mrb[0].mxu0
      %3120 = vmatprep.mubr.f32.mxu0 0.0
      %3121 = vmatmul.mubr.f32.gmra.mrb[0].mxu0 %v1351
      %v3122 = vpop.f32.mrb[0].mxu0
      %v3123 = vadd.f32 0.0, %v3122
      %v3124 = vpop.f32.mrb[0].mxu0
      %3125 = vmatprep.mubr.f32.mxu0 0.0
      %3126 = vmatmul.mubr.f32.gmra.mrb[0].mxu0 %v1353
      %v3127 = vpop.f32.mrb[0].mxu0
      %v3128 = vadd.f32 0.0, %v3127
      %v3129 = vpop.f32.mrb[0].mxu0
      %3130 = vmatprep.mubr.f32.mxu0 0.0
      %3131 = vmatmul.mubr.f32.gmra.mrb[0].mxu0 %v1355
      %v3132 = vpop.f32.mrb[0].mxu0
      %v3133 = vadd.f32 0.0, %v3132
      %v3134 = vpop.f32.mrb[0].mxu0
      %3135 = vmatprep.mubr.f32.mxu0 0.0
      %3136 = vmatmul.mubr.f32.gmra.mrb[0].mxu0 %v1357
      %v3137 = vpop.f32.mrb[0].mxu0
      %v3138 = vadd.f32 0.0, %v3137
      %v3139 = vpop.f32.mrb[0].mxu0
      %3140 = vmatprep.mubr.f32.mxu0 0.0
      %3141 = vmatmul.mubr.f32.gmra.mrb[0].mxu0 %v1359
      %v3142 = vpop.f32.mrb[0].mxu0
      %v3143 = vadd.f32 0.0, %v3142
      %v3144 = vpop.f32.mrb[0].mxu0
      %3145 = vmatprep.mubr.f32.mxu0 0.0
      %3146 = vmatmul.mubr.f32.gmra.mrb[0].mxu0 %v1361
      %v3147 = vpop.f32.mrb[0].mxu0
      %v3148 = vadd.f32 0.0, %v3147
      %v3149 = vpop.f32.mrb[0].mxu0
      %3150 = vmatprep.mubr.f32.mxu0 0.0
      %3151 = vmatmul.mubr.f32.gmra.mrb[0].mxu0 %v1363
      %v3152 = vpop.f32.mrb[0].mxu0
      %v3153 = vadd.f32 0.0, %v3152
      %v3154 = vpop.f32.mrb[0].mxu0
      %3155 = vmatprep.mubr.f32.mxu0 0.0
      %3156 = vmatmul.mubr.f32.gmra.mrb[0].mxu0 %v1365
      %v3157 = vpop.f32.mrb[0].mxu0
      %v3158 = vadd.f32 0.0, %v3157
      %v3159 = vpop.f32.mrb[0].mxu0
      %3160 = vmatprep.mubr.f32.mxu0 0.0
      %3161 = vmatmul.mubr.f32.gmra.mrb[0].mxu0 %v1367
      %v3162 = vpop.f32.mrb[0].mxu0
      %v3163 = vadd.f32 0.0, %v3162
      %v3164 = vpop.f32.mrb[0].mxu0
      %3165 = vmatprep.mubr.f32.mxu0 0.0
      %3166 = vmatmul.mubr.f32.gmra.mrb[0].mxu0 %v1369
      %v3167 = vpop.f32.mrb[0].mxu0
      %v3168 = vadd.f32 0.0, %v3167
      %v3169 = vpop.f32.mrb[0].mxu0
      %3170 = vmatprep.mubr.f32.mxu0 0.0
      %3171 = vmatmul.mubr.f32.gmra.mrb[0].mxu0 %v1371
      %v3172 = vpop.f32.mrb[0].mxu0
      %v3173 = vadd.f32 0.0, %v3172
      %v3174 = vpop.f32.mrb[0].mxu0
      %3175 = vmatprep.mubr.f32.mxu0 0.0
      %3176 = vmatmul.mubr.f32.gmra.mrb[0].mxu0 %v1373
      %v3177 = vpop.f32.mrb[0].mxu0
      %v3178 = vadd.f32 0.0, %v3177
      %v3179 = vpop.f32.mrb[0].mxu0
      %3180 = vmatprep.mubr.f32.mxu0 0.0
      %3181 = vmatmul.mubr.f32.gmra.mrb[0].mxu0 %v1375
      %v3182 = vpop.f32.mrb[0].mxu0
      %v3183 = vadd.f32 0.0, %v3182
      %v3184 = vpop.f32.mrb[0].mxu0
      %3185 = vmatprep.mubr.f32.mxu0 0.0
      %3186 = vmatmul.mubr.f32.gmra.mrb[0].mxu0 %v1377
      %v3187 = vpop.f32.mrb[0].mxu0
      %v3188 = vadd.f32 0.0, %v3187
      %v3189 = vpop.f32.mrb[0].mxu0
      %3190 = vmatprep.mubr.f32.mxu0 0.0
      %3191 = vmatmul.mubr.f32.gmra.mrb[0].mxu0 %v1379
      %v3192 = vpop.f32.mrb[0].mxu0
      %v3193 = vadd.f32 0.0, %v3192
      %v3194 = vpop.f32.mrb[0].mxu0
      %3195 = vmatprep.mubr.f32.mxu0 0.0
      %3196 = vmatmul.mubr.f32.gmra.mrb[0].mxu0 %v1381
      %v3197 = vpop.f32.mrb[0].mxu0
      %v3198 = vadd.f32 0.0, %v3197
      %v3199 = vpop.f32.mrb[0].mxu0
      %3200 = vmatprep.mubr.f32.mxu0 0.0
      %3201 = vmatmul.mubr.f32.gmra.mrb[0].mxu0 %v1383
      %v3202 = vpop.f32.mrb[0].mxu0
      %v3203 = vadd.f32 0.0, %v3202
      %v3204 = vpop.f32.mrb[0].mxu0
      %3205 = vmatprep.mubr.f32.mxu0 0.0
      %3206 = vmatmul.mubr.f32.gmra.mrb[0].mxu0 %v1385
      %v3207 = vpop.f32.mrb[0].mxu0
      %v3208 = vadd.f32 0.0, %v3207
      %v3209 = vpop.f32.mrb[0].mxu0
      %3210 = vmatprep.mubr.f32.mxu0 0.0
      %3211 = vmatmul.mubr.f32.gmra.mrb[0].mxu0 %v2191
      %v3212 = vpop.f32.mrb[0].mxu0
      %v3213 = vadd.f32 0.0, %v3212
      %v3214 = vpop.f32.mrb[0].mxu0
      %3215 = vmatprep.mubr.f32.mxu0 0.0
      %3216 = vmatmul.mubr.f32.gmra.mrb[0].mxu0 %v2193
      %v3217 = vpop.f32.mrb[0].mxu0
      %v3218 = vadd.f32 0.0, %v3217
      %v3219 = vpop.f32.mrb[0].mxu0
      %3220 = vmatprep.mubr.f32.mxu0 0.0
      %3221 = vmatmul.mubr.f32.gmra.mrb[0].mxu0 %v2999
      %v3222 = vpop.f32.mrb[0].mxu0
      %v3223 = vadd.f32 0.0, %v3222
      %v3224 = vpop.f32.mrb[0].mxu0
      %3225 = vmatprep.mubr.f32.mxu0 0.0
      %3226 = vmatmul.mubr.f32.gmra.mrb[0].mxu0 %v3001
      %v3227 = vpop.f32.mrb[0].mxu0
      %v3228 = vadd.f32 0.0, %v3227
      %v3229 = vpop.f32.mrb[0].mxu0
      %3230 = vdwg.mxu0
      %v3231 = vadd.f32 %v2961, %v3073
      %v3232 = vadd.f32 %v2962, %v3078
      %v3233 = vadd.f32 %v2963, %v3083
      %v3234 = vadd.f32 %v2964, %v3088
      %v3235 = vadd.f32 %v2965, %v3093
      %v3236 = vadd.f32 %v2966, %v3098
      %v3237 = vadd.f32 %v2967, %v3103
      %v3238 = vadd.f32 %v2968, %v3108
      %v3239 = vadd.f32 %v2969, %v3113
      %v3240 = vadd.f32 %v2970, %v3118
      %v3241 = vadd.f32 %v2971, %v3123
      %v3242 = vadd.f32 %v2972, %v3128
      %v3243 = vadd.f32 %v2973, %v3133
      %v3244 = vadd.f32 %v2974, %v3138
      %v3245 = vadd.f32 %v2975, %v3143
      %v3246 = vadd.f32 %v2976, %v3148
      %v3247 = vadd.f32 %v2977, %v3153
      %v3248 = vadd.f32 %v2978, %v3158
      %v3249 = vadd.f32 %v2979, %v3163
      %v3250 = vadd.f32 %v2980, %v3168
      %v3251 = vadd.f32 %v2981, %v3173
      %v3252 = vadd.f32 %v2982, %v3178
      %v3253 = vadd.f32 %v2983, %v3183
      %v3254 = vadd.f32 %v2984, %v3188
      %v3255 = vadd.f32 %v2985, %v3193
      %v3256 = vadd.f32 %v2986, %v3198
      %v3257 = vadd.f32 %v2987, %v3203
      %v3258 = vadd.f32 %v2988, %v3208
      %v3259 = vadd.f32 %v2989, %v3213
      %v3260 = vadd.f32 %v2990, %v3218
      %v3261 = vadd.f32 %v2991, %v3223
      %v3262 = vadd.f32 %v2992, %v3228
      %v3263 = vld [vmem:[%s5] sm:$0x1]
      %vm3264 = vcmask 64512
      %v3265 = vsel %vm3264, %v3231, 0.0
      %v3266 = vsel %vm3264, %v3232, 0.0
      %v3267 = vadd.f32 %v3265, %v3266
      %v3268 = vsel %vm3264, %v3233, 0.0
      %v3269 = vadd.f32 %v3267, %v3268
      %v3270 = vsel %vm3264, %v3234, 0.0
      %v3271 = vadd.f32 %v3269, %v3270
      %v3272 = vsel %vm3264, %v3235, 0.0
      %v3273 = vadd.f32 %v3271, %v3272
      %v3274 = vsel %vm3264, %v3236, 0.0
      %v3275 = vadd.f32 %v3273, %v3274
      %v3276 = vsel %vm3264, %v3237, 0.0
      %v3277 = vadd.f32 %v3275, %v3276
      %v3278 = vsel %vm3264, %v3238, 0.0
      %v3279 = vadd.f32 %v3277, %v3278
      %v3280 = vsel %vm3264, %v3239, 0.0
      %v3281 = vadd.f32 %v3279, %v3280
      %v3282 = vsel %vm3264, %v3240, 0.0
      %v3283 = vadd.f32 %v3281, %v3282
      %v3284 = vsel %vm3264, %v3241, 0.0
      %v3285 = vadd.f32 %v3283, %v3284
      %v3286 = vsel %vm3264, %v3242, 0.0
      %v3287 = vadd.f32 %v3285, %v3286
      %v3288 = vsel %vm3264, %v3243, 0.0
      %v3289 = vadd.f32 %v3287, %v3288
      %v3290 = vsel %vm3264, %v3244, 0.0
      %v3291 = vadd.f32 %v3289, %v3290
      %v3292 = vsel %vm3264, %v3245, 0.0
      %v3293 = vadd.f32 %v3291, %v3292
      %v3294 = vsel %vm3264, %v3246, 0.0
      %v3295 = vadd.f32 %v3293, %v3294
      %v3296 = vsel %vm3264, %v3247, 0.0
      %v3297 = vadd.f32 %v3295, %v3296
      %v3298 = vsel %vm3264, %v3248, 0.0
      %v3299 = vadd.f32 %v3297, %v3298
      %v3300 = vsel %vm3264, %v3249, 0.0
      %v3301 = vadd.f32 %v3299, %v3300
      %v3302 = vsel %vm3264, %v3250, 0.0
      %v3303 = vadd.f32 %v3301, %v3302
      %v3304 = vsel %vm3264, %v3251, 0.0
      %v3305 = vadd.f32 %v3303, %v3304
      %v3306 = vsel %vm3264, %v3252, 0.0
      %v3307 = vadd.f32 %v3305, %v3306
      %v3308 = vsel %vm3264, %v3253, 0.0
      %v3309 = vadd.f32 %v3307, %v3308
      %v3310 = vsel %vm3264, %v3254, 0.0
      %v3311 = vadd.f32 %v3309, %v3310
      %v3312 = vsel %vm3264, %v3255, 0.0
      %v3313 = vadd.f32 %v3311, %v3312
      %v3314 = vsel %vm3264, %v3256, 0.0
      %v3315 = vadd.f32 %v3313, %v3314
      %v3316 = vsel %vm3264, %v3257, 0.0
      %v3317 = vadd.f32 %v3315, %v3316
      %v3318 = vsel %vm3264, %v3258, 0.0
      %v3319 = vadd.f32 %v3317, %v3318
      %v3320 = vsel %vm3264, %v3259, 0.0
      %v3321 = vadd.f32 %v3319, %v3320
      %v3322 = vsel %vm3264, %v3260, 0.0
      %v3323 = vadd.f32 %v3321, %v3322
      %v3324 = vsel %vm3264, %v3261, 0.0
      %v3325 = vadd.f32 %v3323, %v3324
      %v3326 = vsel %vm3264, %v3262, 0.0
      %v3327 = vadd.f32 %v3325, %v3326
      %v3328 = vrot.slane %v3327, 4
      %v3329 = vadd.f32 %v3327, %v3328
      %v3330 = vrot.slane %v3329, 2
      %v3331 = vadd.f32 %v3329, %v3330
      %v3332 = vrot.slane %v3331, 1
      %v3333 = vadd.f32 %v3331, %v3332
      %v3334 = vadd.f32 %v3263, %v3333
      %vm3335 = vcmask 57344
      %3336 = vst.msk [vmem:[%s5] sm:$0x1] %vm3335, %v3334
      %v3337 = vld [vmem:[%s6] sm:$0x1]
      %v3338 = vmul.f32 %v3231, %v3231
      %v3339 = vmul.f32 %v3232, %v3232
      %v3340 = vmul.f32 %v3233, %v3233
      %v3341 = vmul.f32 %v3234, %v3234
      %v3342 = vmul.f32 %v3235, %v3235
      %v3343 = vmul.f32 %v3236, %v3236
      %v3344 = vmul.f32 %v3237, %v3237
      %v3345 = vmul.f32 %v3238, %v3238
      %v3346 = vmul.f32 %v3239, %v3239
      %v3347 = vmul.f32 %v3240, %v3240
      %v3348 = vmul.f32 %v3241, %v3241
      %v3349 = vmul.f32 %v3242, %v3242
      %v3350 = vmul.f32 %v3243, %v3243
      %v3351 = vmul.f32 %v3244, %v3244
      %v3352 = vmul.f32 %v3245, %v3245
      %v3353 = vmul.f32 %v3246, %v3246
      %v3354 = vmul.f32 %v3247, %v3247
      %v3355 = vmul.f32 %v3248, %v3248
      %v3356 = vmul.f32 %v3249, %v3249
      %v3357 = vmul.f32 %v3250, %v3250
      %v3358 = vmul.f32 %v3251, %v3251
      %v3359 = vmul.f32 %v3252, %v3252
      %v3360 = vmul.f32 %v3253, %v3253
      %v3361 = vmul.f32 %v3254, %v3254
      %v3362 = vmul.f32 %v3255, %v3255
      %v3363 = vmul.f32 %v3256, %v3256
      %v3364 = vmul.f32 %v3257, %v3257
      %v3365 = vmul.f32 %v3258, %v3258
      %v3366 = vmul.f32 %v3259, %v3259
      %v3367 = vmul.f32 %v3260, %v3260
      %v3368 = vmul.f32 %v3261, %v3261
      %v3369 = vmul.f32 %v3262, %v3262
      %v3370 = vsel %vm3264, %v3338, 0.0
      %v3371 = vsel %vm3264, %v3339, 0.0
      %v3372 = vadd.f32 %v3370, %v3371
      %v3373 = vsel %vm3264, %v3340, 0.0
      %v3374 = vadd.f32 %v3372, %v3373
      %v3375 = vsel %vm3264, %v3341, 0.0
      %v3376 = vadd.f32 %v3374, %v3375
      %v3377 = vsel %vm3264, %v3342, 0.0
      %v3378 = vadd.f32 %v3376, %v3377
      %v3379 = vsel %vm3264, %v3343, 0.0
      %v3380 = vadd.f32 %v3378, %v3379
      %v3381 = vsel %vm3264, %v3344, 0.0
      %v3382 = vadd.f32 %v3380, %v3381
      %v3383 = vsel %vm3264, %v3345, 0.0
      %v3384 = vadd.f32 %v3382, %v3383
      %v3385 = vsel %vm3264, %v3346, 0.0
      %v3386 = vadd.f32 %v3384, %v3385
      %v3387 = vsel %vm3264, %v3347, 0.0
      %v3388 = vadd.f32 %v3386, %v3387
      %v3389 = vsel %vm3264, %v3348, 0.0
      %v3390 = vadd.f32 %v3388, %v3389
      %v3391 = vsel %vm3264, %v3349, 0.0
      %v3392 = vadd.f32 %v3390, %v3391
      %v3393 = vsel %vm3264, %v3350, 0.0
      %v3394 = vadd.f32 %v3392, %v3393
      %v3395 = vsel %vm3264, %v3351, 0.0
      %v3396 = vadd.f32 %v3394, %v3395
      %v3397 = vsel %vm3264, %v3352, 0.0
      %v3398 = vadd.f32 %v3396, %v3397
      %v3399 = vsel %vm3264, %v3353, 0.0
      %v3400 = vadd.f32 %v3398, %v3399
      %v3401 = vsel %vm3264, %v3354, 0.0
      %v3402 = vadd.f32 %v3400, %v3401
      %v3403 = vsel %vm3264, %v3355, 0.0
      %v3404 = vadd.f32 %v3402, %v3403
      %v3405 = vsel %vm3264, %v3356, 0.0
      %v3406 = vadd.f32 %v3404, %v3405
      %v3407 = vsel %vm3264, %v3357, 0.0
      %v3408 = vadd.f32 %v3406, %v3407
      %v3409 = vsel %vm3264, %v3358, 0.0
      %v3410 = vadd.f32 %v3408, %v3409
      %v3411 = vsel %vm3264, %v3359, 0.0
      %v3412 = vadd.f32 %v3410, %v3411
      %v3413 = vsel %vm3264, %v3360, 0.0
      %v3414 = vadd.f32 %v3412, %v3413
      %v3415 = vsel %vm3264, %v3361, 0.0
      %v3416 = vadd.f32 %v3414, %v3415
      %v3417 = vsel %vm3264, %v3362, 0.0
      %v3418 = vadd.f32 %v3416, %v3417
      %v3419 = vsel %vm3264, %v3363, 0.0
      %v3420 = vadd.f32 %v3418, %v3419
      %v3421 = vsel %vm3264, %v3364, 0.0
      %v3422 = vadd.f32 %v3420, %v3421
      %v3423 = vsel %vm3264, %v3365, 0.0
      %v3424 = vadd.f32 %v3422, %v3423
      %v3425 = vsel %vm3264, %v3366, 0.0
      %v3426 = vadd.f32 %v3424, %v3425
      %v3427 = vsel %vm3264, %v3367, 0.0
      %v3428 = vadd.f32 %v3426, %v3427
      %v3429 = vsel %vm3264, %v3368, 0.0
      %v3430 = vadd.f32 %v3428, %v3429
      %v3431 = vsel %vm3264, %v3369, 0.0
      %v3432 = vadd.f32 %v3430, %v3431
      %v3433 = vrot.slane %v3432, 4
      %v3434 = vadd.f32 %v3432, %v3433
      %v3435 = vrot.slane %v3434, 2
      %v3436 = vadd.f32 %v3434, %v3435
      %v3437 = vrot.slane %v3436, 1
      %v3438 = vadd.f32 %v3436, %v3437
      %v3439 = vadd.f32 %v3337, %v3438
      %3440 = vst.msk [vmem:[%s6] sm:$0x1] %vm3335, %v3439
      %3441 = vst.msk [vmem:[%s246] sm:$0xff] %vm3264, %v3231
      %3442 = vst.msk [vmem:[%s246 + $0x8] sm:$0xff] %vm3264, %v3232
      %3443 = vst.msk [vmem:[%s246 + $0x10] sm:$0xff] %vm3264, %v3233
      %3444 = vst.msk [vmem:[%s246 + $0x18] sm:$0xff] %vm3264, %v3234
      %3445 = vst.msk [vmem:[%s246 + $0x20] sm:$0xff] %vm3264, %v3235
      %3446 = vst.msk [vmem:[%s246 + $0x28] sm:$0xff] %vm3264, %v3236
      %3447 = vst.msk [vmem:[%s246 + $0x30] sm:$0xff] %vm3264, %v3237
      %3448 = vst.msk [vmem:[%s246 + $0x38] sm:$0xff] %vm3264, %v3238
      %3449 = vst.msk [vmem:[%s246 + $0x40] sm:$0xff] %vm3264, %v3239
      %3450 = vst.msk [vmem:[%s246 + $0x48] sm:$0xff] %vm3264, %v3240
      %3451 = vst.msk [vmem:[%s246 + $0x50] sm:$0xff] %vm3264, %v3241
      %3452 = vst.msk [vmem:[%s246 + $0x58] sm:$0xff] %vm3264, %v3242
      %3453 = vst.msk [vmem:[%s246 + $0x60] sm:$0xff] %vm3264, %v3243
      %3454 = vst.msk [vmem:[%s246 + $0x68] sm:$0xff] %vm3264, %v3244
      %3455 = vst.msk [vmem:[%s246 + $0x70] sm:$0xff] %vm3264, %v3245
      %3456 = vst.msk [vmem:[%s246 + $0x78] sm:$0xff] %vm3264, %v3246
      %3457 = vst.msk [vmem:[%s246 + $0x80] sm:$0xff] %vm3264, %v3247
      %3458 = vst.msk [vmem:[%s246 + $0x88] sm:$0xff] %vm3264, %v3248
      %3459 = vst.msk [vmem:[%s246 + $0x90] sm:$0xff] %vm3264, %v3249
      %3460 = vst.msk [vmem:[%s246 + $0x98] sm:$0xff] %vm3264, %v3250
      %3461 = vst.msk [vmem:[%s246 + $0xa0] sm:$0xff] %vm3264, %v3251
      %3462 = vst.msk [vmem:[%s246 + $0xa8] sm:$0xff] %vm3264, %v3252
      %3463 = vst.msk [vmem:[%s246 + $0xb0] sm:$0xff] %vm3264, %v3253
      %3464 = vst.msk [vmem:[%s246 + $0xb8] sm:$0xff] %vm3264, %v3254
      %3465 = vst.msk [vmem:[%s246 + $0xc0] sm:$0xff] %vm3264, %v3255
      %3466 = vst.msk [vmem:[%s246 + $0xc8] sm:$0xff] %vm3264, %v3256
      %3467 = vst.msk [vmem:[%s246 + $0xd0] sm:$0xff] %vm3264, %v3257
      %3468 = vst.msk [vmem:[%s246 + $0xd8] sm:$0xff] %vm3264, %v3258
      %3469 = vst.msk [vmem:[%s246 + $0xe0] sm:$0xff] %vm3264, %v3259
      %3470 = vst.msk [vmem:[%s246 + $0xe8] sm:$0xff] %vm3264, %v3260
      %3471 = vst.msk [vmem:[%s246 + $0xf0] sm:$0xff] %vm3264, %v3261
      %3472 = vst.msk [vmem:[%s246 + $0xf8] sm:$0xff] %vm3264, %v3262
      %p3473 = scmp.lt.s32.totalorder %s18, 1
      %s3474 = scalar_select %p3473, %s18, 1
      %s3475 = smul.addr %s3474, 32
      %s3476 = smul.addr %s3475, 8
      %s3477 = scalar_lea.vmem %s4, %s3476
      // Predicated region
      $region41: #{basic_block_forward.4} parent=35 // pred_check
        %p3478 = pneg %p125
      $region42: #{basic_block_forward.4} parent=35 // pred_check_branch
        %3480 = sbr.rel (%p3478) target = $region44
      $region43: #{basic_block_forward.4} parent=35 // pred_region
        _
      $region44: #{basic_block_forward.4} parent=35 // pred_fallthru
        _
      // Predicated region
      $region45: #{basic_block_forward.4} parent=35 // pred_check
        %p3481 = pneg %p146
      $region46: #{basic_block_forward.4} parent=35 // pred_check_branch
        %3483 = sbr.rel (%p3481) target = $region48
      $region47: #{basic_block_forward.4} parent=35 // pred_region
        _
      $region48: #{basic_block_forward.4} parent=35 // pred_fallthru
        _
      // Predicated region
      $region49: #{basic_block_forward.4} parent=35 // pred_check
        %p3484 = pneg %p167
      $region50: #{basic_block_forward.4} parent=35 // pred_check_branch
        %3486 = sbr.rel (%p3484) target = $region52
      $region51: #{basic_block_forward.4} parent=35 // pred_region
        _
      $region52: #{basic_block_forward.4} parent=35 // pred_fallthru
        _
      // Predicated region
      $region53: #{basic_block_forward.4} parent=35 // pred_check
        %p3487 = pneg %p146
      $region54: #{basic_block_forward.4} parent=35 // pred_check_branch
        %3489 = sbr.rel (%p3487) target = $region56
      $region55: #{basic_block_forward.4} parent=35 // pred_region
        _
      $region56: #{basic_block_forward.4} parent=35 // pred_fallthru
        _
      // Predicated region
      $region57: #{basic_block_forward.4} parent=35 // pred_check
        %p3490 = pneg %p167
      $region58: #{basic_block_forward.4} parent=35 // pred_check_branch
        %3492 = sbr.rel (%p3490) target = $region60
      $region59: #{basic_block_forward.4} parent=35 // pred_region
        _
      $region60: #{basic_block_forward.4} parent=35 // pred_fallthru
        _
    $region36: #{basic_block_forward.4} parent=5 // pred_fallthru
      _
    %p3493 = scmp.le.s32.totalorder 2, %s13
    // Predicated region
    $region61: #{basic_block_forward.4} parent=5 // pred_check
      %p3494 = pneg %p3493
    $region62: #{basic_block_forward.4} parent=5 // pred_check_branch
      %3496 = sbr.rel (%p3494) target = $region64
    $region63: #{basic_block_forward.4} parent=5 // pred_region
      %s3497 = ssub.s32 %s13, 2
      // Predicated region
      $region65: #{basic_block_forward.4} parent=63 // pred_check
        %p3498 = pneg %p131
      $region66: #{basic_block_forward.4} parent=63 // pred_check_branch
        %3500 = sbr.rel (%p3498) target = $region68
      $region67: #{basic_block_forward.4} parent=63 // pred_region
        %p3501 = scmp.lt.s32.totalorder %s19, 1
        %s3502 = scalar_select %p3501, %s19, 1
        %s3503 = smul.addr %s3502, 32
        %s3504 = smul.addr %s3503, 8
        %s3505 = scalar_lea.vmem %s4, %s3504
      $region68: #{basic_block_forward.4} parent=63 // pred_fallthru
        _
    $region64: #{basic_block_forward.4} parent=5 // pred_fallthru
      _
  $region6: #{basic_block_forward.4} parent=0 // loop_footer
    %s17 = sadd.s32 1, %s13
  $region7: #{basic_block_forward.4} parent=0 // loop_footer_branch
    %12 = sbr.rel target = $region3
  $region8: #{basic_block_forward.4} parent=0 // loop_exit
    _

</llo_original>
